<compile_context>
chip_gen: v6e
topology: v6e:2x2x1
jax: 0.10.0
libtpu: 0.0.40
codegen_flags: <defaults>
</compile_context>

<pallas_src>
import math

import jax
import jax.numpy as jnp
from jax.experimental import pallas as pl
from jax.experimental.pallas import tpu as pltpu


def _attention_kernel(q_ref, k_ref, v_ref, o_ref):
    # refs are (G, S, D) blocks: G heads of full attention per grid step.
    q = q_ref[...]                                   # (G, S, D) f32
    k = k_ref[...]
    v = v_ref[...]

    d = q.shape[-1]
    scale = 1.0 / math.sqrt(d)

    # Fold the scale into q, then cast matmul operands to bf16 (f32 acc).
    qs = (q * scale).astype(jnp.bfloat16)
    kb = k.astype(jnp.bfloat16)
    vb = v.astype(jnp.bfloat16)

    # Batched QK^T: contract K on its last dim, no transpose materialized.
    scores = jnp.einsum(
        "gqd,gkd->gqk", qs, kb, preferred_element_type=jnp.float32
    )                                                # (G, S, S) f32

    # Numerically-stable softmax.  Cast the unnormalized probabilities to bf16
    # once; the f32 exp result is dead immediately after (no duplicate f32 +
    # bf16 prob tiles live into the PV matmul).  Denominator accumulates in
    # f32 over the bf16 probs.
    m = jnp.max(scores, axis=-1, keepdims=True)
    pb = jnp.exp(scores - m).astype(jnp.bfloat16)    # (G, S, S) bf16
    denom = jnp.sum(pb, axis=-1, keepdims=True, dtype=jnp.float32)  # (G, S, 1)

    # PV with unnormalized probs, then normalize over (S, D) instead of (S, S).
    out = jnp.einsum(
        "gqk,gkd->gqd", pb, vb, preferred_element_type=jnp.float32
    )                                                # (G, S, D) f32
    out = out * pl.reciprocal(denom, approx=True)

    o_ref[...] = out.astype(o_ref.dtype)


def _pick_group(bh, group):
    """Largest divisor of bh that is <= group (never degenerates badly)."""
    g = max(1, min(group, bh))
    while bh % g != 0:
        g -= 1
    return g


def attention(query, key, value, *, group=32, vmem_limit_bytes=48 << 20):
    """query/key/value: (B, H, S, D) float32 -> (B, H, S, D) float32."""
    B, H, S, D = query.shape
    BH = B * H
    g = _pick_group(BH, group)           # heads per grid step, divides BH

    qf = query.reshape(BH, S, D)
    kf = key.reshape(BH, S, D)
    vf = value.reshape(BH, S, D)

    spec = pl.BlockSpec((g, S, D), lambda i: (i, 0, 0))

    itemsize = jnp.dtype(query.dtype).itemsize
    cost = pl.CostEstimate(
        flops=4 * BH * S * S * D,                 # QK^T + PV matmuls
        transcendentals=BH * S * S,               # exp
        bytes_accessed=4 * BH * S * D * itemsize, # Q, K, V read + O write
    )

    out = pl.pallas_call(
        _attention_kernel,
        out_shape=jax.ShapeDtypeStruct((BH, S, D), query.dtype),
        grid_spec=pltpu.PrefetchScalarGridSpec(
            num_scalar_prefetch=0,
            grid=(BH // g,),
            in_specs=[spec, spec, spec],
            out_specs=spec,
        ),
        compiler_params=pltpu.CompilerParams(
            dimension_semantics=("parallel",),
            vmem_limit_bytes=vmem_limit_bytes,
        ),
        cost_estimate=cost,
    )(qf, kf, vf)

    return out.reshape(B, H, S, D)


def attention_ref(query, key, value):
    d = query.shape[-1]
    scores = jnp.einsum("bhsd,bhtd->bhst", query, key) / math.sqrt(d)
    p = jax.nn.softmax(scores, axis=-1)
    return jnp.einsum("bhst,bhtd->bhsd", p, value)


if __name__ == "__main__":
    # Small shapes consistent with the module: seq=128, dim=64, shrunken heads.
    B, H, S, D = 1, 16, 128, 64
    k0, k1, k2 = jax.random.split(jax.random.PRNGKey(0), 3)
    query = jax.random.normal(k0, (B, H, S, D), dtype=jnp.float32)
    key = jax.random.normal(k1, (B, H, S, D), dtype=jnp.float32)
    value = jax.random.normal(k2, (B, H, S, D), dtype=jnp.float32)

    out = attention(query, key, value)
    out = jax.block_until_ready(out)

    ref = attention_ref(query, key, value)
    assert out.shape == (B, H, S, D)
    # bf16 matmul operands + bf16 probs + approx reciprocal -> loose tolerance
    # vs the f32 reference.
    assert jnp.allclose(out, ref, atol=5e-2, rtol=5e-2), "mismatch vs reference"

    print("KERNEL_OK")
</pallas_src>

<mosaic_0001>
module attributes {stable_mosaic.version = 11 : i64} {
  func.func @_attention_kernel(%arg0: i32, %arg1: memref<16x128x64xf32, #tpu.memory_space<vmem>>, %arg2: memref<16x128x64xf32, #tpu.memory_space<vmem>>, %arg3: memref<16x128x64xf32, #tpu.memory_space<vmem>>, %arg4: memref<16x128x64xf32, #tpu.memory_space<vmem>>) attributes {dimension_semantics = [#tpu.dimension_semantics<parallel>], iteration_bounds = array<i64: 1>, scalar_prefetch = 0 : i64, scratch_operands = 0 : i64, tpu.core_type = #tpu.core_type<tc>, window_params = [{transform_indices = @transform_0, window_bounds = array<i64: 16, 128, 64>}, {transform_indices = @transform_1, window_bounds = array<i64: 16, 128, 64>}, {transform_indices = @transform_2, window_bounds = array<i64: 16, 128, 64>}, {transform_indices = @transform_3, window_bounds = array<i64: 16, 128, 64>}]} {
    %c0 = arith.constant 0 : index
    %c0_0 = arith.constant 0 : index
    %c0_1 = arith.constant 0 : index
    %0 = vector.load %arg1[%c0, %c0_0, %c0_1] : memref<16x128x64xf32, #tpu.memory_space<vmem>>, vector<16x128x64xf32>
    %c0_2 = arith.constant 0 : index
    %c0_3 = arith.constant 0 : index
    %c0_4 = arith.constant 0 : index
    %1 = vector.load %arg2[%c0_2, %c0_3, %c0_4] : memref<16x128x64xf32, #tpu.memory_space<vmem>>, vector<16x128x64xf32>
    %c0_5 = arith.constant 0 : index
    %c0_6 = arith.constant 0 : index
    %c0_7 = arith.constant 0 : index
    %2 = vector.load %arg3[%c0_5, %c0_6, %c0_7] : memref<16x128x64xf32, #tpu.memory_space<vmem>>, vector<16x128x64xf32>
    %cst = arith.constant 1.250000e-01 : f32
    %3 = vector.broadcast %cst : f32 to vector<16x128x64xf32>
    %4 = arith.mulf %0, %3 : vector<16x128x64xf32>
    %5 = arith.truncf %4 : vector<16x128x64xf32> to vector<16x128x64xbf16>
    %6 = arith.truncf %1 : vector<16x128x64xf32> to vector<16x128x64xbf16>
    %7 = arith.truncf %2 : vector<16x128x64xf32> to vector<16x128x64xbf16>
    "tpu.trace_start"() <{level = 10 : i32, message = "gqd,gkd->gqk"}> : () -> ()
    %cst_8 = arith.constant dense<0.000000e+00> : vector<16x128x128xf32>
    %8 = tpu.matmul %5, %6, %cst_8 {dimension_numbers = #tpu.dot_dimension_numbers<[2], [2], [1], [1], [0, 0, 0, 1, 1, 1], [0], [0]>} : vector<16x128x64xbf16>, vector<16x128x64xbf16>, vector<16x128x128xf32> -> vector<16x128x128xf32>
    "tpu.trace_stop"() : () -> ()
    %cst_9 = arith.constant dense<0xFF800000> : vector<16x128xf32>
    %9 = vector.multi_reduction <maximumf>, %8, %cst_9 [2] : vector<16x128x128xf32> to vector<16x128xf32>
    %10 = vector.shape_cast %9 : vector<16x128xf32> to vector<16x128x1xf32>
    %11 = vector.broadcast %10 : vector<16x128x1xf32> to vector<16x128x128xf32>
    %12 = arith.subf %8, %11 : vector<16x128x128xf32>
    %13 = math.exp %12 : vector<16x128x128xf32>
    %14 = arith.truncf %13 : vector<16x128x128xf32> to vector<16x128x128xbf16>
    %15 = arith.extf %14 : vector<16x128x128xbf16> to vector<16x128x128xf32>
    %cst_10 = arith.constant dense<0.000000e+00> : vector<16x128xf32>
    %16 = vector.multi_reduction <add>, %15, %cst_10 [2] : vector<16x128x128xf32> to vector<16x128xf32>
    %17 = vector.shape_cast %16 : vector<16x128xf32> to vector<16x128x1xf32>
    "tpu.trace_start"() <{level = 10 : i32, message = "gqk,gkd->gqd"}> : () -> ()
    %cst_11 = arith.constant dense<0.000000e+00> : vector<16x128x64xf32>
    %18 = tpu.matmul %14, %7, %cst_11 {dimension_numbers = #tpu.dot_dimension_numbers<[2], [1], [1], [2], [0, 0, 0, 1, 1, 2], [0], [0]>} : vector<16x128x128xbf16>, vector<16x128x64xbf16>, vector<16x128x64xf32> -> vector<16x128x64xf32>
    "tpu.trace_stop"() : () -> ()
    %19 = tpu.reciprocal %17 {approx = true} : vector<16x128x1xf32> -> vector<16x128x1xf32>
    %20 = vector.broadcast %19 : vector<16x128x1xf32> to vector<16x128x64xf32>
    %21 = arith.mulf %18, %20 : vector<16x128x64xf32>
    %c0_12 = arith.constant 0 : index
    %c0_13 = arith.constant 0 : index
    %c0_14 = arith.constant 0 : index
    %22 = vector.load %arg4[%c0_12, %c0_13, %c0_14] : memref<16x128x64xf32, #tpu.memory_space<vmem>>, vector<16x128x64xf32>
    tpu.vector_store %arg4[%c0_12, %c0_13, %c0_14], %21 {strides = array<i32>} : memref<16x128x64xf32, #tpu.memory_space<vmem>>, vector<16x128x64xf32>,
    return
  }
  func.func @transform_0(%arg0: i32) -> (i32, i32, i32) {
    %c0_i32 = arith.constant 0 : i32
    %c0_i32_0 = arith.constant 0 : i32
    %c0_i32_1 = arith.constant 0 : i32
    return %arg0, %c0_i32, %c0_i32_0 : i32, i32, i32
  }
  func.func @transform_1(%arg0: i32) -> (i32, i32, i32) {
    %c0_i32 = arith.constant 0 : i32
    %c0_i32_0 = arith.constant 0 : i32
    %c0_i32_1 = arith.constant 0 : i32
    return %arg0, %c0_i32, %c0_i32_0 : i32, i32, i32
  }
  func.func @transform_2(%arg0: i32) -> (i32, i32, i32) {
    %c0_i32 = arith.constant 0 : i32
    %c0_i32_0 = arith.constant 0 : i32
    %c0_i32_1 = arith.constant 0 : i32
    return %arg0, %c0_i32, %c0_i32_0 : i32, i32, i32
  }
  func.func @transform_3(%arg0: i32) -> (i32, i32, i32) {
    %c0_i32 = arith.constant 0 : i32
    %c0_i32_0 = arith.constant 0 : i32
    %c0_i32_1 = arith.constant 0 : i32
    return %arg0, %c0_i32, %c0_i32_0 : i32, i32, i32
  }
}

</mosaic_0001>

<llo_original>
// kernel: tpu_custom_call.1
$region0: #{tpu_custom_call.1}
  #allocation0 [shape = 'u32[]', space=smem, size = 0x4, offset = 0x4, fixed_abs, tag = 'smem constant byte address 0x4 - core index']
  #allocation1 [shape = 'u32[144,128]{1,0:T(1,128)}', space=vmem, size = 0x12000, scoped, tag = 'internal scratch']
  %s0 = inlined_call_operand.vmem [shape: f32[16,128,64], index: 0, kind: input, shape index: {}]
  %s1 = inlined_call_operand.vmem [shape: f32[16,128,64], index: 1, kind: input, shape index: {}]
  %s2 = inlined_call_operand.vmem [shape: f32[16,128,64], index: 2, kind: input, shape index: {}]
  %s3 = inlined_call_operand.vmem [shape: f32[16,128,64], index: 3, kind: output, shape index: {}]
  %s4 = sld [smem:[#allocation0]]
  $region22: #{tpu_custom_call.1} parent=0
    _
  %s6 = ssub.s32 1, %s4
  %s7 = scalar_select 0, %s6, %s4
  // Predicated region
  $region2: #{tpu_custom_call.1} parent=0 // pred_check
    _
  $region3: #{tpu_custom_call.1} parent=0 // pred_check_branch
    %9 = sbr.rel (0) target = $region5
  $region4: #{tpu_custom_call.1} parent=0 // pred_region
    _
  $region5: #{tpu_custom_call.1} parent=0 // pred_fallthru
    _
  // Predicated region
  $region6: #{tpu_custom_call.1} parent=0 // pred_check
    _
  $region7: #{tpu_custom_call.1} parent=0 // pred_check_branch
    %11 = sbr.rel (0) target = $region9
  $region8: #{tpu_custom_call.1} parent=0 // pred_region
    _
  $region9: #{tpu_custom_call.1} parent=0 // pred_fallthru
    _
  // Predicated region
  $region10: #{tpu_custom_call.1} parent=0 // pred_check
    _
  $region11: #{tpu_custom_call.1} parent=0 // pred_check_branch
    %13 = sbr.rel (0) target = $region13
  $region12: #{tpu_custom_call.1} parent=0 // pred_region
    _
  $region13: #{tpu_custom_call.1} parent=0 // pred_fallthru
    _
  %v15 = vld [vmem:[%s0] sm:$0xff]
  %v16 = vld [vmem:[%s0 + $0x8] sm:$0xff]
  %v17 = vld [vmem:[%s0 + $0x10] sm:$0xff]
  %v18 = vld [vmem:[%s0 + $0x18] sm:$0xff]
  %v19 = vld [vmem:[%s0 + $0x20] sm:$0xff]
  %v20 = vld [vmem:[%s0 + $0x28] sm:$0xff]
  %v21 = vld [vmem:[%s0 + $0x30] sm:$0xff]
  %v22 = vld [vmem:[%s0 + $0x38] sm:$0xff]
  %v23 = vld [vmem:[%s0 + $0x40] sm:$0xff]
  %v24 = vld [vmem:[%s0 + $0x48] sm:$0xff]
  %v25 = vld [vmem:[%s0 + $0x50] sm:$0xff]
  %v26 = vld [vmem:[%s0 + $0x58] sm:$0xff]
  %v27 = vld [vmem:[%s0 + $0x60] sm:$0xff]
  %v28 = vld [vmem:[%s0 + $0x68] sm:$0xff]
  %v29 = vld [vmem:[%s0 + $0x70] sm:$0xff]
  %v30 = vld [vmem:[%s0 + $0x78] sm:$0xff]
  %v31 = vld [vmem:[%s0 + $0x80] sm:$0xff]
  %v32 = vld [vmem:[%s0 + $0x88] sm:$0xff]
  %v33 = vld [vmem:[%s0 + $0x90] sm:$0xff]
  %v34 = vld [vmem:[%s0 + $0x98] sm:$0xff]
  %v35 = vld [vmem:[%s0 + $0xa0] sm:$0xff]
  %v36 = vld [vmem:[%s0 + $0xa8] sm:$0xff]
  %v37 = vld [vmem:[%s0 + $0xb0] sm:$0xff]
  %v38 = vld [vmem:[%s0 + $0xb8] sm:$0xff]
  %v39 = vld [vmem:[%s0 + $0xc0] sm:$0xff]
  %v40 = vld [vmem:[%s0 + $0xc8] sm:$0xff]
  %v41 = vld [vmem:[%s0 + $0xd0] sm:$0xff]
  %v42 = vld [vmem:[%s0 + $0xd8] sm:$0xff]
  %v43 = vld [vmem:[%s0 + $0xe0] sm:$0xff]
  %v44 = vld [vmem:[%s0 + $0xe8] sm:$0xff]
  %v45 = vld [vmem:[%s0 + $0xf0] sm:$0xff]
  %v46 = vld [vmem:[%s0 + $0xf8] sm:$0xff]
  %v47 = vld [vmem:[%s0 + $0x100] sm:$0xff]
  %v48 = vld [vmem:[%s0 + $0x108] sm:$0xff]
  %v49 = vld [vmem:[%s0 + $0x110] sm:$0xff]
  %v50 = vld [vmem:[%s0 + $0x118] sm:$0xff]
  %v51 = vld [vmem:[%s0 + $0x120] sm:$0xff]
  %v52 = vld [vmem:[%s0 + $0x128] sm:$0xff]
  %v53 = vld [vmem:[%s0 + $0x130] sm:$0xff]
  %v54 = vld [vmem:[%s0 + $0x138] sm:$0xff]
  %v55 = vld [vmem:[%s0 + $0x140] sm:$0xff]
  %v56 = vld [vmem:[%s0 + $0x148] sm:$0xff]
  %v57 = vld [vmem:[%s0 + $0x150] sm:$0xff]
  %v58 = vld [vmem:[%s0 + $0x158] sm:$0xff]
  %v59 = vld [vmem:[%s0 + $0x160] sm:$0xff]
  %v60 = vld [vmem:[%s0 + $0x168] sm:$0xff]
  %v61 = vld [vmem:[%s0 + $0x170] sm:$0xff]
  %v62 = vld [vmem:[%s0 + $0x178] sm:$0xff]
  %v63 = vld [vmem:[%s0 + $0x180] sm:$0xff]
  %v64 = vld [vmem:[%s0 + $0x188] sm:$0xff]
  %v65 = vld [vmem:[%s0 + $0x190] sm:$0xff]
  %v66 = vld [vmem:[%s0 + $0x198] sm:$0xff]
  %v67 = vld [vmem:[%s0 + $0x1a0] sm:$0xff]
  %v68 = vld [vmem:[%s0 + $0x1a8] sm:$0xff]
  %v69 = vld [vmem:[%s0 + $0x1b0] sm:$0xff]
  %v70 = vld [vmem:[%s0 + $0x1b8] sm:$0xff]
  %v71 = vld [vmem:[%s0 + $0x1c0] sm:$0xff]
  %v72 = vld [vmem:[%s0 + $0x1c8] sm:$0xff]
  %v73 = vld [vmem:[%s0 + $0x1d0] sm:$0xff]
  %v74 = vld [vmem:[%s0 + $0x1d8] sm:$0xff]
  %v75 = vld [vmem:[%s0 + $0x1e0] sm:$0xff]
  %v76 = vld [vmem:[%s0 + $0x1e8] sm:$0xff]
  %v77 = vld [vmem:[%s0 + $0x1f0] sm:$0xff]
  %v78 = vld [vmem:[%s0 + $0x1f8] sm:$0xff]
  %v79 = vld [vmem:[%s0 + $0x200] sm:$0xff]
  %v80 = vld [vmem:[%s0 + $0x208] sm:$0xff]
  %v81 = vld [vmem:[%s0 + $0x210] sm:$0xff]
  %v82 = vld [vmem:[%s0 + $0x218] sm:$0xff]
  %v83 = vld [vmem:[%s0 + $0x220] sm:$0xff]
  %v84 = vld [vmem:[%s0 + $0x228] sm:$0xff]
  %v85 = vld [vmem:[%s0 + $0x230] sm:$0xff]
  %v86 = vld [vmem:[%s0 + $0x238] sm:$0xff]
  %v87 = vld [vmem:[%s0 + $0x240] sm:$0xff]
  %v88 = vld [vmem:[%s0 + $0x248] sm:$0xff]
  %v89 = vld [vmem:[%s0 + $0x250] sm:$0xff]
  %v90 = vld [vmem:[%s0 + $0x258] sm:$0xff]
  %v91 = vld [vmem:[%s0 + $0x260] sm:$0xff]
  %v92 = vld [vmem:[%s0 + $0x268] sm:$0xff]
  %v93 = vld [vmem:[%s0 + $0x270] sm:$0xff]
  %v94 = vld [vmem:[%s0 + $0x278] sm:$0xff]
  %v95 = vld [vmem:[%s0 + $0x280] sm:$0xff]
  %v96 = vld [vmem:[%s0 + $0x288] sm:$0xff]
  %v97 = vld [vmem:[%s0 + $0x290] sm:$0xff]
  %v98 = vld [vmem:[%s0 + $0x298] sm:$0xff]
  %v99 = vld [vmem:[%s0 + $0x2a0] sm:$0xff]
  %v100 = vld [vmem:[%s0 + $0x2a8] sm:$0xff]
  %v101 = vld [vmem:[%s0 + $0x2b0] sm:$0xff]
  %v102 = vld [vmem:[%s0 + $0x2b8] sm:$0xff]
  %v103 = vld [vmem:[%s0 + $0x2c0] sm:$0xff]
  %v104 = vld [vmem:[%s0 + $0x2c8] sm:$0xff]
  %v105 = vld [vmem:[%s0 + $0x2d0] sm:$0xff]
  %v106 = vld [vmem:[%s0 + $0x2d8] sm:$0xff]
  %v107 = vld [vmem:[%s0 + $0x2e0] sm:$0xff]
  %v108 = vld [vmem:[%s0 + $0x2e8] sm:$0xff]
  %v109 = vld [vmem:[%s0 + $0x2f0] sm:$0xff]
  %v110 = vld [vmem:[%s0 + $0x2f8] sm:$0xff]
  %v111 = vld [vmem:[%s0 + $0x300] sm:$0xff]
  %v112 = vld [vmem:[%s0 + $0x308] sm:$0xff]
  %v113 = vld [vmem:[%s0 + $0x310] sm:$0xff]
  %v114 = vld [vmem:[%s0 + $0x318] sm:$0xff]
  %v115 = vld [vmem:[%s0 + $0x320] sm:$0xff]
  %v116 = vld [vmem:[%s0 + $0x328] sm:$0xff]
  %v117 = vld [vmem:[%s0 + $0x330] sm:$0xff]
  %v118 = vld [vmem:[%s0 + $0x338] sm:$0xff]
  %v119 = vld [vmem:[%s0 + $0x340] sm:$0xff]
  %v120 = vld [vmem:[%s0 + $0x348] sm:$0xff]
  %v121 = vld [vmem:[%s0 + $0x350] sm:$0xff]
  %v122 = vld [vmem:[%s0 + $0x358] sm:$0xff]
  %v123 = vld [vmem:[%s0 + $0x360] sm:$0xff]
  %v124 = vld [vmem:[%s0 + $0x368] sm:$0xff]
  %v125 = vld [vmem:[%s0 + $0x370] sm:$0xff]
  %v126 = vld [vmem:[%s0 + $0x378] sm:$0xff]
  %v127 = vld [vmem:[%s0 + $0x380] sm:$0xff]
  %v128 = vld [vmem:[%s0 + $0x388] sm:$0xff]
  %v129 = vld [vmem:[%s0 + $0x390] sm:$0xff]
  %v130 = vld [vmem:[%s0 + $0x398] sm:$0xff]
  %v131 = vld [vmem:[%s0 + $0x3a0] sm:$0xff]
  %v132 = vld [vmem:[%s0 + $0x3a8] sm:$0xff]
  %v133 = vld [vmem:[%s0 + $0x3b0] sm:$0xff]
  %v134 = vld [vmem:[%s0 + $0x3b8] sm:$0xff]
  %v135 = vld [vmem:[%s0 + $0x3c0] sm:$0xff]
  %v136 = vld [vmem:[%s0 + $0x3c8] sm:$0xff]
  %v137 = vld [vmem:[%s0 + $0x3d0] sm:$0xff]
  %v138 = vld [vmem:[%s0 + $0x3d8] sm:$0xff]
  %v139 = vld [vmem:[%s0 + $0x3e0] sm:$0xff]
  %v140 = vld [vmem:[%s0 + $0x3e8] sm:$0xff]
  %v141 = vld [vmem:[%s0 + $0x3f0] sm:$0xff]
  %v142 = vld [vmem:[%s0 + $0x3f8] sm:$0xff]
  %v143 = vld [vmem:[%s0 + $0x400] sm:$0xff]
  %v144 = vld [vmem:[%s0 + $0x408] sm:$0xff]
  %v145 = vld [vmem:[%s0 + $0x410] sm:$0xff]
  %v146 = vld [vmem:[%s0 + $0x418] sm:$0xff]
  %v147 = vld [vmem:[%s0 + $0x420] sm:$0xff]
  %v148 = vld [vmem:[%s0 + $0x428] sm:$0xff]
  %v149 = vld [vmem:[%s0 + $0x430] sm:$0xff]
  %v150 = vld [vmem:[%s0 + $0x438] sm:$0xff]
  %v151 = vld [vmem:[%s0 + $0x440] sm:$0xff]
  %v152 = vld [vmem:[%s0 + $0x448] sm:$0xff]
  %v153 = vld [vmem:[%s0 + $0x450] sm:$0xff]
  %v154 = vld [vmem:[%s0 + $0x458] sm:$0xff]
  %v155 = vld [vmem:[%s0 + $0x460] sm:$0xff]
  %v156 = vld [vmem:[%s0 + $0x468] sm:$0xff]
  %v157 = vld [vmem:[%s0 + $0x470] sm:$0xff]
  %v158 = vld [vmem:[%s0 + $0x478] sm:$0xff]
  %v159 = vld [vmem:[%s0 + $0x480] sm:$0xff]
  %v160 = vld [vmem:[%s0 + $0x488] sm:$0xff]
  %v161 = vld [vmem:[%s0 + $0x490] sm:$0xff]
  %v162 = vld [vmem:[%s0 + $0x498] sm:$0xff]
  %v163 = vld [vmem:[%s0 + $0x4a0] sm:$0xff]
  %v164 = vld [vmem:[%s0 + $0x4a8] sm:$0xff]
  %v165 = vld [vmem:[%s0 + $0x4b0] sm:$0xff]
  %v166 = vld [vmem:[%s0 + $0x4b8] sm:$0xff]
  %v167 = vld [vmem:[%s0 + $0x4c0] sm:$0xff]
  %v168 = vld [vmem:[%s0 + $0x4c8] sm:$0xff]
  %v169 = vld [vmem:[%s0 + $0x4d0] sm:$0xff]
  %v170 = vld [vmem:[%s0 + $0x4d8] sm:$0xff]
  %v171 = vld [vmem:[%s0 + $0x4e0] sm:$0xff]
  %v172 = vld [vmem:[%s0 + $0x4e8] sm:$0xff]
  %v173 = vld [vmem:[%s0 + $0x4f0] sm:$0xff]
  %v174 = vld [vmem:[%s0 + $0x4f8] sm:$0xff]
  %v175 = vld [vmem:[%s0 + $0x500] sm:$0xff]
  %v176 = vld [vmem:[%s0 + $0x508] sm:$0xff]
  %v177 = vld [vmem:[%s0 + $0x510] sm:$0xff]
  %v178 = vld [vmem:[%s0 + $0x518] sm:$0xff]
  %v179 = vld [vmem:[%s0 + $0x520] sm:$0xff]
  %v180 = vld [vmem:[%s0 + $0x528] sm:$0xff]
  %v181 = vld [vmem:[%s0 + $0x530] sm:$0xff]
  %v182 = vld [vmem:[%s0 + $0x538] sm:$0xff]
  %v183 = vld [vmem:[%s0 + $0x540] sm:$0xff]
  %v184 = vld [vmem:[%s0 + $0x548] sm:$0xff]
  %v185 = vld [vmem:[%s0 + $0x550] sm:$0xff]
  %v186 = vld [vmem:[%s0 + $0x558] sm:$0xff]
  %v187 = vld [vmem:[%s0 + $0x560] sm:$0xff]
  %v188 = vld [vmem:[%s0 + $0x568] sm:$0xff]
  %v189 = vld [vmem:[%s0 + $0x570] sm:$0xff]
  %v190 = vld [vmem:[%s0 + $0x578] sm:$0xff]
  %v191 = vld [vmem:[%s0 + $0x580] sm:$0xff]
  %v192 = vld [vmem:[%s0 + $0x588] sm:$0xff]
  %v193 = vld [vmem:[%s0 + $0x590] sm:$0xff]
  %v194 = vld [vmem:[%s0 + $0x598] sm:$0xff]
  %v195 = vld [vmem:[%s0 + $0x5a0] sm:$0xff]
  %v196 = vld [vmem:[%s0 + $0x5a8] sm:$0xff]
  %v197 = vld [vmem:[%s0 + $0x5b0] sm:$0xff]
  %v198 = vld [vmem:[%s0 + $0x5b8] sm:$0xff]
  %v199 = vld [vmem:[%s0 + $0x5c0] sm:$0xff]
  %v200 = vld [vmem:[%s0 + $0x5c8] sm:$0xff]
  %v201 = vld [vmem:[%s0 + $0x5d0] sm:$0xff]
  %v202 = vld [vmem:[%s0 + $0x5d8] sm:$0xff]
  %v203 = vld [vmem:[%s0 + $0x5e0] sm:$0xff]
  %v204 = vld [vmem:[%s0 + $0x5e8] sm:$0xff]
  %v205 = vld [vmem:[%s0 + $0x5f0] sm:$0xff]
  %v206 = vld [vmem:[%s0 + $0x5f8] sm:$0xff]
  %v207 = vld [vmem:[%s0 + $0x600] sm:$0xff]
  %v208 = vld [vmem:[%s0 + $0x608] sm:$0xff]
  %v209 = vld [vmem:[%s0 + $0x610] sm:$0xff]
  %v210 = vld [vmem:[%s0 + $0x618] sm:$0xff]
  %v211 = vld [vmem:[%s0 + $0x620] sm:$0xff]
  %v212 = vld [vmem:[%s0 + $0x628] sm:$0xff]
  %v213 = vld [vmem:[%s0 + $0x630] sm:$0xff]
  %v214 = vld [vmem:[%s0 + $0x638] sm:$0xff]
  %v215 = vld [vmem:[%s0 + $0x640] sm:$0xff]
  %v216 = vld [vmem:[%s0 + $0x648] sm:$0xff]
  %v217 = vld [vmem:[%s0 + $0x650] sm:$0xff]
  %v218 = vld [vmem:[%s0 + $0x658] sm:$0xff]
  %v219 = vld [vmem:[%s0 + $0x660] sm:$0xff]
  %v220 = vld [vmem:[%s0 + $0x668] sm:$0xff]
  %v221 = vld [vmem:[%s0 + $0x670] sm:$0xff]
  %v222 = vld [vmem:[%s0 + $0x678] sm:$0xff]
  %v223 = vld [vmem:[%s0 + $0x680] sm:$0xff]
  %v224 = vld [vmem:[%s0 + $0x688] sm:$0xff]
  %v225 = vld [vmem:[%s0 + $0x690] sm:$0xff]
  %v226 = vld [vmem:[%s0 + $0x698] sm:$0xff]
  %v227 = vld [vmem:[%s0 + $0x6a0] sm:$0xff]
  %v228 = vld [vmem:[%s0 + $0x6a8] sm:$0xff]
  %v229 = vld [vmem:[%s0 + $0x6b0] sm:$0xff]
  %v230 = vld [vmem:[%s0 + $0x6b8] sm:$0xff]
  %v231 = vld [vmem:[%s0 + $0x6c0] sm:$0xff]
  %v232 = vld [vmem:[%s0 + $0x6c8] sm:$0xff]
  %v233 = vld [vmem:[%s0 + $0x6d0] sm:$0xff]
  %v234 = vld [vmem:[%s0 + $0x6d8] sm:$0xff]
  %v235 = vld [vmem:[%s0 + $0x6e0] sm:$0xff]
  %v236 = vld [vmem:[%s0 + $0x6e8] sm:$0xff]
  %v237 = vld [vmem:[%s0 + $0x6f0] sm:$0xff]
  %v238 = vld [vmem:[%s0 + $0x6f8] sm:$0xff]
  %v239 = vld [vmem:[%s0 + $0x700] sm:$0xff]
  %v240 = vld [vmem:[%s0 + $0x708] sm:$0xff]
  %v241 = vld [vmem:[%s0 + $0x710] sm:$0xff]
  %v242 = vld [vmem:[%s0 + $0x718] sm:$0xff]
  %v243 = vld [vmem:[%s0 + $0x720] sm:$0xff]
  %v244 = vld [vmem:[%s0 + $0x728] sm:$0xff]
  %v245 = vld [vmem:[%s0 + $0x730] sm:$0xff]
  %v246 = vld [vmem:[%s0 + $0x738] sm:$0xff]
  %v247 = vld [vmem:[%s0 + $0x740] sm:$0xff]
  %v248 = vld [vmem:[%s0 + $0x748] sm:$0xff]
  %v249 = vld [vmem:[%s0 + $0x750] sm:$0xff]
  %v250 = vld [vmem:[%s0 + $0x758] sm:$0xff]
  %v251 = vld [vmem:[%s0 + $0x760] sm:$0xff]
  %v252 = vld [vmem:[%s0 + $0x768] sm:$0xff]
  %v253 = vld [vmem:[%s0 + $0x770] sm:$0xff]
  %v254 = vld [vmem:[%s0 + $0x778] sm:$0xff]
  %v255 = vld [vmem:[%s0 + $0x780] sm:$0xff]
  %v256 = vld [vmem:[%s0 + $0x788] sm:$0xff]
  %v257 = vld [vmem:[%s0 + $0x790] sm:$0xff]
  %v258 = vld [vmem:[%s0 + $0x798] sm:$0xff]
  %v259 = vld [vmem:[%s0 + $0x7a0] sm:$0xff]
  %v260 = vld [vmem:[%s0 + $0x7a8] sm:$0xff]
  %v261 = vld [vmem:[%s0 + $0x7b0] sm:$0xff]
  %v262 = vld [vmem:[%s0 + $0x7b8] sm:$0xff]
  %v263 = vld [vmem:[%s0 + $0x7c0] sm:$0xff]
  %v264 = vld [vmem:[%s0 + $0x7c8] sm:$0xff]
  %v265 = vld [vmem:[%s0 + $0x7d0] sm:$0xff]
  %v266 = vld [vmem:[%s0 + $0x7d8] sm:$0xff]
  %v267 = vld [vmem:[%s0 + $0x7e0] sm:$0xff]
  %v268 = vld [vmem:[%s0 + $0x7e8] sm:$0xff]
  %v269 = vld [vmem:[%s0 + $0x7f0] sm:$0xff]
  %v270 = vld [vmem:[%s0 + $0x7f8] sm:$0xff]
  %v271 = vld [vmem:[%s1] sm:$0xff]
  %v272 = vld [vmem:[%s1 + $0x8] sm:$0xff]
  %v273 = vld [vmem:[%s1 + $0x10] sm:$0xff]
  %v274 = vld [vmem:[%s1 + $0x18] sm:$0xff]
  %v275 = vld [vmem:[%s1 + $0x20] sm:$0xff]
  %v276 = vld [vmem:[%s1 + $0x28] sm:$0xff]
  %v277 = vld [vmem:[%s1 + $0x30] sm:$0xff]
  %v278 = vld [vmem:[%s1 + $0x38] sm:$0xff]
  %v279 = vld [vmem:[%s1 + $0x40] sm:$0xff]
  %v280 = vld [vmem:[%s1 + $0x48] sm:$0xff]
  %v281 = vld [vmem:[%s1 + $0x50] sm:$0xff]
  %v282 = vld [vmem:[%s1 + $0x58] sm:$0xff]
  %v283 = vld [vmem:[%s1 + $0x60] sm:$0xff]
  %v284 = vld [vmem:[%s1 + $0x68] sm:$0xff]
  %v285 = vld [vmem:[%s1 + $0x70] sm:$0xff]
  %v286 = vld [vmem:[%s1 + $0x78] sm:$0xff]
  %v287 = vld [vmem:[%s1 + $0x80] sm:$0xff]
  %v288 = vld [vmem:[%s1 + $0x88] sm:$0xff]
  %v289 = vld [vmem:[%s1 + $0x90] sm:$0xff]
  %v290 = vld [vmem:[%s1 + $0x98] sm:$0xff]
  %v291 = vld [vmem:[%s1 + $0xa0] sm:$0xff]
  %v292 = vld [vmem:[%s1 + $0xa8] sm:$0xff]
  %v293 = vld [vmem:[%s1 + $0xb0] sm:$0xff]
  %v294 = vld [vmem:[%s1 + $0xb8] sm:$0xff]
  %v295 = vld [vmem:[%s1 + $0xc0] sm:$0xff]
  %v296 = vld [vmem:[%s1 + $0xc8] sm:$0xff]
  %v297 = vld [vmem:[%s1 + $0xd0] sm:$0xff]
  %v298 = vld [vmem:[%s1 + $0xd8] sm:$0xff]
  %v299 = vld [vmem:[%s1 + $0xe0] sm:$0xff]
  %v300 = vld [vmem:[%s1 + $0xe8] sm:$0xff]
  %v301 = vld [vmem:[%s1 + $0xf0] sm:$0xff]
  %v302 = vld [vmem:[%s1 + $0xf8] sm:$0xff]
  %v303 = vld [vmem:[%s1 + $0x100] sm:$0xff]
  %v304 = vld [vmem:[%s1 + $0x108] sm:$0xff]
  %v305 = vld [vmem:[%s1 + $0x110] sm:$0xff]
  %v306 = vld [vmem:[%s1 + $0x118] sm:$0xff]
  %v307 = vld [vmem:[%s1 + $0x120] sm:$0xff]
  %v308 = vld [vmem:[%s1 + $0x128] sm:$0xff]
  %v309 = vld [vmem:[%s1 + $0x130] sm:$0xff]
  %v310 = vld [vmem:[%s1 + $0x138] sm:$0xff]
  %v311 = vld [vmem:[%s1 + $0x140] sm:$0xff]
  %v312 = vld [vmem:[%s1 + $0x148] sm:$0xff]
  %v313 = vld [vmem:[%s1 + $0x150] sm:$0xff]
  %v314 = vld [vmem:[%s1 + $0x158] sm:$0xff]
  %v315 = vld [vmem:[%s1 + $0x160] sm:$0xff]
  %v316 = vld [vmem:[%s1 + $0x168] sm:$0xff]
  %v317 = vld [vmem:[%s1 + $0x170] sm:$0xff]
  %v318 = vld [vmem:[%s1 + $0x178] sm:$0xff]
  %v319 = vld [vmem:[%s1 + $0x180] sm:$0xff]
  %v320 = vld [vmem:[%s1 + $0x188] sm:$0xff]
  %v321 = vld [vmem:[%s1 + $0x190] sm:$0xff]
  %v322 = vld [vmem:[%s1 + $0x198] sm:$0xff]
  %v323 = vld [vmem:[%s1 + $0x1a0] sm:$0xff]
  %v324 = vld [vmem:[%s1 + $0x1a8] sm:$0xff]
  %v325 = vld [vmem:[%s1 + $0x1b0] sm:$0xff]
  %v326 = vld [vmem:[%s1 + $0x1b8] sm:$0xff]
  %v327 = vld [vmem:[%s1 + $0x1c0] sm:$0xff]
  %v328 = vld [vmem:[%s1 + $0x1c8] sm:$0xff]
  %v329 = vld [vmem:[%s1 + $0x1d0] sm:$0xff]
  %v330 = vld [vmem:[%s1 + $0x1d8] sm:$0xff]
  %v331 = vld [vmem:[%s1 + $0x1e0] sm:$0xff]
  %v332 = vld [vmem:[%s1 + $0x1e8] sm:$0xff]
  %v333 = vld [vmem:[%s1 + $0x1f0] sm:$0xff]
  %v334 = vld [vmem:[%s1 + $0x1f8] sm:$0xff]
  %v335 = vld [vmem:[%s1 + $0x200] sm:$0xff]
  %v336 = vld [vmem:[%s1 + $0x208] sm:$0xff]
  %v337 = vld [vmem:[%s1 + $0x210] sm:$0xff]
  %v338 = vld [vmem:[%s1 + $0x218] sm:$0xff]
  %v339 = vld [vmem:[%s1 + $0x220] sm:$0xff]
  %v340 = vld [vmem:[%s1 + $0x228] sm:$0xff]
  %v341 = vld [vmem:[%s1 + $0x230] sm:$0xff]
  %v342 = vld [vmem:[%s1 + $0x238] sm:$0xff]
  %v343 = vld [vmem:[%s1 + $0x240] sm:$0xff]
  %v344 = vld [vmem:[%s1 + $0x248] sm:$0xff]
  %v345 = vld [vmem:[%s1 + $0x250] sm:$0xff]
  %v346 = vld [vmem:[%s1 + $0x258] sm:$0xff]
  %v347 = vld [vmem:[%s1 + $0x260] sm:$0xff]
  %v348 = vld [vmem:[%s1 + $0x268] sm:$0xff]
  %v349 = vld [vmem:[%s1 + $0x270] sm:$0xff]
  %v350 = vld [vmem:[%s1 + $0x278] sm:$0xff]
  %v351 = vld [vmem:[%s1 + $0x280] sm:$0xff]
  %v352 = vld [vmem:[%s1 + $0x288] sm:$0xff]
  %v353 = vld [vmem:[%s1 + $0x290] sm:$0xff]
  %v354 = vld [vmem:[%s1 + $0x298] sm:$0xff]
  %v355 = vld [vmem:[%s1 + $0x2a0] sm:$0xff]
  %v356 = vld [vmem:[%s1 + $0x2a8] sm:$0xff]
  %v357 = vld [vmem:[%s1 + $0x2b0] sm:$0xff]
  %v358 = vld [vmem:[%s1 + $0x2b8] sm:$0xff]
  %v359 = vld [vmem:[%s1 + $0x2c0] sm:$0xff]
  %v360 = vld [vmem:[%s1 + $0x2c8] sm:$0xff]
  %v361 = vld [vmem:[%s1 + $0x2d0] sm:$0xff]
  %v362 = vld [vmem:[%s1 + $0x2d8] sm:$0xff]
  %v363 = vld [vmem:[%s1 + $0x2e0] sm:$0xff]
  %v364 = vld [vmem:[%s1 + $0x2e8] sm:$0xff]
  %v365 = vld [vmem:[%s1 + $0x2f0] sm:$0xff]
  %v366 = vld [vmem:[%s1 + $0x2f8] sm:$0xff]
  %v367 = vld [vmem:[%s1 + $0x300] sm:$0xff]
  %v368 = vld [vmem:[%s1 + $0x308] sm:$0xff]
  %v369 = vld [vmem:[%s1 + $0x310] sm:$0xff]
  %v370 = vld [vmem:[%s1 + $0x318] sm:$0xff]
  %v371 = vld [vmem:[%s1 + $0x320] sm:$0xff]
  %v372 = vld [vmem:[%s1 + $0x328] sm:$0xff]
  %v373 = vld [vmem:[%s1 + $0x330] sm:$0xff]
  %v374 = vld [vmem:[%s1 + $0x338] sm:$0xff]
  %v375 = vld [vmem:[%s1 + $0x340] sm:$0xff]
  %v376 = vld [vmem:[%s1 + $0x348] sm:$0xff]
  %v377 = vld [vmem:[%s1 + $0x350] sm:$0xff]
  %v378 = vld [vmem:[%s1 + $0x358] sm:$0xff]
  %v379 = vld [vmem:[%s1 + $0x360] sm:$0xff]
  %v380 = vld [vmem:[%s1 + $0x368] sm:$0xff]
  %v381 = vld [vmem:[%s1 + $0x370] sm:$0xff]
  %v382 = vld [vmem:[%s1 + $0x378] sm:$0xff]
  %v383 = vld [vmem:[%s1 + $0x380] sm:$0xff]
  %v384 = vld [vmem:[%s1 + $0x388] sm:$0xff]
  %v385 = vld [vmem:[%s1 + $0x390] sm:$0xff]
  %v386 = vld [vmem:[%s1 + $0x398] sm:$0xff]
  %v387 = vld [vmem:[%s1 + $0x3a0] sm:$0xff]
  %v388 = vld [vmem:[%s1 + $0x3a8] sm:$0xff]
  %v389 = vld [vmem:[%s1 + $0x3b0] sm:$0xff]
  %v390 = vld [vmem:[%s1 + $0x3b8] sm:$0xff]
  %v391 = vld [vmem:[%s1 + $0x3c0] sm:$0xff]
  %v392 = vld [vmem:[%s1 + $0x3c8] sm:$0xff]
  %v393 = vld [vmem:[%s1 + $0x3d0] sm:$0xff]
  %v394 = vld [vmem:[%s1 + $0x3d8] sm:$0xff]
  %v395 = vld [vmem:[%s1 + $0x3e0] sm:$0xff]
  %v396 = vld [vmem:[%s1 + $0x3e8] sm:$0xff]
  %v397 = vld [vmem:[%s1 + $0x3f0] sm:$0xff]
  %v398 = vld [vmem:[%s1 + $0x3f8] sm:$0xff]
  %v399 = vld [vmem:[%s1 + $0x400] sm:$0xff]
  %v400 = vld [vmem:[%s1 + $0x408] sm:$0xff]
  %v401 = vld [vmem:[%s1 + $0x410] sm:$0xff]
  %v402 = vld [vmem:[%s1 + $0x418] sm:$0xff]
  %v403 = vld [vmem:[%s1 + $0x420] sm:$0xff]
  %v404 = vld [vmem:[%s1 + $0x428] sm:$0xff]
  %v405 = vld [vmem:[%s1 + $0x430] sm:$0xff]
  %v406 = vld [vmem:[%s1 + $0x438] sm:$0xff]
  %v407 = vld [vmem:[%s1 + $0x440] sm:$0xff]
  %v408 = vld [vmem:[%s1 + $0x448] sm:$0xff]
  %v409 = vld [vmem:[%s1 + $0x450] sm:$0xff]
  %v410 = vld [vmem:[%s1 + $0x458] sm:$0xff]
  %v411 = vld [vmem:[%s1 + $0x460] sm:$0xff]
  %v412 = vld [vmem:[%s1 + $0x468] sm:$0xff]
  %v413 = vld [vmem:[%s1 + $0x470] sm:$0xff]
  %v414 = vld [vmem:[%s1 + $0x478] sm:$0xff]
  %v415 = vld [vmem:[%s1 + $0x480] sm:$0xff]
  %v416 = vld [vmem:[%s1 + $0x488] sm:$0xff]
  %v417 = vld [vmem:[%s1 + $0x490] sm:$0xff]
  %v418 = vld [vmem:[%s1 + $0x498] sm:$0xff]
  %v419 = vld [vmem:[%s1 + $0x4a0] sm:$0xff]
  %v420 = vld [vmem:[%s1 + $0x4a8] sm:$0xff]
  %v421 = vld [vmem:[%s1 + $0x4b0] sm:$0xff]
  %v422 = vld [vmem:[%s1 + $0x4b8] sm:$0xff]
  %v423 = vld [vmem:[%s1 + $0x4c0] sm:$0xff]
  %v424 = vld [vmem:[%s1 + $0x4c8] sm:$0xff]
  %v425 = vld [vmem:[%s1 + $0x4d0] sm:$0xff]
  %v426 = vld [vmem:[%s1 + $0x4d8] sm:$0xff]
  %v427 = vld [vmem:[%s1 + $0x4e0] sm:$0xff]
  %v428 = vld [vmem:[%s1 + $0x4e8] sm:$0xff]
  %v429 = vld [vmem:[%s1 + $0x4f0] sm:$0xff]
  %v430 = vld [vmem:[%s1 + $0x4f8] sm:$0xff]
  %v431 = vld [vmem:[%s1 + $0x500] sm:$0xff]
  %v432 = vld [vmem:[%s1 + $0x508] sm:$0xff]
  %v433 = vld [vmem:[%s1 + $0x510] sm:$0xff]
  %v434 = vld [vmem:[%s1 + $0x518] sm:$0xff]
  %v435 = vld [vmem:[%s1 + $0x520] sm:$0xff]
  %v436 = vld [vmem:[%s1 + $0x528] sm:$0xff]
  %v437 = vld [vmem:[%s1 + $0x530] sm:$0xff]
  %v438 = vld [vmem:[%s1 + $0x538] sm:$0xff]
  %v439 = vld [vmem:[%s1 + $0x540] sm:$0xff]
  %v440 = vld [vmem:[%s1 + $0x548] sm:$0xff]
  %v441 = vld [vmem:[%s1 + $0x550] sm:$0xff]
  %v442 = vld [vmem:[%s1 + $0x558] sm:$0xff]
  %v443 = vld [vmem:[%s1 + $0x560] sm:$0xff]
  %v444 = vld [vmem:[%s1 + $0x568] sm:$0xff]
  %v445 = vld [vmem:[%s1 + $0x570] sm:$0xff]
  %v446 = vld [vmem:[%s1 + $0x578] sm:$0xff]
  %v447 = vld [vmem:[%s1 + $0x580] sm:$0xff]
  %v448 = vld [vmem:[%s1 + $0x588] sm:$0xff]
  %v449 = vld [vmem:[%s1 + $0x590] sm:$0xff]
  %v450 = vld [vmem:[%s1 + $0x598] sm:$0xff]
  %v451 = vld [vmem:[%s1 + $0x5a0] sm:$0xff]
  %v452 = vld [vmem:[%s1 + $0x5a8] sm:$0xff]
  %v453 = vld [vmem:[%s1 + $0x5b0] sm:$0xff]
  %v454 = vld [vmem:[%s1 + $0x5b8] sm:$0xff]
  %v455 = vld [vmem:[%s1 + $0x5c0] sm:$0xff]
  %v456 = vld [vmem:[%s1 + $0x5c8] sm:$0xff]
  %v457 = vld [vmem:[%s1 + $0x5d0] sm:$0xff]
  %v458 = vld [vmem:[%s1 + $0x5d8] sm:$0xff]
  %v459 = vld [vmem:[%s1 + $0x5e0] sm:$0xff]
  %v460 = vld [vmem:[%s1 + $0x5e8] sm:$0xff]
  %v461 = vld [vmem:[%s1 + $0x5f0] sm:$0xff]
  %v462 = vld [vmem:[%s1 + $0x5f8] sm:$0xff]
  %v463 = vld [vmem:[%s1 + $0x600] sm:$0xff]
  %v464 = vld [vmem:[%s1 + $0x608] sm:$0xff]
  %v465 = vld [vmem:[%s1 + $0x610] sm:$0xff]
  %v466 = vld [vmem:[%s1 + $0x618] sm:$0xff]
  %v467 = vld [vmem:[%s1 + $0x620] sm:$0xff]
  %v468 = vld [vmem:[%s1 + $0x628] sm:$0xff]
  %v469 = vld [vmem:[%s1 + $0x630] sm:$0xff]
  %v470 = vld [vmem:[%s1 + $0x638] sm:$0xff]
  %v471 = vld [vmem:[%s1 + $0x640] sm:$0xff]
  %v472 = vld [vmem:[%s1 + $0x648] sm:$0xff]
  %v473 = vld [vmem:[%s1 + $0x650] sm:$0xff]
  %v474 = vld [vmem:[%s1 + $0x658] sm:$0xff]
  %v475 = vld [vmem:[%s1 + $0x660] sm:$0xff]
  %v476 = vld [vmem:[%s1 + $0x668] sm:$0xff]
  %v477 = vld [vmem:[%s1 + $0x670] sm:$0xff]
  %v478 = vld [vmem:[%s1 + $0x678] sm:$0xff]
  %v479 = vld [vmem:[%s1 + $0x680] sm:$0xff]
  %v480 = vld [vmem:[%s1 + $0x688] sm:$0xff]
  %v481 = vld [vmem:[%s1 + $0x690] sm:$0xff]
  %v482 = vld [vmem:[%s1 + $0x698] sm:$0xff]
  %v483 = vld [vmem:[%s1 + $0x6a0] sm:$0xff]
  %v484 = vld [vmem:[%s1 + $0x6a8] sm:$0xff]
  %v485 = vld [vmem:[%s1 + $0x6b0] sm:$0xff]
  %v486 = vld [vmem:[%s1 + $0x6b8] sm:$0xff]
  %v487 = vld [vmem:[%s1 + $0x6c0] sm:$0xff]
  %v488 = vld [vmem:[%s1 + $0x6c8] sm:$0xff]
  %v489 = vld [vmem:[%s1 + $0x6d0] sm:$0xff]
  %v490 = vld [vmem:[%s1 + $0x6d8] sm:$0xff]
  %v491 = vld [vmem:[%s1 + $0x6e0] sm:$0xff]
  %v492 = vld [vmem:[%s1 + $0x6e8] sm:$0xff]
  %v493 = vld [vmem:[%s1 + $0x6f0] sm:$0xff]
  %v494 = vld [vmem:[%s1 + $0x6f8] sm:$0xff]
  %v495 = vld [vmem:[%s1 + $0x700] sm:$0xff]
  %v496 = vld [vmem:[%s1 + $0x708] sm:$0xff]
  %v497 = vld [vmem:[%s1 + $0x710] sm:$0xff]
  %v498 = vld [vmem:[%s1 + $0x718] sm:$0xff]
  %v499 = vld [vmem:[%s1 + $0x720] sm:$0xff]
  %v500 = vld [vmem:[%s1 + $0x728] sm:$0xff]
  %v501 = vld [vmem:[%s1 + $0x730] sm:$0xff]
  %v502 = vld [vmem:[%s1 + $0x738] sm:$0xff]
  %v503 = vld [vmem:[%s1 + $0x740] sm:$0xff]
  %v504 = vld [vmem:[%s1 + $0x748] sm:$0xff]
  %v505 = vld [vmem:[%s1 + $0x750] sm:$0xff]
  %v506 = vld [vmem:[%s1 + $0x758] sm:$0xff]
  %v507 = vld [vmem:[%s1 + $0x760] sm:$0xff]
  %v508 = vld [vmem:[%s1 + $0x768] sm:$0xff]
  %v509 = vld [vmem:[%s1 + $0x770] sm:$0xff]
  %v510 = vld [vmem:[%s1 + $0x778] sm:$0xff]
  %v511 = vld [vmem:[%s1 + $0x780] sm:$0xff]
  %v512 = vld [vmem:[%s1 + $0x788] sm:$0xff]
  %v513 = vld [vmem:[%s1 + $0x790] sm:$0xff]
  %v514 = vld [vmem:[%s1 + $0x798] sm:$0xff]
  %v515 = vld [vmem:[%s1 + $0x7a0] sm:$0xff]
  %v516 = vld [vmem:[%s1 + $0x7a8] sm:$0xff]
  %v517 = vld [vmem:[%s1 + $0x7b0] sm:$0xff]
  %v518 = vld [vmem:[%s1 + $0x7b8] sm:$0xff]
  %v519 = vld [vmem:[%s1 + $0x7c0] sm:$0xff]
  %v520 = vld [vmem:[%s1 + $0x7c8] sm:$0xff]
  %v521 = vld [vmem:[%s1 + $0x7d0] sm:$0xff]
  %v522 = vld [vmem:[%s1 + $0x7d8] sm:$0xff]
  %v523 = vld [vmem:[%s1 + $0x7e0] sm:$0xff]
  %v524 = vld [vmem:[%s1 + $0x7e8] sm:$0xff]
  %v525 = vld [vmem:[%s1 + $0x7f0] sm:$0xff]
  %v526 = vld [vmem:[%s1 + $0x7f8] sm:$0xff]
  %v527 = vld [vmem:[%s2] sm:$0xff]
  %v528 = vld [vmem:[%s2 + $0x8] sm:$0xff]
  %v529 = vld [vmem:[%s2 + $0x10] sm:$0xff]
  %v530 = vld [vmem:[%s2 + $0x18] sm:$0xff]
  %v531 = vld [vmem:[%s2 + $0x20] sm:$0xff]
  %v532 = vld [vmem:[%s2 + $0x28] sm:$0xff]
  %v533 = vld [vmem:[%s2 + $0x30] sm:$0xff]
  %v534 = vld [vmem:[%s2 + $0x38] sm:$0xff]
  %v535 = vld [vmem:[%s2 + $0x40] sm:$0xff]
  %v536 = vld [vmem:[%s2 + $0x48] sm:$0xff]
  %v537 = vld [vmem:[%s2 + $0x50] sm:$0xff]
  %v538 = vld [vmem:[%s2 + $0x58] sm:$0xff]
  %v539 = vld [vmem:[%s2 + $0x60] sm:$0xff]
  %v540 = vld [vmem:[%s2 + $0x68] sm:$0xff]
  %v541 = vld [vmem:[%s2 + $0x70] sm:$0xff]
  %v542 = vld [vmem:[%s2 + $0x78] sm:$0xff]
  %v543 = vld [vmem:[%s2 + $0x80] sm:$0xff]
  %v544 = vld [vmem:[%s2 + $0x88] sm:$0xff]
  %v545 = vld [vmem:[%s2 + $0x90] sm:$0xff]
  %v546 = vld [vmem:[%s2 + $0x98] sm:$0xff]
  %v547 = vld [vmem:[%s2 + $0xa0] sm:$0xff]
  %v548 = vld [vmem:[%s2 + $0xa8] sm:$0xff]
  %v549 = vld [vmem:[%s2 + $0xb0] sm:$0xff]
  %v550 = vld [vmem:[%s2 + $0xb8] sm:$0xff]
  %v551 = vld [vmem:[%s2 + $0xc0] sm:$0xff]
  %v552 = vld [vmem:[%s2 + $0xc8] sm:$0xff]
  %v553 = vld [vmem:[%s2 + $0xd0] sm:$0xff]
  %v554 = vld [vmem:[%s2 + $0xd8] sm:$0xff]
  %v555 = vld [vmem:[%s2 + $0xe0] sm:$0xff]
  %v556 = vld [vmem:[%s2 + $0xe8] sm:$0xff]
  %v557 = vld [vmem:[%s2 + $0xf0] sm:$0xff]
  %v558 = vld [vmem:[%s2 + $0xf8] sm:$0xff]
  %v559 = vld [vmem:[%s2 + $0x100] sm:$0xff]
  %v560 = vld [vmem:[%s2 + $0x108] sm:$0xff]
  %v561 = vld [vmem:[%s2 + $0x110] sm:$0xff]
  %v562 = vld [vmem:[%s2 + $0x118] sm:$0xff]
  %v563 = vld [vmem:[%s2 + $0x120] sm:$0xff]
  %v564 = vld [vmem:[%s2 + $0x128] sm:$0xff]
  %v565 = vld [vmem:[%s2 + $0x130] sm:$0xff]
  %v566 = vld [vmem:[%s2 + $0x138] sm:$0xff]
  %v567 = vld [vmem:[%s2 + $0x140] sm:$0xff]
  %v568 = vld [vmem:[%s2 + $0x148] sm:$0xff]
  %v569 = vld [vmem:[%s2 + $0x150] sm:$0xff]
  %v570 = vld [vmem:[%s2 + $0x158] sm:$0xff]
  %v571 = vld [vmem:[%s2 + $0x160] sm:$0xff]
  %v572 = vld [vmem:[%s2 + $0x168] sm:$0xff]
  %v573 = vld [vmem:[%s2 + $0x170] sm:$0xff]
  %v574 = vld [vmem:[%s2 + $0x178] sm:$0xff]
  %v575 = vld [vmem:[%s2 + $0x180] sm:$0xff]
  %v576 = vld [vmem:[%s2 + $0x188] sm:$0xff]
  %v577 = vld [vmem:[%s2 + $0x190] sm:$0xff]
  %v578 = vld [vmem:[%s2 + $0x198] sm:$0xff]
  %v579 = vld [vmem:[%s2 + $0x1a0] sm:$0xff]
  %v580 = vld [vmem:[%s2 + $0x1a8] sm:$0xff]
  %v581 = vld [vmem:[%s2 + $0x1b0] sm:$0xff]
  %v582 = vld [vmem:[%s2 + $0x1b8] sm:$0xff]
  %v583 = vld [vmem:[%s2 + $0x1c0] sm:$0xff]
  %v584 = vld [vmem:[%s2 + $0x1c8] sm:$0xff]
  %v585 = vld [vmem:[%s2 + $0x1d0] sm:$0xff]
  %v586 = vld [vmem:[%s2 + $0x1d8] sm:$0xff]
  %v587 = vld [vmem:[%s2 + $0x1e0] sm:$0xff]
  %v588 = vld [vmem:[%s2 + $0x1e8] sm:$0xff]
  %v589 = vld [vmem:[%s2 + $0x1f0] sm:$0xff]
  %v590 = vld [vmem:[%s2 + $0x1f8] sm:$0xff]
  %v591 = vld [vmem:[%s2 + $0x200] sm:$0xff]
  %v592 = vld [vmem:[%s2 + $0x208] sm:$0xff]
  %v593 = vld [vmem:[%s2 + $0x210] sm:$0xff]
  %v594 = vld [vmem:[%s2 + $0x218] sm:$0xff]
  %v595 = vld [vmem:[%s2 + $0x220] sm:$0xff]
  %v596 = vld [vmem:[%s2 + $0x228] sm:$0xff]
  %v597 = vld [vmem:[%s2 + $0x230] sm:$0xff]
  %v598 = vld [vmem:[%s2 + $0x238] sm:$0xff]
  %v599 = vld [vmem:[%s2 + $0x240] sm:$0xff]
  %v600 = vld [vmem:[%s2 + $0x248] sm:$0xff]
  %v601 = vld [vmem:[%s2 + $0x250] sm:$0xff]
  %v602 = vld [vmem:[%s2 + $0x258] sm:$0xff]
  %v603 = vld [vmem:[%s2 + $0x260] sm:$0xff]
  %v604 = vld [vmem:[%s2 + $0x268] sm:$0xff]
  %v605 = vld [vmem:[%s2 + $0x270] sm:$0xff]
  %v606 = vld [vmem:[%s2 + $0x278] sm:$0xff]
  %v607 = vld [vmem:[%s2 + $0x280] sm:$0xff]
  %v608 = vld [vmem:[%s2 + $0x288] sm:$0xff]
  %v609 = vld [vmem:[%s2 + $0x290] sm:$0xff]
  %v610 = vld [vmem:[%s2 + $0x298] sm:$0xff]
  %v611 = vld [vmem:[%s2 + $0x2a0] sm:$0xff]
  %v612 = vld [vmem:[%s2 + $0x2a8] sm:$0xff]
  %v613 = vld [vmem:[%s2 + $0x2b0] sm:$0xff]
  %v614 = vld [vmem:[%s2 + $0x2b8] sm:$0xff]
  %v615 = vld [vmem:[%s2 + $0x2c0] sm:$0xff]
  %v616 = vld [vmem:[%s2 + $0x2c8] sm:$0xff]
  %v617 = vld [vmem:[%s2 + $0x2d0] sm:$0xff]
  %v618 = vld [vmem:[%s2 + $0x2d8] sm:$0xff]
  %v619 = vld [vmem:[%s2 + $0x2e0] sm:$0xff]
  %v620 = vld [vmem:[%s2 + $0x2e8] sm:$0xff]
  %v621 = vld [vmem:[%s2 + $0x2f0] sm:$0xff]
  %v622 = vld [vmem:[%s2 + $0x2f8] sm:$0xff]
  %v623 = vld [vmem:[%s2 + $0x300] sm:$0xff]
  %v624 = vld [vmem:[%s2 + $0x308] sm:$0xff]
  %v625 = vld [vmem:[%s2 + $0x310] sm:$0xff]
  %v626 = vld [vmem:[%s2 + $0x318] sm:$0xff]
  %v627 = vld [vmem:[%s2 + $0x320] sm:$0xff]
  %v628 = vld [vmem:[%s2 + $0x328] sm:$0xff]
  %v629 = vld [vmem:[%s2 + $0x330] sm:$0xff]
  %v630 = vld [vmem:[%s2 + $0x338] sm:$0xff]
  %v631 = vld [vmem:[%s2 + $0x340] sm:$0xff]
  %v632 = vld [vmem:[%s2 + $0x348] sm:$0xff]
  %v633 = vld [vmem:[%s2 + $0x350] sm:$0xff]
  %v634 = vld [vmem:[%s2 + $0x358] sm:$0xff]
  %v635 = vld [vmem:[%s2 + $0x360] sm:$0xff]
  %v636 = vld [vmem:[%s2 + $0x368] sm:$0xff]
  %v637 = vld [vmem:[%s2 + $0x370] sm:$0xff]
  %v638 = vld [vmem:[%s2 + $0x378] sm:$0xff]
  %v639 = vld [vmem:[%s2 + $0x380] sm:$0xff]
  %v640 = vld [vmem:[%s2 + $0x388] sm:$0xff]
  %v641 = vld [vmem:[%s2 + $0x390] sm:$0xff]
  %v642 = vld [vmem:[%s2 + $0x398] sm:$0xff]
  %v643 = vld [vmem:[%s2 + $0x3a0] sm:$0xff]
  %v644 = vld [vmem:[%s2 + $0x3a8] sm:$0xff]
  %v645 = vld [vmem:[%s2 + $0x3b0] sm:$0xff]
  %v646 = vld [vmem:[%s2 + $0x3b8] sm:$0xff]
  %v647 = vld [vmem:[%s2 + $0x3c0] sm:$0xff]
  %v648 = vld [vmem:[%s2 + $0x3c8] sm:$0xff]
  %v649 = vld [vmem:[%s2 + $0x3d0] sm:$0xff]
  %v650 = vld [vmem:[%s2 + $0x3d8] sm:$0xff]
  %v651 = vld [vmem:[%s2 + $0x3e0] sm:$0xff]
  %v652 = vld [vmem:[%s2 + $0x3e8] sm:$0xff]
  %v653 = vld [vmem:[%s2 + $0x3f0] sm:$0xff]
  %v654 = vld [vmem:[%s2 + $0x3f8] sm:$0xff]
  %v655 = vld [vmem:[%s2 + $0x400] sm:$0xff]
  %v656 = vld [vmem:[%s2 + $0x408] sm:$0xff]
  %v657 = vld [vmem:[%s2 + $0x410] sm:$0xff]
  %v658 = vld [vmem:[%s2 + $0x418] sm:$0xff]
  %v659 = vld [vmem:[%s2 + $0x420] sm:$0xff]
  %v660 = vld [vmem:[%s2 + $0x428] sm:$0xff]
  %v661 = vld [vmem:[%s2 + $0x430] sm:$0xff]
  %v662 = vld [vmem:[%s2 + $0x438] sm:$0xff]
  %v663 = vld [vmem:[%s2 + $0x440] sm:$0xff]
  %v664 = vld [vmem:[%s2 + $0x448] sm:$0xff]
  %v665 = vld [vmem:[%s2 + $0x450] sm:$0xff]
  %v666 = vld [vmem:[%s2 + $0x458] sm:$0xff]
  %v667 = vld [vmem:[%s2 + $0x460] sm:$0xff]
  %v668 = vld [vmem:[%s2 + $0x468] sm:$0xff]
  %v669 = vld [vmem:[%s2 + $0x470] sm:$0xff]
  %v670 = vld [vmem:[%s2 + $0x478] sm:$0xff]
  %v671 = vld [vmem:[%s2 + $0x480] sm:$0xff]
  %v672 = vld [vmem:[%s2 + $0x488] sm:$0xff]
  %v673 = vld [vmem:[%s2 + $0x490] sm:$0xff]
  %v674 = vld [vmem:[%s2 + $0x498] sm:$0xff]
  %v675 = vld [vmem:[%s2 + $0x4a0] sm:$0xff]
  %v676 = vld [vmem:[%s2 + $0x4a8] sm:$0xff]
  %v677 = vld [vmem:[%s2 + $0x4b0] sm:$0xff]
  %v678 = vld [vmem:[%s2 + $0x4b8] sm:$0xff]
  %v679 = vld [vmem:[%s2 + $0x4c0] sm:$0xff]
  %v680 = vld [vmem:[%s2 + $0x4c8] sm:$0xff]
  %v681 = vld [vmem:[%s2 + $0x4d0] sm:$0xff]
  %v682 = vld [vmem:[%s2 + $0x4d8] sm:$0xff]
  %v683 = vld [vmem:[%s2 + $0x4e0] sm:$0xff]
  %v684 = vld [vmem:[%s2 + $0x4e8] sm:$0xff]
  %v685 = vld [vmem:[%s2 + $0x4f0] sm:$0xff]
  %v686 = vld [vmem:[%s2 + $0x4f8] sm:$0xff]
  %v687 = vld [vmem:[%s2 + $0x500] sm:$0xff]
  %v688 = vld [vmem:[%s2 + $0x508] sm:$0xff]
  %v689 = vld [vmem:[%s2 + $0x510] sm:$0xff]
  %v690 = vld [vmem:[%s2 + $0x518] sm:$0xff]
  %v691 = vld [vmem:[%s2 + $0x520] sm:$0xff]
  %v692 = vld [vmem:[%s2 + $0x528] sm:$0xff]
  %v693 = vld [vmem:[%s2 + $0x530] sm:$0xff]
  %v694 = vld [vmem:[%s2 + $0x538] sm:$0xff]
  %v695 = vld [vmem:[%s2 + $0x540] sm:$0xff]
  %v696 = vld [vmem:[%s2 + $0x548] sm:$0xff]
  %v697 = vld [vmem:[%s2 + $0x550] sm:$0xff]
  %v698 = vld [vmem:[%s2 + $0x558] sm:$0xff]
  %v699 = vld [vmem:[%s2 + $0x560] sm:$0xff]
  %v700 = vld [vmem:[%s2 + $0x568] sm:$0xff]
  %v701 = vld [vmem:[%s2 + $0x570] sm:$0xff]
  %v702 = vld [vmem:[%s2 + $0x578] sm:$0xff]
  %v703 = vld [vmem:[%s2 + $0x580] sm:$0xff]
  %v704 = vld [vmem:[%s2 + $0x588] sm:$0xff]
  %v705 = vld [vmem:[%s2 + $0x590] sm:$0xff]
  %v706 = vld [vmem:[%s2 + $0x598] sm:$0xff]
  %v707 = vld [vmem:[%s2 + $0x5a0] sm:$0xff]
  %v708 = vld [vmem:[%s2 + $0x5a8] sm:$0xff]
  %v709 = vld [vmem:[%s2 + $0x5b0] sm:$0xff]
  %v710 = vld [vmem:[%s2 + $0x5b8] sm:$0xff]
  %v711 = vld [vmem:[%s2 + $0x5c0] sm:$0xff]
  %v712 = vld [vmem:[%s2 + $0x5c8] sm:$0xff]
  %v713 = vld [vmem:[%s2 + $0x5d0] sm:$0xff]
  %v714 = vld [vmem:[%s2 + $0x5d8] sm:$0xff]
  %v715 = vld [vmem:[%s2 + $0x5e0] sm:$0xff]
  %v716 = vld [vmem:[%s2 + $0x5e8] sm:$0xff]
  %v717 = vld [vmem:[%s2 + $0x5f0] sm:$0xff]
  %v718 = vld [vmem:[%s2 + $0x5f8] sm:$0xff]
  %v719 = vld [vmem:[%s2 + $0x600] sm:$0xff]
  %v720 = vld [vmem:[%s2 + $0x608] sm:$0xff]
  %v721 = vld [vmem:[%s2 + $0x610] sm:$0xff]
  %v722 = vld [vmem:[%s2 + $0x618] sm:$0xff]
  %v723 = vld [vmem:[%s2 + $0x620] sm:$0xff]
  %v724 = vld [vmem:[%s2 + $0x628] sm:$0xff]
  %v725 = vld [vmem:[%s2 + $0x630] sm:$0xff]
  %v726 = vld [vmem:[%s2 + $0x638] sm:$0xff]
  %v727 = vld [vmem:[%s2 + $0x640] sm:$0xff]
  %v728 = vld [vmem:[%s2 + $0x648] sm:$0xff]
  %v729 = vld [vmem:[%s2 + $0x650] sm:$0xff]
  %v730 = vld [vmem:[%s2 + $0x658] sm:$0xff]
  %v731 = vld [vmem:[%s2 + $0x660] sm:$0xff]
  %v732 = vld [vmem:[%s2 + $0x668] sm:$0xff]
  %v733 = vld [vmem:[%s2 + $0x670] sm:$0xff]
  %v734 = vld [vmem:[%s2 + $0x678] sm:$0xff]
  %v735 = vld [vmem:[%s2 + $0x680] sm:$0xff]
  %v736 = vld [vmem:[%s2 + $0x688] sm:$0xff]
  %v737 = vld [vmem:[%s2 + $0x690] sm:$0xff]
  %v738 = vld [vmem:[%s2 + $0x698] sm:$0xff]
  %v739 = vld [vmem:[%s2 + $0x6a0] sm:$0xff]
  %v740 = vld [vmem:[%s2 + $0x6a8] sm:$0xff]
  %v741 = vld [vmem:[%s2 + $0x6b0] sm:$0xff]
  %v742 = vld [vmem:[%s2 + $0x6b8] sm:$0xff]
  %v743 = vld [vmem:[%s2 + $0x6c0] sm:$0xff]
  %v744 = vld [vmem:[%s2 + $0x6c8] sm:$0xff]
  %v745 = vld [vmem:[%s2 + $0x6d0] sm:$0xff]
  %v746 = vld [vmem:[%s2 + $0x6d8] sm:$0xff]
  %v747 = vld [vmem:[%s2 + $0x6e0] sm:$0xff]
  %v748 = vld [vmem:[%s2 + $0x6e8] sm:$0xff]
  %v749 = vld [vmem:[%s2 + $0x6f0] sm:$0xff]
  %v750 = vld [vmem:[%s2 + $0x6f8] sm:$0xff]
  %v751 = vld [vmem:[%s2 + $0x700] sm:$0xff]
  %v752 = vld [vmem:[%s2 + $0x708] sm:$0xff]
  %v753 = vld [vmem:[%s2 + $0x710] sm:$0xff]
  %v754 = vld [vmem:[%s2 + $0x718] sm:$0xff]
  %v755 = vld [vmem:[%s2 + $0x720] sm:$0xff]
  %v756 = vld [vmem:[%s2 + $0x728] sm:$0xff]
  %v757 = vld [vmem:[%s2 + $0x730] sm:$0xff]
  %v758 = vld [vmem:[%s2 + $0x738] sm:$0xff]
  %v759 = vld [vmem:[%s2 + $0x740] sm:$0xff]
  %v760 = vld [vmem:[%s2 + $0x748] sm:$0xff]
  %v761 = vld [vmem:[%s2 + $0x750] sm:$0xff]
  %v762 = vld [vmem:[%s2 + $0x758] sm:$0xff]
  %v763 = vld [vmem:[%s2 + $0x760] sm:$0xff]
  %v764 = vld [vmem:[%s2 + $0x768] sm:$0xff]
  %v765 = vld [vmem:[%s2 + $0x770] sm:$0xff]
  %v766 = vld [vmem:[%s2 + $0x778] sm:$0xff]
  %v767 = vld [vmem:[%s2 + $0x780] sm:$0xff]
  %v768 = vld [vmem:[%s2 + $0x788] sm:$0xff]
  %v769 = vld [vmem:[%s2 + $0x790] sm:$0xff]
  %v770 = vld [vmem:[%s2 + $0x798] sm:$0xff]
  %v771 = vld [vmem:[%s2 + $0x7a0] sm:$0xff]
  %v772 = vld [vmem:[%s2 + $0x7a8] sm:$0xff]
  %v773 = vld [vmem:[%s2 + $0x7b0] sm:$0xff]
  %v774 = vld [vmem:[%s2 + $0x7b8] sm:$0xff]
  %v775 = vld [vmem:[%s2 + $0x7c0] sm:$0xff]
  %v776 = vld [vmem:[%s2 + $0x7c8] sm:$0xff]
  %v777 = vld [vmem:[%s2 + $0x7d0] sm:$0xff]
  %v778 = vld [vmem:[%s2 + $0x7d8] sm:$0xff]
  %v779 = vld [vmem:[%s2 + $0x7e0] sm:$0xff]
  %v780 = vld [vmem:[%s2 + $0x7e8] sm:$0xff]
  %v781 = vld [vmem:[%s2 + $0x7f0] sm:$0xff]
  %v782 = vld [vmem:[%s2 + $0x7f8] sm:$0xff]
  %v783 = vmul.f32 %v15, 0.125
  %v784 = vmul.f32 %v16, 0.125
  %v785 = vmul.f32 %v17, 0.125
  %v786 = vmul.f32 %v18, 0.125
  %v787 = vmul.f32 %v19, 0.125
  %v788 = vmul.f32 %v20, 0.125
  %v789 = vmul.f32 %v21, 0.125
  %v790 = vmul.f32 %v22, 0.125
  %v791 = vmul.f32 %v23, 0.125
  %v792 = vmul.f32 %v24, 0.125
  %v793 = vmul.f32 %v25, 0.125
  %v794 = vmul.f32 %v26, 0.125
  %v795 = vmul.f32 %v27, 0.125
  %v796 = vmul.f32 %v28, 0.125
  %v797 = vmul.f32 %v29, 0.125
  %v798 = vmul.f32 %v30, 0.125
  %v799 = vmul.f32 %v31, 0.125
  %v800 = vmul.f32 %v32, 0.125
  %v801 = vmul.f32 %v33, 0.125
  %v802 = vmul.f32 %v34, 0.125
  %v803 = vmul.f32 %v35, 0.125
  %v804 = vmul.f32 %v36, 0.125
  %v805 = vmul.f32 %v37, 0.125
  %v806 = vmul.f32 %v38, 0.125
  %v807 = vmul.f32 %v39, 0.125
  %v808 = vmul.f32 %v40, 0.125
  %v809 = vmul.f32 %v41, 0.125
  %v810 = vmul.f32 %v42, 0.125
  %v811 = vmul.f32 %v43, 0.125
  %v812 = vmul.f32 %v44, 0.125
  %v813 = vmul.f32 %v45, 0.125
  %v814 = vmul.f32 %v46, 0.125
  %v815 = vmul.f32 %v47, 0.125
  %v816 = vmul.f32 %v48, 0.125
  %v817 = vmul.f32 %v49, 0.125
  %v818 = vmul.f32 %v50, 0.125
  %v819 = vmul.f32 %v51, 0.125
  %v820 = vmul.f32 %v52, 0.125
  %v821 = vmul.f32 %v53, 0.125
  %v822 = vmul.f32 %v54, 0.125
  %v823 = vmul.f32 %v55, 0.125
  %v824 = vmul.f32 %v56, 0.125
  %v825 = vmul.f32 %v57, 0.125
  %v826 = vmul.f32 %v58, 0.125
  %v827 = vmul.f32 %v59, 0.125
  %v828 = vmul.f32 %v60, 0.125
  %v829 = vmul.f32 %v61, 0.125
  %v830 = vmul.f32 %v62, 0.125
  %v831 = vmul.f32 %v63, 0.125
  %v832 = vmul.f32 %v64, 0.125
  %v833 = vmul.f32 %v65, 0.125
  %v834 = vmul.f32 %v66, 0.125
  %v835 = vmul.f32 %v67, 0.125
  %v836 = vmul.f32 %v68, 0.125
  %v837 = vmul.f32 %v69, 0.125
  %v838 = vmul.f32 %v70, 0.125
  %v839 = vmul.f32 %v71, 0.125
  %v840 = vmul.f32 %v72, 0.125
  %v841 = vmul.f32 %v73, 0.125
  %v842 = vmul.f32 %v74, 0.125
  %v843 = vmul.f32 %v75, 0.125
  %v844 = vmul.f32 %v76, 0.125
  %v845 = vmul.f32 %v77, 0.125
  %v846 = vmul.f32 %v78, 0.125
  %v847 = vmul.f32 %v79, 0.125
  %v848 = vmul.f32 %v80, 0.125
  %v849 = vmul.f32 %v81, 0.125
  %v850 = vmul.f32 %v82, 0.125
  %v851 = vmul.f32 %v83, 0.125
  %v852 = vmul.f32 %v84, 0.125
  %v853 = vmul.f32 %v85, 0.125
  %v854 = vmul.f32 %v86, 0.125
  %v855 = vmul.f32 %v87, 0.125
  %v856 = vmul.f32 %v88, 0.125
  %v857 = vmul.f32 %v89, 0.125
  %v858 = vmul.f32 %v90, 0.125
  %v859 = vmul.f32 %v91, 0.125
  %v860 = vmul.f32 %v92, 0.125
  %v861 = vmul.f32 %v93, 0.125
  %v862 = vmul.f32 %v94, 0.125
  %v863 = vmul.f32 %v95, 0.125
  %v864 = vmul.f32 %v96, 0.125
  %v865 = vmul.f32 %v97, 0.125
  %v866 = vmul.f32 %v98, 0.125
  %v867 = vmul.f32 %v99, 0.125
  %v868 = vmul.f32 %v100, 0.125
  %v869 = vmul.f32 %v101, 0.125
  %v870 = vmul.f32 %v102, 0.125
  %v871 = vmul.f32 %v103, 0.125
  %v872 = vmul.f32 %v104, 0.125
  %v873 = vmul.f32 %v105, 0.125
  %v874 = vmul.f32 %v106, 0.125
  %v875 = vmul.f32 %v107, 0.125
  %v876 = vmul.f32 %v108, 0.125
  %v877 = vmul.f32 %v109, 0.125
  %v878 = vmul.f32 %v110, 0.125
  %v879 = vmul.f32 %v111, 0.125
  %v880 = vmul.f32 %v112, 0.125
  %v881 = vmul.f32 %v113, 0.125
  %v882 = vmul.f32 %v114, 0.125
  %v883 = vmul.f32 %v115, 0.125
  %v884 = vmul.f32 %v116, 0.125
  %v885 = vmul.f32 %v117, 0.125
  %v886 = vmul.f32 %v118, 0.125
  %v887 = vmul.f32 %v119, 0.125
  %v888 = vmul.f32 %v120, 0.125
  %v889 = vmul.f32 %v121, 0.125
  %v890 = vmul.f32 %v122, 0.125
  %v891 = vmul.f32 %v123, 0.125
  %v892 = vmul.f32 %v124, 0.125
  %v893 = vmul.f32 %v125, 0.125
  %v894 = vmul.f32 %v126, 0.125
  %v895 = vmul.f32 %v127, 0.125
  %v896 = vmul.f32 %v128, 0.125
  %v897 = vmul.f32 %v129, 0.125
  %v898 = vmul.f32 %v130, 0.125
  %v899 = vmul.f32 %v131, 0.125
  %v900 = vmul.f32 %v132, 0.125
  %v901 = vmul.f32 %v133, 0.125
  %v902 = vmul.f32 %v134, 0.125
  %v903 = vmul.f32 %v135, 0.125
  %v904 = vmul.f32 %v136, 0.125
  %v905 = vmul.f32 %v137, 0.125
  %v906 = vmul.f32 %v138, 0.125
  %v907 = vmul.f32 %v139, 0.125
  %v908 = vmul.f32 %v140, 0.125
  %v909 = vmul.f32 %v141, 0.125
  %v910 = vmul.f32 %v142, 0.125
  %v911 = vmul.f32 %v143, 0.125
  %v912 = vmul.f32 %v144, 0.125
  %v913 = vmul.f32 %v145, 0.125
  %v914 = vmul.f32 %v146, 0.125
  %v915 = vmul.f32 %v147, 0.125
  %v916 = vmul.f32 %v148, 0.125
  %v917 = vmul.f32 %v149, 0.125
  %v918 = vmul.f32 %v150, 0.125
  %v919 = vmul.f32 %v151, 0.125
  %v920 = vmul.f32 %v152, 0.125
  %v921 = vmul.f32 %v153, 0.125
  %v922 = vmul.f32 %v154, 0.125
  %v923 = vmul.f32 %v155, 0.125
  %v924 = vmul.f32 %v156, 0.125
  %v925 = vmul.f32 %v157, 0.125
  %v926 = vmul.f32 %v158, 0.125
  %v927 = vmul.f32 %v159, 0.125
  %v928 = vmul.f32 %v160, 0.125
  %v929 = vmul.f32 %v161, 0.125
  %v930 = vmul.f32 %v162, 0.125
  %v931 = vmul.f32 %v163, 0.125
  %v932 = vmul.f32 %v164, 0.125
  %v933 = vmul.f32 %v165, 0.125
  %v934 = vmul.f32 %v166, 0.125
  %v935 = vmul.f32 %v167, 0.125
  %v936 = vmul.f32 %v168, 0.125
  %v937 = vmul.f32 %v169, 0.125
  %v938 = vmul.f32 %v170, 0.125
  %v939 = vmul.f32 %v171, 0.125
  %v940 = vmul.f32 %v172, 0.125
  %v941 = vmul.f32 %v173, 0.125
  %v942 = vmul.f32 %v174, 0.125
  %v943 = vmul.f32 %v175, 0.125
  %v944 = vmul.f32 %v176, 0.125
  %v945 = vmul.f32 %v177, 0.125
  %v946 = vmul.f32 %v178, 0.125
  %v947 = vmul.f32 %v179, 0.125
  %v948 = vmul.f32 %v180, 0.125
  %v949 = vmul.f32 %v181, 0.125
  %v950 = vmul.f32 %v182, 0.125
  %v951 = vmul.f32 %v183, 0.125
  %v952 = vmul.f32 %v184, 0.125
  %v953 = vmul.f32 %v185, 0.125
  %v954 = vmul.f32 %v186, 0.125
  %v955 = vmul.f32 %v187, 0.125
  %v956 = vmul.f32 %v188, 0.125
  %v957 = vmul.f32 %v189, 0.125
  %v958 = vmul.f32 %v190, 0.125
  %v959 = vmul.f32 %v191, 0.125
  %v960 = vmul.f32 %v192, 0.125
  %v961 = vmul.f32 %v193, 0.125
  %v962 = vmul.f32 %v194, 0.125
  %v963 = vmul.f32 %v195, 0.125
  %v964 = vmul.f32 %v196, 0.125
  %v965 = vmul.f32 %v197, 0.125
  %v966 = vmul.f32 %v198, 0.125
  %v967 = vmul.f32 %v199, 0.125
  %v968 = vmul.f32 %v200, 0.125
  %v969 = vmul.f32 %v201, 0.125
  %v970 = vmul.f32 %v202, 0.125
  %v971 = vmul.f32 %v203, 0.125
  %v972 = vmul.f32 %v204, 0.125
  %v973 = vmul.f32 %v205, 0.125
  %v974 = vmul.f32 %v206, 0.125
  %v975 = vmul.f32 %v207, 0.125
  %v976 = vmul.f32 %v208, 0.125
  %v977 = vmul.f32 %v209, 0.125
  %v978 = vmul.f32 %v210, 0.125
  %v979 = vmul.f32 %v211, 0.125
  %v980 = vmul.f32 %v212, 0.125
  %v981 = vmul.f32 %v213, 0.125
  %v982 = vmul.f32 %v214, 0.125
  %v983 = vmul.f32 %v215, 0.125
  %v984 = vmul.f32 %v216, 0.125
  %v985 = vmul.f32 %v217, 0.125
  %v986 = vmul.f32 %v218, 0.125
  %v987 = vmul.f32 %v219, 0.125
  %v988 = vmul.f32 %v220, 0.125
  %v989 = vmul.f32 %v221, 0.125
  %v990 = vmul.f32 %v222, 0.125
  %v991 = vmul.f32 %v223, 0.125
  %v992 = vmul.f32 %v224, 0.125
  %v993 = vmul.f32 %v225, 0.125
  %v994 = vmul.f32 %v226, 0.125
  %v995 = vmul.f32 %v227, 0.125
  %v996 = vmul.f32 %v228, 0.125
  %v997 = vmul.f32 %v229, 0.125
  %v998 = vmul.f32 %v230, 0.125
  %v999 = vmul.f32 %v231, 0.125
  %v1000 = vmul.f32 %v232, 0.125
  %v1001 = vmul.f32 %v233, 0.125
  %v1002 = vmul.f32 %v234, 0.125
  %v1003 = vmul.f32 %v235, 0.125
  %v1004 = vmul.f32 %v236, 0.125
  %v1005 = vmul.f32 %v237, 0.125
  %v1006 = vmul.f32 %v238, 0.125
  %v1007 = vmul.f32 %v239, 0.125
  %v1008 = vmul.f32 %v240, 0.125
  %v1009 = vmul.f32 %v241, 0.125
  %v1010 = vmul.f32 %v242, 0.125
  %v1011 = vmul.f32 %v243, 0.125
  %v1012 = vmul.f32 %v244, 0.125
  %v1013 = vmul.f32 %v245, 0.125
  %v1014 = vmul.f32 %v246, 0.125
  %v1015 = vmul.f32 %v247, 0.125
  %v1016 = vmul.f32 %v248, 0.125
  %v1017 = vmul.f32 %v249, 0.125
  %v1018 = vmul.f32 %v250, 0.125
  %v1019 = vmul.f32 %v251, 0.125
  %v1020 = vmul.f32 %v252, 0.125
  %v1021 = vmul.f32 %v253, 0.125
  %v1022 = vmul.f32 %v254, 0.125
  %v1023 = vmul.f32 %v255, 0.125
  %v1024 = vmul.f32 %v256, 0.125
  %v1025 = vmul.f32 %v257, 0.125
  %v1026 = vmul.f32 %v258, 0.125
  %v1027 = vmul.f32 %v259, 0.125
  %v1028 = vmul.f32 %v260, 0.125
  %v1029 = vmul.f32 %v261, 0.125
  %v1030 = vmul.f32 %v262, 0.125
  %v1031 = vmul.f32 %v263, 0.125
  %v1032 = vmul.f32 %v264, 0.125
  %v1033 = vmul.f32 %v265, 0.125
  %v1034 = vmul.f32 %v266, 0.125
  %v1035 = vmul.f32 %v267, 0.125
  %v1036 = vmul.f32 %v268, 0.125
  %v1037 = vmul.f32 %v269, 0.125
  %v1038 = vmul.f32 %v270, 0.125
  %v1039 = vpack.c.bf16 %v784, %v783
  %v1040 = vpack.c.bf16 %v786, %v785
  %v1041 = vpack.c.bf16 %v788, %v787
  %v1042 = vpack.c.bf16 %v790, %v789
  %v1043 = vpack.c.bf16 %v792, %v791
  %v1044 = vpack.c.bf16 %v794, %v793
  %v1045 = vpack.c.bf16 %v796, %v795
  %v1046 = vpack.c.bf16 %v798, %v797
  %v1047 = vpack.c.bf16 %v800, %v799
  %v1048 = vpack.c.bf16 %v802, %v801
  %v1049 = vpack.c.bf16 %v804, %v803
  %v1050 = vpack.c.bf16 %v806, %v805
  %v1051 = vpack.c.bf16 %v808, %v807
  %v1052 = vpack.c.bf16 %v810, %v809
  %v1053 = vpack.c.bf16 %v812, %v811
  %v1054 = vpack.c.bf16 %v814, %v813
  %v1055 = vpack.c.bf16 %v816, %v815
  %v1056 = vpack.c.bf16 %v818, %v817
  %v1057 = vpack.c.bf16 %v820, %v819
  %v1058 = vpack.c.bf16 %v822, %v821
  %v1059 = vpack.c.bf16 %v824, %v823
  %v1060 = vpack.c.bf16 %v826, %v825
  %v1061 = vpack.c.bf16 %v828, %v827
  %v1062 = vpack.c.bf16 %v830, %v829
  %v1063 = vpack.c.bf16 %v832, %v831
  %v1064 = vpack.c.bf16 %v834, %v833
  %v1065 = vpack.c.bf16 %v836, %v835
  %v1066 = vpack.c.bf16 %v838, %v837
  %v1067 = vpack.c.bf16 %v840, %v839
  %v1068 = vpack.c.bf16 %v842, %v841
  %v1069 = vpack.c.bf16 %v844, %v843
  %v1070 = vpack.c.bf16 %v846, %v845
  %v1071 = vpack.c.bf16 %v848, %v847
  %v1072 = vpack.c.bf16 %v850, %v849
  %v1073 = vpack.c.bf16 %v852, %v851
  %v1074 = vpack.c.bf16 %v854, %v853
  %v1075 = vpack.c.bf16 %v856, %v855
  %v1076 = vpack.c.bf16 %v858, %v857
  %v1077 = vpack.c.bf16 %v860, %v859
  %v1078 = vpack.c.bf16 %v862, %v861
  %v1079 = vpack.c.bf16 %v864, %v863
  %v1080 = vpack.c.bf16 %v866, %v865
  %v1081 = vpack.c.bf16 %v868, %v867
  %v1082 = vpack.c.bf16 %v870, %v869
  %v1083 = vpack.c.bf16 %v872, %v871
  %v1084 = vpack.c.bf16 %v874, %v873
  %v1085 = vpack.c.bf16 %v876, %v875
  %v1086 = vpack.c.bf16 %v878, %v877
  %v1087 = vpack.c.bf16 %v880, %v879
  %v1088 = vpack.c.bf16 %v882, %v881
  %v1089 = vpack.c.bf16 %v884, %v883
  %v1090 = vpack.c.bf16 %v886, %v885
  %v1091 = vpack.c.bf16 %v888, %v887
  %v1092 = vpack.c.bf16 %v890, %v889
  %v1093 = vpack.c.bf16 %v892, %v891
  %v1094 = vpack.c.bf16 %v894, %v893
  %v1095 = vpack.c.bf16 %v896, %v895
  %v1096 = vpack.c.bf16 %v898, %v897
  %v1097 = vpack.c.bf16 %v900, %v899
  %v1098 = vpack.c.bf16 %v902, %v901
  %v1099 = vpack.c.bf16 %v904, %v903
  %v1100 = vpack.c.bf16 %v906, %v905
  %v1101 = vpack.c.bf16 %v908, %v907
  %v1102 = vpack.c.bf16 %v910, %v909
  %v1103 = vpack.c.bf16 %v912, %v911
  %v1104 = vpack.c.bf16 %v914, %v913
  %v1105 = vpack.c.bf16 %v916, %v915
  %v1106 = vpack.c.bf16 %v918, %v917
  %v1107 = vpack.c.bf16 %v920, %v919
  %v1108 = vpack.c.bf16 %v922, %v921
  %v1109 = vpack.c.bf16 %v924, %v923
  %v1110 = vpack.c.bf16 %v926, %v925
  %v1111 = vpack.c.bf16 %v928, %v927
  %v1112 = vpack.c.bf16 %v930, %v929
  %v1113 = vpack.c.bf16 %v932, %v931
  %v1114 = vpack.c.bf16 %v934, %v933
  %v1115 = vpack.c.bf16 %v936, %v935
  %v1116 = vpack.c.bf16 %v938, %v937
  %v1117 = vpack.c.bf16 %v940, %v939
  %v1118 = vpack.c.bf16 %v942, %v941
  %v1119 = vpack.c.bf16 %v944, %v943
  %v1120 = vpack.c.bf16 %v946, %v945
  %v1121 = vpack.c.bf16 %v948, %v947
  %v1122 = vpack.c.bf16 %v950, %v949
  %v1123 = vpack.c.bf16 %v952, %v951
  %v1124 = vpack.c.bf16 %v954, %v953
  %v1125 = vpack.c.bf16 %v956, %v955
  %v1126 = vpack.c.bf16 %v958, %v957
  %v1127 = vpack.c.bf16 %v960, %v959
  %v1128 = vpack.c.bf16 %v962, %v961
  %v1129 = vpack.c.bf16 %v964, %v963
  %v1130 = vpack.c.bf16 %v966, %v965
  %v1131 = vpack.c.bf16 %v968, %v967
  %v1132 = vpack.c.bf16 %v970, %v969
  %v1133 = vpack.c.bf16 %v972, %v971
  %v1134 = vpack.c.bf16 %v974, %v973
  %v1135 = vpack.c.bf16 %v976, %v975
  %v1136 = vpack.c.bf16 %v978, %v977
  %v1137 = vpack.c.bf16 %v980, %v979
  %v1138 = vpack.c.bf16 %v982, %v981
  %v1139 = vpack.c.bf16 %v984, %v983
  %v1140 = vpack.c.bf16 %v986, %v985
  %v1141 = vpack.c.bf16 %v988, %v987
  %v1142 = vpack.c.bf16 %v990, %v989
  %v1143 = vpack.c.bf16 %v992, %v991
  %v1144 = vpack.c.bf16 %v994, %v993
  %v1145 = vpack.c.bf16 %v996, %v995
  %v1146 = vpack.c.bf16 %v998, %v997
  %v1147 = vpack.c.bf16 %v1000, %v999
  %v1148 = vpack.c.bf16 %v1002, %v1001
  %v1149 = vpack.c.bf16 %v1004, %v1003
  %v1150 = vpack.c.bf16 %v1006, %v1005
  %v1151 = vpack.c.bf16 %v1008, %v1007
  %v1152 = vpack.c.bf16 %v1010, %v1009
  %v1153 = vpack.c.bf16 %v1012, %v1011
  %v1154 = vpack.c.bf16 %v1014, %v1013
  %v1155 = vpack.c.bf16 %v1016, %v1015
  %v1156 = vpack.c.bf16 %v1018, %v1017
  %v1157 = vpack.c.bf16 %v1020, %v1019
  %v1158 = vpack.c.bf16 %v1022, %v1021
  %v1159 = vpack.c.bf16 %v1024, %v1023
  %v1160 = vpack.c.bf16 %v1026, %v1025
  %v1161 = vpack.c.bf16 %v1028, %v1027
  %v1162 = vpack.c.bf16 %v1030, %v1029
  %v1163 = vpack.c.bf16 %v1032, %v1031
  %v1164 = vpack.c.bf16 %v1034, %v1033
  %v1165 = vpack.c.bf16 %v1036, %v1035
  %v1166 = vpack.c.bf16 %v1038, %v1037
  %v1167 = vpack.c.bf16 %v272, %v271
  %v1168 = vpack.c.bf16 %v274, %v273
  %v1169 = vpack.c.bf16 %v276, %v275
  %v1170 = vpack.c.bf16 %v278, %v277
  %v1171 = vpack.c.bf16 %v280, %v279
  %v1172 = vpack.c.bf16 %v282, %v281
  %v1173 = vpack.c.bf16 %v284, %v283
  %v1174 = vpack.c.bf16 %v286, %v285
  %v1175 = vpack.c.bf16 %v288, %v287
  %v1176 = vpack.c.bf16 %v290, %v289
  %v1177 = vpack.c.bf16 %v292, %v291
  %v1178 = vpack.c.bf16 %v294, %v293
  %v1179 = vpack.c.bf16 %v296, %v295
  %v1180 = vpack.c.bf16 %v298, %v297
  %v1181 = vpack.c.bf16 %v300, %v299
  %v1182 = vpack.c.bf16 %v302, %v301
  %v1183 = vpack.c.bf16 %v304, %v303
  %v1184 = vpack.c.bf16 %v306, %v305
  %v1185 = vpack.c.bf16 %v308, %v307
  %v1186 = vpack.c.bf16 %v310, %v309
  %v1187 = vpack.c.bf16 %v312, %v311
  %v1188 = vpack.c.bf16 %v314, %v313
  %v1189 = vpack.c.bf16 %v316, %v315
  %v1190 = vpack.c.bf16 %v318, %v317
  %v1191 = vpack.c.bf16 %v320, %v319
  %v1192 = vpack.c.bf16 %v322, %v321
  %v1193 = vpack.c.bf16 %v324, %v323
  %v1194 = vpack.c.bf16 %v326, %v325
  %v1195 = vpack.c.bf16 %v328, %v327
  %v1196 = vpack.c.bf16 %v330, %v329
  %v1197 = vpack.c.bf16 %v332, %v331
  %v1198 = vpack.c.bf16 %v334, %v333
  %v1199 = vpack.c.bf16 %v336, %v335
  %v1200 = vpack.c.bf16 %v338, %v337
  %v1201 = vpack.c.bf16 %v340, %v339
  %v1202 = vpack.c.bf16 %v342, %v341
  %v1203 = vpack.c.bf16 %v344, %v343
  %v1204 = vpack.c.bf16 %v346, %v345
  %v1205 = vpack.c.bf16 %v348, %v347
  %v1206 = vpack.c.bf16 %v350, %v349
  %v1207 = vpack.c.bf16 %v352, %v351
  %v1208 = vpack.c.bf16 %v354, %v353
  %v1209 = vpack.c.bf16 %v356, %v355
  %v1210 = vpack.c.bf16 %v358, %v357
  %v1211 = vpack.c.bf16 %v360, %v359
  %v1212 = vpack.c.bf16 %v362, %v361
  %v1213 = vpack.c.bf16 %v364, %v363
  %v1214 = vpack.c.bf16 %v366, %v365
  %v1215 = vpack.c.bf16 %v368, %v367
  %v1216 = vpack.c.bf16 %v370, %v369
  %v1217 = vpack.c.bf16 %v372, %v371
  %v1218 = vpack.c.bf16 %v374, %v373
  %v1219 = vpack.c.bf16 %v376, %v375
  %v1220 = vpack.c.bf16 %v378, %v377
  %v1221 = vpack.c.bf16 %v380, %v379
  %v1222 = vpack.c.bf16 %v382, %v381
  %v1223 = vpack.c.bf16 %v384, %v383
  %v1224 = vpack.c.bf16 %v386, %v385
  %v1225 = vpack.c.bf16 %v388, %v387
  %v1226 = vpack.c.bf16 %v390, %v389
  %v1227 = vpack.c.bf16 %v392, %v391
  %v1228 = vpack.c.bf16 %v394, %v393
  %v1229 = vpack.c.bf16 %v396, %v395
  %v1230 = vpack.c.bf16 %v398, %v397
  %v1231 = vpack.c.bf16 %v400, %v399
  %v1232 = vpack.c.bf16 %v402, %v401
  %v1233 = vpack.c.bf16 %v404, %v403
  %v1234 = vpack.c.bf16 %v406, %v405
  %v1235 = vpack.c.bf16 %v408, %v407
  %v1236 = vpack.c.bf16 %v410, %v409
  %v1237 = vpack.c.bf16 %v412, %v411
  %v1238 = vpack.c.bf16 %v414, %v413
  %v1239 = vpack.c.bf16 %v416, %v415
  %v1240 = vpack.c.bf16 %v418, %v417
  %v1241 = vpack.c.bf16 %v420, %v419
  %v1242 = vpack.c.bf16 %v422, %v421
  %v1243 = vpack.c.bf16 %v424, %v423
  %v1244 = vpack.c.bf16 %v426, %v425
  %v1245 = vpack.c.bf16 %v428, %v427
  %v1246 = vpack.c.bf16 %v430, %v429
  %v1247 = vpack.c.bf16 %v432, %v431
  %v1248 = vpack.c.bf16 %v434, %v433
  %v1249 = vpack.c.bf16 %v436, %v435
  %v1250 = vpack.c.bf16 %v438, %v437
  %v1251 = vpack.c.bf16 %v440, %v439
  %v1252 = vpack.c.bf16 %v442, %v441
  %v1253 = vpack.c.bf16 %v444, %v443
  %v1254 = vpack.c.bf16 %v446, %v445
  %v1255 = vpack.c.bf16 %v448, %v447
  %v1256 = vpack.c.bf16 %v450, %v449
  %v1257 = vpack.c.bf16 %v452, %v451
  %v1258 = vpack.c.bf16 %v454, %v453
  %v1259 = vpack.c.bf16 %v456, %v455
  %v1260 = vpack.c.bf16 %v458, %v457
  %v1261 = vpack.c.bf16 %v460, %v459
  %v1262 = vpack.c.bf16 %v462, %v461
  %v1263 = vpack.c.bf16 %v464, %v463
  %v1264 = vpack.c.bf16 %v466, %v465
  %v1265 = vpack.c.bf16 %v468, %v467
  %v1266 = vpack.c.bf16 %v470, %v469
  %v1267 = vpack.c.bf16 %v472, %v471
  %v1268 = vpack.c.bf16 %v474, %v473
  %v1269 = vpack.c.bf16 %v476, %v475
  %v1270 = vpack.c.bf16 %v478, %v477
  %v1271 = vpack.c.bf16 %v480, %v479
  %v1272 = vpack.c.bf16 %v482, %v481
  %v1273 = vpack.c.bf16 %v484, %v483
  %v1274 = vpack.c.bf16 %v486, %v485
  %v1275 = vpack.c.bf16 %v488, %v487
  %v1276 = vpack.c.bf16 %v490, %v489
  %v1277 = vpack.c.bf16 %v492, %v491
  %v1278 = vpack.c.bf16 %v494, %v493
  %v1279 = vpack.c.bf16 %v496, %v495
  %v1280 = vpack.c.bf16 %v498, %v497
  %v1281 = vpack.c.bf16 %v500, %v499
  %v1282 = vpack.c.bf16 %v502, %v501
  %v1283 = vpack.c.bf16 %v504, %v503
  %v1284 = vpack.c.bf16 %v506, %v505
  %v1285 = vpack.c.bf16 %v508, %v507
  %v1286 = vpack.c.bf16 %v510, %v509
  %v1287 = vpack.c.bf16 %v512, %v511
  %v1288 = vpack.c.bf16 %v514, %v513
  %v1289 = vpack.c.bf16 %v516, %v515
  %v1290 = vpack.c.bf16 %v518, %v517
  %v1291 = vpack.c.bf16 %v520, %v519
  %v1292 = vpack.c.bf16 %v522, %v521
  %v1293 = vpack.c.bf16 %v524, %v523
  %v1294 = vpack.c.bf16 %v526, %v525
  %v1295 = vpack.c.bf16 %v528, %v527
  %v1296 = vpack.c.bf16 %v530, %v529
  %v1297 = vpack.c.bf16 %v532, %v531
  %v1298 = vpack.c.bf16 %v534, %v533
  %v1299 = vpack.c.bf16 %v536, %v535
  %v1300 = vpack.c.bf16 %v538, %v537
  %v1301 = vpack.c.bf16 %v540, %v539
  %v1302 = vpack.c.bf16 %v542, %v541
  %v1303 = vpack.c.bf16 %v544, %v543
  %v1304 = vpack.c.bf16 %v546, %v545
  %v1305 = vpack.c.bf16 %v548, %v547
  %v1306 = vpack.c.bf16 %v550, %v549
  %v1307 = vpack.c.bf16 %v552, %v551
  %v1308 = vpack.c.bf16 %v554, %v553
  %v1309 = vpack.c.bf16 %v556, %v555
  %v1310 = vpack.c.bf16 %v558, %v557
  %v1311 = vpack.c.bf16 %v560, %v559
  %v1312 = vpack.c.bf16 %v562, %v561
  %v1313 = vpack.c.bf16 %v564, %v563
  %v1314 = vpack.c.bf16 %v566, %v565
  %v1315 = vpack.c.bf16 %v568, %v567
  %v1316 = vpack.c.bf16 %v570, %v569
  %v1317 = vpack.c.bf16 %v572, %v571
  %v1318 = vpack.c.bf16 %v574, %v573
  %v1319 = vpack.c.bf16 %v576, %v575
  %v1320 = vpack.c.bf16 %v578, %v577
  %v1321 = vpack.c.bf16 %v580, %v579
  %v1322 = vpack.c.bf16 %v582, %v581
  %v1323 = vpack.c.bf16 %v584, %v583
  %v1324 = vpack.c.bf16 %v586, %v585
  %v1325 = vpack.c.bf16 %v588, %v587
  %v1326 = vpack.c.bf16 %v590, %v589
  %v1327 = vpack.c.bf16 %v592, %v591
  %v1328 = vpack.c.bf16 %v594, %v593
  %v1329 = vpack.c.bf16 %v596, %v595
  %v1330 = vpack.c.bf16 %v598, %v597
  %v1331 = vpack.c.bf16 %v600, %v599
  %v1332 = vpack.c.bf16 %v602, %v601
  %v1333 = vpack.c.bf16 %v604, %v603
  %v1334 = vpack.c.bf16 %v606, %v605
  %v1335 = vpack.c.bf16 %v608, %v607
  %v1336 = vpack.c.bf16 %v610, %v609
  %v1337 = vpack.c.bf16 %v612, %v611
  %v1338 = vpack.c.bf16 %v614, %v613
  %v1339 = vpack.c.bf16 %v616, %v615
  %v1340 = vpack.c.bf16 %v618, %v617
  %v1341 = vpack.c.bf16 %v620, %v619
  %v1342 = vpack.c.bf16 %v622, %v621
  %v1343 = vpack.c.bf16 %v624, %v623
  %v1344 = vpack.c.bf16 %v626, %v625
  %v1345 = vpack.c.bf16 %v628, %v627
  %v1346 = vpack.c.bf16 %v630, %v629
  %v1347 = vpack.c.bf16 %v632, %v631
  %v1348 = vpack.c.bf16 %v634, %v633
  %v1349 = vpack.c.bf16 %v636, %v635
  %v1350 = vpack.c.bf16 %v638, %v637
  %v1351 = vpack.c.bf16 %v640, %v639
  %v1352 = vpack.c.bf16 %v642, %v641
  %v1353 = vpack.c.bf16 %v644, %v643
  %v1354 = vpack.c.bf16 %v646, %v645
  %v1355 = vpack.c.bf16 %v648, %v647
  %v1356 = vpack.c.bf16 %v650, %v649
  %v1357 = vpack.c.bf16 %v652, %v651
  %v1358 = vpack.c.bf16 %v654, %v653
  %v1359 = vpack.c.bf16 %v656, %v655
  %v1360 = vpack.c.bf16 %v658, %v657
  %v1361 = vpack.c.bf16 %v660, %v659
  %v1362 = vpack.c.bf16 %v662, %v661
  %v1363 = vpack.c.bf16 %v664, %v663
  %v1364 = vpack.c.bf16 %v666, %v665
  %v1365 = vpack.c.bf16 %v668, %v667
  %v1366 = vpack.c.bf16 %v670, %v669
  %v1367 = vpack.c.bf16 %v672, %v671
  %v1368 = vpack.c.bf16 %v674, %v673
  %v1369 = vpack.c.bf16 %v676, %v675
  %v1370 = vpack.c.bf16 %v678, %v677
  %v1371 = vpack.c.bf16 %v680, %v679
  %v1372 = vpack.c.bf16 %v682, %v681
  %v1373 = vpack.c.bf16 %v684, %v683
  %v1374 = vpack.c.bf16 %v686, %v685
  %v1375 = vpack.c.bf16 %v688, %v687
  %v1376 = vpack.c.bf16 %v690, %v689
  %v1377 = vpack.c.bf16 %v692, %v691
  %v1378 = vpack.c.bf16 %v694, %v693
  %v1379 = vpack.c.bf16 %v696, %v695
  %v1380 = vpack.c.bf16 %v698, %v697
  %v1381 = vpack.c.bf16 %v700, %v699
  %v1382 = vpack.c.bf16 %v702, %v701
  %v1383 = vpack.c.bf16 %v704, %v703
  %v1384 = vpack.c.bf16 %v706, %v705
  %v1385 = vpack.c.bf16 %v708, %v707
  %v1386 = vpack.c.bf16 %v710, %v709
  %v1387 = vpack.c.bf16 %v712, %v711
  %v1388 = vpack.c.bf16 %v714, %v713
  %v1389 = vpack.c.bf16 %v716, %v715
  %v1390 = vpack.c.bf16 %v718, %v717
  %v1391 = vpack.c.bf16 %v720, %v719
  %v1392 = vpack.c.bf16 %v722, %v721
  %v1393 = vpack.c.bf16 %v724, %v723
  %v1394 = vpack.c.bf16 %v726, %v725
  %v1395 = vpack.c.bf16 %v728, %v727
  %v1396 = vpack.c.bf16 %v730, %v729
  %v1397 = vpack.c.bf16 %v732, %v731
  %v1398 = vpack.c.bf16 %v734, %v733
  %v1399 = vpack.c.bf16 %v736, %v735
  %v1400 = vpack.c.bf16 %v738, %v737
  %v1401 = vpack.c.bf16 %v740, %v739
  %v1402 = vpack.c.bf16 %v742, %v741
  %v1403 = vpack.c.bf16 %v744, %v743
  %v1404 = vpack.c.bf16 %v746, %v745
  %v1405 = vpack.c.bf16 %v748, %v747
  %v1406 = vpack.c.bf16 %v750, %v749
  %v1407 = vpack.c.bf16 %v752, %v751
  %v1408 = vpack.c.bf16 %v754, %v753
  %v1409 = vpack.c.bf16 %v756, %v755
  %v1410 = vpack.c.bf16 %v758, %v757
  %v1411 = vpack.c.bf16 %v760, %v759
  %v1412 = vpack.c.bf16 %v762, %v761
  %v1413 = vpack.c.bf16 %v764, %v763
  %v1414 = vpack.c.bf16 %v766, %v765
  %v1415 = vpack.c.bf16 %v768, %v767
  %v1416 = vpack.c.bf16 %v770, %v769
  %v1417 = vpack.c.bf16 %v772, %v771
  %v1418 = vpack.c.bf16 %v774, %v773
  %v1419 = vpack.c.bf16 %v776, %v775
  %v1420 = vpack.c.bf16 %v778, %v777
  %v1421 = vpack.c.bf16 %v780, %v779
  %v1422 = vpack.c.bf16 %v782, %v781
  %vm1423 = vcmask 523264
  %v1425 = vsel %vm1423, %v1039, 0
  %v1428 = vsel %vm1423, %v1040, 0
  %v1431 = vsel %vm1423, %v1041, 0
  %v1434 = vsel %vm1423, %v1042, 0
  %v1437 = vsel %vm1423, %v1043, 0
  %v1440 = vsel %vm1423, %v1044, 0
  %v1443 = vsel %vm1423, %v1045, 0
  %v1446 = vsel %vm1423, %v1046, 0
  %v1449 = vsel %vm1423, %v1167, 0
  %v1452 = vsel %vm1423, %v1168, 0
  %v1455 = vsel %vm1423, %v1169, 0
  %v1458 = vsel %vm1423, %v1170, 0
  %v1461 = vsel %vm1423, %v1171, 0
  %v1464 = vsel %vm1423, %v1172, 0
  %v1467 = vsel %vm1423, %v1173, 0
  %v1470 = vsel %vm1423, %v1174, 0
  %1472 = vmatprep.subr.bf16.mxu0 0
  %1473 = vmatpush1.bf16.xpose.msra.mxu0 %v1470
  %1474 = vmatprep.subr.bf16.mxu0 0
  %1475 = vmatpush1.bf16.xpose.msra.mxu0 %v1467
  %1476 = vmatprep.subr.bf16.mxu0 0
  %1477 = vmatpush1.bf16.xpose.msra.mxu0 %v1464
  %1478 = vmatprep.subr.bf16.mxu0 0
  %1479 = vmatpush1.bf16.xpose.msra.mxu0 %v1461
  %1480 = vmatprep.subr.bf16.mxu0 0
  %1481 = vmatpush1.bf16.xpose.msra.mxu0 %v1458
  %1482 = vmatprep.subr.bf16.mxu0 0
  %1483 = vmatpush1.bf16.xpose.msra.mxu0 %v1455
  %1484 = vmatprep.subr.bf16.mxu0 0
  %1485 = vmatpush1.bf16.xpose.msra.mxu0 %v1452
  %1486 = vmatprep.subr.bf16.mxu0 0
  %1487 = vmatpush1.bf16.xpose.msra.mxu0 %v1449
  %1488 = vmatprep.subr.bf16.mxu0 0
  %1489 = vmatpush2.bf16.xpose.msra.mxu0 0
  %1490 = vmatprep.subr.bf16.mxu0 0
  %1491 = vmatpush2.bf16.xpose.msra.mxu0 0
  %1492 = vmatprep.subr.bf16.mxu0 0
  %1493 = vmatpush2.bf16.xpose.msra.mxu0 0
  %1494 = vmatprep.subr.bf16.mxu0 0
  %1495 = vmatpush2.bf16.xpose.msra.mxu0 0
  %1496 = vmatprep.subr.bf16.mxu0 0
  %1497 = vmatpush2.bf16.xpose.msra.mxu0 0
  %1498 = vmatprep.subr.bf16.mxu0 0
  %1499 = vmatpush2.bf16.xpose.msra.mxu0 0
  %1500 = vmatprep.subr.bf16.mxu0 0
  %1501 = vmatpush2.bf16.xpose.msra.mxu0 0
  %1502 = vmatprep.subr.bf16.mxu0 0
  %1503 = vmatpush2.bf16.xpose.msra.mxu0 0
  %1504 = vmatprep.mubr.bf16.mxu0 0
  %1505 = vmatmul.mubr.bf16.gmra.mxu0 %v1425
  %v1506 = vpop.f32.mrf.mxu0
  %v1507 = vadd.f32 0.0, %v1506
  %v1508 = vpop.f32.mrf.mxu0
  %v1509 = vpop.f32.mrf.mxu0
  %v1510 = vadd.f32 0.0, %v1509
  %v1511 = vpop.f32.mrf.mxu0
  %1512 = vmatprep.mubr.bf16.mxu0 0
  %1513 = vmatmul.mubr.bf16.gmra.mxu0 %v1428
  %v1514 = vpop.f32.mrf.mxu0
  %v1515 = vadd.f32 0.0, %v1514
  %v1516 = vpop.f32.mrf.mxu0
  %v1517 = vpop.f32.mrf.mxu0
  %v1518 = vadd.f32 0.0, %v1517
  %v1519 = vpop.f32.mrf.mxu0
  %1520 = vmatprep.mubr.bf16.mxu0 0
  %1521 = vmatmul.mubr.bf16.gmra.mxu0 %v1431
  %v1522 = vpop.f32.mrf.mxu0
  %v1523 = vadd.f32 0.0, %v1522
  %v1524 = vpop.f32.mrf.mxu0
  %v1525 = vpop.f32.mrf.mxu0
  %v1526 = vadd.f32 0.0, %v1525
  %v1527 = vpop.f32.mrf.mxu0
  %1528 = vmatprep.mubr.bf16.mxu0 0
  %1529 = vmatmul.mubr.bf16.gmra.mxu0 %v1434
  %v1530 = vpop.f32.mrf.mxu0
  %v1531 = vadd.f32 0.0, %v1530
  %v1532 = vpop.f32.mrf.mxu0
  %v1533 = vpop.f32.mrf.mxu0
  %v1534 = vadd.f32 0.0, %v1533
  %v1535 = vpop.f32.mrf.mxu0
  %1536 = vmatprep.mubr.bf16.mxu0 0
  %1537 = vmatmul.mubr.bf16.gmra.mxu0 %v1437
  %v1538 = vpop.f32.mrf.mxu0
  %v1539 = vadd.f32 0.0, %v1538
  %v1540 = vpop.f32.mrf.mxu0
  %v1541 = vpop.f32.mrf.mxu0
  %v1542 = vadd.f32 0.0, %v1541
  %v1543 = vpop.f32.mrf.mxu0
  %1544 = vmatprep.mubr.bf16.mxu0 0
  %1545 = vmatmul.mubr.bf16.gmra.mxu0 %v1440
  %v1546 = vpop.f32.mrf.mxu0
  %v1547 = vadd.f32 0.0, %v1546
  %v1548 = vpop.f32.mrf.mxu0
  %v1549 = vpop.f32.mrf.mxu0
  %v1550 = vadd.f32 0.0, %v1549
  %v1551 = vpop.f32.mrf.mxu0
  %1552 = vmatprep.mubr.bf16.mxu0 0
  %1553 = vmatmul.mubr.bf16.gmra.mxu0 %v1443
  %v1554 = vpop.f32.mrf.mxu0
  %v1555 = vadd.f32 0.0, %v1554
  %v1556 = vpop.f32.mrf.mxu0
  %v1557 = vpop.f32.mrf.mxu0
  %v1558 = vadd.f32 0.0, %v1557
  %v1559 = vpop.f32.mrf.mxu0
  %1560 = vmatprep.mubr.bf16.mxu0 0
  %1561 = vmatmul.mubr.bf16.gmra.mxu0 %v1446
  %v1562 = vpop.f32.mrf.mxu0
  %v1563 = vadd.f32 0.0, %v1562
  %v1564 = vpop.f32.mrf.mxu0
  %v1565 = vpop.f32.mrf.mxu0
  %v1566 = vadd.f32 0.0, %v1565
  %v1567 = vpop.f32.mrf.mxu0
  %1568 = vdwg.mxu0
  %v1570 = vsel %vm1423, %v1047, 0
  %v1573 = vsel %vm1423, %v1048, 0
  %v1576 = vsel %vm1423, %v1049, 0
  %v1579 = vsel %vm1423, %v1050, 0
  %v1582 = vsel %vm1423, %v1051, 0
  %v1585 = vsel %vm1423, %v1052, 0
  %v1588 = vsel %vm1423, %v1053, 0
  %v1591 = vsel %vm1423, %v1054, 0
  %v1594 = vsel %vm1423, %v1175, 0
  %v1597 = vsel %vm1423, %v1176, 0
  %v1600 = vsel %vm1423, %v1177, 0
  %v1603 = vsel %vm1423, %v1178, 0
  %v1606 = vsel %vm1423, %v1179, 0
  %v1609 = vsel %vm1423, %v1180, 0
  %v1612 = vsel %vm1423, %v1181, 0
  %v1615 = vsel %vm1423, %v1182, 0
  %1617 = vmatprep.subr.bf16.mxu0 0
  %1618 = vmatpush1.bf16.xpose.msra.mxu0 %v1615
  %1619 = vmatprep.subr.bf16.mxu0 0
  %1620 = vmatpush1.bf16.xpose.msra.mxu0 %v1612
  %1621 = vmatprep.subr.bf16.mxu0 0
  %1622 = vmatpush1.bf16.xpose.msra.mxu0 %v1609
  %1623 = vmatprep.subr.bf16.mxu0 0
  %1624 = vmatpush1.bf16.xpose.msra.mxu0 %v1606
  %1625 = vmatprep.subr.bf16.mxu0 0
  %1626 = vmatpush1.bf16.xpose.msra.mxu0 %v1603
  %1627 = vmatprep.subr.bf16.mxu0 0
  %1628 = vmatpush1.bf16.xpose.msra.mxu0 %v1600
  %1629 = vmatprep.subr.bf16.mxu0 0
  %1630 = vmatpush1.bf16.xpose.msra.mxu0 %v1597
  %1631 = vmatprep.subr.bf16.mxu0 0
  %1632 = vmatpush1.bf16.xpose.msra.mxu0 %v1594
  %1633 = vmatprep.subr.bf16.mxu0 0
  %1634 = vmatpush2.bf16.xpose.msra.mxu0 0
  %1635 = vmatprep.subr.bf16.mxu0 0
  %1636 = vmatpush2.bf16.xpose.msra.mxu0 0
  %1637 = vmatprep.subr.bf16.mxu0 0
  %1638 = vmatpush2.bf16.xpose.msra.mxu0 0
  %1639 = vmatprep.subr.bf16.mxu0 0
  %1640 = vmatpush2.bf16.xpose.msra.mxu0 0
  %1641 = vmatprep.subr.bf16.mxu0 0
  %1642 = vmatpush2.bf16.xpose.msra.mxu0 0
  %1643 = vmatprep.subr.bf16.mxu0 0
  %1644 = vmatpush2.bf16.xpose.msra.mxu0 0
  %1645 = vmatprep.subr.bf16.mxu0 0
  %1646 = vmatpush2.bf16.xpose.msra.mxu0 0
  %1647 = vmatprep.subr.bf16.mxu0 0
  %1648 = vmatpush2.bf16.xpose.msra.mxu0 0
  %1649 = vmatprep.mubr.bf16.mxu0 0
  %1650 = vmatmul.mubr.bf16.gmra.mxu0 %v1570
  %v1651 = vpop.f32.mrf.mxu0
  %v1652 = vadd.f32 0.0, %v1651
  %v1653 = vpop.f32.mrf.mxu0
  %v1654 = vpop.f32.mrf.mxu0
  %v1655 = vadd.f32 0.0, %v1654
  %v1656 = vpop.f32.mrf.mxu0
  %1657 = vmatprep.mubr.bf16.mxu0 0
  %1658 = vmatmul.mubr.bf16.gmra.mxu0 %v1573
  %v1659 = vpop.f32.mrf.mxu0
  %v1660 = vadd.f32 0.0, %v1659
  %v1661 = vpop.f32.mrf.mxu0
  %v1662 = vpop.f32.mrf.mxu0
  %v1663 = vadd.f32 0.0, %v1662
  %v1664 = vpop.f32.mrf.mxu0
  %1665 = vmatprep.mubr.bf16.mxu0 0
  %1666 = vmatmul.mubr.bf16.gmra.mxu0 %v1576
  %v1667 = vpop.f32.mrf.mxu0
  %v1668 = vadd.f32 0.0, %v1667
  %v1669 = vpop.f32.mrf.mxu0
  %v1670 = vpop.f32.mrf.mxu0
  %v1671 = vadd.f32 0.0, %v1670
  %v1672 = vpop.f32.mrf.mxu0
  %1673 = vmatprep.mubr.bf16.mxu0 0
  %1674 = vmatmul.mubr.bf16.gmra.mxu0 %v1579
  %v1675 = vpop.f32.mrf.mxu0
  %v1676 = vadd.f32 0.0, %v1675
  %v1677 = vpop.f32.mrf.mxu0
  %v1678 = vpop.f32.mrf.mxu0
  %v1679 = vadd.f32 0.0, %v1678
  %v1680 = vpop.f32.mrf.mxu0
  %1681 = vmatprep.mubr.bf16.mxu0 0
  %1682 = vmatmul.mubr.bf16.gmra.mxu0 %v1582
  %v1683 = vpop.f32.mrf.mxu0
  %v1684 = vadd.f32 0.0, %v1683
  %v1685 = vpop.f32.mrf.mxu0
  %v1686 = vpop.f32.mrf.mxu0
  %v1687 = vadd.f32 0.0, %v1686
  %v1688 = vpop.f32.mrf.mxu0
  %1689 = vmatprep.mubr.bf16.mxu0 0
  %1690 = vmatmul.mubr.bf16.gmra.mxu0 %v1585
  %v1691 = vpop.f32.mrf.mxu0
  %v1692 = vadd.f32 0.0, %v1691
  %v1693 = vpop.f32.mrf.mxu0
  %v1694 = vpop.f32.mrf.mxu0
  %v1695 = vadd.f32 0.0, %v1694
  %v1696 = vpop.f32.mrf.mxu0
  %1697 = vmatprep.mubr.bf16.mxu0 0
  %1698 = vmatmul.mubr.bf16.gmra.mxu0 %v1588
  %v1699 = vpop.f32.mrf.mxu0
  %v1700 = vadd.f32 0.0, %v1699
  %v1701 = vpop.f32.mrf.mxu0
  %v1702 = vpop.f32.mrf.mxu0
  %v1703 = vadd.f32 0.0, %v1702
  %v1704 = vpop.f32.mrf.mxu0
  %1705 = vmatprep.mubr.bf16.mxu0 0
  %1706 = vmatmul.mubr.bf16.gmra.mxu0 %v1591
  %v1707 = vpop.f32.mrf.mxu0
  %v1708 = vadd.f32 0.0, %v1707
  %v1709 = vpop.f32.mrf.mxu0
  %v1710 = vpop.f32.mrf.mxu0
  %v1711 = vadd.f32 0.0, %v1710
  %v1712 = vpop.f32.mrf.mxu0
  %1713 = vdwg.mxu0
  %v1715 = vsel %vm1423, %v1055, 0
  %v1718 = vsel %vm1423, %v1056, 0
  %v1721 = vsel %vm1423, %v1057, 0
  %v1724 = vsel %vm1423, %v1058, 0
  %v1727 = vsel %vm1423, %v1059, 0
  %v1730 = vsel %vm1423, %v1060, 0
  %v1733 = vsel %vm1423, %v1061, 0
  %v1736 = vsel %vm1423, %v1062, 0
  %v1739 = vsel %vm1423, %v1183, 0
  %v1742 = vsel %vm1423, %v1184, 0
  %v1745 = vsel %vm1423, %v1185, 0
  %v1748 = vsel %vm1423, %v1186, 0
  %v1751 = vsel %vm1423, %v1187, 0
  %v1754 = vsel %vm1423, %v1188, 0
  %v1757 = vsel %vm1423, %v1189, 0
  %v1760 = vsel %vm1423, %v1190, 0
  %1762 = vmatprep.subr.bf16.mxu0 0
  %1763 = vmatpush1.bf16.xpose.msra.mxu0 %v1760
  %1764 = vmatprep.subr.bf16.mxu0 0
  %1765 = vmatpush1.bf16.xpose.msra.mxu0 %v1757
  %1766 = vmatprep.subr.bf16.mxu0 0
  %1767 = vmatpush1.bf16.xpose.msra.mxu0 %v1754
  %1768 = vmatprep.subr.bf16.mxu0 0
  %1769 = vmatpush1.bf16.xpose.msra.mxu0 %v1751
  %1770 = vmatprep.subr.bf16.mxu0 0
  %1771 = vmatpush1.bf16.xpose.msra.mxu0 %v1748
  %1772 = vmatprep.subr.bf16.mxu0 0
  %1773 = vmatpush1.bf16.xpose.msra.mxu0 %v1745
  %1774 = vmatprep.subr.bf16.mxu0 0
  %1775 = vmatpush1.bf16.xpose.msra.mxu0 %v1742
  %1776 = vmatprep.subr.bf16.mxu0 0
  %1777 = vmatpush1.bf16.xpose.msra.mxu0 %v1739
  %1778 = vmatprep.subr.bf16.mxu0 0
  %1779 = vmatpush2.bf16.xpose.msra.mxu0 0
  %1780 = vmatprep.subr.bf16.mxu0 0
  %1781 = vmatpush2.bf16.xpose.msra.mxu0 0
  %1782 = vmatprep.subr.bf16.mxu0 0
  %1783 = vmatpush2.bf16.xpose.msra.mxu0 0
  %1784 = vmatprep.subr.bf16.mxu0 0
  %1785 = vmatpush2.bf16.xpose.msra.mxu0 0
  %1786 = vmatprep.subr.bf16.mxu0 0
  %1787 = vmatpush2.bf16.xpose.msra.mxu0 0
  %1788 = vmatprep.subr.bf16.mxu0 0
  %1789 = vmatpush2.bf16.xpose.msra.mxu0 0
  %1790 = vmatprep.subr.bf16.mxu0 0
  %1791 = vmatpush2.bf16.xpose.msra.mxu0 0
  %1792 = vmatprep.subr.bf16.mxu0 0
  %1793 = vmatpush2.bf16.xpose.msra.mxu0 0
  %1794 = vmatprep.mubr.bf16.mxu0 0
  %1795 = vmatmul.mubr.bf16.gmra.mxu0 %v1715
  %v1796 = vpop.f32.mrf.mxu0
  %v1797 = vadd.f32 0.0, %v1796
  %v1798 = vpop.f32.mrf.mxu0
  %v1799 = vpop.f32.mrf.mxu0
  %v1800 = vadd.f32 0.0, %v1799
  %v1801 = vpop.f32.mrf.mxu0
  %1802 = vmatprep.mubr.bf16.mxu0 0
  %1803 = vmatmul.mubr.bf16.gmra.mxu0 %v1718
  %v1804 = vpop.f32.mrf.mxu0
  %v1805 = vadd.f32 0.0, %v1804
  %v1806 = vpop.f32.mrf.mxu0
  %v1807 = vpop.f32.mrf.mxu0
  %v1808 = vadd.f32 0.0, %v1807
  %v1809 = vpop.f32.mrf.mxu0
  %1810 = vmatprep.mubr.bf16.mxu0 0
  %1811 = vmatmul.mubr.bf16.gmra.mxu0 %v1721
  %v1812 = vpop.f32.mrf.mxu0
  %v1813 = vadd.f32 0.0, %v1812
  %v1814 = vpop.f32.mrf.mxu0
  %v1815 = vpop.f32.mrf.mxu0
  %v1816 = vadd.f32 0.0, %v1815
  %v1817 = vpop.f32.mrf.mxu0
  %1818 = vmatprep.mubr.bf16.mxu0 0
  %1819 = vmatmul.mubr.bf16.gmra.mxu0 %v1724
  %v1820 = vpop.f32.mrf.mxu0
  %v1821 = vadd.f32 0.0, %v1820
  %v1822 = vpop.f32.mrf.mxu0
  %v1823 = vpop.f32.mrf.mxu0
  %v1824 = vadd.f32 0.0, %v1823
  %v1825 = vpop.f32.mrf.mxu0
  %1826 = vmatprep.mubr.bf16.mxu0 0
  %1827 = vmatmul.mubr.bf16.gmra.mxu0 %v1727
  %v1828 = vpop.f32.mrf.mxu0
  %v1829 = vadd.f32 0.0, %v1828
  %v1830 = vpop.f32.mrf.mxu0
  %v1831 = vpop.f32.mrf.mxu0
  %v1832 = vadd.f32 0.0, %v1831
  %v1833 = vpop.f32.mrf.mxu0
  %1834 = vmatprep.mubr.bf16.mxu0 0
  %1835 = vmatmul.mubr.bf16.gmra.mxu0 %v1730
  %v1836 = vpop.f32.mrf.mxu0
  %v1837 = vadd.f32 0.0, %v1836
  %v1838 = vpop.f32.mrf.mxu0
  %v1839 = vpop.f32.mrf.mxu0
  %v1840 = vadd.f32 0.0, %v1839
  %v1841 = vpop.f32.mrf.mxu0
  %1842 = vmatprep.mubr.bf16.mxu0 0
  %1843 = vmatmul.mubr.bf16.gmra.mxu0 %v1733
  %v1844 = vpop.f32.mrf.mxu0
  %v1845 = vadd.f32 0.0, %v1844
  %v1846 = vpop.f32.mrf.mxu0
  %v1847 = vpop.f32.mrf.mxu0
  %v1848 = vadd.f32 0.0, %v1847
  %v1849 = vpop.f32.mrf.mxu0
  %1850 = vmatprep.mubr.bf16.mxu0 0
  %1851 = vmatmul.mubr.bf16.gmra.mxu0 %v1736
  %v1852 = vpop.f32.mrf.mxu0
  %v1853 = vadd.f32 0.0, %v1852
  %v1854 = vpop.f32.mrf.mxu0
  %v1855 = vpop.f32.mrf.mxu0
  %v1856 = vadd.f32 0.0, %v1855
  %v1857 = vpop.f32.mrf.mxu0
  %1858 = vdwg.mxu0
  %v1860 = vsel %vm1423, %v1063, 0
  %v1863 = vsel %vm1423, %v1064, 0
  %v1866 = vsel %vm1423, %v1065, 0
  %v1869 = vsel %vm1423, %v1066, 0
  %v1872 = vsel %vm1423, %v1067, 0
  %v1875 = vsel %vm1423, %v1068, 0
  %v1878 = vsel %vm1423, %v1069, 0
  %v1881 = vsel %vm1423, %v1070, 0
  %v1884 = vsel %vm1423, %v1191, 0
  %v1887 = vsel %vm1423, %v1192, 0
  %v1890 = vsel %vm1423, %v1193, 0
  %v1893 = vsel %vm1423, %v1194, 0
  %v1896 = vsel %vm1423, %v1195, 0
  %v1899 = vsel %vm1423, %v1196, 0
  %v1902 = vsel %vm1423, %v1197, 0
  %v1905 = vsel %vm1423, %v1198, 0
  %1907 = vmatprep.subr.bf16.mxu0 0
  %1908 = vmatpush1.bf16.xpose.msra.mxu0 %v1905
  %1909 = vmatprep.subr.bf16.mxu0 0
  %1910 = vmatpush1.bf16.xpose.msra.mxu0 %v1902
  %1911 = vmatprep.subr.bf16.mxu0 0
  %1912 = vmatpush1.bf16.xpose.msra.mxu0 %v1899
  %1913 = vmatprep.subr.bf16.mxu0 0
  %1914 = vmatpush1.bf16.xpose.msra.mxu0 %v1896
  %1915 = vmatprep.subr.bf16.mxu0 0
  %1916 = vmatpush1.bf16.xpose.msra.mxu0 %v1893
  %1917 = vmatprep.subr.bf16.mxu0 0
  %1918 = vmatpush1.bf16.xpose.msra.mxu0 %v1890
  %1919 = vmatprep.subr.bf16.mxu0 0
  %1920 = vmatpush1.bf16.xpose.msra.mxu0 %v1887
  %1921 = vmatprep.subr.bf16.mxu0 0
  %1922 = vmatpush1.bf16.xpose.msra.mxu0 %v1884
  %1923 = vmatprep.subr.bf16.mxu0 0
  %1924 = vmatpush2.bf16.xpose.msra.mxu0 0
  %1925 = vmatprep.subr.bf16.mxu0 0
  %1926 = vmatpush2.bf16.xpose.msra.mxu0 0
  %1927 = vmatprep.subr.bf16.mxu0 0
  %1928 = vmatpush2.bf16.xpose.msra.mxu0 0
  %1929 = vmatprep.subr.bf16.mxu0 0
  %1930 = vmatpush2.bf16.xpose.msra.mxu0 0
  %1931 = vmatprep.subr.bf16.mxu0 0
  %1932 = vmatpush2.bf16.xpose.msra.mxu0 0
  %1933 = vmatprep.subr.bf16.mxu0 0
  %1934 = vmatpush2.bf16.xpose.msra.mxu0 0
  %1935 = vmatprep.subr.bf16.mxu0 0
  %1936 = vmatpush2.bf16.xpose.msra.mxu0 0
  %1937 = vmatprep.subr.bf16.mxu0 0
  %1938 = vmatpush2.bf16.xpose.msra.mxu0 0
  %1939 = vmatprep.mubr.bf16.mxu0 0
  %1940 = vmatmul.mubr.bf16.gmra.mxu0 %v1860
  %v1941 = vpop.f32.mrf.mxu0
  %v1942 = vadd.f32 0.0, %v1941
  %v1943 = vpop.f32.mrf.mxu0
  %v1944 = vpop.f32.mrf.mxu0
  %v1945 = vadd.f32 0.0, %v1944
  %v1946 = vpop.f32.mrf.mxu0
  %1947 = vmatprep.mubr.bf16.mxu0 0
  %1948 = vmatmul.mubr.bf16.gmra.mxu0 %v1863
  %v1949 = vpop.f32.mrf.mxu0
  %v1950 = vadd.f32 0.0, %v1949
  %v1951 = vpop.f32.mrf.mxu0
  %v1952 = vpop.f32.mrf.mxu0
  %v1953 = vadd.f32 0.0, %v1952
  %v1954 = vpop.f32.mrf.mxu0
  %1955 = vmatprep.mubr.bf16.mxu0 0
  %1956 = vmatmul.mubr.bf16.gmra.mxu0 %v1866
  %v1957 = vpop.f32.mrf.mxu0
  %v1958 = vadd.f32 0.0, %v1957
  %v1959 = vpop.f32.mrf.mxu0
  %v1960 = vpop.f32.mrf.mxu0
  %v1961 = vadd.f32 0.0, %v1960
  %v1962 = vpop.f32.mrf.mxu0
  %1963 = vmatprep.mubr.bf16.mxu0 0
  %1964 = vmatmul.mubr.bf16.gmra.mxu0 %v1869
  %v1965 = vpop.f32.mrf.mxu0
  %v1966 = vadd.f32 0.0, %v1965
  %v1967 = vpop.f32.mrf.mxu0
  %v1968 = vpop.f32.mrf.mxu0
  %v1969 = vadd.f32 0.0, %v1968
  %v1970 = vpop.f32.mrf.mxu0
  %1971 = vmatprep.mubr.bf16.mxu0 0
  %1972 = vmatmul.mubr.bf16.gmra.mxu0 %v1872
  %v1973 = vpop.f32.mrf.mxu0
  %v1974 = vadd.f32 0.0, %v1973
  %v1975 = vpop.f32.mrf.mxu0
  %v1976 = vpop.f32.mrf.mxu0
  %v1977 = vadd.f32 0.0, %v1976
  %v1978 = vpop.f32.mrf.mxu0
  %1979 = vmatprep.mubr.bf16.mxu0 0
  %1980 = vmatmul.mubr.bf16.gmra.mxu0 %v1875
  %v1981 = vpop.f32.mrf.mxu0
  %v1982 = vadd.f32 0.0, %v1981
  %v1983 = vpop.f32.mrf.mxu0
  %v1984 = vpop.f32.mrf.mxu0
  %v1985 = vadd.f32 0.0, %v1984
  %v1986 = vpop.f32.mrf.mxu0
  %1987 = vmatprep.mubr.bf16.mxu0 0
  %1988 = vmatmul.mubr.bf16.gmra.mxu0 %v1878
  %v1989 = vpop.f32.mrf.mxu0
  %v1990 = vadd.f32 0.0, %v1989
  %v1991 = vpop.f32.mrf.mxu0
  %v1992 = vpop.f32.mrf.mxu0
  %v1993 = vadd.f32 0.0, %v1992
  %v1994 = vpop.f32.mrf.mxu0
  %1995 = vmatprep.mubr.bf16.mxu0 0
  %1996 = vmatmul.mubr.bf16.gmra.mxu0 %v1881
  %v1997 = vpop.f32.mrf.mxu0
  %v1998 = vadd.f32 0.0, %v1997
  %v1999 = vpop.f32.mrf.mxu0
  %v2000 = vpop.f32.mrf.mxu0
  %v2001 = vadd.f32 0.0, %v2000
  %v2002 = vpop.f32.mrf.mxu0
  %2003 = vdwg.mxu0
  %v2005 = vsel %vm1423, %v1071, 0
  %v2008 = vsel %vm1423, %v1072, 0
  %v2011 = vsel %vm1423, %v1073, 0
  %v2014 = vsel %vm1423, %v1074, 0
  %v2017 = vsel %vm1423, %v1075, 0
  %v2020 = vsel %vm1423, %v1076, 0
  %v2023 = vsel %vm1423, %v1077, 0
  %v2026 = vsel %vm1423, %v1078, 0
  %v2029 = vsel %vm1423, %v1199, 0
  %v2032 = vsel %vm1423, %v1200, 0
  %v2035 = vsel %vm1423, %v1201, 0
  %v2038 = vsel %vm1423, %v1202, 0
  %v2041 = vsel %vm1423, %v1203, 0
  %v2044 = vsel %vm1423, %v1204, 0
  %v2047 = vsel %vm1423, %v1205, 0
  %v2050 = vsel %vm1423, %v1206, 0
  %2052 = vmatprep.subr.bf16.mxu0 0
  %2053 = vmatpush1.bf16.xpose.msra.mxu0 %v2050
  %2054 = vmatprep.subr.bf16.mxu0 0
  %2055 = vmatpush1.bf16.xpose.msra.mxu0 %v2047
  %2056 = vmatprep.subr.bf16.mxu0 0
  %2057 = vmatpush1.bf16.xpose.msra.mxu0 %v2044
  %2058 = vmatprep.subr.bf16.mxu0 0
  %2059 = vmatpush1.bf16.xpose.msra.mxu0 %v2041
  %2060 = vmatprep.subr.bf16.mxu0 0
  %2061 = vmatpush1.bf16.xpose.msra.mxu0 %v2038
  %2062 = vmatprep.subr.bf16.mxu0 0
  %2063 = vmatpush1.bf16.xpose.msra.mxu0 %v2035
  %2064 = vmatprep.subr.bf16.mxu0 0
  %2065 = vmatpush1.bf16.xpose.msra.mxu0 %v2032
  %2066 = vmatprep.subr.bf16.mxu0 0
  %2067 = vmatpush1.bf16.xpose.msra.mxu0 %v2029
  %2068 = vmatprep.subr.bf16.mxu0 0
  %2069 = vmatpush2.bf16.xpose.msra.mxu0 0
  %2070 = vmatprep.subr.bf16.mxu0 0
  %2071 = vmatpush2.bf16.xpose.msra.mxu0 0
  %2072 = vmatprep.subr.bf16.mxu0 0
  %2073 = vmatpush2.bf16.xpose.msra.mxu0 0
  %2074 = vmatprep.subr.bf16.mxu0 0
  %2075 = vmatpush2.bf16.xpose.msra.mxu0 0
  %2076 = vmatprep.subr.bf16.mxu0 0
  %2077 = vmatpush2.bf16.xpose.msra.mxu0 0
  %2078 = vmatprep.subr.bf16.mxu0 0
  %2079 = vmatpush2.bf16.xpose.msra.mxu0 0
  %2080 = vmatprep.subr.bf16.mxu0 0
  %2081 = vmatpush2.bf16.xpose.msra.mxu0 0
  %2082 = vmatprep.subr.bf16.mxu0 0
  %2083 = vmatpush2.bf16.xpose.msra.mxu0 0
  %2084 = vmatprep.mubr.bf16.mxu0 0
  %2085 = vmatmul.mubr.bf16.gmra.mxu0 %v2005
  %v2086 = vpop.f32.mrf.mxu0
  %v2087 = vadd.f32 0.0, %v2086
  %v2088 = vpop.f32.mrf.mxu0
  %v2089 = vpop.f32.mrf.mxu0
  %v2090 = vadd.f32 0.0, %v2089
  %v2091 = vpop.f32.mrf.mxu0
  %2092 = vmatprep.mubr.bf16.mxu0 0
  %2093 = vmatmul.mubr.bf16.gmra.mxu0 %v2008
  %v2094 = vpop.f32.mrf.mxu0
  %v2095 = vadd.f32 0.0, %v2094
  %v2096 = vpop.f32.mrf.mxu0
  %v2097 = vpop.f32.mrf.mxu0
  %v2098 = vadd.f32 0.0, %v2097
  %v2099 = vpop.f32.mrf.mxu0
  %2100 = vmatprep.mubr.bf16.mxu0 0
  %2101 = vmatmul.mubr.bf16.gmra.mxu0 %v2011
  %v2102 = vpop.f32.mrf.mxu0
  %v2103 = vadd.f32 0.0, %v2102
  %v2104 = vpop.f32.mrf.mxu0
  %v2105 = vpop.f32.mrf.mxu0
  %v2106 = vadd.f32 0.0, %v2105
  %v2107 = vpop.f32.mrf.mxu0
  %2108 = vmatprep.mubr.bf16.mxu0 0
  %2109 = vmatmul.mubr.bf16.gmra.mxu0 %v2014
  %v2110 = vpop.f32.mrf.mxu0
  %v2111 = vadd.f32 0.0, %v2110
  %v2112 = vpop.f32.mrf.mxu0
  %v2113 = vpop.f32.mrf.mxu0
  %v2114 = vadd.f32 0.0, %v2113
  %v2115 = vpop.f32.mrf.mxu0
  %2116 = vmatprep.mubr.bf16.mxu0 0
  %2117 = vmatmul.mubr.bf16.gmra.mxu0 %v2017
  %v2118 = vpop.f32.mrf.mxu0
  %v2119 = vadd.f32 0.0, %v2118
  %v2120 = vpop.f32.mrf.mxu0
  %v2121 = vpop.f32.mrf.mxu0
  %v2122 = vadd.f32 0.0, %v2121
  %v2123 = vpop.f32.mrf.mxu0
  %2124 = vmatprep.mubr.bf16.mxu0 0
  %2125 = vmatmul.mubr.bf16.gmra.mxu0 %v2020
  %v2126 = vpop.f32.mrf.mxu0
  %v2127 = vadd.f32 0.0, %v2126
  %v2128 = vpop.f32.mrf.mxu0
  %v2129 = vpop.f32.mrf.mxu0
  %v2130 = vadd.f32 0.0, %v2129
  %v2131 = vpop.f32.mrf.mxu0
  %2132 = vmatprep.mubr.bf16.mxu0 0
  %2133 = vmatmul.mubr.bf16.gmra.mxu0 %v2023
  %v2134 = vpop.f32.mrf.mxu0
  %v2135 = vadd.f32 0.0, %v2134
  %v2136 = vpop.f32.mrf.mxu0
  %v2137 = vpop.f32.mrf.mxu0
  %v2138 = vadd.f32 0.0, %v2137
  %v2139 = vpop.f32.mrf.mxu0
  %2140 = vmatprep.mubr.bf16.mxu0 0
  %2141 = vmatmul.mubr.bf16.gmra.mxu0 %v2026
  %v2142 = vpop.f32.mrf.mxu0
  %v2143 = vadd.f32 0.0, %v2142
  %v2144 = vpop.f32.mrf.mxu0
  %v2145 = vpop.f32.mrf.mxu0
  %v2146 = vadd.f32 0.0, %v2145
  %v2147 = vpop.f32.mrf.mxu0
  %2148 = vdwg.mxu0
  %v2150 = vsel %vm1423, %v1079, 0
  %v2153 = vsel %vm1423, %v1080, 0
  %v2156 = vsel %vm1423, %v1081, 0
  %v2159 = vsel %vm1423, %v1082, 0
  %v2162 = vsel %vm1423, %v1083, 0
  %v2165 = vsel %vm1423, %v1084, 0
  %v2168 = vsel %vm1423, %v1085, 0
  %v2171 = vsel %vm1423, %v1086, 0
  %v2174 = vsel %vm1423, %v1207, 0
  %v2177 = vsel %vm1423, %v1208, 0
  %v2180 = vsel %vm1423, %v1209, 0
  %v2183 = vsel %vm1423, %v1210, 0
  %v2186 = vsel %vm1423, %v1211, 0
  %v2189 = vsel %vm1423, %v1212, 0
  %v2192 = vsel %vm1423, %v1213, 0
  %v2195 = vsel %vm1423, %v1214, 0
  %2197 = vmatprep.subr.bf16.mxu0 0
  %2198 = vmatpush1.bf16.xpose.msra.mxu0 %v2195
  %2199 = vmatprep.subr.bf16.mxu0 0
  %2200 = vmatpush1.bf16.xpose.msra.mxu0 %v2192
  %2201 = vmatprep.subr.bf16.mxu0 0
  %2202 = vmatpush1.bf16.xpose.msra.mxu0 %v2189
  %2203 = vmatprep.subr.bf16.mxu0 0
  %2204 = vmatpush1.bf16.xpose.msra.mxu0 %v2186
  %2205 = vmatprep.subr.bf16.mxu0 0
  %2206 = vmatpush1.bf16.xpose.msra.mxu0 %v2183
  %2207 = vmatprep.subr.bf16.mxu0 0
  %2208 = vmatpush1.bf16.xpose.msra.mxu0 %v2180
  %2209 = vmatprep.subr.bf16.mxu0 0
  %2210 = vmatpush1.bf16.xpose.msra.mxu0 %v2177
  %2211 = vmatprep.subr.bf16.mxu0 0
  %2212 = vmatpush1.bf16.xpose.msra.mxu0 %v2174
  %2213 = vmatprep.subr.bf16.mxu0 0
  %2214 = vmatpush2.bf16.xpose.msra.mxu0 0
  %2215 = vmatprep.subr.bf16.mxu0 0
  %2216 = vmatpush2.bf16.xpose.msra.mxu0 0
  %2217 = vmatprep.subr.bf16.mxu0 0
  %2218 = vmatpush2.bf16.xpose.msra.mxu0 0
  %2219 = vmatprep.subr.bf16.mxu0 0
  %2220 = vmatpush2.bf16.xpose.msra.mxu0 0
  %2221 = vmatprep.subr.bf16.mxu0 0
  %2222 = vmatpush2.bf16.xpose.msra.mxu0 0
  %2223 = vmatprep.subr.bf16.mxu0 0
  %2224 = vmatpush2.bf16.xpose.msra.mxu0 0
  %2225 = vmatprep.subr.bf16.mxu0 0
  %2226 = vmatpush2.bf16.xpose.msra.mxu0 0
  %2227 = vmatprep.subr.bf16.mxu0 0
  %2228 = vmatpush2.bf16.xpose.msra.mxu0 0
  %2229 = vmatprep.mubr.bf16.mxu0 0
  %2230 = vmatmul.mubr.bf16.gmra.mxu0 %v2150
  %v2231 = vpop.f32.mrf.mxu0
  %v2232 = vadd.f32 0.0, %v2231
  %v2233 = vpop.f32.mrf.mxu0
  %v2234 = vpop.f32.mrf.mxu0
  %v2235 = vadd.f32 0.0, %v2234
  %v2236 = vpop.f32.mrf.mxu0
  %2237 = vmatprep.mubr.bf16.mxu0 0
  %2238 = vmatmul.mubr.bf16.gmra.mxu0 %v2153
  %v2239 = vpop.f32.mrf.mxu0
  %v2240 = vadd.f32 0.0, %v2239
  %v2241 = vpop.f32.mrf.mxu0
  %v2242 = vpop.f32.mrf.mxu0
  %v2243 = vadd.f32 0.0, %v2242
  %v2244 = vpop.f32.mrf.mxu0
  %2245 = vmatprep.mubr.bf16.mxu0 0
  %2246 = vmatmul.mubr.bf16.gmra.mxu0 %v2156
  %v2247 = vpop.f32.mrf.mxu0
  %v2248 = vadd.f32 0.0, %v2247
  %v2249 = vpop.f32.mrf.mxu0
  %v2250 = vpop.f32.mrf.mxu0
  %v2251 = vadd.f32 0.0, %v2250
  %v2252 = vpop.f32.mrf.mxu0
  %2253 = vmatprep.mubr.bf16.mxu0 0
  %2254 = vmatmul.mubr.bf16.gmra.mxu0 %v2159
  %v2255 = vpop.f32.mrf.mxu0
  %v2256 = vadd.f32 0.0, %v2255
  %v2257 = vpop.f32.mrf.mxu0
  %v2258 = vpop.f32.mrf.mxu0
  %v2259 = vadd.f32 0.0, %v2258
  %v2260 = vpop.f32.mrf.mxu0
  %2261 = vmatprep.mubr.bf16.mxu0 0
  %2262 = vmatmul.mubr.bf16.gmra.mxu0 %v2162
  %v2263 = vpop.f32.mrf.mxu0
  %v2264 = vadd.f32 0.0, %v2263
  %v2265 = vpop.f32.mrf.mxu0
  %v2266 = vpop.f32.mrf.mxu0
  %v2267 = vadd.f32 0.0, %v2266
  %v2268 = vpop.f32.mrf.mxu0
  %2269 = vmatprep.mubr.bf16.mxu0 0
  %2270 = vmatmul.mubr.bf16.gmra.mxu0 %v2165
  %v2271 = vpop.f32.mrf.mxu0
  %v2272 = vadd.f32 0.0, %v2271
  %v2273 = vpop.f32.mrf.mxu0
  %v2274 = vpop.f32.mrf.mxu0
  %v2275 = vadd.f32 0.0, %v2274
  %v2276 = vpop.f32.mrf.mxu0
  %2277 = vmatprep.mubr.bf16.mxu0 0
  %2278 = vmatmul.mubr.bf16.gmra.mxu0 %v2168
  %v2279 = vpop.f32.mrf.mxu0
  %v2280 = vadd.f32 0.0, %v2279
  %v2281 = vpop.f32.mrf.mxu0
  %v2282 = vpop.f32.mrf.mxu0
  %v2283 = vadd.f32 0.0, %v2282
  %v2284 = vpop.f32.mrf.mxu0
  %2285 = vmatprep.mubr.bf16.mxu0 0
  %2286 = vmatmul.mubr.bf16.gmra.mxu0 %v2171
  %v2287 = vpop.f32.mrf.mxu0
  %v2288 = vadd.f32 0.0, %v2287
  %v2289 = vpop.f32.mrf.mxu0
  %v2290 = vpop.f32.mrf.mxu0
  %v2291 = vadd.f32 0.0, %v2290
  %v2292 = vpop.f32.mrf.mxu0
  %2293 = vdwg.mxu0
  %v2295 = vsel %vm1423, %v1087, 0
  %v2298 = vsel %vm1423, %v1088, 0
  %v2301 = vsel %vm1423, %v1089, 0
  %v2304 = vsel %vm1423, %v1090, 0
  %v2307 = vsel %vm1423, %v1091, 0
  %v2310 = vsel %vm1423, %v1092, 0
  %v2313 = vsel %vm1423, %v1093, 0
  %v2316 = vsel %vm1423, %v1094, 0
  %v2319 = vsel %vm1423, %v1215, 0
  %v2322 = vsel %vm1423, %v1216, 0
  %v2325 = vsel %vm1423, %v1217, 0
  %v2328 = vsel %vm1423, %v1218, 0
  %v2331 = vsel %vm1423, %v1219, 0
  %v2334 = vsel %vm1423, %v1220, 0
  %v2337 = vsel %vm1423, %v1221, 0
  %v2340 = vsel %vm1423, %v1222, 0
  %2342 = vmatprep.subr.bf16.mxu0 0
  %2343 = vmatpush1.bf16.xpose.msra.mxu0 %v2340
  %2344 = vmatprep.subr.bf16.mxu0 0
  %2345 = vmatpush1.bf16.xpose.msra.mxu0 %v2337
  %2346 = vmatprep.subr.bf16.mxu0 0
  %2347 = vmatpush1.bf16.xpose.msra.mxu0 %v2334
  %2348 = vmatprep.subr.bf16.mxu0 0
  %2349 = vmatpush1.bf16.xpose.msra.mxu0 %v2331
  %2350 = vmatprep.subr.bf16.mxu0 0
  %2351 = vmatpush1.bf16.xpose.msra.mxu0 %v2328
  %2352 = vmatprep.subr.bf16.mxu0 0
  %2353 = vmatpush1.bf16.xpose.msra.mxu0 %v2325
  %2354 = vmatprep.subr.bf16.mxu0 0
  %2355 = vmatpush1.bf16.xpose.msra.mxu0 %v2322
  %2356 = vmatprep.subr.bf16.mxu0 0
  %2357 = vmatpush1.bf16.xpose.msra.mxu0 %v2319
  %2358 = vmatprep.subr.bf16.mxu0 0
  %2359 = vmatpush2.bf16.xpose.msra.mxu0 0
  %2360 = vmatprep.subr.bf16.mxu0 0
  %2361 = vmatpush2.bf16.xpose.msra.mxu0 0
  %2362 = vmatprep.subr.bf16.mxu0 0
  %2363 = vmatpush2.bf16.xpose.msra.mxu0 0
  %2364 = vmatprep.subr.bf16.mxu0 0
  %2365 = vmatpush2.bf16.xpose.msra.mxu0 0
  %2366 = vmatprep.subr.bf16.mxu0 0
  %2367 = vmatpush2.bf16.xpose.msra.mxu0 0
  %2368 = vmatprep.subr.bf16.mxu0 0
  %2369 = vmatpush2.bf16.xpose.msra.mxu0 0
  %2370 = vmatprep.subr.bf16.mxu0 0
  %2371 = vmatpush2.bf16.xpose.msra.mxu0 0
  %2372 = vmatprep.subr.bf16.mxu0 0
  %2373 = vmatpush2.bf16.xpose.msra.mxu0 0
  %2374 = vmatprep.mubr.bf16.mxu0 0
  %2375 = vmatmul.mubr.bf16.gmra.mxu0 %v2295
  %v2376 = vpop.f32.mrf.mxu0
  %v2377 = vadd.f32 0.0, %v2376
  %v2378 = vpop.f32.mrf.mxu0
  %v2379 = vpop.f32.mrf.mxu0
  %v2380 = vadd.f32 0.0, %v2379
  %v2381 = vpop.f32.mrf.mxu0
  %2382 = vmatprep.mubr.bf16.mxu0 0
  %2383 = vmatmul.mubr.bf16.gmra.mxu0 %v2298
  %v2384 = vpop.f32.mrf.mxu0
  %v2385 = vadd.f32 0.0, %v2384
  %v2386 = vpop.f32.mrf.mxu0
  %v2387 = vpop.f32.mrf.mxu0
  %v2388 = vadd.f32 0.0, %v2387
  %v2389 = vpop.f32.mrf.mxu0
  %2390 = vmatprep.mubr.bf16.mxu0 0
  %2391 = vmatmul.mubr.bf16.gmra.mxu0 %v2301
  %v2392 = vpop.f32.mrf.mxu0
  %v2393 = vadd.f32 0.0, %v2392
  %v2394 = vpop.f32.mrf.mxu0
  %v2395 = vpop.f32.mrf.mxu0
  %v2396 = vadd.f32 0.0, %v2395
  %v2397 = vpop.f32.mrf.mxu0
  %2398 = vmatprep.mubr.bf16.mxu0 0
  %2399 = vmatmul.mubr.bf16.gmra.mxu0 %v2304
  %v2400 = vpop.f32.mrf.mxu0
  %v2401 = vadd.f32 0.0, %v2400
  %v2402 = vpop.f32.mrf.mxu0
  %v2403 = vpop.f32.mrf.mxu0
  %v2404 = vadd.f32 0.0, %v2403
  %v2405 = vpop.f32.mrf.mxu0
  %2406 = vmatprep.mubr.bf16.mxu0 0
  %2407 = vmatmul.mubr.bf16.gmra.mxu0 %v2307
  %v2408 = vpop.f32.mrf.mxu0
  %v2409 = vadd.f32 0.0, %v2408
  %v2410 = vpop.f32.mrf.mxu0
  %v2411 = vpop.f32.mrf.mxu0
  %v2412 = vadd.f32 0.0, %v2411
  %v2413 = vpop.f32.mrf.mxu0
  %2414 = vmatprep.mubr.bf16.mxu0 0
  %2415 = vmatmul.mubr.bf16.gmra.mxu0 %v2310
  %v2416 = vpop.f32.mrf.mxu0
  %v2417 = vadd.f32 0.0, %v2416
  %v2418 = vpop.f32.mrf.mxu0
  %v2419 = vpop.f32.mrf.mxu0
  %v2420 = vadd.f32 0.0, %v2419
  %v2421 = vpop.f32.mrf.mxu0
  %2422 = vmatprep.mubr.bf16.mxu0 0
  %2423 = vmatmul.mubr.bf16.gmra.mxu0 %v2313
  %v2424 = vpop.f32.mrf.mxu0
  %v2425 = vadd.f32 0.0, %v2424
  %v2426 = vpop.f32.mrf.mxu0
  %v2427 = vpop.f32.mrf.mxu0
  %v2428 = vadd.f32 0.0, %v2427
  %v2429 = vpop.f32.mrf.mxu0
  %2430 = vmatprep.mubr.bf16.mxu0 0
  %2431 = vmatmul.mubr.bf16.gmra.mxu0 %v2316
  %v2432 = vpop.f32.mrf.mxu0
  %v2433 = vadd.f32 0.0, %v2432
  %v2434 = vpop.f32.mrf.mxu0
  %v2435 = vpop.f32.mrf.mxu0
  %v2436 = vadd.f32 0.0, %v2435
  %v2437 = vpop.f32.mrf.mxu0
  %2438 = vdwg.mxu0
  %v2440 = vsel %vm1423, %v1095, 0
  %v2443 = vsel %vm1423, %v1096, 0
  %v2446 = vsel %vm1423, %v1097, 0
  %v2449 = vsel %vm1423, %v1098, 0
  %v2452 = vsel %vm1423, %v1099, 0
  %v2455 = vsel %vm1423, %v1100, 0
  %v2458 = vsel %vm1423, %v1101, 0
  %v2461 = vsel %vm1423, %v1102, 0
  %v2464 = vsel %vm1423, %v1223, 0
  %v2467 = vsel %vm1423, %v1224, 0
  %v2470 = vsel %vm1423, %v1225, 0
  %v2473 = vsel %vm1423, %v1226, 0
  %v2476 = vsel %vm1423, %v1227, 0
  %v2479 = vsel %vm1423, %v1228, 0
  %v2482 = vsel %vm1423, %v1229, 0
  %v2485 = vsel %vm1423, %v1230, 0
  %2487 = vmatprep.subr.bf16.mxu0 0
  %2488 = vmatpush1.bf16.xpose.msra.mxu0 %v2485
  %2489 = vmatprep.subr.bf16.mxu0 0
  %2490 = vmatpush1.bf16.xpose.msra.mxu0 %v2482
  %2491 = vmatprep.subr.bf16.mxu0 0
  %2492 = vmatpush1.bf16.xpose.msra.mxu0 %v2479
  %2493 = vmatprep.subr.bf16.mxu0 0
  %2494 = vmatpush1.bf16.xpose.msra.mxu0 %v2476
  %2495 = vmatprep.subr.bf16.mxu0 0
  %2496 = vmatpush1.bf16.xpose.msra.mxu0 %v2473
  %2497 = vmatprep.subr.bf16.mxu0 0
  %2498 = vmatpush1.bf16.xpose.msra.mxu0 %v2470
  %2499 = vmatprep.subr.bf16.mxu0 0
  %2500 = vmatpush1.bf16.xpose.msra.mxu0 %v2467
  %2501 = vmatprep.subr.bf16.mxu0 0
  %2502 = vmatpush1.bf16.xpose.msra.mxu0 %v2464
  %2503 = vmatprep.subr.bf16.mxu0 0
  %2504 = vmatpush2.bf16.xpose.msra.mxu0 0
  %2505 = vmatprep.subr.bf16.mxu0 0
  %2506 = vmatpush2.bf16.xpose.msra.mxu0 0
  %2507 = vmatprep.subr.bf16.mxu0 0
  %2508 = vmatpush2.bf16.xpose.msra.mxu0 0
  %2509 = vmatprep.subr.bf16.mxu0 0
  %2510 = vmatpush2.bf16.xpose.msra.mxu0 0
  %2511 = vmatprep.subr.bf16.mxu0 0
  %2512 = vmatpush2.bf16.xpose.msra.mxu0 0
  %2513 = vmatprep.subr.bf16.mxu0 0
  %2514 = vmatpush2.bf16.xpose.msra.mxu0 0
  %2515 = vmatprep.subr.bf16.mxu0 0
  %2516 = vmatpush2.bf16.xpose.msra.mxu0 0
  %2517 = vmatprep.subr.bf16.mxu0 0
  %2518 = vmatpush2.bf16.xpose.msra.mxu0 0
  %2519 = vmatprep.mubr.bf16.mxu0 0
  %2520 = vmatmul.mubr.bf16.gmra.mxu0 %v2440
  %v2521 = vpop.f32.mrf.mxu0
  %v2522 = vadd.f32 0.0, %v2521
  %v2523 = vpop.f32.mrf.mxu0
  %v2524 = vpop.f32.mrf.mxu0
  %v2525 = vadd.f32 0.0, %v2524
  %v2526 = vpop.f32.mrf.mxu0
  %2527 = vmatprep.mubr.bf16.mxu0 0
  %2528 = vmatmul.mubr.bf16.gmra.mxu0 %v2443
  %v2529 = vpop.f32.mrf.mxu0
  %v2530 = vadd.f32 0.0, %v2529
  %v2531 = vpop.f32.mrf.mxu0
  %v2532 = vpop.f32.mrf.mxu0
  %v2533 = vadd.f32 0.0, %v2532
  %v2534 = vpop.f32.mrf.mxu0
  %2535 = vmatprep.mubr.bf16.mxu0 0
  %2536 = vmatmul.mubr.bf16.gmra.mxu0 %v2446
  %v2537 = vpop.f32.mrf.mxu0
  %v2538 = vadd.f32 0.0, %v2537
  %v2539 = vpop.f32.mrf.mxu0
  %v2540 = vpop.f32.mrf.mxu0
  %v2541 = vadd.f32 0.0, %v2540
  %v2542 = vpop.f32.mrf.mxu0
  %2543 = vmatprep.mubr.bf16.mxu0 0
  %2544 = vmatmul.mubr.bf16.gmra.mxu0 %v2449
  %v2545 = vpop.f32.mrf.mxu0
  %v2546 = vadd.f32 0.0, %v2545
  %v2547 = vpop.f32.mrf.mxu0
  %v2548 = vpop.f32.mrf.mxu0
  %v2549 = vadd.f32 0.0, %v2548
  %v2550 = vpop.f32.mrf.mxu0
  %2551 = vmatprep.mubr.bf16.mxu0 0
  %2552 = vmatmul.mubr.bf16.gmra.mxu0 %v2452
  %v2553 = vpop.f32.mrf.mxu0
  %v2554 = vadd.f32 0.0, %v2553
  %v2555 = vpop.f32.mrf.mxu0
  %v2556 = vpop.f32.mrf.mxu0
  %v2557 = vadd.f32 0.0, %v2556
  %v2558 = vpop.f32.mrf.mxu0
  %2559 = vmatprep.mubr.bf16.mxu0 0
  %2560 = vmatmul.mubr.bf16.gmra.mxu0 %v2455
  %v2561 = vpop.f32.mrf.mxu0
  %v2562 = vadd.f32 0.0, %v2561
  %v2563 = vpop.f32.mrf.mxu0
  %v2564 = vpop.f32.mrf.mxu0
  %v2565 = vadd.f32 0.0, %v2564
  %v2566 = vpop.f32.mrf.mxu0
  %2567 = vmatprep.mubr.bf16.mxu0 0
  %2568 = vmatmul.mubr.bf16.gmra.mxu0 %v2458
  %v2569 = vpop.f32.mrf.mxu0
  %v2570 = vadd.f32 0.0, %v2569
  %v2571 = vpop.f32.mrf.mxu0
  %v2572 = vpop.f32.mrf.mxu0
  %v2573 = vadd.f32 0.0, %v2572
  %v2574 = vpop.f32.mrf.mxu0
  %2575 = vmatprep.mubr.bf16.mxu0 0
  %2576 = vmatmul.mubr.bf16.gmra.mxu0 %v2461
  %v2577 = vpop.f32.mrf.mxu0
  %v2578 = vadd.f32 0.0, %v2577
  %v2579 = vpop.f32.mrf.mxu0
  %v2580 = vpop.f32.mrf.mxu0
  %v2581 = vadd.f32 0.0, %v2580
  %v2582 = vpop.f32.mrf.mxu0
  %2583 = vdwg.mxu0
  %v2585 = vsel %vm1423, %v1103, 0
  %v2588 = vsel %vm1423, %v1104, 0
  %v2591 = vsel %vm1423, %v1105, 0
  %v2594 = vsel %vm1423, %v1106, 0
  %v2597 = vsel %vm1423, %v1107, 0
  %v2600 = vsel %vm1423, %v1108, 0
  %v2603 = vsel %vm1423, %v1109, 0
  %v2606 = vsel %vm1423, %v1110, 0
  %v2609 = vsel %vm1423, %v1231, 0
  %v2612 = vsel %vm1423, %v1232, 0
  %v2615 = vsel %vm1423, %v1233, 0
  %v2618 = vsel %vm1423, %v1234, 0
  %v2621 = vsel %vm1423, %v1235, 0
  %v2624 = vsel %vm1423, %v1236, 0
  %v2627 = vsel %vm1423, %v1237, 0
  %v2630 = vsel %vm1423, %v1238, 0
  %2632 = vmatprep.subr.bf16.mxu0 0
  %2633 = vmatpush1.bf16.xpose.msra.mxu0 %v2630
  %2634 = vmatprep.subr.bf16.mxu0 0
  %2635 = vmatpush1.bf16.xpose.msra.mxu0 %v2627
  %2636 = vmatprep.subr.bf16.mxu0 0
  %2637 = vmatpush1.bf16.xpose.msra.mxu0 %v2624
  %2638 = vmatprep.subr.bf16.mxu0 0
  %2639 = vmatpush1.bf16.xpose.msra.mxu0 %v2621
  %2640 = vmatprep.subr.bf16.mxu0 0
  %2641 = vmatpush1.bf16.xpose.msra.mxu0 %v2618
  %2642 = vmatprep.subr.bf16.mxu0 0
  %2643 = vmatpush1.bf16.xpose.msra.mxu0 %v2615
  %2644 = vmatprep.subr.bf16.mxu0 0
  %2645 = vmatpush1.bf16.xpose.msra.mxu0 %v2612
  %2646 = vmatprep.subr.bf16.mxu0 0
  %2647 = vmatpush1.bf16.xpose.msra.mxu0 %v2609
  %2648 = vmatprep.subr.bf16.mxu0 0
  %2649 = vmatpush2.bf16.xpose.msra.mxu0 0
  %2650 = vmatprep.subr.bf16.mxu0 0
  %2651 = vmatpush2.bf16.xpose.msra.mxu0 0
  %2652 = vmatprep.subr.bf16.mxu0 0
  %2653 = vmatpush2.bf16.xpose.msra.mxu0 0
  %2654 = vmatprep.subr.bf16.mxu0 0
  %2655 = vmatpush2.bf16.xpose.msra.mxu0 0
  %2656 = vmatprep.subr.bf16.mxu0 0
  %2657 = vmatpush2.bf16.xpose.msra.mxu0 0
  %2658 = vmatprep.subr.bf16.mxu0 0
  %2659 = vmatpush2.bf16.xpose.msra.mxu0 0
  %2660 = vmatprep.subr.bf16.mxu0 0
  %2661 = vmatpush2.bf16.xpose.msra.mxu0 0
  %2662 = vmatprep.subr.bf16.mxu0 0
  %2663 = vmatpush2.bf16.xpose.msra.mxu0 0
  %2664 = vmatprep.mubr.bf16.mxu0 0
  %2665 = vmatmul.mubr.bf16.gmra.mxu0 %v2585
  %v2666 = vpop.f32.mrf.mxu0
  %v2667 = vadd.f32 0.0, %v2666
  %v2668 = vpop.f32.mrf.mxu0
  %v2669 = vpop.f32.mrf.mxu0
  %v2670 = vadd.f32 0.0, %v2669
  %v2671 = vpop.f32.mrf.mxu0
  %2672 = vmatprep.mubr.bf16.mxu0 0
  %2673 = vmatmul.mubr.bf16.gmra.mxu0 %v2588
  %v2674 = vpop.f32.mrf.mxu0
  %v2675 = vadd.f32 0.0, %v2674
  %v2676 = vpop.f32.mrf.mxu0
  %v2677 = vpop.f32.mrf.mxu0
  %v2678 = vadd.f32 0.0, %v2677
  %v2679 = vpop.f32.mrf.mxu0
  %2680 = vmatprep.mubr.bf16.mxu0 0
  %2681 = vmatmul.mubr.bf16.gmra.mxu0 %v2591
  %v2682 = vpop.f32.mrf.mxu0
  %v2683 = vadd.f32 0.0, %v2682
  %v2684 = vpop.f32.mrf.mxu0
  %v2685 = vpop.f32.mrf.mxu0
  %v2686 = vadd.f32 0.0, %v2685
  %v2687 = vpop.f32.mrf.mxu0
  %2688 = vmatprep.mubr.bf16.mxu0 0
  %2689 = vmatmul.mubr.bf16.gmra.mxu0 %v2594
  %v2690 = vpop.f32.mrf.mxu0
  %v2691 = vadd.f32 0.0, %v2690
  %v2692 = vpop.f32.mrf.mxu0
  %v2693 = vpop.f32.mrf.mxu0
  %v2694 = vadd.f32 0.0, %v2693
  %v2695 = vpop.f32.mrf.mxu0
  %2696 = vmatprep.mubr.bf16.mxu0 0
  %2697 = vmatmul.mubr.bf16.gmra.mxu0 %v2597
  %v2698 = vpop.f32.mrf.mxu0
  %v2699 = vadd.f32 0.0, %v2698
  %v2700 = vpop.f32.mrf.mxu0
  %v2701 = vpop.f32.mrf.mxu0
  %v2702 = vadd.f32 0.0, %v2701
  %v2703 = vpop.f32.mrf.mxu0
  %2704 = vmatprep.mubr.bf16.mxu0 0
  %2705 = vmatmul.mubr.bf16.gmra.mxu0 %v2600
  %v2706 = vpop.f32.mrf.mxu0
  %v2707 = vadd.f32 0.0, %v2706
  %v2708 = vpop.f32.mrf.mxu0
  %v2709 = vpop.f32.mrf.mxu0
  %v2710 = vadd.f32 0.0, %v2709
  %v2711 = vpop.f32.mrf.mxu0
  %2712 = vmatprep.mubr.bf16.mxu0 0
  %2713 = vmatmul.mubr.bf16.gmra.mxu0 %v2603
  %v2714 = vpop.f32.mrf.mxu0
  %v2715 = vadd.f32 0.0, %v2714
  %v2716 = vpop.f32.mrf.mxu0
  %v2717 = vpop.f32.mrf.mxu0
  %v2718 = vadd.f32 0.0, %v2717
  %v2719 = vpop.f32.mrf.mxu0
  %2720 = vmatprep.mubr.bf16.mxu0 0
  %2721 = vmatmul.mubr.bf16.gmra.mxu0 %v2606
  %v2722 = vpop.f32.mrf.mxu0
  %v2723 = vadd.f32 0.0, %v2722
  %v2724 = vpop.f32.mrf.mxu0
  %v2725 = vpop.f32.mrf.mxu0
  %v2726 = vadd.f32 0.0, %v2725
  %v2727 = vpop.f32.mrf.mxu0
  %2728 = vdwg.mxu0
  %v2730 = vsel %vm1423, %v1111, 0
  %v2733 = vsel %vm1423, %v1112, 0
  %v2736 = vsel %vm1423, %v1113, 0
  %v2739 = vsel %vm1423, %v1114, 0
  %v2742 = vsel %vm1423, %v1115, 0
  %v2745 = vsel %vm1423, %v1116, 0
  %v2748 = vsel %vm1423, %v1117, 0
  %v2751 = vsel %vm1423, %v1118, 0
  %v2754 = vsel %vm1423, %v1239, 0
  %v2757 = vsel %vm1423, %v1240, 0
  %v2760 = vsel %vm1423, %v1241, 0
  %v2763 = vsel %vm1423, %v1242, 0
  %v2766 = vsel %vm1423, %v1243, 0
  %v2769 = vsel %vm1423, %v1244, 0
  %v2772 = vsel %vm1423, %v1245, 0
  %v2775 = vsel %vm1423, %v1246, 0
  %2777 = vmatprep.subr.bf16.mxu0 0
  %2778 = vmatpush1.bf16.xpose.msra.mxu0 %v2775
  %2779 = vmatprep.subr.bf16.mxu0 0
  %2780 = vmatpush1.bf16.xpose.msra.mxu0 %v2772
  %2781 = vmatprep.subr.bf16.mxu0 0
  %2782 = vmatpush1.bf16.xpose.msra.mxu0 %v2769
  %2783 = vmatprep.subr.bf16.mxu0 0
  %2784 = vmatpush1.bf16.xpose.msra.mxu0 %v2766
  %2785 = vmatprep.subr.bf16.mxu0 0
  %2786 = vmatpush1.bf16.xpose.msra.mxu0 %v2763
  %2787 = vmatprep.subr.bf16.mxu0 0
  %2788 = vmatpush1.bf16.xpose.msra.mxu0 %v2760
  %2789 = vmatprep.subr.bf16.mxu0 0
  %2790 = vmatpush1.bf16.xpose.msra.mxu0 %v2757
  %2791 = vmatprep.subr.bf16.mxu0 0
  %2792 = vmatpush1.bf16.xpose.msra.mxu0 %v2754
  %2793 = vmatprep.subr.bf16.mxu0 0
  %2794 = vmatpush2.bf16.xpose.msra.mxu0 0
  %2795 = vmatprep.subr.bf16.mxu0 0
  %2796 = vmatpush2.bf16.xpose.msra.mxu0 0
  %2797 = vmatprep.subr.bf16.mxu0 0
  %2798 = vmatpush2.bf16.xpose.msra.mxu0 0
  %2799 = vmatprep.subr.bf16.mxu0 0
  %2800 = vmatpush2.bf16.xpose.msra.mxu0 0
  %2801 = vmatprep.subr.bf16.mxu0 0
  %2802 = vmatpush2.bf16.xpose.msra.mxu0 0
  %2803 = vmatprep.subr.bf16.mxu0 0
  %2804 = vmatpush2.bf16.xpose.msra.mxu0 0
  %2805 = vmatprep.subr.bf16.mxu0 0
  %2806 = vmatpush2.bf16.xpose.msra.mxu0 0
  %2807 = vmatprep.subr.bf16.mxu0 0
  %2808 = vmatpush2.bf16.xpose.msra.mxu0 0
  %2809 = vmatprep.mubr.bf16.mxu0 0
  %2810 = vmatmul.mubr.bf16.gmra.mxu0 %v2730
  %v2811 = vpop.f32.mrf.mxu0
  %v2812 = vadd.f32 0.0, %v2811
  %v2813 = vpop.f32.mrf.mxu0
  %v2814 = vpop.f32.mrf.mxu0
  %v2815 = vadd.f32 0.0, %v2814
  %v2816 = vpop.f32.mrf.mxu0
  %2817 = vmatprep.mubr.bf16.mxu0 0
  %2818 = vmatmul.mubr.bf16.gmra.mxu0 %v2733
  %v2819 = vpop.f32.mrf.mxu0
  %v2820 = vadd.f32 0.0, %v2819
  %v2821 = vpop.f32.mrf.mxu0
  %v2822 = vpop.f32.mrf.mxu0
  %v2823 = vadd.f32 0.0, %v2822
  %v2824 = vpop.f32.mrf.mxu0
  %2825 = vmatprep.mubr.bf16.mxu0 0
  %2826 = vmatmul.mubr.bf16.gmra.mxu0 %v2736
  %v2827 = vpop.f32.mrf.mxu0
  %v2828 = vadd.f32 0.0, %v2827
  %v2829 = vpop.f32.mrf.mxu0
  %v2830 = vpop.f32.mrf.mxu0
  %v2831 = vadd.f32 0.0, %v2830
  %v2832 = vpop.f32.mrf.mxu0
  %2833 = vmatprep.mubr.bf16.mxu0 0
  %2834 = vmatmul.mubr.bf16.gmra.mxu0 %v2739
  %v2835 = vpop.f32.mrf.mxu0
  %v2836 = vadd.f32 0.0, %v2835
  %v2837 = vpop.f32.mrf.mxu0
  %v2838 = vpop.f32.mrf.mxu0
  %v2839 = vadd.f32 0.0, %v2838
  %v2840 = vpop.f32.mrf.mxu0
  %2841 = vmatprep.mubr.bf16.mxu0 0
  %2842 = vmatmul.mubr.bf16.gmra.mxu0 %v2742
  %v2843 = vpop.f32.mrf.mxu0
  %v2844 = vadd.f32 0.0, %v2843
  %v2845 = vpop.f32.mrf.mxu0
  %v2846 = vpop.f32.mrf.mxu0
  %v2847 = vadd.f32 0.0, %v2846
  %v2848 = vpop.f32.mrf.mxu0
  %2849 = vmatprep.mubr.bf16.mxu0 0
  %2850 = vmatmul.mubr.bf16.gmra.mxu0 %v2745
  %v2851 = vpop.f32.mrf.mxu0
  %v2852 = vadd.f32 0.0, %v2851
  %v2853 = vpop.f32.mrf.mxu0
  %v2854 = vpop.f32.mrf.mxu0
  %v2855 = vadd.f32 0.0, %v2854
  %v2856 = vpop.f32.mrf.mxu0
  %2857 = vmatprep.mubr.bf16.mxu0 0
  %2858 = vmatmul.mubr.bf16.gmra.mxu0 %v2748
  %v2859 = vpop.f32.mrf.mxu0
  %v2860 = vadd.f32 0.0, %v2859
  %v2861 = vpop.f32.mrf.mxu0
  %v2862 = vpop.f32.mrf.mxu0
  %v2863 = vadd.f32 0.0, %v2862
  %v2864 = vpop.f32.mrf.mxu0
  %2865 = vmatprep.mubr.bf16.mxu0 0
  %2866 = vmatmul.mubr.bf16.gmra.mxu0 %v2751
  %v2867 = vpop.f32.mrf.mxu0
  %v2868 = vadd.f32 0.0, %v2867
  %v2869 = vpop.f32.mrf.mxu0
  %v2870 = vpop.f32.mrf.mxu0
  %v2871 = vadd.f32 0.0, %v2870
  %v2872 = vpop.f32.mrf.mxu0
  %2873 = vdwg.mxu0
  %v2875 = vsel %vm1423, %v1119, 0
  %v2878 = vsel %vm1423, %v1120, 0
  %v2881 = vsel %vm1423, %v1121, 0
  %v2884 = vsel %vm1423, %v1122, 0
  %v2887 = vsel %vm1423, %v1123, 0
  %v2890 = vsel %vm1423, %v1124, 0
  %v2893 = vsel %vm1423, %v1125, 0
  %v2896 = vsel %vm1423, %v1126, 0
  %v2899 = vsel %vm1423, %v1247, 0
  %v2902 = vsel %vm1423, %v1248, 0
  %v2905 = vsel %vm1423, %v1249, 0
  %v2908 = vsel %vm1423, %v1250, 0
  %v2911 = vsel %vm1423, %v1251, 0
  %v2914 = vsel %vm1423, %v1252, 0
  %v2917 = vsel %vm1423, %v1253, 0
  %v2920 = vsel %vm1423, %v1254, 0
  %2922 = vmatprep.subr.bf16.mxu0 0
  %2923 = vmatpush1.bf16.xpose.msra.mxu0 %v2920
  %2924 = vmatprep.subr.bf16.mxu0 0
  %2925 = vmatpush1.bf16.xpose.msra.mxu0 %v2917
  %2926 = vmatprep.subr.bf16.mxu0 0
  %2927 = vmatpush1.bf16.xpose.msra.mxu0 %v2914
  %2928 = vmatprep.subr.bf16.mxu0 0
  %2929 = vmatpush1.bf16.xpose.msra.mxu0 %v2911
  %2930 = vmatprep.subr.bf16.mxu0 0
  %2931 = vmatpush1.bf16.xpose.msra.mxu0 %v2908
  %2932 = vmatprep.subr.bf16.mxu0 0
  %2933 = vmatpush1.bf16.xpose.msra.mxu0 %v2905
  %2934 = vmatprep.subr.bf16.mxu0 0
  %2935 = vmatpush1.bf16.xpose.msra.mxu0 %v2902
  %2936 = vmatprep.subr.bf16.mxu0 0
  %2937 = vmatpush1.bf16.xpose.msra.mxu0 %v2899
  %2938 = vmatprep.subr.bf16.mxu0 0
  %2939 = vmatpush2.bf16.xpose.msra.mxu0 0
  %2940 = vmatprep.subr.bf16.mxu0 0
  %2941 = vmatpush2.bf16.xpose.msra.mxu0 0
  %2942 = vmatprep.subr.bf16.mxu0 0
  %2943 = vmatpush2.bf16.xpose.msra.mxu0 0
  %2944 = vmatprep.subr.bf16.mxu0 0
  %2945 = vmatpush2.bf16.xpose.msra.mxu0 0
  %2946 = vmatprep.subr.bf16.mxu0 0
  %2947 = vmatpush2.bf16.xpose.msra.mxu0 0
  %2948 = vmatprep.subr.bf16.mxu0 0
  %2949 = vmatpush2.bf16.xpose.msra.mxu0 0
  %2950 = vmatprep.subr.bf16.mxu0 0
  %2951 = vmatpush2.bf16.xpose.msra.mxu0 0
  %2952 = vmatprep.subr.bf16.mxu0 0
  %2953 = vmatpush2.bf16.xpose.msra.mxu0 0
  %2954 = vmatprep.mubr.bf16.mxu0 0
  %2955 = vmatmul.mubr.bf16.gmra.mxu0 %v2875
  %v2956 = vpop.f32.mrf.mxu0
  %v2957 = vadd.f32 0.0, %v2956
  %v2958 = vpop.f32.mrf.mxu0
  %v2959 = vpop.f32.mrf.mxu0
  %v2960 = vadd.f32 0.0, %v2959
  %v2961 = vpop.f32.mrf.mxu0
  %2962 = vmatprep.mubr.bf16.mxu0 0
  %2963 = vmatmul.mubr.bf16.gmra.mxu0 %v2878
  %v2964 = vpop.f32.mrf.mxu0
  %v2965 = vadd.f32 0.0, %v2964
  %v2966 = vpop.f32.mrf.mxu0
  %v2967 = vpop.f32.mrf.mxu0
  %v2968 = vadd.f32 0.0, %v2967
  %v2969 = vpop.f32.mrf.mxu0
  %2970 = vmatprep.mubr.bf16.mxu0 0
  %2971 = vmatmul.mubr.bf16.gmra.mxu0 %v2881
  %v2972 = vpop.f32.mrf.mxu0
  %v2973 = vadd.f32 0.0, %v2972
  %v2974 = vpop.f32.mrf.mxu0
  %v2975 = vpop.f32.mrf.mxu0
  %v2976 = vadd.f32 0.0, %v2975
  %v2977 = vpop.f32.mrf.mxu0
  %2978 = vmatprep.mubr.bf16.mxu0 0
  %2979 = vmatmul.mubr.bf16.gmra.mxu0 %v2884
  %v2980 = vpop.f32.mrf.mxu0
  %v2981 = vadd.f32 0.0, %v2980
  %v2982 = vpop.f32.mrf.mxu0
  %v2983 = vpop.f32.mrf.mxu0
  %v2984 = vadd.f32 0.0, %v2983
  %v2985 = vpop.f32.mrf.mxu0
  %2986 = vmatprep.mubr.bf16.mxu0 0
  %2987 = vmatmul.mubr.bf16.gmra.mxu0 %v2887
  %v2988 = vpop.f32.mrf.mxu0
  %v2989 = vadd.f32 0.0, %v2988
  %v2990 = vpop.f32.mrf.mxu0
  %v2991 = vpop.f32.mrf.mxu0
  %v2992 = vadd.f32 0.0, %v2991
  %v2993 = vpop.f32.mrf.mxu0
  %2994 = vmatprep.mubr.bf16.mxu0 0
  %2995 = vmatmul.mubr.bf16.gmra.mxu0 %v2890
  %v2996 = vpop.f32.mrf.mxu0
  %v2997 = vadd.f32 0.0, %v2996
  %v2998 = vpop.f32.mrf.mxu0
  %v2999 = vpop.f32.mrf.mxu0
  %v3000 = vadd.f32 0.0, %v2999
  %v3001 = vpop.f32.mrf.mxu0
  %3002 = vmatprep.mubr.bf16.mxu0 0
  %3003 = vmatmul.mubr.bf16.gmra.mxu0 %v2893
  %v3004 = vpop.f32.mrf.mxu0
  %v3005 = vadd.f32 0.0, %v3004
  %v3006 = vpop.f32.mrf.mxu0
  %v3007 = vpop.f32.mrf.mxu0
  %v3008 = vadd.f32 0.0, %v3007
  %v3009 = vpop.f32.mrf.mxu0
  %3010 = vmatprep.mubr.bf16.mxu0 0
  %3011 = vmatmul.mubr.bf16.gmra.mxu0 %v2896
  %v3012 = vpop.f32.mrf.mxu0
  %v3013 = vadd.f32 0.0, %v3012
  %v3014 = vpop.f32.mrf.mxu0
  %v3015 = vpop.f32.mrf.mxu0
  %v3016 = vadd.f32 0.0, %v3015
  %v3017 = vpop.f32.mrf.mxu0
  %3018 = vdwg.mxu0
  %v3020 = vsel %vm1423, %v1127, 0
  %v3023 = vsel %vm1423, %v1128, 0
  %v3026 = vsel %vm1423, %v1129, 0
  %v3029 = vsel %vm1423, %v1130, 0
  %v3032 = vsel %vm1423, %v1131, 0
  %v3035 = vsel %vm1423, %v1132, 0
  %v3038 = vsel %vm1423, %v1133, 0
  %v3041 = vsel %vm1423, %v1134, 0
  %v3044 = vsel %vm1423, %v1255, 0
  %v3047 = vsel %vm1423, %v1256, 0
  %v3050 = vsel %vm1423, %v1257, 0
  %v3053 = vsel %vm1423, %v1258, 0
  %v3056 = vsel %vm1423, %v1259, 0
  %v3059 = vsel %vm1423, %v1260, 0
  %v3062 = vsel %vm1423, %v1261, 0
  %v3065 = vsel %vm1423, %v1262, 0
  %3067 = vmatprep.subr.bf16.mxu0 0
  %3068 = vmatpush1.bf16.xpose.msra.mxu0 %v3065
  %3069 = vmatprep.subr.bf16.mxu0 0
  %3070 = vmatpush1.bf16.xpose.msra.mxu0 %v3062
  %3071 = vmatprep.subr.bf16.mxu0 0
  %3072 = vmatpush1.bf16.xpose.msra.mxu0 %v3059
  %3073 = vmatprep.subr.bf16.mxu0 0
  %3074 = vmatpush1.bf16.xpose.msra.mxu0 %v3056
  %3075 = vmatprep.subr.bf16.mxu0 0
  %3076 = vmatpush1.bf16.xpose.msra.mxu0 %v3053
  %3077 = vmatprep.subr.bf16.mxu0 0
  %3078 = vmatpush1.bf16.xpose.msra.mxu0 %v3050
  %3079 = vmatprep.subr.bf16.mxu0 0
  %3080 = vmatpush1.bf16.xpose.msra.mxu0 %v3047
  %3081 = vmatprep.subr.bf16.mxu0 0
  %3082 = vmatpush1.bf16.xpose.msra.mxu0 %v3044
  %3083 = vmatprep.subr.bf16.mxu0 0
  %3084 = vmatpush2.bf16.xpose.msra.mxu0 0
  %3085 = vmatprep.subr.bf16.mxu0 0
  %3086 = vmatpush2.bf16.xpose.msra.mxu0 0
  %3087 = vmatprep.subr.bf16.mxu0 0
  %3088 = vmatpush2.bf16.xpose.msra.mxu0 0
  %3089 = vmatprep.subr.bf16.mxu0 0
  %3090 = vmatpush2.bf16.xpose.msra.mxu0 0
  %3091 = vmatprep.subr.bf16.mxu0 0
  %3092 = vmatpush2.bf16.xpose.msra.mxu0 0
  %3093 = vmatprep.subr.bf16.mxu0 0
  %3094 = vmatpush2.bf16.xpose.msra.mxu0 0
  %3095 = vmatprep.subr.bf16.mxu0 0
  %3096 = vmatpush2.bf16.xpose.msra.mxu0 0
  %3097 = vmatprep.subr.bf16.mxu0 0
  %3098 = vmatpush2.bf16.xpose.msra.mxu0 0
  %3099 = vmatprep.mubr.bf16.mxu0 0
  %3100 = vmatmul.mubr.bf16.gmra.mxu0 %v3020
  %v3101 = vpop.f32.mrf.mxu0
  %v3102 = vadd.f32 0.0, %v3101
  %v3103 = vpop.f32.mrf.mxu0
  %v3104 = vpop.f32.mrf.mxu0
  %v3105 = vadd.f32 0.0, %v3104
  %v3106 = vpop.f32.mrf.mxu0
  %3107 = vmatprep.mubr.bf16.mxu0 0
  %3108 = vmatmul.mubr.bf16.gmra.mxu0 %v3023
  %v3109 = vpop.f32.mrf.mxu0
  %v3110 = vadd.f32 0.0, %v3109
  %v3111 = vpop.f32.mrf.mxu0
  %v3112 = vpop.f32.mrf.mxu0
  %v3113 = vadd.f32 0.0, %v3112
  %v3114 = vpop.f32.mrf.mxu0
  %3115 = vmatprep.mubr.bf16.mxu0 0
  %3116 = vmatmul.mubr.bf16.gmra.mxu0 %v3026
  %v3117 = vpop.f32.mrf.mxu0
  %v3118 = vadd.f32 0.0, %v3117
  %v3119 = vpop.f32.mrf.mxu0
  %v3120 = vpop.f32.mrf.mxu0
  %v3121 = vadd.f32 0.0, %v3120
  %v3122 = vpop.f32.mrf.mxu0
  %3123 = vmatprep.mubr.bf16.mxu0 0
  %3124 = vmatmul.mubr.bf16.gmra.mxu0 %v3029
  %v3125 = vpop.f32.mrf.mxu0
  %v3126 = vadd.f32 0.0, %v3125
  %v3127 = vpop.f32.mrf.mxu0
  %v3128 = vpop.f32.mrf.mxu0
  %v3129 = vadd.f32 0.0, %v3128
  %v3130 = vpop.f32.mrf.mxu0
  %3131 = vmatprep.mubr.bf16.mxu0 0
  %3132 = vmatmul.mubr.bf16.gmra.mxu0 %v3032
  %v3133 = vpop.f32.mrf.mxu0
  %v3134 = vadd.f32 0.0, %v3133
  %v3135 = vpop.f32.mrf.mxu0
  %v3136 = vpop.f32.mrf.mxu0
  %v3137 = vadd.f32 0.0, %v3136
  %v3138 = vpop.f32.mrf.mxu0
  %3139 = vmatprep.mubr.bf16.mxu0 0
  %3140 = vmatmul.mubr.bf16.gmra.mxu0 %v3035
  %v3141 = vpop.f32.mrf.mxu0
  %v3142 = vadd.f32 0.0, %v3141
  %v3143 = vpop.f32.mrf.mxu0
  %v3144 = vpop.f32.mrf.mxu0
  %v3145 = vadd.f32 0.0, %v3144
  %v3146 = vpop.f32.mrf.mxu0
  %3147 = vmatprep.mubr.bf16.mxu0 0
  %3148 = vmatmul.mubr.bf16.gmra.mxu0 %v3038
  %v3149 = vpop.f32.mrf.mxu0
  %v3150 = vadd.f32 0.0, %v3149
  %v3151 = vpop.f32.mrf.mxu0
  %v3152 = vpop.f32.mrf.mxu0
  %v3153 = vadd.f32 0.0, %v3152
  %v3154 = vpop.f32.mrf.mxu0
  %3155 = vmatprep.mubr.bf16.mxu0 0
  %3156 = vmatmul.mubr.bf16.gmra.mxu0 %v3041
  %v3157 = vpop.f32.mrf.mxu0
  %v3158 = vadd.f32 0.0, %v3157
  %v3159 = vpop.f32.mrf.mxu0
  %v3160 = vpop.f32.mrf.mxu0
  %v3161 = vadd.f32 0.0, %v3160
  %v3162 = vpop.f32.mrf.mxu0
  %3163 = vdwg.mxu0
  %v3165 = vsel %vm1423, %v1135, 0
  %v3168 = vsel %vm1423, %v1136, 0
  %v3171 = vsel %vm1423, %v1137, 0
  %v3174 = vsel %vm1423, %v1138, 0
  %v3177 = vsel %vm1423, %v1139, 0
  %v3180 = vsel %vm1423, %v1140, 0
  %v3183 = vsel %vm1423, %v1141, 0
  %v3186 = vsel %vm1423, %v1142, 0
  %v3189 = vsel %vm1423, %v1263, 0
  %v3192 = vsel %vm1423, %v1264, 0
  %v3195 = vsel %vm1423, %v1265, 0
  %v3198 = vsel %vm1423, %v1266, 0
  %v3201 = vsel %vm1423, %v1267, 0
  %v3204 = vsel %vm1423, %v1268, 0
  %v3207 = vsel %vm1423, %v1269, 0
  %v3210 = vsel %vm1423, %v1270, 0
  %3212 = vmatprep.subr.bf16.mxu0 0
  %3213 = vmatpush1.bf16.xpose.msra.mxu0 %v3210
  %3214 = vmatprep.subr.bf16.mxu0 0
  %3215 = vmatpush1.bf16.xpose.msra.mxu0 %v3207
  %3216 = vmatprep.subr.bf16.mxu0 0
  %3217 = vmatpush1.bf16.xpose.msra.mxu0 %v3204
  %3218 = vmatprep.subr.bf16.mxu0 0
  %3219 = vmatpush1.bf16.xpose.msra.mxu0 %v3201
  %3220 = vmatprep.subr.bf16.mxu0 0
  %3221 = vmatpush1.bf16.xpose.msra.mxu0 %v3198
  %3222 = vmatprep.subr.bf16.mxu0 0
  %3223 = vmatpush1.bf16.xpose.msra.mxu0 %v3195
  %3224 = vmatprep.subr.bf16.mxu0 0
  %3225 = vmatpush1.bf16.xpose.msra.mxu0 %v3192
  %3226 = vmatprep.subr.bf16.mxu0 0
  %3227 = vmatpush1.bf16.xpose.msra.mxu0 %v3189
  %3228 = vmatprep.subr.bf16.mxu0 0
  %3229 = vmatpush2.bf16.xpose.msra.mxu0 0
  %3230 = vmatprep.subr.bf16.mxu0 0
  %3231 = vmatpush2.bf16.xpose.msra.mxu0 0
  %3232 = vmatprep.subr.bf16.mxu0 0
  %3233 = vmatpush2.bf16.xpose.msra.mxu0 0
  %3234 = vmatprep.subr.bf16.mxu0 0
  %3235 = vmatpush2.bf16.xpose.msra.mxu0 0
  %3236 = vmatprep.subr.bf16.mxu0 0
  %3237 = vmatpush2.bf16.xpose.msra.mxu0 0
  %3238 = vmatprep.subr.bf16.mxu0 0
  %3239 = vmatpush2.bf16.xpose.msra.mxu0 0
  %3240 = vmatprep.subr.bf16.mxu0 0
  %3241 = vmatpush2.bf16.xpose.msra.mxu0 0
  %3242 = vmatprep.subr.bf16.mxu0 0
  %3243 = vmatpush2.bf16.xpose.msra.mxu0 0
  %3244 = vmatprep.mubr.bf16.mxu0 0
  %3245 = vmatmul.mubr.bf16.gmra.mxu0 %v3165
  %v3246 = vpop.f32.mrf.mxu0
  %v3247 = vadd.f32 0.0, %v3246
  %v3248 = vpop.f32.mrf.mxu0
  %v3249 = vpop.f32.mrf.mxu0
  %v3250 = vadd.f32 0.0, %v3249
  %v3251 = vpop.f32.mrf.mxu0
  %3252 = vmatprep.mubr.bf16.mxu0 0
  %3253 = vmatmul.mubr.bf16.gmra.mxu0 %v3168
  %v3254 = vpop.f32.mrf.mxu0
  %v3255 = vadd.f32 0.0, %v3254
  %v3256 = vpop.f32.mrf.mxu0
  %v3257 = vpop.f32.mrf.mxu0
  %v3258 = vadd.f32 0.0, %v3257
  %v3259 = vpop.f32.mrf.mxu0
  %3260 = vmatprep.mubr.bf16.mxu0 0
  %3261 = vmatmul.mubr.bf16.gmra.mxu0 %v3171
  %v3262 = vpop.f32.mrf.mxu0
  %v3263 = vadd.f32 0.0, %v3262
  %v3264 = vpop.f32.mrf.mxu0
  %v3265 = vpop.f32.mrf.mxu0
  %v3266 = vadd.f32 0.0, %v3265
  %v3267 = vpop.f32.mrf.mxu0
  %3268 = vmatprep.mubr.bf16.mxu0 0
  %3269 = vmatmul.mubr.bf16.gmra.mxu0 %v3174
  %v3270 = vpop.f32.mrf.mxu0
  %v3271 = vadd.f32 0.0, %v3270
  %v3272 = vpop.f32.mrf.mxu0
  %v3273 = vpop.f32.mrf.mxu0
  %v3274 = vadd.f32 0.0, %v3273
  %v3275 = vpop.f32.mrf.mxu0
  %3276 = vmatprep.mubr.bf16.mxu0 0
  %3277 = vmatmul.mubr.bf16.gmra.mxu0 %v3177
  %v3278 = vpop.f32.mrf.mxu0
  %v3279 = vadd.f32 0.0, %v3278
  %v3280 = vpop.f32.mrf.mxu0
  %v3281 = vpop.f32.mrf.mxu0
  %v3282 = vadd.f32 0.0, %v3281
  %v3283 = vpop.f32.mrf.mxu0
  %3284 = vmatprep.mubr.bf16.mxu0 0
  %3285 = vmatmul.mubr.bf16.gmra.mxu0 %v3180
  %v3286 = vpop.f32.mrf.mxu0
  %v3287 = vadd.f32 0.0, %v3286
  %v3288 = vpop.f32.mrf.mxu0
  %v3289 = vpop.f32.mrf.mxu0
  %v3290 = vadd.f32 0.0, %v3289
  %v3291 = vpop.f32.mrf.mxu0
  %3292 = vmatprep.mubr.bf16.mxu0 0
  %3293 = vmatmul.mubr.bf16.gmra.mxu0 %v3183
  %v3294 = vpop.f32.mrf.mxu0
  %v3295 = vadd.f32 0.0, %v3294
  %v3296 = vpop.f32.mrf.mxu0
  %v3297 = vpop.f32.mrf.mxu0
  %v3298 = vadd.f32 0.0, %v3297
  %v3299 = vpop.f32.mrf.mxu0
  %3300 = vmatprep.mubr.bf16.mxu0 0
  %3301 = vmatmul.mubr.bf16.gmra.mxu0 %v3186
  %v3302 = vpop.f32.mrf.mxu0
  %v3303 = vadd.f32 0.0, %v3302
  %v3304 = vpop.f32.mrf.mxu0
  %v3305 = vpop.f32.mrf.mxu0
  %v3306 = vadd.f32 0.0, %v3305
  %v3307 = vpop.f32.mrf.mxu0
  %3308 = vdwg.mxu0
  %v3310 = vsel %vm1423, %v1143, 0
  %v3313 = vsel %vm1423, %v1144, 0
  %v3316 = vsel %vm1423, %v1145, 0
  %v3319 = vsel %vm1423, %v1146, 0
  %v3322 = vsel %vm1423, %v1147, 0
  %v3325 = vsel %vm1423, %v1148, 0
  %v3328 = vsel %vm1423, %v1149, 0
  %v3331 = vsel %vm1423, %v1150, 0
  %v3334 = vsel %vm1423, %v1271, 0
  %v3337 = vsel %vm1423, %v1272, 0
  %v3340 = vsel %vm1423, %v1273, 0
  %v3343 = vsel %vm1423, %v1274, 0
  %v3346 = vsel %vm1423, %v1275, 0
  %v3349 = vsel %vm1423, %v1276, 0
  %v3352 = vsel %vm1423, %v1277, 0
  %v3355 = vsel %vm1423, %v1278, 0
  %3357 = vmatprep.subr.bf16.mxu0 0
  %3358 = vmatpush1.bf16.xpose.msra.mxu0 %v3355
  %3359 = vmatprep.subr.bf16.mxu0 0
  %3360 = vmatpush1.bf16.xpose.msra.mxu0 %v3352
  %3361 = vmatprep.subr.bf16.mxu0 0
  %3362 = vmatpush1.bf16.xpose.msra.mxu0 %v3349
  %3363 = vmatprep.subr.bf16.mxu0 0
  %3364 = vmatpush1.bf16.xpose.msra.mxu0 %v3346
  %3365 = vmatprep.subr.bf16.mxu0 0
  %3366 = vmatpush1.bf16.xpose.msra.mxu0 %v3343
  %3367 = vmatprep.subr.bf16.mxu0 0
  %3368 = vmatpush1.bf16.xpose.msra.mxu0 %v3340
  %3369 = vmatprep.subr.bf16.mxu0 0
  %3370 = vmatpush1.bf16.xpose.msra.mxu0 %v3337
  %3371 = vmatprep.subr.bf16.mxu0 0
  %3372 = vmatpush1.bf16.xpose.msra.mxu0 %v3334
  %3373 = vmatprep.subr.bf16.mxu0 0
  %3374 = vmatpush2.bf16.xpose.msra.mxu0 0
  %3375 = vmatprep.subr.bf16.mxu0 0
  %3376 = vmatpush2.bf16.xpose.msra.mxu0 0
  %3377 = vmatprep.subr.bf16.mxu0 0
  %3378 = vmatpush2.bf16.xpose.msra.mxu0 0
  %3379 = vmatprep.subr.bf16.mxu0 0
  %3380 = vmatpush2.bf16.xpose.msra.mxu0 0
  %3381 = vmatprep.subr.bf16.mxu0 0
  %3382 = vmatpush2.bf16.xpose.msra.mxu0 0
  %3383 = vmatprep.subr.bf16.mxu0 0
  %3384 = vmatpush2.bf16.xpose.msra.mxu0 0
  %3385 = vmatprep.subr.bf16.mxu0 0
  %3386 = vmatpush2.bf16.xpose.msra.mxu0 0
  %3387 = vmatprep.subr.bf16.mxu0 0
  %3388 = vmatpush2.bf16.xpose.msra.mxu0 0
  %3389 = vmatprep.mubr.bf16.mxu0 0
  %3390 = vmatmul.mubr.bf16.gmra.mxu0 %v3310
  %v3391 = vpop.f32.mrf.mxu0
  %v3392 = vadd.f32 0.0, %v3391
  %v3393 = vpop.f32.mrf.mxu0
  %v3394 = vpop.f32.mrf.mxu0
  %v3395 = vadd.f32 0.0, %v3394
  %v3396 = vpop.f32.mrf.mxu0
  %3397 = vmatprep.mubr.bf16.mxu0 0
  %3398 = vmatmul.mubr.bf16.gmra.mxu0 %v3313
  %v3399 = vpop.f32.mrf.mxu0
  %v3400 = vadd.f32 0.0, %v3399
  %v3401 = vpop.f32.mrf.mxu0
  %v3402 = vpop.f32.mrf.mxu0
  %v3403 = vadd.f32 0.0, %v3402
  %v3404 = vpop.f32.mrf.mxu0
  %3405 = vmatprep.mubr.bf16.mxu0 0
  %3406 = vmatmul.mubr.bf16.gmra.mxu0 %v3316
  %v3407 = vpop.f32.mrf.mxu0
  %v3408 = vadd.f32 0.0, %v3407
  %v3409 = vpop.f32.mrf.mxu0
  %v3410 = vpop.f32.mrf.mxu0
  %v3411 = vadd.f32 0.0, %v3410
  %v3412 = vpop.f32.mrf.mxu0
  %3413 = vmatprep.mubr.bf16.mxu0 0
  %3414 = vmatmul.mubr.bf16.gmra.mxu0 %v3319
  %v3415 = vpop.f32.mrf.mxu0
  %v3416 = vadd.f32 0.0, %v3415
  %v3417 = vpop.f32.mrf.mxu0
  %v3418 = vpop.f32.mrf.mxu0
  %v3419 = vadd.f32 0.0, %v3418
  %v3420 = vpop.f32.mrf.mxu0
  %3421 = vmatprep.mubr.bf16.mxu0 0
  %3422 = vmatmul.mubr.bf16.gmra.mxu0 %v3322
  %v3423 = vpop.f32.mrf.mxu0
  %v3424 = vadd.f32 0.0, %v3423
  %v3425 = vpop.f32.mrf.mxu0
  %v3426 = vpop.f32.mrf.mxu0
  %v3427 = vadd.f32 0.0, %v3426
  %v3428 = vpop.f32.mrf.mxu0
  %3429 = vmatprep.mubr.bf16.mxu0 0
  %3430 = vmatmul.mubr.bf16.gmra.mxu0 %v3325
  %v3431 = vpop.f32.mrf.mxu0
  %v3432 = vadd.f32 0.0, %v3431
  %v3433 = vpop.f32.mrf.mxu0
  %v3434 = vpop.f32.mrf.mxu0
  %v3435 = vadd.f32 0.0, %v3434
  %v3436 = vpop.f32.mrf.mxu0
  %3437 = vmatprep.mubr.bf16.mxu0 0
  %3438 = vmatmul.mubr.bf16.gmra.mxu0 %v3328
  %v3439 = vpop.f32.mrf.mxu0
  %v3440 = vadd.f32 0.0, %v3439
  %v3441 = vpop.f32.mrf.mxu0
  %v3442 = vpop.f32.mrf.mxu0
  %v3443 = vadd.f32 0.0, %v3442
  %v3444 = vpop.f32.mrf.mxu0
  %3445 = vmatprep.mubr.bf16.mxu0 0
  %3446 = vmatmul.mubr.bf16.gmra.mxu0 %v3331
  %v3447 = vpop.f32.mrf.mxu0
  %v3448 = vadd.f32 0.0, %v3447
  %v3449 = vpop.f32.mrf.mxu0
  %v3450 = vpop.f32.mrf.mxu0
  %v3451 = vadd.f32 0.0, %v3450
  %v3452 = vpop.f32.mrf.mxu0
  %3453 = vdwg.mxu0
  %v3455 = vsel %vm1423, %v1151, 0
  %v3458 = vsel %vm1423, %v1152, 0
  %v3461 = vsel %vm1423, %v1153, 0
  %v3464 = vsel %vm1423, %v1154, 0
  %v3467 = vsel %vm1423, %v1155, 0
  %v3470 = vsel %vm1423, %v1156, 0
  %v3473 = vsel %vm1423, %v1157, 0
  %v3476 = vsel %vm1423, %v1158, 0
  %v3479 = vsel %vm1423, %v1279, 0
  %v3482 = vsel %vm1423, %v1280, 0
  %v3485 = vsel %vm1423, %v1281, 0
  %v3488 = vsel %vm1423, %v1282, 0
  %v3491 = vsel %vm1423, %v1283, 0
  %v3494 = vsel %vm1423, %v1284, 0
  %v3497 = vsel %vm1423, %v1285, 0
  %v3500 = vsel %vm1423, %v1286, 0
  %3502 = vmatprep.subr.bf16.mxu0 0
  %3503 = vmatpush1.bf16.xpose.msra.mxu0 %v3500
  %3504 = vmatprep.subr.bf16.mxu0 0
  %3505 = vmatpush1.bf16.xpose.msra.mxu0 %v3497
  %3506 = vmatprep.subr.bf16.mxu0 0
  %3507 = vmatpush1.bf16.xpose.msra.mxu0 %v3494
  %3508 = vmatprep.subr.bf16.mxu0 0
  %3509 = vmatpush1.bf16.xpose.msra.mxu0 %v3491
  %3510 = vmatprep.subr.bf16.mxu0 0
  %3511 = vmatpush1.bf16.xpose.msra.mxu0 %v3488
  %3512 = vmatprep.subr.bf16.mxu0 0
  %3513 = vmatpush1.bf16.xpose.msra.mxu0 %v3485
  %3514 = vmatprep.subr.bf16.mxu0 0
  %3515 = vmatpush1.bf16.xpose.msra.mxu0 %v3482
  %3516 = vmatprep.subr.bf16.mxu0 0
  %3517 = vmatpush1.bf16.xpose.msra.mxu0 %v3479
  %3518 = vmatprep.subr.bf16.mxu0 0
  %3519 = vmatpush2.bf16.xpose.msra.mxu0 0
  %3520 = vmatprep.subr.bf16.mxu0 0
  %3521 = vmatpush2.bf16.xpose.msra.mxu0 0
  %3522 = vmatprep.subr.bf16.mxu0 0
  %3523 = vmatpush2.bf16.xpose.msra.mxu0 0
  %3524 = vmatprep.subr.bf16.mxu0 0
  %3525 = vmatpush2.bf16.xpose.msra.mxu0 0
  %3526 = vmatprep.subr.bf16.mxu0 0
  %3527 = vmatpush2.bf16.xpose.msra.mxu0 0
  %3528 = vmatprep.subr.bf16.mxu0 0
  %3529 = vmatpush2.bf16.xpose.msra.mxu0 0
  %3530 = vmatprep.subr.bf16.mxu0 0
  %3531 = vmatpush2.bf16.xpose.msra.mxu0 0
  %3532 = vmatprep.subr.bf16.mxu0 0
  %3533 = vmatpush2.bf16.xpose.msra.mxu0 0
  %3534 = vmatprep.mubr.bf16.mxu0 0
  %3535 = vmatmul.mubr.bf16.gmra.mxu0 %v3455
  %v3536 = vpop.f32.mrf.mxu0
  %v3537 = vadd.f32 0.0, %v3536
  %v3538 = vpop.f32.mrf.mxu0
  %v3539 = vpop.f32.mrf.mxu0
  %v3540 = vadd.f32 0.0, %v3539
  %v3541 = vpop.f32.mrf.mxu0
  %3542 = vmatprep.mubr.bf16.mxu0 0
  %3543 = vmatmul.mubr.bf16.gmra.mxu0 %v3458
  %v3544 = vpop.f32.mrf.mxu0
  %v3545 = vadd.f32 0.0, %v3544
  %v3546 = vpop.f32.mrf.mxu0
  %v3547 = vpop.f32.mrf.mxu0
  %v3548 = vadd.f32 0.0, %v3547
  %v3549 = vpop.f32.mrf.mxu0
  %3550 = vmatprep.mubr.bf16.mxu0 0
  %3551 = vmatmul.mubr.bf16.gmra.mxu0 %v3461
  %v3552 = vpop.f32.mrf.mxu0
  %v3553 = vadd.f32 0.0, %v3552
  %v3554 = vpop.f32.mrf.mxu0
  %v3555 = vpop.f32.mrf.mxu0
  %v3556 = vadd.f32 0.0, %v3555
  %v3557 = vpop.f32.mrf.mxu0
  %3558 = vmatprep.mubr.bf16.mxu0 0
  %3559 = vmatmul.mubr.bf16.gmra.mxu0 %v3464
  %v3560 = vpop.f32.mrf.mxu0
  %v3561 = vadd.f32 0.0, %v3560
  %v3562 = vpop.f32.mrf.mxu0
  %v3563 = vpop.f32.mrf.mxu0
  %v3564 = vadd.f32 0.0, %v3563
  %v3565 = vpop.f32.mrf.mxu0
  %3566 = vmatprep.mubr.bf16.mxu0 0
  %3567 = vmatmul.mubr.bf16.gmra.mxu0 %v3467
  %v3568 = vpop.f32.mrf.mxu0
  %v3569 = vadd.f32 0.0, %v3568
  %v3570 = vpop.f32.mrf.mxu0
  %v3571 = vpop.f32.mrf.mxu0
  %v3572 = vadd.f32 0.0, %v3571
  %v3573 = vpop.f32.mrf.mxu0
  %3574 = vmatprep.mubr.bf16.mxu0 0
  %3575 = vmatmul.mubr.bf16.gmra.mxu0 %v3470
  %v3576 = vpop.f32.mrf.mxu0
  %v3577 = vadd.f32 0.0, %v3576
  %v3578 = vpop.f32.mrf.mxu0
  %v3579 = vpop.f32.mrf.mxu0
  %v3580 = vadd.f32 0.0, %v3579
  %v3581 = vpop.f32.mrf.mxu0
  %3582 = vmatprep.mubr.bf16.mxu0 0
  %3583 = vmatmul.mubr.bf16.gmra.mxu0 %v3473
  %v3584 = vpop.f32.mrf.mxu0
  %v3585 = vadd.f32 0.0, %v3584
  %v3586 = vpop.f32.mrf.mxu0
  %v3587 = vpop.f32.mrf.mxu0
  %v3588 = vadd.f32 0.0, %v3587
  %v3589 = vpop.f32.mrf.mxu0
  %3590 = vmatprep.mubr.bf16.mxu0 0
  %3591 = vmatmul.mubr.bf16.gmra.mxu0 %v3476
  %v3592 = vpop.f32.mrf.mxu0
  %v3593 = vadd.f32 0.0, %v3592
  %v3594 = vpop.f32.mrf.mxu0
  %v3595 = vpop.f32.mrf.mxu0
  %v3596 = vadd.f32 0.0, %v3595
  %v3597 = vpop.f32.mrf.mxu0
  %3598 = vdwg.mxu0
  %v3600 = vsel %vm1423, %v1159, 0
  %v3603 = vsel %vm1423, %v1160, 0
  %v3606 = vsel %vm1423, %v1161, 0
  %v3609 = vsel %vm1423, %v1162, 0
  %v3612 = vsel %vm1423, %v1163, 0
  %v3615 = vsel %vm1423, %v1164, 0
  %v3618 = vsel %vm1423, %v1165, 0
  %v3621 = vsel %vm1423, %v1166, 0
  %v3624 = vsel %vm1423, %v1287, 0
  %v3627 = vsel %vm1423, %v1288, 0
  %v3630 = vsel %vm1423, %v1289, 0
  %v3633 = vsel %vm1423, %v1290, 0
  %v3636 = vsel %vm1423, %v1291, 0
  %v3639 = vsel %vm1423, %v1292, 0
  %v3642 = vsel %vm1423, %v1293, 0
  %v3645 = vsel %vm1423, %v1294, 0
  %3647 = vmatprep.subr.bf16.mxu0 0
  %3648 = vmatpush1.bf16.xpose.msra.mxu0 %v3645
  %3649 = vmatprep.subr.bf16.mxu0 0
  %3650 = vmatpush1.bf16.xpose.msra.mxu0 %v3642
  %3651 = vmatprep.subr.bf16.mxu0 0
  %3652 = vmatpush1.bf16.xpose.msra.mxu0 %v3639
  %3653 = vmatprep.subr.bf16.mxu0 0
  %3654 = vmatpush1.bf16.xpose.msra.mxu0 %v3636
  %3655 = vmatprep.subr.bf16.mxu0 0
  %3656 = vmatpush1.bf16.xpose.msra.mxu0 %v3633
  %3657 = vmatprep.subr.bf16.mxu0 0
  %3658 = vmatpush1.bf16.xpose.msra.mxu0 %v3630
  %3659 = vmatprep.subr.bf16.mxu0 0
  %3660 = vmatpush1.bf16.xpose.msra.mxu0 %v3627
  %3661 = vmatprep.subr.bf16.mxu0 0
  %3662 = vmatpush1.bf16.xpose.msra.mxu0 %v3624
  %3663 = vmatprep.subr.bf16.mxu0 0
  %3664 = vmatpush2.bf16.xpose.msra.mxu0 0
  %3665 = vmatprep.subr.bf16.mxu0 0
  %3666 = vmatpush2.bf16.xpose.msra.mxu0 0
  %3667 = vmatprep.subr.bf16.mxu0 0
  %3668 = vmatpush2.bf16.xpose.msra.mxu0 0
  %3669 = vmatprep.subr.bf16.mxu0 0
  %3670 = vmatpush2.bf16.xpose.msra.mxu0 0
  %3671 = vmatprep.subr.bf16.mxu0 0
  %3672 = vmatpush2.bf16.xpose.msra.mxu0 0
  %3673 = vmatprep.subr.bf16.mxu0 0
  %3674 = vmatpush2.bf16.xpose.msra.mxu0 0
  %3675 = vmatprep.subr.bf16.mxu0 0
  %3676 = vmatpush2.bf16.xpose.msra.mxu0 0
  %3677 = vmatprep.subr.bf16.mxu0 0
  %3678 = vmatpush2.bf16.xpose.msra.mxu0 0
  %3679 = vmatprep.mubr.bf16.mxu0 0
  %3680 = vmatmul.mubr.bf16.gmra.mxu0 %v3600
  %v3681 = vpop.f32.mrf.mxu0
  %v3682 = vadd.f32 0.0, %v3681
  %v3683 = vpop.f32.mrf.mxu0
  %v3684 = vpop.f32.mrf.mxu0
  %v3685 = vadd.f32 0.0, %v3684
  %v3686 = vpop.f32.mrf.mxu0
  %3687 = vmatprep.mubr.bf16.mxu0 0
  %3688 = vmatmul.mubr.bf16.gmra.mxu0 %v3603
  %v3689 = vpop.f32.mrf.mxu0
  %v3690 = vadd.f32 0.0, %v3689
  %v3691 = vpop.f32.mrf.mxu0
  %v3692 = vpop.f32.mrf.mxu0
  %v3693 = vadd.f32 0.0, %v3692
  %v3694 = vpop.f32.mrf.mxu0
  %3695 = vmatprep.mubr.bf16.mxu0 0
  %3696 = vmatmul.mubr.bf16.gmra.mxu0 %v3606
  %v3697 = vpop.f32.mrf.mxu0
  %v3698 = vadd.f32 0.0, %v3697
  %v3699 = vpop.f32.mrf.mxu0
  %v3700 = vpop.f32.mrf.mxu0
  %v3701 = vadd.f32 0.0, %v3700
  %v3702 = vpop.f32.mrf.mxu0
  %3703 = vmatprep.mubr.bf16.mxu0 0
  %3704 = vmatmul.mubr.bf16.gmra.mxu0 %v3609
  %v3705 = vpop.f32.mrf.mxu0
  %v3706 = vadd.f32 0.0, %v3705
  %v3707 = vpop.f32.mrf.mxu0
  %v3708 = vpop.f32.mrf.mxu0
  %v3709 = vadd.f32 0.0, %v3708
  %v3710 = vpop.f32.mrf.mxu0
  %3711 = vmatprep.mubr.bf16.mxu0 0
  %3712 = vmatmul.mubr.bf16.gmra.mxu0 %v3612
  %v3713 = vpop.f32.mrf.mxu0
  %v3714 = vadd.f32 0.0, %v3713
  %v3715 = vpop.f32.mrf.mxu0
  %v3716 = vpop.f32.mrf.mxu0
  %v3717 = vadd.f32 0.0, %v3716
  %v3718 = vpop.f32.mrf.mxu0
  %3719 = vmatprep.mubr.bf16.mxu0 0
  %3720 = vmatmul.mubr.bf16.gmra.mxu0 %v3615
  %v3721 = vpop.f32.mrf.mxu0
  %v3722 = vadd.f32 0.0, %v3721
  %v3723 = vpop.f32.mrf.mxu0
  %v3724 = vpop.f32.mrf.mxu0
  %v3725 = vadd.f32 0.0, %v3724
  %v3726 = vpop.f32.mrf.mxu0
  %3727 = vmatprep.mubr.bf16.mxu0 0
  %3728 = vmatmul.mubr.bf16.gmra.mxu0 %v3618
  %v3729 = vpop.f32.mrf.mxu0
  %v3730 = vadd.f32 0.0, %v3729
  %v3731 = vpop.f32.mrf.mxu0
  %v3732 = vpop.f32.mrf.mxu0
  %v3733 = vadd.f32 0.0, %v3732
  %v3734 = vpop.f32.mrf.mxu0
  %3735 = vmatprep.mubr.bf16.mxu0 0
  %3736 = vmatmul.mubr.bf16.gmra.mxu0 %v3621
  %v3737 = vpop.f32.mrf.mxu0
  %v3738 = vadd.f32 0.0, %v3737
  %v3739 = vpop.f32.mrf.mxu0
  %v3740 = vpop.f32.mrf.mxu0
  %v3741 = vadd.f32 0.0, %v3740
  %v3742 = vpop.f32.mrf.mxu0
  %3743 = vdwg.mxu0
  %3744 = vmax.xlane.f32.xlu0 %v1507
  %v3745 = vpop.xlane.xlu0 %3744
  %3746 = vmax.xlane.f32.xlu0 %v1510
  %v3747 = vpop.xlane.xlu0 %3746
  %3748 = vmax.xlane.f32.xlu0 %v1515
  %v3749 = vpop.xlane.xlu0 %3748
  %3750 = vmax.xlane.f32.xlu0 %v1518
  %v3751 = vpop.xlane.xlu0 %3750
  %3752 = vmax.xlane.f32.xlu0 %v1523
  %v3753 = vpop.xlane.xlu0 %3752
  %3754 = vmax.xlane.f32.xlu0 %v1526
  %v3755 = vpop.xlane.xlu0 %3754
  %3756 = vmax.xlane.f32.xlu0 %v1531
  %v3757 = vpop.xlane.xlu0 %3756
  %3758 = vmax.xlane.f32.xlu0 %v1534
  %v3759 = vpop.xlane.xlu0 %3758
  %3760 = vmax.xlane.f32.xlu0 %v1539
  %v3761 = vpop.xlane.xlu0 %3760
  %3762 = vmax.xlane.f32.xlu0 %v1542
  %v3763 = vpop.xlane.xlu0 %3762
  %3764 = vmax.xlane.f32.xlu0 %v1547
  %v3765 = vpop.xlane.xlu0 %3764
  %3766 = vmax.xlane.f32.xlu0 %v1550
  %v3767 = vpop.xlane.xlu0 %3766
  %3768 = vmax.xlane.f32.xlu0 %v1555
  %v3769 = vpop.xlane.xlu0 %3768
  %3770 = vmax.xlane.f32.xlu0 %v1558
  %v3771 = vpop.xlane.xlu0 %3770
  %3772 = vmax.xlane.f32.xlu0 %v1563
  %v3773 = vpop.xlane.xlu0 %3772
  %3774 = vmax.xlane.f32.xlu0 %v1566
  %v3775 = vpop.xlane.xlu0 %3774
  %3776 = vmax.xlane.f32.xlu0 %v1652
  %v3777 = vpop.xlane.xlu0 %3776
  %3778 = vmax.xlane.f32.xlu0 %v1655
  %v3779 = vpop.xlane.xlu0 %3778
  %3780 = vmax.xlane.f32.xlu0 %v1660
  %v3781 = vpop.xlane.xlu0 %3780
  %3782 = vmax.xlane.f32.xlu0 %v1663
  %v3783 = vpop.xlane.xlu0 %3782
  %3784 = vmax.xlane.f32.xlu0 %v1668
  %v3785 = vpop.xlane.xlu0 %3784
  %3786 = vmax.xlane.f32.xlu0 %v1671
  %v3787 = vpop.xlane.xlu0 %3786
  %3788 = vmax.xlane.f32.xlu0 %v1676
  %v3789 = vpop.xlane.xlu0 %3788
  %3790 = vmax.xlane.f32.xlu0 %v1679
  %v3791 = vpop.xlane.xlu0 %3790
  %3792 = vmax.xlane.f32.xlu0 %v1684
  %v3793 = vpop.xlane.xlu0 %3792
  %3794 = vmax.xlane.f32.xlu0 %v1687
  %v3795 = vpop.xlane.xlu0 %3794
  %3796 = vmax.xlane.f32.xlu0 %v1692
  %v3797 = vpop.xlane.xlu0 %3796
  %3798 = vmax.xlane.f32.xlu0 %v1695
  %v3799 = vpop.xlane.xlu0 %3798
  %3800 = vmax.xlane.f32.xlu0 %v1700
  %v3801 = vpop.xlane.xlu0 %3800
  %3802 = vmax.xlane.f32.xlu0 %v1703
  %v3803 = vpop.xlane.xlu0 %3802
  %3804 = vmax.xlane.f32.xlu0 %v1708
  %v3805 = vpop.xlane.xlu0 %3804
  %3806 = vmax.xlane.f32.xlu0 %v1711
  %v3807 = vpop.xlane.xlu0 %3806
  %3808 = vmax.xlane.f32.xlu0 %v1797
  %v3809 = vpop.xlane.xlu0 %3808
  %3810 = vmax.xlane.f32.xlu0 %v1800
  %v3811 = vpop.xlane.xlu0 %3810
  %3812 = vmax.xlane.f32.xlu0 %v1805
  %v3813 = vpop.xlane.xlu0 %3812
  %3814 = vmax.xlane.f32.xlu0 %v1808
  %v3815 = vpop.xlane.xlu0 %3814
  %3816 = vmax.xlane.f32.xlu0 %v1813
  %v3817 = vpop.xlane.xlu0 %3816
  %3818 = vmax.xlane.f32.xlu0 %v1816
  %v3819 = vpop.xlane.xlu0 %3818
  %3820 = vmax.xlane.f32.xlu0 %v1821
  %v3821 = vpop.xlane.xlu0 %3820
  %3822 = vmax.xlane.f32.xlu0 %v1824
  %v3823 = vpop.xlane.xlu0 %3822
  %3824 = vmax.xlane.f32.xlu0 %v1829
  %v3825 = vpop.xlane.xlu0 %3824
  %3826 = vmax.xlane.f32.xlu0 %v1832
  %v3827 = vpop.xlane.xlu0 %3826
  %3828 = vmax.xlane.f32.xlu0 %v1837
  %v3829 = vpop.xlane.xlu0 %3828
  %3830 = vmax.xlane.f32.xlu0 %v1840
  %v3831 = vpop.xlane.xlu0 %3830
  %3832 = vmax.xlane.f32.xlu0 %v1845
  %v3833 = vpop.xlane.xlu0 %3832
  %3834 = vmax.xlane.f32.xlu0 %v1848
  %v3835 = vpop.xlane.xlu0 %3834
  %3836 = vmax.xlane.f32.xlu0 %v1853
  %v3837 = vpop.xlane.xlu0 %3836
  %3838 = vmax.xlane.f32.xlu0 %v1856
  %v3839 = vpop.xlane.xlu0 %3838
  %3840 = vmax.xlane.f32.xlu0 %v1942
  %v3841 = vpop.xlane.xlu0 %3840
  %3842 = vmax.xlane.f32.xlu0 %v1945
  %v3843 = vpop.xlane.xlu0 %3842
  %3844 = vmax.xlane.f32.xlu0 %v1950
  %v3845 = vpop.xlane.xlu0 %3844
  %3846 = vmax.xlane.f32.xlu0 %v1953
  %v3847 = vpop.xlane.xlu0 %3846
  %3848 = vmax.xlane.f32.xlu0 %v1958
  %v3849 = vpop.xlane.xlu0 %3848
  %3850 = vmax.xlane.f32.xlu0 %v1961
  %v3851 = vpop.xlane.xlu0 %3850
  %3852 = vmax.xlane.f32.xlu0 %v1966
  %v3853 = vpop.xlane.xlu0 %3852
  %3854 = vmax.xlane.f32.xlu0 %v1969
  %v3855 = vpop.xlane.xlu0 %3854
  %3856 = vmax.xlane.f32.xlu0 %v1974
  %v3857 = vpop.xlane.xlu0 %3856
  %3858 = vmax.xlane.f32.xlu0 %v1977
  %v3859 = vpop.xlane.xlu0 %3858
  %3860 = vmax.xlane.f32.xlu0 %v1982
  %v3861 = vpop.xlane.xlu0 %3860
  %3862 = vmax.xlane.f32.xlu0 %v1985
  %v3863 = vpop.xlane.xlu0 %3862
  %3864 = vmax.xlane.f32.xlu0 %v1990
  %v3865 = vpop.xlane.xlu0 %3864
  %3866 = vmax.xlane.f32.xlu0 %v1993
  %v3867 = vpop.xlane.xlu0 %3866
  %3868 = vmax.xlane.f32.xlu0 %v1998
  %v3869 = vpop.xlane.xlu0 %3868
  %3870 = vmax.xlane.f32.xlu0 %v2001
  %v3871 = vpop.xlane.xlu0 %3870
  %3872 = vmax.xlane.f32.xlu0 %v2087
  %v3873 = vpop.xlane.xlu0 %3872
  %3874 = vmax.xlane.f32.xlu0 %v2090
  %v3875 = vpop.xlane.xlu0 %3874
  %3876 = vmax.xlane.f32.xlu0 %v2095
  %v3877 = vpop.xlane.xlu0 %3876
  %3878 = vmax.xlane.f32.xlu0 %v2098
  %v3879 = vpop.xlane.xlu0 %3878
  %3880 = vmax.xlane.f32.xlu0 %v2103
  %v3881 = vpop.xlane.xlu0 %3880
  %3882 = vmax.xlane.f32.xlu0 %v2106
  %v3883 = vpop.xlane.xlu0 %3882
  %3884 = vmax.xlane.f32.xlu0 %v2111
  %v3885 = vpop.xlane.xlu0 %3884
  %3886 = vmax.xlane.f32.xlu0 %v2114
  %v3887 = vpop.xlane.xlu0 %3886
  %3888 = vmax.xlane.f32.xlu0 %v2119
  %v3889 = vpop.xlane.xlu0 %3888
  %3890 = vmax.xlane.f32.xlu0 %v2122
  %v3891 = vpop.xlane.xlu0 %3890
  %3892 = vmax.xlane.f32.xlu0 %v2127
  %v3893 = vpop.xlane.xlu0 %3892
  %3894 = vmax.xlane.f32.xlu0 %v2130
  %v3895 = vpop.xlane.xlu0 %3894
  %3896 = vmax.xlane.f32.xlu0 %v2135
  %v3897 = vpop.xlane.xlu0 %3896
  %3898 = vmax.xlane.f32.xlu0 %v2138
  %v3899 = vpop.xlane.xlu0 %3898
  %3900 = vmax.xlane.f32.xlu0 %v2143
  %v3901 = vpop.xlane.xlu0 %3900
  %3902 = vmax.xlane.f32.xlu0 %v2146
  %v3903 = vpop.xlane.xlu0 %3902
  %3904 = vmax.xlane.f32.xlu0 %v2232
  %v3905 = vpop.xlane.xlu0 %3904
  %3906 = vmax.xlane.f32.xlu0 %v2235
  %v3907 = vpop.xlane.xlu0 %3906
  %3908 = vmax.xlane.f32.xlu0 %v2240
  %v3909 = vpop.xlane.xlu0 %3908
  %3910 = vmax.xlane.f32.xlu0 %v2243
  %v3911 = vpop.xlane.xlu0 %3910
  %3912 = vmax.xlane.f32.xlu0 %v2248
  %v3913 = vpop.xlane.xlu0 %3912
  %3914 = vmax.xlane.f32.xlu0 %v2251
  %v3915 = vpop.xlane.xlu0 %3914
  %3916 = vmax.xlane.f32.xlu0 %v2256
  %v3917 = vpop.xlane.xlu0 %3916
  %3918 = vmax.xlane.f32.xlu0 %v2259
  %v3919 = vpop.xlane.xlu0 %3918
  %3920 = vmax.xlane.f32.xlu0 %v2264
  %v3921 = vpop.xlane.xlu0 %3920
  %3922 = vmax.xlane.f32.xlu0 %v2267
  %v3923 = vpop.xlane.xlu0 %3922
  %3924 = vmax.xlane.f32.xlu0 %v2272
  %v3925 = vpop.xlane.xlu0 %3924
  %3926 = vmax.xlane.f32.xlu0 %v2275
  %v3927 = vpop.xlane.xlu0 %3926
  %3928 = vmax.xlane.f32.xlu0 %v2280
  %v3929 = vpop.xlane.xlu0 %3928
  %3930 = vmax.xlane.f32.xlu0 %v2283
  %v3931 = vpop.xlane.xlu0 %3930
  %3932 = vmax.xlane.f32.xlu0 %v2288
  %v3933 = vpop.xlane.xlu0 %3932
  %3934 = vmax.xlane.f32.xlu0 %v2291
  %v3935 = vpop.xlane.xlu0 %3934
  %3936 = vmax.xlane.f32.xlu0 %v2377
  %v3937 = vpop.xlane.xlu0 %3936
  %3938 = vmax.xlane.f32.xlu0 %v2380
  %v3939 = vpop.xlane.xlu0 %3938
  %3940 = vmax.xlane.f32.xlu0 %v2385
  %v3941 = vpop.xlane.xlu0 %3940
  %3942 = vmax.xlane.f32.xlu0 %v2388
  %v3943 = vpop.xlane.xlu0 %3942
  %3944 = vmax.xlane.f32.xlu0 %v2393
  %v3945 = vpop.xlane.xlu0 %3944
  %3946 = vmax.xlane.f32.xlu0 %v2396
  %v3947 = vpop.xlane.xlu0 %3946
  %3948 = vmax.xlane.f32.xlu0 %v2401
  %v3949 = vpop.xlane.xlu0 %3948
  %3950 = vmax.xlane.f32.xlu0 %v2404
  %v3951 = vpop.xlane.xlu0 %3950
  %3952 = vmax.xlane.f32.xlu0 %v2409
  %v3953 = vpop.xlane.xlu0 %3952
  %3954 = vmax.xlane.f32.xlu0 %v2412
  %v3955 = vpop.xlane.xlu0 %3954
  %3956 = vmax.xlane.f32.xlu0 %v2417
  %v3957 = vpop.xlane.xlu0 %3956
  %3958 = vmax.xlane.f32.xlu0 %v2420
  %v3959 = vpop.xlane.xlu0 %3958
  %3960 = vmax.xlane.f32.xlu0 %v2425
  %v3961 = vpop.xlane.xlu0 %3960
  %3962 = vmax.xlane.f32.xlu0 %v2428
  %v3963 = vpop.xlane.xlu0 %3962
  %3964 = vmax.xlane.f32.xlu0 %v2433
  %v3965 = vpop.xlane.xlu0 %3964
  %3966 = vmax.xlane.f32.xlu0 %v2436
  %v3967 = vpop.xlane.xlu0 %3966
  %3968 = vmax.xlane.f32.xlu0 %v2522
  %v3969 = vpop.xlane.xlu0 %3968
  %3970 = vmax.xlane.f32.xlu0 %v2525
  %v3971 = vpop.xlane.xlu0 %3970
  %3972 = vmax.xlane.f32.xlu0 %v2530
  %v3973 = vpop.xlane.xlu0 %3972
  %3974 = vmax.xlane.f32.xlu0 %v2533
  %v3975 = vpop.xlane.xlu0 %3974
  %3976 = vmax.xlane.f32.xlu0 %v2538
  %v3977 = vpop.xlane.xlu0 %3976
  %3978 = vmax.xlane.f32.xlu0 %v2541
  %v3979 = vpop.xlane.xlu0 %3978
  %3980 = vmax.xlane.f32.xlu0 %v2546
  %v3981 = vpop.xlane.xlu0 %3980
  %3982 = vmax.xlane.f32.xlu0 %v2549
  %v3983 = vpop.xlane.xlu0 %3982
  %3984 = vmax.xlane.f32.xlu0 %v2554
  %v3985 = vpop.xlane.xlu0 %3984
  %3986 = vmax.xlane.f32.xlu0 %v2557
  %v3987 = vpop.xlane.xlu0 %3986
  %3988 = vmax.xlane.f32.xlu0 %v2562
  %v3989 = vpop.xlane.xlu0 %3988
  %3990 = vmax.xlane.f32.xlu0 %v2565
  %v3991 = vpop.xlane.xlu0 %3990
  %3992 = vmax.xlane.f32.xlu0 %v2570
  %v3993 = vpop.xlane.xlu0 %3992
  %3994 = vmax.xlane.f32.xlu0 %v2573
  %v3995 = vpop.xlane.xlu0 %3994
  %3996 = vmax.xlane.f32.xlu0 %v2578
  %v3997 = vpop.xlane.xlu0 %3996
  %3998 = vmax.xlane.f32.xlu0 %v2581
  %v3999 = vpop.xlane.xlu0 %3998
  %4000 = vmax.xlane.f32.xlu0 %v2667
  %v4001 = vpop.xlane.xlu0 %4000
  %4002 = vmax.xlane.f32.xlu0 %v2670
  %v4003 = vpop.xlane.xlu0 %4002
  %4004 = vmax.xlane.f32.xlu0 %v2675
  %v4005 = vpop.xlane.xlu0 %4004
  %4006 = vmax.xlane.f32.xlu0 %v2678
  %v4007 = vpop.xlane.xlu0 %4006
  %4008 = vmax.xlane.f32.xlu0 %v2683
  %v4009 = vpop.xlane.xlu0 %4008
  %4010 = vmax.xlane.f32.xlu0 %v2686
  %v4011 = vpop.xlane.xlu0 %4010
  %4012 = vmax.xlane.f32.xlu0 %v2691
  %v4013 = vpop.xlane.xlu0 %4012
  %4014 = vmax.xlane.f32.xlu0 %v2694
  %v4015 = vpop.xlane.xlu0 %4014
  %4016 = vmax.xlane.f32.xlu0 %v2699
  %v4017 = vpop.xlane.xlu0 %4016
  %4018 = vmax.xlane.f32.xlu0 %v2702
  %v4019 = vpop.xlane.xlu0 %4018
  %4020 = vmax.xlane.f32.xlu0 %v2707
  %v4021 = vpop.xlane.xlu0 %4020
  %4022 = vmax.xlane.f32.xlu0 %v2710
  %v4023 = vpop.xlane.xlu0 %4022
  %4024 = vmax.xlane.f32.xlu0 %v2715
  %v4025 = vpop.xlane.xlu0 %4024
  %4026 = vmax.xlane.f32.xlu0 %v2718
  %v4027 = vpop.xlane.xlu0 %4026
  %4028 = vmax.xlane.f32.xlu0 %v2723
  %v4029 = vpop.xlane.xlu0 %4028
  %4030 = vmax.xlane.f32.xlu0 %v2726
  %v4031 = vpop.xlane.xlu0 %4030
  %4032 = vmax.xlane.f32.xlu0 %v2812
  %v4033 = vpop.xlane.xlu0 %4032
  %4034 = vmax.xlane.f32.xlu0 %v2815
  %v4035 = vpop.xlane.xlu0 %4034
  %4036 = vmax.xlane.f32.xlu0 %v2820
  %v4037 = vpop.xlane.xlu0 %4036
  %4038 = vmax.xlane.f32.xlu0 %v2823
  %v4039 = vpop.xlane.xlu0 %4038
  %4040 = vmax.xlane.f32.xlu0 %v2828
  %v4041 = vpop.xlane.xlu0 %4040
  %4042 = vmax.xlane.f32.xlu0 %v2831
  %v4043 = vpop.xlane.xlu0 %4042
  %4044 = vmax.xlane.f32.xlu0 %v2836
  %v4045 = vpop.xlane.xlu0 %4044
  %4046 = vmax.xlane.f32.xlu0 %v2839
  %v4047 = vpop.xlane.xlu0 %4046
  %4048 = vmax.xlane.f32.xlu0 %v2844
  %v4049 = vpop.xlane.xlu0 %4048
  %4050 = vmax.xlane.f32.xlu0 %v2847
  %v4051 = vpop.xlane.xlu0 %4050
  %4052 = vmax.xlane.f32.xlu0 %v2852
  %v4053 = vpop.xlane.xlu0 %4052
  %4054 = vmax.xlane.f32.xlu0 %v2855
  %v4055 = vpop.xlane.xlu0 %4054
  %4056 = vmax.xlane.f32.xlu0 %v2860
  %v4057 = vpop.xlane.xlu0 %4056
  %4058 = vmax.xlane.f32.xlu0 %v2863
  %v4059 = vpop.xlane.xlu0 %4058
  %4060 = vmax.xlane.f32.xlu0 %v2868
  %v4061 = vpop.xlane.xlu0 %4060
  %4062 = vmax.xlane.f32.xlu0 %v2871
  %v4063 = vpop.xlane.xlu0 %4062
  %4064 = vmax.xlane.f32.xlu0 %v2957
  %v4065 = vpop.xlane.xlu0 %4064
  %4066 = vmax.xlane.f32.xlu0 %v2960
  %v4067 = vpop.xlane.xlu0 %4066
  %4068 = vmax.xlane.f32.xlu0 %v2965
  %v4069 = vpop.xlane.xlu0 %4068
  %4070 = vmax.xlane.f32.xlu0 %v2968
  %v4071 = vpop.xlane.xlu0 %4070
  %4072 = vmax.xlane.f32.xlu0 %v2973
  %v4073 = vpop.xlane.xlu0 %4072
  %4074 = vmax.xlane.f32.xlu0 %v2976
  %v4075 = vpop.xlane.xlu0 %4074
  %4076 = vmax.xlane.f32.xlu0 %v2981
  %v4077 = vpop.xlane.xlu0 %4076
  %4078 = vmax.xlane.f32.xlu0 %v2984
  %v4079 = vpop.xlane.xlu0 %4078
  %4080 = vmax.xlane.f32.xlu0 %v2989
  %v4081 = vpop.xlane.xlu0 %4080
  %4082 = vmax.xlane.f32.xlu0 %v2992
  %v4083 = vpop.xlane.xlu0 %4082
  %4084 = vmax.xlane.f32.xlu0 %v2997
  %v4085 = vpop.xlane.xlu0 %4084
  %4086 = vmax.xlane.f32.xlu0 %v3000
  %v4087 = vpop.xlane.xlu0 %4086
  %4088 = vmax.xlane.f32.xlu0 %v3005
  %v4089 = vpop.xlane.xlu0 %4088
  %4090 = vmax.xlane.f32.xlu0 %v3008
  %v4091 = vpop.xlane.xlu0 %4090
  %4092 = vmax.xlane.f32.xlu0 %v3013
  %v4093 = vpop.xlane.xlu0 %4092
  %4094 = vmax.xlane.f32.xlu0 %v3016
  %v4095 = vpop.xlane.xlu0 %4094
  %4096 = vmax.xlane.f32.xlu0 %v3102
  %v4097 = vpop.xlane.xlu0 %4096
  %4098 = vmax.xlane.f32.xlu0 %v3105
  %v4099 = vpop.xlane.xlu0 %4098
  %4100 = vmax.xlane.f32.xlu0 %v3110
  %v4101 = vpop.xlane.xlu0 %4100
  %4102 = vmax.xlane.f32.xlu0 %v3113
  %v4103 = vpop.xlane.xlu0 %4102
  %4104 = vmax.xlane.f32.xlu0 %v3118
  %v4105 = vpop.xlane.xlu0 %4104
  %4106 = vmax.xlane.f32.xlu0 %v3121
  %v4107 = vpop.xlane.xlu0 %4106
  %4108 = vmax.xlane.f32.xlu0 %v3126
  %v4109 = vpop.xlane.xlu0 %4108
  %4110 = vmax.xlane.f32.xlu0 %v3129
  %v4111 = vpop.xlane.xlu0 %4110
  %4112 = vmax.xlane.f32.xlu0 %v3134
  %v4113 = vpop.xlane.xlu0 %4112
  %4114 = vmax.xlane.f32.xlu0 %v3137
  %v4115 = vpop.xlane.xlu0 %4114
  %4116 = vmax.xlane.f32.xlu0 %v3142
  %v4117 = vpop.xlane.xlu0 %4116
  %4118 = vmax.xlane.f32.xlu0 %v3145
  %v4119 = vpop.xlane.xlu0 %4118
  %4120 = vmax.xlane.f32.xlu0 %v3150
  %v4121 = vpop.xlane.xlu0 %4120
  %4122 = vmax.xlane.f32.xlu0 %v3153
  %v4123 = vpop.xlane.xlu0 %4122
  %4124 = vmax.xlane.f32.xlu0 %v3158
  %v4125 = vpop.xlane.xlu0 %4124
  %4126 = vmax.xlane.f32.xlu0 %v3161
  %v4127 = vpop.xlane.xlu0 %4126
  %4128 = vmax.xlane.f32.xlu0 %v3247
  %v4129 = vpop.xlane.xlu0 %4128
  %4130 = vmax.xlane.f32.xlu0 %v3250
  %v4131 = vpop.xlane.xlu0 %4130
  %4132 = vmax.xlane.f32.xlu0 %v3255
  %v4133 = vpop.xlane.xlu0 %4132
  %4134 = vmax.xlane.f32.xlu0 %v3258
  %v4135 = vpop.xlane.xlu0 %4134
  %4136 = vmax.xlane.f32.xlu0 %v3263
  %v4137 = vpop.xlane.xlu0 %4136
  %4138 = vmax.xlane.f32.xlu0 %v3266
  %v4139 = vpop.xlane.xlu0 %4138
  %4140 = vmax.xlane.f32.xlu0 %v3271
  %v4141 = vpop.xlane.xlu0 %4140
  %4142 = vmax.xlane.f32.xlu0 %v3274
  %v4143 = vpop.xlane.xlu0 %4142
  %4144 = vmax.xlane.f32.xlu0 %v3279
  %v4145 = vpop.xlane.xlu0 %4144
  %4146 = vmax.xlane.f32.xlu0 %v3282
  %v4147 = vpop.xlane.xlu0 %4146
  %4148 = vmax.xlane.f32.xlu0 %v3287
  %v4149 = vpop.xlane.xlu0 %4148
  %4150 = vmax.xlane.f32.xlu0 %v3290
  %v4151 = vpop.xlane.xlu0 %4150
  %4152 = vmax.xlane.f32.xlu0 %v3295
  %v4153 = vpop.xlane.xlu0 %4152
  %4154 = vmax.xlane.f32.xlu0 %v3298
  %v4155 = vpop.xlane.xlu0 %4154
  %4156 = vmax.xlane.f32.xlu0 %v3303
  %v4157 = vpop.xlane.xlu0 %4156
  %4158 = vmax.xlane.f32.xlu0 %v3306
  %v4159 = vpop.xlane.xlu0 %4158
  %4160 = vmax.xlane.f32.xlu0 %v3392
  %v4161 = vpop.xlane.xlu0 %4160
  %4162 = vmax.xlane.f32.xlu0 %v3395
  %v4163 = vpop.xlane.xlu0 %4162
  %4164 = vmax.xlane.f32.xlu0 %v3400
  %v4165 = vpop.xlane.xlu0 %4164
  %4166 = vmax.xlane.f32.xlu0 %v3403
  %v4167 = vpop.xlane.xlu0 %4166
  %4168 = vmax.xlane.f32.xlu0 %v3408
  %v4169 = vpop.xlane.xlu0 %4168
  %4170 = vmax.xlane.f32.xlu0 %v3411
  %v4171 = vpop.xlane.xlu0 %4170
  %4172 = vmax.xlane.f32.xlu0 %v3416
  %v4173 = vpop.xlane.xlu0 %4172
  %4174 = vmax.xlane.f32.xlu0 %v3419
  %v4175 = vpop.xlane.xlu0 %4174
  %4176 = vmax.xlane.f32.xlu0 %v3424
  %v4177 = vpop.xlane.xlu0 %4176
  %4178 = vmax.xlane.f32.xlu0 %v3427
  %v4179 = vpop.xlane.xlu0 %4178
  %4180 = vmax.xlane.f32.xlu0 %v3432
  %v4181 = vpop.xlane.xlu0 %4180
  %4182 = vmax.xlane.f32.xlu0 %v3435
  %v4183 = vpop.xlane.xlu0 %4182
  %4184 = vmax.xlane.f32.xlu0 %v3440
  %v4185 = vpop.xlane.xlu0 %4184
  %4186 = vmax.xlane.f32.xlu0 %v3443
  %v4187 = vpop.xlane.xlu0 %4186
  %4188 = vmax.xlane.f32.xlu0 %v3448
  %v4189 = vpop.xlane.xlu0 %4188
  %4190 = vmax.xlane.f32.xlu0 %v3451
  %v4191 = vpop.xlane.xlu0 %4190
  %4192 = vmax.xlane.f32.xlu0 %v3537
  %v4193 = vpop.xlane.xlu0 %4192
  %4194 = vmax.xlane.f32.xlu0 %v3540
  %v4195 = vpop.xlane.xlu0 %4194
  %4196 = vmax.xlane.f32.xlu0 %v3545
  %v4197 = vpop.xlane.xlu0 %4196
  %4198 = vmax.xlane.f32.xlu0 %v3548
  %v4199 = vpop.xlane.xlu0 %4198
  %4200 = vmax.xlane.f32.xlu0 %v3553
  %v4201 = vpop.xlane.xlu0 %4200
  %4202 = vmax.xlane.f32.xlu0 %v3556
  %v4203 = vpop.xlane.xlu0 %4202
  %4204 = vmax.xlane.f32.xlu0 %v3561
  %v4205 = vpop.xlane.xlu0 %4204
  %4206 = vmax.xlane.f32.xlu0 %v3564
  %v4207 = vpop.xlane.xlu0 %4206
  %4208 = vmax.xlane.f32.xlu0 %v3569
  %v4209 = vpop.xlane.xlu0 %4208
  %4210 = vmax.xlane.f32.xlu0 %v3572
  %v4211 = vpop.xlane.xlu0 %4210
  %4212 = vmax.xlane.f32.xlu0 %v3577
  %v4213 = vpop.xlane.xlu0 %4212
  %4214 = vmax.xlane.f32.xlu0 %v3580
  %v4215 = vpop.xlane.xlu0 %4214
  %4216 = vmax.xlane.f32.xlu0 %v3585
  %v4217 = vpop.xlane.xlu0 %4216
  %4218 = vmax.xlane.f32.xlu0 %v3588
  %v4219 = vpop.xlane.xlu0 %4218
  %4220 = vmax.xlane.f32.xlu0 %v3593
  %v4221 = vpop.xlane.xlu0 %4220
  %4222 = vmax.xlane.f32.xlu0 %v3596
  %v4223 = vpop.xlane.xlu0 %4222
  %4224 = vmax.xlane.f32.xlu0 %v3682
  %v4225 = vpop.xlane.xlu0 %4224
  %4226 = vmax.xlane.f32.xlu0 %v3685
  %v4227 = vpop.xlane.xlu0 %4226
  %4228 = vmax.xlane.f32.xlu0 %v3690
  %v4229 = vpop.xlane.xlu0 %4228
  %4230 = vmax.xlane.f32.xlu0 %v3693
  %v4231 = vpop.xlane.xlu0 %4230
  %4232 = vmax.xlane.f32.xlu0 %v3698
  %v4233 = vpop.xlane.xlu0 %4232
  %4234 = vmax.xlane.f32.xlu0 %v3701
  %v4235 = vpop.xlane.xlu0 %4234
  %4236 = vmax.xlane.f32.xlu0 %v3706
  %v4237 = vpop.xlane.xlu0 %4236
  %4238 = vmax.xlane.f32.xlu0 %v3709
  %v4239 = vpop.xlane.xlu0 %4238
  %4240 = vmax.xlane.f32.xlu0 %v3714
  %v4241 = vpop.xlane.xlu0 %4240
  %4242 = vmax.xlane.f32.xlu0 %v3717
  %v4243 = vpop.xlane.xlu0 %4242
  %4244 = vmax.xlane.f32.xlu0 %v3722
  %v4245 = vpop.xlane.xlu0 %4244
  %4246 = vmax.xlane.f32.xlu0 %v3725
  %v4247 = vpop.xlane.xlu0 %4246
  %4248 = vmax.xlane.f32.xlu0 %v3730
  %v4249 = vpop.xlane.xlu0 %4248
  %4250 = vmax.xlane.f32.xlu0 %v3733
  %v4251 = vpop.xlane.xlu0 %4250
  %4252 = vmax.xlane.f32.xlu0 %v3738
  %v4253 = vpop.xlane.xlu0 %4252
  %4254 = vmax.xlane.f32.xlu0 %v3741
  %v4255 = vpop.xlane.xlu0 %4254
  %v4256 = vsub.f32 %v1507, %v3745
  %v4257 = vsub.f32 %v1510, %v3747
  %v4258 = vsub.f32 %v1515, %v3749
  %v4259 = vsub.f32 %v1518, %v3751
  %v4260 = vsub.f32 %v1523, %v3753
  %v4261 = vsub.f32 %v1526, %v3755
  %v4262 = vsub.f32 %v1531, %v3757
  %v4263 = vsub.f32 %v1534, %v3759
  %v4264 = vsub.f32 %v1539, %v3761
  %v4265 = vsub.f32 %v1542, %v3763
  %v4266 = vsub.f32 %v1547, %v3765
  %v4267 = vsub.f32 %v1550, %v3767
  %v4268 = vsub.f32 %v1555, %v3769
  %v4269 = vsub.f32 %v1558, %v3771
  %v4270 = vsub.f32 %v1563, %v3773
  %v4271 = vsub.f32 %v1566, %v3775
  %v4272 = vsub.f32 %v1652, %v3777
  %v4273 = vsub.f32 %v1655, %v3779
  %v4274 = vsub.f32 %v1660, %v3781
  %v4275 = vsub.f32 %v1663, %v3783
  %v4276 = vsub.f32 %v1668, %v3785
  %v4277 = vsub.f32 %v1671, %v3787
  %v4278 = vsub.f32 %v1676, %v3789
  %v4279 = vsub.f32 %v1679, %v3791
  %v4280 = vsub.f32 %v1684, %v3793
  %v4281 = vsub.f32 %v1687, %v3795
  %v4282 = vsub.f32 %v1692, %v3797
  %v4283 = vsub.f32 %v1695, %v3799
  %v4284 = vsub.f32 %v1700, %v3801
  %v4285 = vsub.f32 %v1703, %v3803
  %v4286 = vsub.f32 %v1708, %v3805
  %v4287 = vsub.f32 %v1711, %v3807
  %v4288 = vsub.f32 %v1797, %v3809
  %v4289 = vsub.f32 %v1800, %v3811
  %v4290 = vsub.f32 %v1805, %v3813
  %v4291 = vsub.f32 %v1808, %v3815
  %v4292 = vsub.f32 %v1813, %v3817
  %v4293 = vsub.f32 %v1816, %v3819
  %v4294 = vsub.f32 %v1821, %v3821
  %v4295 = vsub.f32 %v1824, %v3823
  %v4296 = vsub.f32 %v1829, %v3825
  %v4297 = vsub.f32 %v1832, %v3827
  %v4298 = vsub.f32 %v1837, %v3829
  %v4299 = vsub.f32 %v1840, %v3831
  %v4300 = vsub.f32 %v1845, %v3833
  %v4301 = vsub.f32 %v1848, %v3835
  %v4302 = vsub.f32 %v1853, %v3837
  %v4303 = vsub.f32 %v1856, %v3839
  %v4304 = vsub.f32 %v1942, %v3841
  %v4305 = vsub.f32 %v1945, %v3843
  %v4306 = vsub.f32 %v1950, %v3845
  %v4307 = vsub.f32 %v1953, %v3847
  %v4308 = vsub.f32 %v1958, %v3849
  %v4309 = vsub.f32 %v1961, %v3851
  %v4310 = vsub.f32 %v1966, %v3853
  %v4311 = vsub.f32 %v1969, %v3855
  %v4312 = vsub.f32 %v1974, %v3857
  %v4313 = vsub.f32 %v1977, %v3859
  %v4314 = vsub.f32 %v1982, %v3861
  %v4315 = vsub.f32 %v1985, %v3863
  %v4316 = vsub.f32 %v1990, %v3865
  %v4317 = vsub.f32 %v1993, %v3867
  %v4318 = vsub.f32 %v1998, %v3869
  %v4319 = vsub.f32 %v2001, %v3871
  %v4320 = vsub.f32 %v2087, %v3873
  %v4321 = vsub.f32 %v2090, %v3875
  %v4322 = vsub.f32 %v2095, %v3877
  %v4323 = vsub.f32 %v2098, %v3879
  %v4324 = vsub.f32 %v2103, %v3881
  %v4325 = vsub.f32 %v2106, %v3883
  %v4326 = vsub.f32 %v2111, %v3885
  %v4327 = vsub.f32 %v2114, %v3887
  %v4328 = vsub.f32 %v2119, %v3889
  %v4329 = vsub.f32 %v2122, %v3891
  %v4330 = vsub.f32 %v2127, %v3893
  %v4331 = vsub.f32 %v2130, %v3895
  %v4332 = vsub.f32 %v2135, %v3897
  %v4333 = vsub.f32 %v2138, %v3899
  %v4334 = vsub.f32 %v2143, %v3901
  %v4335 = vsub.f32 %v2146, %v3903
  %v4336 = vsub.f32 %v2232, %v3905
  %v4337 = vsub.f32 %v2235, %v3907
  %v4338 = vsub.f32 %v2240, %v3909
  %v4339 = vsub.f32 %v2243, %v3911
  %v4340 = vsub.f32 %v2248, %v3913
  %v4341 = vsub.f32 %v2251, %v3915
  %v4342 = vsub.f32 %v2256, %v3917
  %v4343 = vsub.f32 %v2259, %v3919
  %v4344 = vsub.f32 %v2264, %v3921
  %v4345 = vsub.f32 %v2267, %v3923
  %v4346 = vsub.f32 %v2272, %v3925
  %v4347 = vsub.f32 %v2275, %v3927
  %v4348 = vsub.f32 %v2280, %v3929
  %v4349 = vsub.f32 %v2283, %v3931
  %v4350 = vsub.f32 %v2288, %v3933
  %v4351 = vsub.f32 %v2291, %v3935
  %v4352 = vsub.f32 %v2377, %v3937
  %v4353 = vsub.f32 %v2380, %v3939
  %v4354 = vsub.f32 %v2385, %v3941
  %v4355 = vsub.f32 %v2388, %v3943
  %v4356 = vsub.f32 %v2393, %v3945
  %v4357 = vsub.f32 %v2396, %v3947
  %v4358 = vsub.f32 %v2401, %v3949
  %v4359 = vsub.f32 %v2404, %v3951
  %v4360 = vsub.f32 %v2409, %v3953
  %v4361 = vsub.f32 %v2412, %v3955
  %v4362 = vsub.f32 %v2417, %v3957
  %v4363 = vsub.f32 %v2420, %v3959
  %v4364 = vsub.f32 %v2425, %v3961
  %v4365 = vsub.f32 %v2428, %v3963
  %v4366 = vsub.f32 %v2433, %v3965
  %v4367 = vsub.f32 %v2436, %v3967
  %v4368 = vsub.f32 %v2522, %v3969
  %v4369 = vsub.f32 %v2525, %v3971
  %v4370 = vsub.f32 %v2530, %v3973
  %v4371 = vsub.f32 %v2533, %v3975
  %v4372 = vsub.f32 %v2538, %v3977
  %v4373 = vsub.f32 %v2541, %v3979
  %v4374 = vsub.f32 %v2546, %v3981
  %v4375 = vsub.f32 %v2549, %v3983
  %v4376 = vsub.f32 %v2554, %v3985
  %v4377 = vsub.f32 %v2557, %v3987
  %v4378 = vsub.f32 %v2562, %v3989
  %v4379 = vsub.f32 %v2565, %v3991
  %v4380 = vsub.f32 %v2570, %v3993
  %v4381 = vsub.f32 %v2573, %v3995
  %v4382 = vsub.f32 %v2578, %v3997
  %v4383 = vsub.f32 %v2581, %v3999
  %v4384 = vsub.f32 %v2667, %v4001
  %v4385 = vsub.f32 %v2670, %v4003
  %v4386 = vsub.f32 %v2675, %v4005
  %v4387 = vsub.f32 %v2678, %v4007
  %v4388 = vsub.f32 %v2683, %v4009
  %v4389 = vsub.f32 %v2686, %v4011
  %v4390 = vsub.f32 %v2691, %v4013
  %v4391 = vsub.f32 %v2694, %v4015
  %v4392 = vsub.f32 %v2699, %v4017
  %v4393 = vsub.f32 %v2702, %v4019
  %v4394 = vsub.f32 %v2707, %v4021
  %v4395 = vsub.f32 %v2710, %v4023
  %v4396 = vsub.f32 %v2715, %v4025
  %v4397 = vsub.f32 %v2718, %v4027
  %v4398 = vsub.f32 %v2723, %v4029
  %v4399 = vsub.f32 %v2726, %v4031
  %v4400 = vsub.f32 %v2812, %v4033
  %v4401 = vsub.f32 %v2815, %v4035
  %v4402 = vsub.f32 %v2820, %v4037
  %v4403 = vsub.f32 %v2823, %v4039
  %v4404 = vsub.f32 %v2828, %v4041
  %v4405 = vsub.f32 %v2831, %v4043
  %v4406 = vsub.f32 %v2836, %v4045
  %v4407 = vsub.f32 %v2839, %v4047
  %v4408 = vsub.f32 %v2844, %v4049
  %v4409 = vsub.f32 %v2847, %v4051
  %v4410 = vsub.f32 %v2852, %v4053
  %v4411 = vsub.f32 %v2855, %v4055
  %v4412 = vsub.f32 %v2860, %v4057
  %v4413 = vsub.f32 %v2863, %v4059
  %v4414 = vsub.f32 %v2868, %v4061
  %v4415 = vsub.f32 %v2871, %v4063
  %v4416 = vsub.f32 %v2957, %v4065
  %v4417 = vsub.f32 %v2960, %v4067
  %v4418 = vsub.f32 %v2965, %v4069
  %v4419 = vsub.f32 %v2968, %v4071
  %v4420 = vsub.f32 %v2973, %v4073
  %v4421 = vsub.f32 %v2976, %v4075
  %v4422 = vsub.f32 %v2981, %v4077
  %v4423 = vsub.f32 %v2984, %v4079
  %v4424 = vsub.f32 %v2989, %v4081
  %v4425 = vsub.f32 %v2992, %v4083
  %v4426 = vsub.f32 %v2997, %v4085
  %v4427 = vsub.f32 %v3000, %v4087
  %v4428 = vsub.f32 %v3005, %v4089
  %v4429 = vsub.f32 %v3008, %v4091
  %v4430 = vsub.f32 %v3013, %v4093
  %v4431 = vsub.f32 %v3016, %v4095
  %v4432 = vsub.f32 %v3102, %v4097
  %v4433 = vsub.f32 %v3105, %v4099
  %v4434 = vsub.f32 %v3110, %v4101
  %v4435 = vsub.f32 %v3113, %v4103
  %v4436 = vsub.f32 %v3118, %v4105
  %v4437 = vsub.f32 %v3121, %v4107
  %v4438 = vsub.f32 %v3126, %v4109
  %v4439 = vsub.f32 %v3129, %v4111
  %v4440 = vsub.f32 %v3134, %v4113
  %v4441 = vsub.f32 %v3137, %v4115
  %v4442 = vsub.f32 %v3142, %v4117
  %v4443 = vsub.f32 %v3145, %v4119
  %v4444 = vsub.f32 %v3150, %v4121
  %v4445 = vsub.f32 %v3153, %v4123
  %v4446 = vsub.f32 %v3158, %v4125
  %v4447 = vsub.f32 %v3161, %v4127
  %v4448 = vsub.f32 %v3247, %v4129
  %v4449 = vsub.f32 %v3250, %v4131
  %v4450 = vsub.f32 %v3255, %v4133
  %v4451 = vsub.f32 %v3258, %v4135
  %v4452 = vsub.f32 %v3263, %v4137
  %v4453 = vsub.f32 %v3266, %v4139
  %v4454 = vsub.f32 %v3271, %v4141
  %v4455 = vsub.f32 %v3274, %v4143
  %v4456 = vsub.f32 %v3279, %v4145
  %v4457 = vsub.f32 %v3282, %v4147
  %v4458 = vsub.f32 %v3287, %v4149
  %v4459 = vsub.f32 %v3290, %v4151
  %v4460 = vsub.f32 %v3295, %v4153
  %v4461 = vsub.f32 %v3298, %v4155
  %v4462 = vsub.f32 %v3303, %v4157
  %v4463 = vsub.f32 %v3306, %v4159
  %v4464 = vsub.f32 %v3392, %v4161
  %v4465 = vsub.f32 %v3395, %v4163
  %v4466 = vsub.f32 %v3400, %v4165
  %v4467 = vsub.f32 %v3403, %v4167
  %v4468 = vsub.f32 %v3408, %v4169
  %v4469 = vsub.f32 %v3411, %v4171
  %v4470 = vsub.f32 %v3416, %v4173
  %v4471 = vsub.f32 %v3419, %v4175
  %v4472 = vsub.f32 %v3424, %v4177
  %v4473 = vsub.f32 %v3427, %v4179
  %v4474 = vsub.f32 %v3432, %v4181
  %v4475 = vsub.f32 %v3435, %v4183
  %v4476 = vsub.f32 %v3440, %v4185
  %v4477 = vsub.f32 %v3443, %v4187
  %v4478 = vsub.f32 %v3448, %v4189
  %v4479 = vsub.f32 %v3451, %v4191
  %v4480 = vsub.f32 %v3537, %v4193
  %v4481 = vsub.f32 %v3540, %v4195
  %v4482 = vsub.f32 %v3545, %v4197
  %v4483 = vsub.f32 %v3548, %v4199
  %v4484 = vsub.f32 %v3553, %v4201
  %v4485 = vsub.f32 %v3556, %v4203
  %v4486 = vsub.f32 %v3561, %v4205
  %v4487 = vsub.f32 %v3564, %v4207
  %v4488 = vsub.f32 %v3569, %v4209
  %v4489 = vsub.f32 %v3572, %v4211
  %v4490 = vsub.f32 %v3577, %v4213
  %v4491 = vsub.f32 %v3580, %v4215
  %v4492 = vsub.f32 %v3585, %v4217
  %v4493 = vsub.f32 %v3588, %v4219
  %v4494 = vsub.f32 %v3593, %v4221
  %v4495 = vsub.f32 %v3596, %v4223
  %v4496 = vsub.f32 %v3682, %v4225
  %v4497 = vsub.f32 %v3685, %v4227
  %v4498 = vsub.f32 %v3690, %v4229
  %v4499 = vsub.f32 %v3693, %v4231
  %v4500 = vsub.f32 %v3698, %v4233
  %v4501 = vsub.f32 %v3701, %v4235
  %v4502 = vsub.f32 %v3706, %v4237
  %v4503 = vsub.f32 %v3709, %v4239
  %v4504 = vsub.f32 %v3714, %v4241
  %v4505 = vsub.f32 %v3717, %v4243
  %v4506 = vsub.f32 %v3722, %v4245
  %v4507 = vsub.f32 %v3725, %v4247
  %v4508 = vsub.f32 %v3730, %v4249
  %v4509 = vsub.f32 %v3733, %v4251
  %v4510 = vsub.f32 %v3738, %v4253
  %v4511 = vsub.f32 %v3741, %v4255
  %v4512 = vmul.f32 %v4256, 1.442695
  %v4513 = vpow.pop %v4512
  %v4514 = vmul.f32 %v4257, 1.442695
  %v4515 = vpow.pop %v4514
  %v4516 = vmul.f32 %v4258, 1.442695
  %v4517 = vpow.pop %v4516
  %v4518 = vmul.f32 %v4259, 1.442695
  %v4519 = vpow.pop %v4518
  %v4520 = vmul.f32 %v4260, 1.442695
  %v4521 = vpow.pop %v4520
  %v4522 = vmul.f32 %v4261, 1.442695
  %v4523 = vpow.pop %v4522
  %v4524 = vmul.f32 %v4262, 1.442695
  %v4525 = vpow.pop %v4524
  %v4526 = vmul.f32 %v4263, 1.442695
  %v4527 = vpow.pop %v4526
  %v4528 = vmul.f32 %v4264, 1.442695
  %v4529 = vpow.pop %v4528
  %v4530 = vmul.f32 %v4265, 1.442695
  %v4531 = vpow.pop %v4530
  %v4532 = vmul.f32 %v4266, 1.442695
  %v4533 = vpow.pop %v4532
  %v4534 = vmul.f32 %v4267, 1.442695
  %v4535 = vpow.pop %v4534
  %v4536 = vmul.f32 %v4268, 1.442695
  %v4537 = vpow.pop %v4536
  %v4538 = vmul.f32 %v4269, 1.442695
  %v4539 = vpow.pop %v4538
  %v4540 = vmul.f32 %v4270, 1.442695
  %v4541 = vpow.pop %v4540
  %v4542 = vmul.f32 %v4271, 1.442695
  %v4543 = vpow.pop %v4542
  %v4544 = vmul.f32 %v4272, 1.442695
  %v4545 = vpow.pop %v4544
  %v4546 = vmul.f32 %v4273, 1.442695
  %v4547 = vpow.pop %v4546
  %v4548 = vmul.f32 %v4274, 1.442695
  %v4549 = vpow.pop %v4548
  %v4550 = vmul.f32 %v4275, 1.442695
  %v4551 = vpow.pop %v4550
  %v4552 = vmul.f32 %v4276, 1.442695
  %v4553 = vpow.pop %v4552
  %v4554 = vmul.f32 %v4277, 1.442695
  %v4555 = vpow.pop %v4554
  %v4556 = vmul.f32 %v4278, 1.442695
  %v4557 = vpow.pop %v4556
  %v4558 = vmul.f32 %v4279, 1.442695
  %v4559 = vpow.pop %v4558
  %v4560 = vmul.f32 %v4280, 1.442695
  %v4561 = vpow.pop %v4560
  %v4562 = vmul.f32 %v4281, 1.442695
  %v4563 = vpow.pop %v4562
  %v4564 = vmul.f32 %v4282, 1.442695
  %v4565 = vpow.pop %v4564
  %v4566 = vmul.f32 %v4283, 1.442695
  %v4567 = vpow.pop %v4566
  %v4568 = vmul.f32 %v4284, 1.442695
  %v4569 = vpow.pop %v4568
  %v4570 = vmul.f32 %v4285, 1.442695
  %v4571 = vpow.pop %v4570
  %v4572 = vmul.f32 %v4286, 1.442695
  %v4573 = vpow.pop %v4572
  %v4574 = vmul.f32 %v4287, 1.442695
  %v4575 = vpow.pop %v4574
  %v4576 = vmul.f32 %v4288, 1.442695
  %v4577 = vpow.pop %v4576
  %v4578 = vmul.f32 %v4289, 1.442695
  %v4579 = vpow.pop %v4578
  %v4580 = vmul.f32 %v4290, 1.442695
  %v4581 = vpow.pop %v4580
  %v4582 = vmul.f32 %v4291, 1.442695
  %v4583 = vpow.pop %v4582
  %v4584 = vmul.f32 %v4292, 1.442695
  %v4585 = vpow.pop %v4584
  %v4586 = vmul.f32 %v4293, 1.442695
  %v4587 = vpow.pop %v4586
  %v4588 = vmul.f32 %v4294, 1.442695
  %v4589 = vpow.pop %v4588
  %v4590 = vmul.f32 %v4295, 1.442695
  %v4591 = vpow.pop %v4590
  %v4592 = vmul.f32 %v4296, 1.442695
  %v4593 = vpow.pop %v4592
  %v4594 = vmul.f32 %v4297, 1.442695
  %v4595 = vpow.pop %v4594
  %v4596 = vmul.f32 %v4298, 1.442695
  %v4597 = vpow.pop %v4596
  %v4598 = vmul.f32 %v4299, 1.442695
  %v4599 = vpow.pop %v4598
  %v4600 = vmul.f32 %v4300, 1.442695
  %v4601 = vpow.pop %v4600
  %v4602 = vmul.f32 %v4301, 1.442695
  %v4603 = vpow.pop %v4602
  %v4604 = vmul.f32 %v4302, 1.442695
  %v4605 = vpow.pop %v4604
  %v4606 = vmul.f32 %v4303, 1.442695
  %v4607 = vpow.pop %v4606
  %v4608 = vmul.f32 %v4304, 1.442695
  %v4609 = vpow.pop %v4608
  %v4610 = vmul.f32 %v4305, 1.442695
  %v4611 = vpow.pop %v4610
  %v4612 = vmul.f32 %v4306, 1.442695
  %v4613 = vpow.pop %v4612
  %v4614 = vmul.f32 %v4307, 1.442695
  %v4615 = vpow.pop %v4614
  %v4616 = vmul.f32 %v4308, 1.442695
  %v4617 = vpow.pop %v4616
  %v4618 = vmul.f32 %v4309, 1.442695
  %v4619 = vpow.pop %v4618
  %v4620 = vmul.f32 %v4310, 1.442695
  %v4621 = vpow.pop %v4620
  %v4622 = vmul.f32 %v4311, 1.442695
  %v4623 = vpow.pop %v4622
  %v4624 = vmul.f32 %v4312, 1.442695
  %v4625 = vpow.pop %v4624
  %v4626 = vmul.f32 %v4313, 1.442695
  %v4627 = vpow.pop %v4626
  %v4628 = vmul.f32 %v4314, 1.442695
  %v4629 = vpow.pop %v4628
  %v4630 = vmul.f32 %v4315, 1.442695
  %v4631 = vpow.pop %v4630
  %v4632 = vmul.f32 %v4316, 1.442695
  %v4633 = vpow.pop %v4632
  %v4634 = vmul.f32 %v4317, 1.442695
  %v4635 = vpow.pop %v4634
  %v4636 = vmul.f32 %v4318, 1.442695
  %v4637 = vpow.pop %v4636
  %v4638 = vmul.f32 %v4319, 1.442695
  %v4639 = vpow.pop %v4638
  %v4640 = vmul.f32 %v4320, 1.442695
  %v4641 = vpow.pop %v4640
  %v4642 = vmul.f32 %v4321, 1.442695
  %v4643 = vpow.pop %v4642
  %v4644 = vmul.f32 %v4322, 1.442695
  %v4645 = vpow.pop %v4644
  %v4646 = vmul.f32 %v4323, 1.442695
  %v4647 = vpow.pop %v4646
  %v4648 = vmul.f32 %v4324, 1.442695
  %v4649 = vpow.pop %v4648
  %v4650 = vmul.f32 %v4325, 1.442695
  %v4651 = vpow.pop %v4650
  %v4652 = vmul.f32 %v4326, 1.442695
  %v4653 = vpow.pop %v4652
  %v4654 = vmul.f32 %v4327, 1.442695
  %v4655 = vpow.pop %v4654
  %v4656 = vmul.f32 %v4328, 1.442695
  %v4657 = vpow.pop %v4656
  %v4658 = vmul.f32 %v4329, 1.442695
  %v4659 = vpow.pop %v4658
  %v4660 = vmul.f32 %v4330, 1.442695
  %v4661 = vpow.pop %v4660
  %v4662 = vmul.f32 %v4331, 1.442695
  %v4663 = vpow.pop %v4662
  %v4664 = vmul.f32 %v4332, 1.442695
  %v4665 = vpow.pop %v4664
  %v4666 = vmul.f32 %v4333, 1.442695
  %v4667 = vpow.pop %v4666
  %v4668 = vmul.f32 %v4334, 1.442695
  %v4669 = vpow.pop %v4668
  %v4670 = vmul.f32 %v4335, 1.442695
  %v4671 = vpow.pop %v4670
  %v4672 = vmul.f32 %v4336, 1.442695
  %v4673 = vpow.pop %v4672
  %v4674 = vmul.f32 %v4337, 1.442695
  %v4675 = vpow.pop %v4674
  %v4676 = vmul.f32 %v4338, 1.442695
  %v4677 = vpow.pop %v4676
  %v4678 = vmul.f32 %v4339, 1.442695
  %v4679 = vpow.pop %v4678
  %v4680 = vmul.f32 %v4340, 1.442695
  %v4681 = vpow.pop %v4680
  %v4682 = vmul.f32 %v4341, 1.442695
  %v4683 = vpow.pop %v4682
  %v4684 = vmul.f32 %v4342, 1.442695
  %v4685 = vpow.pop %v4684
  %v4686 = vmul.f32 %v4343, 1.442695
  %v4687 = vpow.pop %v4686
  %v4688 = vmul.f32 %v4344, 1.442695
  %v4689 = vpow.pop %v4688
  %v4690 = vmul.f32 %v4345, 1.442695
  %v4691 = vpow.pop %v4690
  %v4692 = vmul.f32 %v4346, 1.442695
  %v4693 = vpow.pop %v4692
  %v4694 = vmul.f32 %v4347, 1.442695
  %v4695 = vpow.pop %v4694
  %v4696 = vmul.f32 %v4348, 1.442695
  %v4697 = vpow.pop %v4696
  %v4698 = vmul.f32 %v4349, 1.442695
  %v4699 = vpow.pop %v4698
  %v4700 = vmul.f32 %v4350, 1.442695
  %v4701 = vpow.pop %v4700
  %v4702 = vmul.f32 %v4351, 1.442695
  %v4703 = vpow.pop %v4702
  %v4704 = vmul.f32 %v4352, 1.442695
  %v4705 = vpow.pop %v4704
  %v4706 = vmul.f32 %v4353, 1.442695
  %v4707 = vpow.pop %v4706
  %v4708 = vmul.f32 %v4354, 1.442695
  %v4709 = vpow.pop %v4708
  %v4710 = vmul.f32 %v4355, 1.442695
  %v4711 = vpow.pop %v4710
  %v4712 = vmul.f32 %v4356, 1.442695
  %v4713 = vpow.pop %v4712
  %v4714 = vmul.f32 %v4357, 1.442695
  %v4715 = vpow.pop %v4714
  %v4716 = vmul.f32 %v4358, 1.442695
  %v4717 = vpow.pop %v4716
  %v4718 = vmul.f32 %v4359, 1.442695
  %v4719 = vpow.pop %v4718
  %v4720 = vmul.f32 %v4360, 1.442695
  %v4721 = vpow.pop %v4720
  %v4722 = vmul.f32 %v4361, 1.442695
  %v4723 = vpow.pop %v4722
  %v4724 = vmul.f32 %v4362, 1.442695
  %v4725 = vpow.pop %v4724
  %v4726 = vmul.f32 %v4363, 1.442695
  %v4727 = vpow.pop %v4726
  %v4728 = vmul.f32 %v4364, 1.442695
  %v4729 = vpow.pop %v4728
  %v4730 = vmul.f32 %v4365, 1.442695
  %v4731 = vpow.pop %v4730
  %v4732 = vmul.f32 %v4366, 1.442695
  %v4733 = vpow.pop %v4732
  %v4734 = vmul.f32 %v4367, 1.442695
  %v4735 = vpow.pop %v4734
  %v4736 = vmul.f32 %v4368, 1.442695
  %v4737 = vpow.pop %v4736
  %v4738 = vmul.f32 %v4369, 1.442695
  %v4739 = vpow.pop %v4738
  %v4740 = vmul.f32 %v4370, 1.442695
  %v4741 = vpow.pop %v4740
  %v4742 = vmul.f32 %v4371, 1.442695
  %v4743 = vpow.pop %v4742
  %v4744 = vmul.f32 %v4372, 1.442695
  %v4745 = vpow.pop %v4744
  %v4746 = vmul.f32 %v4373, 1.442695
  %v4747 = vpow.pop %v4746
  %v4748 = vmul.f32 %v4374, 1.442695
  %v4749 = vpow.pop %v4748
  %v4750 = vmul.f32 %v4375, 1.442695
  %v4751 = vpow.pop %v4750
  %v4752 = vmul.f32 %v4376, 1.442695
  %v4753 = vpow.pop %v4752
  %v4754 = vmul.f32 %v4377, 1.442695
  %v4755 = vpow.pop %v4754
  %v4756 = vmul.f32 %v4378, 1.442695
  %v4757 = vpow.pop %v4756
  %v4758 = vmul.f32 %v4379, 1.442695
  %v4759 = vpow.pop %v4758
  %v4760 = vmul.f32 %v4380, 1.442695
  %v4761 = vpow.pop %v4760
  %v4762 = vmul.f32 %v4381, 1.442695
  %v4763 = vpow.pop %v4762
  %v4764 = vmul.f32 %v4382, 1.442695
  %v4765 = vpow.pop %v4764
  %v4766 = vmul.f32 %v4383, 1.442695
  %v4767 = vpow.pop %v4766
  %v4768 = vmul.f32 %v4384, 1.442695
  %v4769 = vpow.pop %v4768
  %v4770 = vmul.f32 %v4385, 1.442695
  %v4771 = vpow.pop %v4770
  %v4772 = vmul.f32 %v4386, 1.442695
  %v4773 = vpow.pop %v4772
  %v4774 = vmul.f32 %v4387, 1.442695
  %v4775 = vpow.pop %v4774
  %v4776 = vmul.f32 %v4388, 1.442695
  %v4777 = vpow.pop %v4776
  %v4778 = vmul.f32 %v4389, 1.442695
  %v4779 = vpow.pop %v4778
  %v4780 = vmul.f32 %v4390, 1.442695
  %v4781 = vpow.pop %v4780
  %v4782 = vmul.f32 %v4391, 1.442695
  %v4783 = vpow.pop %v4782
  %v4784 = vmul.f32 %v4392, 1.442695
  %v4785 = vpow.pop %v4784
  %v4786 = vmul.f32 %v4393, 1.442695
  %v4787 = vpow.pop %v4786
  %v4788 = vmul.f32 %v4394, 1.442695
  %v4789 = vpow.pop %v4788
  %v4790 = vmul.f32 %v4395, 1.442695
  %v4791 = vpow.pop %v4790
  %v4792 = vmul.f32 %v4396, 1.442695
  %v4793 = vpow.pop %v4792
  %v4794 = vmul.f32 %v4397, 1.442695
  %v4795 = vpow.pop %v4794
  %v4796 = vmul.f32 %v4398, 1.442695
  %v4797 = vpow.pop %v4796
  %v4798 = vmul.f32 %v4399, 1.442695
  %v4799 = vpow.pop %v4798
  %v4800 = vmul.f32 %v4400, 1.442695
  %v4801 = vpow.pop %v4800
  %v4802 = vmul.f32 %v4401, 1.442695
  %v4803 = vpow.pop %v4802
  %v4804 = vmul.f32 %v4402, 1.442695
  %v4805 = vpow.pop %v4804
  %v4806 = vmul.f32 %v4403, 1.442695
  %v4807 = vpow.pop %v4806
  %v4808 = vmul.f32 %v4404, 1.442695
  %v4809 = vpow.pop %v4808
  %v4810 = vmul.f32 %v4405, 1.442695
  %v4811 = vpow.pop %v4810
  %v4812 = vmul.f32 %v4406, 1.442695
  %v4813 = vpow.pop %v4812
  %v4814 = vmul.f32 %v4407, 1.442695
  %v4815 = vpow.pop %v4814
  %v4816 = vmul.f32 %v4408, 1.442695
  %v4817 = vpow.pop %v4816
  %v4818 = vmul.f32 %v4409, 1.442695
  %v4819 = vpow.pop %v4818
  %v4820 = vmul.f32 %v4410, 1.442695
  %v4821 = vpow.pop %v4820
  %v4822 = vmul.f32 %v4411, 1.442695
  %v4823 = vpow.pop %v4822
  %v4824 = vmul.f32 %v4412, 1.442695
  %v4825 = vpow.pop %v4824
  %v4826 = vmul.f32 %v4413, 1.442695
  %v4827 = vpow.pop %v4826
  %v4828 = vmul.f32 %v4414, 1.442695
  %v4829 = vpow.pop %v4828
  %v4830 = vmul.f32 %v4415, 1.442695
  %v4831 = vpow.pop %v4830
  %v4832 = vmul.f32 %v4416, 1.442695
  %v4833 = vpow.pop %v4832
  %v4834 = vmul.f32 %v4417, 1.442695
  %v4835 = vpow.pop %v4834
  %v4836 = vmul.f32 %v4418, 1.442695
  %v4837 = vpow.pop %v4836
  %v4838 = vmul.f32 %v4419, 1.442695
  %v4839 = vpow.pop %v4838
  %v4840 = vmul.f32 %v4420, 1.442695
  %v4841 = vpow.pop %v4840
  %v4842 = vmul.f32 %v4421, 1.442695
  %v4843 = vpow.pop %v4842
  %v4844 = vmul.f32 %v4422, 1.442695
  %v4845 = vpow.pop %v4844
  %v4846 = vmul.f32 %v4423, 1.442695
  %v4847 = vpow.pop %v4846
  %v4848 = vmul.f32 %v4424, 1.442695
  %v4849 = vpow.pop %v4848
  %v4850 = vmul.f32 %v4425, 1.442695
  %v4851 = vpow.pop %v4850
  %v4852 = vmul.f32 %v4426, 1.442695
  %v4853 = vpow.pop %v4852
  %v4854 = vmul.f32 %v4427, 1.442695
  %v4855 = vpow.pop %v4854
  %v4856 = vmul.f32 %v4428, 1.442695
  %v4857 = vpow.pop %v4856
  %v4858 = vmul.f32 %v4429, 1.442695
  %v4859 = vpow.pop %v4858
  %v4860 = vmul.f32 %v4430, 1.442695
  %v4861 = vpow.pop %v4860
  %v4862 = vmul.f32 %v4431, 1.442695
  %v4863 = vpow.pop %v4862
  %v4864 = vmul.f32 %v4432, 1.442695
  %v4865 = vpow.pop %v4864
  %v4866 = vmul.f32 %v4433, 1.442695
  %v4867 = vpow.pop %v4866
  %v4868 = vmul.f32 %v4434, 1.442695
  %v4869 = vpow.pop %v4868
  %v4870 = vmul.f32 %v4435, 1.442695
  %v4871 = vpow.pop %v4870
  %v4872 = vmul.f32 %v4436, 1.442695
  %v4873 = vpow.pop %v4872
  %v4874 = vmul.f32 %v4437, 1.442695
  %v4875 = vpow.pop %v4874
  %v4876 = vmul.f32 %v4438, 1.442695
  %v4877 = vpow.pop %v4876
  %v4878 = vmul.f32 %v4439, 1.442695
  %v4879 = vpow.pop %v4878
  %v4880 = vmul.f32 %v4440, 1.442695
  %v4881 = vpow.pop %v4880
  %v4882 = vmul.f32 %v4441, 1.442695
  %v4883 = vpow.pop %v4882
  %v4884 = vmul.f32 %v4442, 1.442695
  %v4885 = vpow.pop %v4884
  %v4886 = vmul.f32 %v4443, 1.442695
  %v4887 = vpow.pop %v4886
  %v4888 = vmul.f32 %v4444, 1.442695
  %v4889 = vpow.pop %v4888
  %v4890 = vmul.f32 %v4445, 1.442695
  %v4891 = vpow.pop %v4890
  %v4892 = vmul.f32 %v4446, 1.442695
  %v4893 = vpow.pop %v4892
  %v4894 = vmul.f32 %v4447, 1.442695
  %v4895 = vpow.pop %v4894
  %v4896 = vmul.f32 %v4448, 1.442695
  %v4897 = vpow.pop %v4896
  %v4898 = vmul.f32 %v4449, 1.442695
  %v4899 = vpow.pop %v4898
  %v4900 = vmul.f32 %v4450, 1.442695
  %v4901 = vpow.pop %v4900
  %v4902 = vmul.f32 %v4451, 1.442695
  %v4903 = vpow.pop %v4902
  %v4904 = vmul.f32 %v4452, 1.442695
  %v4905 = vpow.pop %v4904
  %v4906 = vmul.f32 %v4453, 1.442695
  %v4907 = vpow.pop %v4906
  %v4908 = vmul.f32 %v4454, 1.442695
  %v4909 = vpow.pop %v4908
  %v4910 = vmul.f32 %v4455, 1.442695
  %v4911 = vpow.pop %v4910
  %v4912 = vmul.f32 %v4456, 1.442695
  %v4913 = vpow.pop %v4912
  %v4914 = vmul.f32 %v4457, 1.442695
  %v4915 = vpow.pop %v4914
  %v4916 = vmul.f32 %v4458, 1.442695
  %v4917 = vpow.pop %v4916
  %v4918 = vmul.f32 %v4459, 1.442695
  %v4919 = vpow.pop %v4918
  %v4920 = vmul.f32 %v4460, 1.442695
  %v4921 = vpow.pop %v4920
  %v4922 = vmul.f32 %v4461, 1.442695
  %v4923 = vpow.pop %v4922
  %v4924 = vmul.f32 %v4462, 1.442695
  %v4925 = vpow.pop %v4924
  %v4926 = vmul.f32 %v4463, 1.442695
  %v4927 = vpow.pop %v4926
  %v4928 = vmul.f32 %v4464, 1.442695
  %v4929 = vpow.pop %v4928
  %v4930 = vmul.f32 %v4465, 1.442695
  %v4931 = vpow.pop %v4930
  %v4932 = vmul.f32 %v4466, 1.442695
  %v4933 = vpow.pop %v4932
  %v4934 = vmul.f32 %v4467, 1.442695
  %v4935 = vpow.pop %v4934
  %v4936 = vmul.f32 %v4468, 1.442695
  %v4937 = vpow.pop %v4936
  %v4938 = vmul.f32 %v4469, 1.442695
  %v4939 = vpow.pop %v4938
  %v4940 = vmul.f32 %v4470, 1.442695
  %v4941 = vpow.pop %v4940
  %v4942 = vmul.f32 %v4471, 1.442695
  %v4943 = vpow.pop %v4942
  %v4944 = vmul.f32 %v4472, 1.442695
  %v4945 = vpow.pop %v4944
  %v4946 = vmul.f32 %v4473, 1.442695
  %v4947 = vpow.pop %v4946
  %v4948 = vmul.f32 %v4474, 1.442695
  %v4949 = vpow.pop %v4948
  %v4950 = vmul.f32 %v4475, 1.442695
  %v4951 = vpow.pop %v4950
  %v4952 = vmul.f32 %v4476, 1.442695
  %v4953 = vpow.pop %v4952
  %v4954 = vmul.f32 %v4477, 1.442695
  %v4955 = vpow.pop %v4954
  %v4956 = vmul.f32 %v4478, 1.442695
  %v4957 = vpow.pop %v4956
  %v4958 = vmul.f32 %v4479, 1.442695
  %v4959 = vpow.pop %v4958
  %v4960 = vmul.f32 %v4480, 1.442695
  %v4961 = vpow.pop %v4960
  %v4962 = vmul.f32 %v4481, 1.442695
  %v4963 = vpow.pop %v4962
  %v4964 = vmul.f32 %v4482, 1.442695
  %v4965 = vpow.pop %v4964
  %v4966 = vmul.f32 %v4483, 1.442695
  %v4967 = vpow.pop %v4966
  %v4968 = vmul.f32 %v4484, 1.442695
  %v4969 = vpow.pop %v4968
  %v4970 = vmul.f32 %v4485, 1.442695
  %v4971 = vpow.pop %v4970
  %v4972 = vmul.f32 %v4486, 1.442695
  %v4973 = vpow.pop %v4972
  %v4974 = vmul.f32 %v4487, 1.442695
  %v4975 = vpow.pop %v4974
  %v4976 = vmul.f32 %v4488, 1.442695
  %v4977 = vpow.pop %v4976
  %v4978 = vmul.f32 %v4489, 1.442695
  %v4979 = vpow.pop %v4978
  %v4980 = vmul.f32 %v4490, 1.442695
  %v4981 = vpow.pop %v4980
  %v4982 = vmul.f32 %v4491, 1.442695
  %v4983 = vpow.pop %v4982
  %v4984 = vmul.f32 %v4492, 1.442695
  %v4985 = vpow.pop %v4984
  %v4986 = vmul.f32 %v4493, 1.442695
  %v4987 = vpow.pop %v4986
  %v4988 = vmul.f32 %v4494, 1.442695
  %v4989 = vpow.pop %v4988
  %v4990 = vmul.f32 %v4495, 1.442695
  %v4991 = vpow.pop %v4990
  %v4992 = vmul.f32 %v4496, 1.442695
  %v4993 = vpow.pop %v4992
  %v4994 = vmul.f32 %v4497, 1.442695
  %v4995 = vpow.pop %v4994
  %v4996 = vmul.f32 %v4498, 1.442695
  %v4997 = vpow.pop %v4996
  %v4998 = vmul.f32 %v4499, 1.442695
  %v4999 = vpow.pop %v4998
  %v5000 = vmul.f32 %v4500, 1.442695
  %v5001 = vpow.pop %v5000
  %v5002 = vmul.f32 %v4501, 1.442695
  %v5003 = vpow.pop %v5002
  %v5004 = vmul.f32 %v4502, 1.442695
  %v5005 = vpow.pop %v5004
  %v5006 = vmul.f32 %v4503, 1.442695
  %v5007 = vpow.pop %v5006
  %v5008 = vmul.f32 %v4504, 1.442695
  %v5009 = vpow.pop %v5008
  %v5010 = vmul.f32 %v4505, 1.442695
  %v5011 = vpow.pop %v5010
  %v5012 = vmul.f32 %v4506, 1.442695
  %v5013 = vpow.pop %v5012
  %v5014 = vmul.f32 %v4507, 1.442695
  %v5015 = vpow.pop %v5014
  %v5016 = vmul.f32 %v4508, 1.442695
  %v5017 = vpow.pop %v5016
  %v5018 = vmul.f32 %v4509, 1.442695
  %v5019 = vpow.pop %v5018
  %v5020 = vmul.f32 %v4510, 1.442695
  %v5021 = vpow.pop %v5020
  %v5022 = vmul.f32 %v4511, 1.442695
  %v5023 = vpow.pop %v5022
  %v5024 = vpack.c.bf16 %v4515, %v4513
  %v5025 = vpack.c.bf16 %v4519, %v4517
  %v5026 = vpack.c.bf16 %v4523, %v4521
  %v5027 = vpack.c.bf16 %v4527, %v4525
  %v5028 = vpack.c.bf16 %v4531, %v4529
  %v5029 = vpack.c.bf16 %v4535, %v4533
  %v5030 = vpack.c.bf16 %v4539, %v4537
  %v5031 = vpack.c.bf16 %v4543, %v4541
  %v5032 = vpack.c.bf16 %v4547, %v4545
  %v5033 = vpack.c.bf16 %v4551, %v4549
  %v5034 = vpack.c.bf16 %v4555, %v4553
  %v5035 = vpack.c.bf16 %v4559, %v4557
  %v5036 = vpack.c.bf16 %v4563, %v4561
  %v5037 = vpack.c.bf16 %v4567, %v4565
  %v5038 = vpack.c.bf16 %v4571, %v4569
  %v5039 = vpack.c.bf16 %v4575, %v4573
  %v5040 = vpack.c.bf16 %v4579, %v4577
  %v5041 = vpack.c.bf16 %v4583, %v4581
  %v5042 = vpack.c.bf16 %v4587, %v4585
  %v5043 = vpack.c.bf16 %v4591, %v4589
  %v5044 = vpack.c.bf16 %v4595, %v4593
  %v5045 = vpack.c.bf16 %v4599, %v4597
  %v5046 = vpack.c.bf16 %v4603, %v4601
  %v5047 = vpack.c.bf16 %v4607, %v4605
  %v5048 = vpack.c.bf16 %v4611, %v4609
  %v5049 = vpack.c.bf16 %v4615, %v4613
  %v5050 = vpack.c.bf16 %v4619, %v4617
  %v5051 = vpack.c.bf16 %v4623, %v4621
  %v5052 = vpack.c.bf16 %v4627, %v4625
  %v5053 = vpack.c.bf16 %v4631, %v4629
  %v5054 = vpack.c.bf16 %v4635, %v4633
  %v5055 = vpack.c.bf16 %v4639, %v4637
  %v5056 = vpack.c.bf16 %v4643, %v4641
  %v5057 = vpack.c.bf16 %v4647, %v4645
  %v5058 = vpack.c.bf16 %v4651, %v4649
  %v5059 = vpack.c.bf16 %v4655, %v4653
  %v5060 = vpack.c.bf16 %v4659, %v4657
  %v5061 = vpack.c.bf16 %v4663, %v4661
  %v5062 = vpack.c.bf16 %v4667, %v4665
  %v5063 = vpack.c.bf16 %v4671, %v4669
  %v5064 = vpack.c.bf16 %v4675, %v4673
  %v5065 = vpack.c.bf16 %v4679, %v4677
  %v5066 = vpack.c.bf16 %v4683, %v4681
  %v5067 = vpack.c.bf16 %v4687, %v4685
  %v5068 = vpack.c.bf16 %v4691, %v4689
  %v5069 = vpack.c.bf16 %v4695, %v4693
  %v5070 = vpack.c.bf16 %v4699, %v4697
  %v5071 = vpack.c.bf16 %v4703, %v4701
  %v5072 = vpack.c.bf16 %v4707, %v4705
  %v5073 = vpack.c.bf16 %v4711, %v4709
  %v5074 = vpack.c.bf16 %v4715, %v4713
  %v5075 = vpack.c.bf16 %v4719, %v4717
  %v5076 = vpack.c.bf16 %v4723, %v4721
  %v5077 = vpack.c.bf16 %v4727, %v4725
  %v5078 = vpack.c.bf16 %v4731, %v4729
  %v5079 = vpack.c.bf16 %v4735, %v4733
  %v5080 = vpack.c.bf16 %v4739, %v4737
  %v5081 = vpack.c.bf16 %v4743, %v4741
  %v5082 = vpack.c.bf16 %v4747, %v4745
  %v5083 = vpack.c.bf16 %v4751, %v4749
  %v5084 = vpack.c.bf16 %v4755, %v4753
  %v5085 = vpack.c.bf16 %v4759, %v4757
  %v5086 = vpack.c.bf16 %v4763, %v4761
  %v5087 = vpack.c.bf16 %v4767, %v4765
  %v5088 = vpack.c.bf16 %v4771, %v4769
  %v5089 = vpack.c.bf16 %v4775, %v4773
  %v5090 = vpack.c.bf16 %v4779, %v4777
  %v5091 = vpack.c.bf16 %v4783, %v4781
  %v5092 = vpack.c.bf16 %v4787, %v4785
  %v5093 = vpack.c.bf16 %v4791, %v4789
  %v5094 = vpack.c.bf16 %v4795, %v4793
  %v5095 = vpack.c.bf16 %v4799, %v4797
  %v5096 = vpack.c.bf16 %v4803, %v4801
  %v5097 = vpack.c.bf16 %v4807, %v4805
  %v5098 = vpack.c.bf16 %v4811, %v4809
  %v5099 = vpack.c.bf16 %v4815, %v4813
  %v5100 = vpack.c.bf16 %v4819, %v4817
  %v5101 = vpack.c.bf16 %v4823, %v4821
  %v5102 = vpack.c.bf16 %v4827, %v4825
  %v5103 = vpack.c.bf16 %v4831, %v4829
  %v5104 = vpack.c.bf16 %v4835, %v4833
  %v5105 = vpack.c.bf16 %v4839, %v4837
  %v5106 = vpack.c.bf16 %v4843, %v4841
  %v5107 = vpack.c.bf16 %v4847, %v4845
  %v5108 = vpack.c.bf16 %v4851, %v4849
  %v5109 = vpack.c.bf16 %v4855, %v4853
  %v5110 = vpack.c.bf16 %v4859, %v4857
  %v5111 = vpack.c.bf16 %v4863, %v4861
  %v5112 = vpack.c.bf16 %v4867, %v4865
  %v5113 = vpack.c.bf16 %v4871, %v4869
  %v5114 = vpack.c.bf16 %v4875, %v4873
  %v5115 = vpack.c.bf16 %v4879, %v4877
  %v5116 = vpack.c.bf16 %v4883, %v4881
  %v5117 = vpack.c.bf16 %v4887, %v4885
  %v5118 = vpack.c.bf16 %v4891, %v4889
  %v5119 = vpack.c.bf16 %v4895, %v4893
  %v5120 = vpack.c.bf16 %v4899, %v4897
  %v5121 = vpack.c.bf16 %v4903, %v4901
  %v5122 = vpack.c.bf16 %v4907, %v4905
  %v5123 = vpack.c.bf16 %v4911, %v4909
  %v5124 = vpack.c.bf16 %v4915, %v4913
  %v5125 = vpack.c.bf16 %v4919, %v4917
  %v5126 = vpack.c.bf16 %v4923, %v4921
  %v5127 = vpack.c.bf16 %v4927, %v4925
  %v5128 = vpack.c.bf16 %v4931, %v4929
  %v5129 = vpack.c.bf16 %v4935, %v4933
  %v5130 = vpack.c.bf16 %v4939, %v4937
  %v5131 = vpack.c.bf16 %v4943, %v4941
  %v5132 = vpack.c.bf16 %v4947, %v4945
  %v5133 = vpack.c.bf16 %v4951, %v4949
  %v5134 = vpack.c.bf16 %v4955, %v4953
  %v5135 = vpack.c.bf16 %v4959, %v4957
  %v5136 = vpack.c.bf16 %v4963, %v4961
  %v5137 = vpack.c.bf16 %v4967, %v4965
  %v5138 = vpack.c.bf16 %v4971, %v4969
  %v5139 = vpack.c.bf16 %v4975, %v4973
  %v5140 = vpack.c.bf16 %v4979, %v4977
  %v5141 = vpack.c.bf16 %v4983, %v4981
  %v5142 = vpack.c.bf16 %v4987, %v4985
  %v5143 = vpack.c.bf16 %v4991, %v4989
  %v5144 = vpack.c.bf16 %v4995, %v4993
  %v5145 = vpack.c.bf16 %v4999, %v4997
  %v5146 = vpack.c.bf16 %v5003, %v5001
  %v5147 = vpack.c.bf16 %v5007, %v5005
  %v5148 = vpack.c.bf16 %v5011, %v5009
  %v5149 = vpack.c.bf16 %v5015, %v5013
  %v5150 = vpack.c.bf16 %v5019, %v5017
  %v5151 = vpack.c.bf16 %v5023, %v5021
  %v5152 = vunpack.c.l.bf16 %v5024
  %v5153 = vunpack.c.h.bf16 %v5024
  %v5154 = vunpack.c.l.bf16 %v5025
  %v5155 = vunpack.c.h.bf16 %v5025
  %v5156 = vunpack.c.l.bf16 %v5026
  %v5157 = vunpack.c.h.bf16 %v5026
  %v5158 = vunpack.c.l.bf16 %v5027
  %v5159 = vunpack.c.h.bf16 %v5027
  %v5160 = vunpack.c.l.bf16 %v5028
  %v5161 = vunpack.c.h.bf16 %v5028
  %v5162 = vunpack.c.l.bf16 %v5029
  %v5163 = vunpack.c.h.bf16 %v5029
  %v5164 = vunpack.c.l.bf16 %v5030
  %v5165 = vunpack.c.h.bf16 %v5030
  %v5166 = vunpack.c.l.bf16 %v5031
  %v5167 = vunpack.c.h.bf16 %v5031
  %v5168 = vunpack.c.l.bf16 %v5032
  %v5169 = vunpack.c.h.bf16 %v5032
  %v5170 = vunpack.c.l.bf16 %v5033
  %v5171 = vunpack.c.h.bf16 %v5033
  %v5172 = vunpack.c.l.bf16 %v5034
  %v5173 = vunpack.c.h.bf16 %v5034
  %v5174 = vunpack.c.l.bf16 %v5035
  %v5175 = vunpack.c.h.bf16 %v5035
  %v5176 = vunpack.c.l.bf16 %v5036
  %v5177 = vunpack.c.h.bf16 %v5036
  %v5178 = vunpack.c.l.bf16 %v5037
  %v5179 = vunpack.c.h.bf16 %v5037
  %v5180 = vunpack.c.l.bf16 %v5038
  %v5181 = vunpack.c.h.bf16 %v5038
  %v5182 = vunpack.c.l.bf16 %v5039
  %v5183 = vunpack.c.h.bf16 %v5039
  %v5184 = vunpack.c.l.bf16 %v5040
  %v5185 = vunpack.c.h.bf16 %v5040
  %v5186 = vunpack.c.l.bf16 %v5041
  %v5187 = vunpack.c.h.bf16 %v5041
  %v5188 = vunpack.c.l.bf16 %v5042
  %v5189 = vunpack.c.h.bf16 %v5042
  %v5190 = vunpack.c.l.bf16 %v5043
  %v5191 = vunpack.c.h.bf16 %v5043
  %v5192 = vunpack.c.l.bf16 %v5044
  %v5193 = vunpack.c.h.bf16 %v5044
  %v5194 = vunpack.c.l.bf16 %v5045
  %v5195 = vunpack.c.h.bf16 %v5045
  %v5196 = vunpack.c.l.bf16 %v5046
  %v5197 = vunpack.c.h.bf16 %v5046
  %v5198 = vunpack.c.l.bf16 %v5047
  %v5199 = vunpack.c.h.bf16 %v5047
  %v5200 = vunpack.c.l.bf16 %v5048
  %v5201 = vunpack.c.h.bf16 %v5048
  %v5202 = vunpack.c.l.bf16 %v5049
  %v5203 = vunpack.c.h.bf16 %v5049
  %v5204 = vunpack.c.l.bf16 %v5050
  %v5205 = vunpack.c.h.bf16 %v5050
  %v5206 = vunpack.c.l.bf16 %v5051
  %v5207 = vunpack.c.h.bf16 %v5051
  %v5208 = vunpack.c.l.bf16 %v5052
  %v5209 = vunpack.c.h.bf16 %v5052
  %v5210 = vunpack.c.l.bf16 %v5053
  %v5211 = vunpack.c.h.bf16 %v5053
  %v5212 = vunpack.c.l.bf16 %v5054
  %v5213 = vunpack.c.h.bf16 %v5054
  %v5214 = vunpack.c.l.bf16 %v5055
  %v5215 = vunpack.c.h.bf16 %v5055
  %v5216 = vunpack.c.l.bf16 %v5056
  %v5217 = vunpack.c.h.bf16 %v5056
  %v5218 = vunpack.c.l.bf16 %v5057
  %v5219 = vunpack.c.h.bf16 %v5057
  %v5220 = vunpack.c.l.bf16 %v5058
  %v5221 = vunpack.c.h.bf16 %v5058
  %v5222 = vunpack.c.l.bf16 %v5059
  %v5223 = vunpack.c.h.bf16 %v5059
  %v5224 = vunpack.c.l.bf16 %v5060
  %v5225 = vunpack.c.h.bf16 %v5060
  %v5226 = vunpack.c.l.bf16 %v5061
  %v5227 = vunpack.c.h.bf16 %v5061
  %v5228 = vunpack.c.l.bf16 %v5062
  %v5229 = vunpack.c.h.bf16 %v5062
  %v5230 = vunpack.c.l.bf16 %v5063
  %v5231 = vunpack.c.h.bf16 %v5063
  %v5232 = vunpack.c.l.bf16 %v5064
  %v5233 = vunpack.c.h.bf16 %v5064
  %v5234 = vunpack.c.l.bf16 %v5065
  %v5235 = vunpack.c.h.bf16 %v5065
  %v5236 = vunpack.c.l.bf16 %v5066
  %v5237 = vunpack.c.h.bf16 %v5066
  %v5238 = vunpack.c.l.bf16 %v5067
  %v5239 = vunpack.c.h.bf16 %v5067
  %v5240 = vunpack.c.l.bf16 %v5068
  %v5241 = vunpack.c.h.bf16 %v5068
  %v5242 = vunpack.c.l.bf16 %v5069
  %v5243 = vunpack.c.h.bf16 %v5069
  %v5244 = vunpack.c.l.bf16 %v5070
  %v5245 = vunpack.c.h.bf16 %v5070
  %v5246 = vunpack.c.l.bf16 %v5071
  %v5247 = vunpack.c.h.bf16 %v5071
  %v5248 = vunpack.c.l.bf16 %v5072
  %v5249 = vunpack.c.h.bf16 %v5072
  %v5250 = vunpack.c.l.bf16 %v5073
  %v5251 = vunpack.c.h.bf16 %v5073
  %v5252 = vunpack.c.l.bf16 %v5074
  %v5253 = vunpack.c.h.bf16 %v5074
  %v5254 = vunpack.c.l.bf16 %v5075
  %v5255 = vunpack.c.h.bf16 %v5075
  %v5256 = vunpack.c.l.bf16 %v5076
  %v5257 = vunpack.c.h.bf16 %v5076
  %v5258 = vunpack.c.l.bf16 %v5077
  %v5259 = vunpack.c.h.bf16 %v5077
  %v5260 = vunpack.c.l.bf16 %v5078
  %v5261 = vunpack.c.h.bf16 %v5078
  %v5262 = vunpack.c.l.bf16 %v5079
  %v5263 = vunpack.c.h.bf16 %v5079
  %v5264 = vunpack.c.l.bf16 %v5080
  %v5265 = vunpack.c.h.bf16 %v5080
  %v5266 = vunpack.c.l.bf16 %v5081
  %v5267 = vunpack.c.h.bf16 %v5081
  %v5268 = vunpack.c.l.bf16 %v5082
  %v5269 = vunpack.c.h.bf16 %v5082
  %v5270 = vunpack.c.l.bf16 %v5083
  %v5271 = vunpack.c.h.bf16 %v5083
  %v5272 = vunpack.c.l.bf16 %v5084
  %v5273 = vunpack.c.h.bf16 %v5084
  %v5274 = vunpack.c.l.bf16 %v5085
  %v5275 = vunpack.c.h.bf16 %v5085
  %v5276 = vunpack.c.l.bf16 %v5086
  %v5277 = vunpack.c.h.bf16 %v5086
  %v5278 = vunpack.c.l.bf16 %v5087
  %v5279 = vunpack.c.h.bf16 %v5087
  %v5280 = vunpack.c.l.bf16 %v5088
  %v5281 = vunpack.c.h.bf16 %v5088
  %v5282 = vunpack.c.l.bf16 %v5089
  %v5283 = vunpack.c.h.bf16 %v5089
  %v5284 = vunpack.c.l.bf16 %v5090
  %v5285 = vunpack.c.h.bf16 %v5090
  %v5286 = vunpack.c.l.bf16 %v5091
  %v5287 = vunpack.c.h.bf16 %v5091
  %v5288 = vunpack.c.l.bf16 %v5092
  %v5289 = vunpack.c.h.bf16 %v5092
  %v5290 = vunpack.c.l.bf16 %v5093
  %v5291 = vunpack.c.h.bf16 %v5093
  %v5292 = vunpack.c.l.bf16 %v5094
  %v5293 = vunpack.c.h.bf16 %v5094
  %v5294 = vunpack.c.l.bf16 %v5095
  %v5295 = vunpack.c.h.bf16 %v5095
  %v5296 = vunpack.c.l.bf16 %v5096
  %v5297 = vunpack.c.h.bf16 %v5096
  %v5298 = vunpack.c.l.bf16 %v5097
  %v5299 = vunpack.c.h.bf16 %v5097
  %v5300 = vunpack.c.l.bf16 %v5098
  %v5301 = vunpack.c.h.bf16 %v5098
  %v5302 = vunpack.c.l.bf16 %v5099
  %v5303 = vunpack.c.h.bf16 %v5099
  %v5304 = vunpack.c.l.bf16 %v5100
  %v5305 = vunpack.c.h.bf16 %v5100
  %v5306 = vunpack.c.l.bf16 %v5101
  %v5307 = vunpack.c.h.bf16 %v5101
  %v5308 = vunpack.c.l.bf16 %v5102
  %v5309 = vunpack.c.h.bf16 %v5102
  %v5310 = vunpack.c.l.bf16 %v5103
  %v5311 = vunpack.c.h.bf16 %v5103
  %v5312 = vunpack.c.l.bf16 %v5104
  %v5313 = vunpack.c.h.bf16 %v5104
  %v5314 = vunpack.c.l.bf16 %v5105
  %v5315 = vunpack.c.h.bf16 %v5105
  %v5316 = vunpack.c.l.bf16 %v5106
  %v5317 = vunpack.c.h.bf16 %v5106
  %v5318 = vunpack.c.l.bf16 %v5107
  %v5319 = vunpack.c.h.bf16 %v5107
  %v5320 = vunpack.c.l.bf16 %v5108
  %v5321 = vunpack.c.h.bf16 %v5108
  %v5322 = vunpack.c.l.bf16 %v5109
  %v5323 = vunpack.c.h.bf16 %v5109
  %v5324 = vunpack.c.l.bf16 %v5110
  %v5325 = vunpack.c.h.bf16 %v5110
  %v5326 = vunpack.c.l.bf16 %v5111
  %v5327 = vunpack.c.h.bf16 %v5111
  %v5328 = vunpack.c.l.bf16 %v5112
  %v5329 = vunpack.c.h.bf16 %v5112
  %v5330 = vunpack.c.l.bf16 %v5113
  %v5331 = vunpack.c.h.bf16 %v5113
  %v5332 = vunpack.c.l.bf16 %v5114
  %v5333 = vunpack.c.h.bf16 %v5114
  %v5334 = vunpack.c.l.bf16 %v5115
  %v5335 = vunpack.c.h.bf16 %v5115
  %v5336 = vunpack.c.l.bf16 %v5116
  %v5337 = vunpack.c.h.bf16 %v5116
  %v5338 = vunpack.c.l.bf16 %v5117
  %v5339 = vunpack.c.h.bf16 %v5117
  %v5340 = vunpack.c.l.bf16 %v5118
  %v5341 = vunpack.c.h.bf16 %v5118
  %v5342 = vunpack.c.l.bf16 %v5119
  %v5343 = vunpack.c.h.bf16 %v5119
  %v5344 = vunpack.c.l.bf16 %v5120
  %v5345 = vunpack.c.h.bf16 %v5120
  %v5346 = vunpack.c.l.bf16 %v5121
  %v5347 = vunpack.c.h.bf16 %v5121
  %v5348 = vunpack.c.l.bf16 %v5122
  %v5349 = vunpack.c.h.bf16 %v5122
  %v5350 = vunpack.c.l.bf16 %v5123
  %v5351 = vunpack.c.h.bf16 %v5123
  %v5352 = vunpack.c.l.bf16 %v5124
  %v5353 = vunpack.c.h.bf16 %v5124
  %v5354 = vunpack.c.l.bf16 %v5125
  %v5355 = vunpack.c.h.bf16 %v5125
  %v5356 = vunpack.c.l.bf16 %v5126
  %v5357 = vunpack.c.h.bf16 %v5126
  %v5358 = vunpack.c.l.bf16 %v5127
  %v5359 = vunpack.c.h.bf16 %v5127
  %v5360 = vunpack.c.l.bf16 %v5128
  %v5361 = vunpack.c.h.bf16 %v5128
  %v5362 = vunpack.c.l.bf16 %v5129
  %v5363 = vunpack.c.h.bf16 %v5129
  %v5364 = vunpack.c.l.bf16 %v5130
  %v5365 = vunpack.c.h.bf16 %v5130
  %v5366 = vunpack.c.l.bf16 %v5131
  %v5367 = vunpack.c.h.bf16 %v5131
  %v5368 = vunpack.c.l.bf16 %v5132
  %v5369 = vunpack.c.h.bf16 %v5132
  %v5370 = vunpack.c.l.bf16 %v5133
  %v5371 = vunpack.c.h.bf16 %v5133
  %v5372 = vunpack.c.l.bf16 %v5134
  %v5373 = vunpack.c.h.bf16 %v5134
  %v5374 = vunpack.c.l.bf16 %v5135
  %v5375 = vunpack.c.h.bf16 %v5135
  %v5376 = vunpack.c.l.bf16 %v5136
  %v5377 = vunpack.c.h.bf16 %v5136
  %v5378 = vunpack.c.l.bf16 %v5137
  %v5379 = vunpack.c.h.bf16 %v5137
  %v5380 = vunpack.c.l.bf16 %v5138
  %v5381 = vunpack.c.h.bf16 %v5138
  %v5382 = vunpack.c.l.bf16 %v5139
  %v5383 = vunpack.c.h.bf16 %v5139
  %v5384 = vunpack.c.l.bf16 %v5140
  %v5385 = vunpack.c.h.bf16 %v5140
  %v5386 = vunpack.c.l.bf16 %v5141
  %v5387 = vunpack.c.h.bf16 %v5141
  %v5388 = vunpack.c.l.bf16 %v5142
  %v5389 = vunpack.c.h.bf16 %v5142
  %v5390 = vunpack.c.l.bf16 %v5143
  %v5391 = vunpack.c.h.bf16 %v5143
  %v5392 = vunpack.c.l.bf16 %v5144
  %v5393 = vunpack.c.h.bf16 %v5144
  %v5394 = vunpack.c.l.bf16 %v5145
  %v5395 = vunpack.c.h.bf16 %v5145
  %v5396 = vunpack.c.l.bf16 %v5146
  %v5397 = vunpack.c.h.bf16 %v5146
  %v5398 = vunpack.c.l.bf16 %v5147
  %v5399 = vunpack.c.h.bf16 %v5147
  %v5400 = vunpack.c.l.bf16 %v5148
  %v5401 = vunpack.c.h.bf16 %v5148
  %v5402 = vunpack.c.l.bf16 %v5149
  %v5403 = vunpack.c.h.bf16 %v5149
  %v5404 = vunpack.c.l.bf16 %v5150
  %v5405 = vunpack.c.h.bf16 %v5150
  %v5406 = vunpack.c.l.bf16 %v5151
  %v5407 = vunpack.c.h.bf16 %v5151
  %5408 = vadd.xlane.f32.xlu0 %v5152
  %v5409 = vpop.xlane.xlu0 %5408
  %5410 = vadd.xlane.f32.xlu0 %v5153
  %v5411 = vpop.xlane.xlu0 %5410
  %5412 = vadd.xlane.f32.xlu0 %v5154
  %v5413 = vpop.xlane.xlu0 %5412
  %5414 = vadd.xlane.f32.xlu0 %v5155
  %v5415 = vpop.xlane.xlu0 %5414
  %5416 = vadd.xlane.f32.xlu0 %v5156
  %v5417 = vpop.xlane.xlu0 %5416
  %5418 = vadd.xlane.f32.xlu0 %v5157
  %v5419 = vpop.xlane.xlu0 %5418
  %5420 = vadd.xlane.f32.xlu0 %v5158
  %v5421 = vpop.xlane.xlu0 %5420
  %5422 = vadd.xlane.f32.xlu0 %v5159
  %v5423 = vpop.xlane.xlu0 %5422
  %5424 = vadd.xlane.f32.xlu0 %v5160
  %v5425 = vpop.xlane.xlu0 %5424
  %5426 = vadd.xlane.f32.xlu0 %v5161
  %v5427 = vpop.xlane.xlu0 %5426
  %5428 = vadd.xlane.f32.xlu0 %v5162
  %v5429 = vpop.xlane.xlu0 %5428
  %5430 = vadd.xlane.f32.xlu0 %v5163
  %v5431 = vpop.xlane.xlu0 %5430
  %5432 = vadd.xlane.f32.xlu0 %v5164
  %v5433 = vpop.xlane.xlu0 %5432
  %5434 = vadd.xlane.f32.xlu0 %v5165
  %v5435 = vpop.xlane.xlu0 %5434
  %5436 = vadd.xlane.f32.xlu0 %v5166
  %v5437 = vpop.xlane.xlu0 %5436
  %5438 = vadd.xlane.f32.xlu0 %v5167
  %v5439 = vpop.xlane.xlu0 %5438
  %5440 = vadd.xlane.f32.xlu0 %v5168
  %v5441 = vpop.xlane.xlu0 %5440
  %5442 = vadd.xlane.f32.xlu0 %v5169
  %v5443 = vpop.xlane.xlu0 %5442
  %5444 = vadd.xlane.f32.xlu0 %v5170
  %v5445 = vpop.xlane.xlu0 %5444
  %5446 = vadd.xlane.f32.xlu0 %v5171
  %v5447 = vpop.xlane.xlu0 %5446
  %5448 = vadd.xlane.f32.xlu0 %v5172
  %v5449 = vpop.xlane.xlu0 %5448
  %5450 = vadd.xlane.f32.xlu0 %v5173
  %v5451 = vpop.xlane.xlu0 %5450
  %5452 = vadd.xlane.f32.xlu0 %v5174
  %v5453 = vpop.xlane.xlu0 %5452
  %5454 = vadd.xlane.f32.xlu0 %v5175
  %v5455 = vpop.xlane.xlu0 %5454
  %5456 = vadd.xlane.f32.xlu0 %v5176
  %v5457 = vpop.xlane.xlu0 %5456
  %5458 = vadd.xlane.f32.xlu0 %v5177
  %v5459 = vpop.xlane.xlu0 %5458
  %5460 = vadd.xlane.f32.xlu0 %v5178
  %v5461 = vpop.xlane.xlu0 %5460
  %5462 = vadd.xlane.f32.xlu0 %v5179
  %v5463 = vpop.xlane.xlu0 %5462
  %5464 = vadd.xlane.f32.xlu0 %v5180
  %v5465 = vpop.xlane.xlu0 %5464
  %5466 = vadd.xlane.f32.xlu0 %v5181
  %v5467 = vpop.xlane.xlu0 %5466
  %5468 = vadd.xlane.f32.xlu0 %v5182
  %v5469 = vpop.xlane.xlu0 %5468
  %5470 = vadd.xlane.f32.xlu0 %v5183
  %v5471 = vpop.xlane.xlu0 %5470
  %5472 = vadd.xlane.f32.xlu0 %v5184
  %v5473 = vpop.xlane.xlu0 %5472
  %5474 = vadd.xlane.f32.xlu0 %v5185
  %v5475 = vpop.xlane.xlu0 %5474
  %5476 = vadd.xlane.f32.xlu0 %v5186
  %v5477 = vpop.xlane.xlu0 %5476
  %5478 = vadd.xlane.f32.xlu0 %v5187
  %v5479 = vpop.xlane.xlu0 %5478
  %5480 = vadd.xlane.f32.xlu0 %v5188
  %v5481 = vpop.xlane.xlu0 %5480
  %5482 = vadd.xlane.f32.xlu0 %v5189
  %v5483 = vpop.xlane.xlu0 %5482
  %5484 = vadd.xlane.f32.xlu0 %v5190
  %v5485 = vpop.xlane.xlu0 %5484
  %5486 = vadd.xlane.f32.xlu0 %v5191
  %v5487 = vpop.xlane.xlu0 %5486
  %5488 = vadd.xlane.f32.xlu0 %v5192
  %v5489 = vpop.xlane.xlu0 %5488
  %5490 = vadd.xlane.f32.xlu0 %v5193
  %v5491 = vpop.xlane.xlu0 %5490
  %5492 = vadd.xlane.f32.xlu0 %v5194
  %v5493 = vpop.xlane.xlu0 %5492
  %5494 = vadd.xlane.f32.xlu0 %v5195
  %v5495 = vpop.xlane.xlu0 %5494
  %5496 = vadd.xlane.f32.xlu0 %v5196
  %v5497 = vpop.xlane.xlu0 %5496
  %5498 = vadd.xlane.f32.xlu0 %v5197
  %v5499 = vpop.xlane.xlu0 %5498
  %5500 = vadd.xlane.f32.xlu0 %v5198
  %v5501 = vpop.xlane.xlu0 %5500
  %5502 = vadd.xlane.f32.xlu0 %v5199
  %v5503 = vpop.xlane.xlu0 %5502
  %5504 = vadd.xlane.f32.xlu0 %v5200
  %v5505 = vpop.xlane.xlu0 %5504
  %5506 = vadd.xlane.f32.xlu0 %v5201
  %v5507 = vpop.xlane.xlu0 %5506
  %5508 = vadd.xlane.f32.xlu0 %v5202
  %v5509 = vpop.xlane.xlu0 %5508
  %5510 = vadd.xlane.f32.xlu0 %v5203
  %v5511 = vpop.xlane.xlu0 %5510
  %5512 = vadd.xlane.f32.xlu0 %v5204
  %v5513 = vpop.xlane.xlu0 %5512
  %5514 = vadd.xlane.f32.xlu0 %v5205
  %v5515 = vpop.xlane.xlu0 %5514
  %5516 = vadd.xlane.f32.xlu0 %v5206
  %v5517 = vpop.xlane.xlu0 %5516
  %5518 = vadd.xlane.f32.xlu0 %v5207
  %v5519 = vpop.xlane.xlu0 %5518
  %5520 = vadd.xlane.f32.xlu0 %v5208
  %v5521 = vpop.xlane.xlu0 %5520
  %5522 = vadd.xlane.f32.xlu0 %v5209
  %v5523 = vpop.xlane.xlu0 %5522
  %5524 = vadd.xlane.f32.xlu0 %v5210
  %v5525 = vpop.xlane.xlu0 %5524
  %5526 = vadd.xlane.f32.xlu0 %v5211
  %v5527 = vpop.xlane.xlu0 %5526
  %5528 = vadd.xlane.f32.xlu0 %v5212
  %v5529 = vpop.xlane.xlu0 %5528
  %5530 = vadd.xlane.f32.xlu0 %v5213
  %v5531 = vpop.xlane.xlu0 %5530
  %5532 = vadd.xlane.f32.xlu0 %v5214
  %v5533 = vpop.xlane.xlu0 %5532
  %5534 = vadd.xlane.f32.xlu0 %v5215
  %v5535 = vpop.xlane.xlu0 %5534
  %5536 = vadd.xlane.f32.xlu0 %v5216
  %v5537 = vpop.xlane.xlu0 %5536
  %5538 = vadd.xlane.f32.xlu0 %v5217
  %v5539 = vpop.xlane.xlu0 %5538
  %5540 = vadd.xlane.f32.xlu0 %v5218
  %v5541 = vpop.xlane.xlu0 %5540
  %5542 = vadd.xlane.f32.xlu0 %v5219
  %v5543 = vpop.xlane.xlu0 %5542
  %5544 = vadd.xlane.f32.xlu0 %v5220
  %v5545 = vpop.xlane.xlu0 %5544
  %5546 = vadd.xlane.f32.xlu0 %v5221
  %v5547 = vpop.xlane.xlu0 %5546
  %5548 = vadd.xlane.f32.xlu0 %v5222
  %v5549 = vpop.xlane.xlu0 %5548
  %5550 = vadd.xlane.f32.xlu0 %v5223
  %v5551 = vpop.xlane.xlu0 %5550
  %5552 = vadd.xlane.f32.xlu0 %v5224
  %v5553 = vpop.xlane.xlu0 %5552
  %5554 = vadd.xlane.f32.xlu0 %v5225
  %v5555 = vpop.xlane.xlu0 %5554
  %5556 = vadd.xlane.f32.xlu0 %v5226
  %v5557 = vpop.xlane.xlu0 %5556
  %5558 = vadd.xlane.f32.xlu0 %v5227
  %v5559 = vpop.xlane.xlu0 %5558
  %5560 = vadd.xlane.f32.xlu0 %v5228
  %v5561 = vpop.xlane.xlu0 %5560
  %5562 = vadd.xlane.f32.xlu0 %v5229
  %v5563 = vpop.xlane.xlu0 %5562
  %5564 = vadd.xlane.f32.xlu0 %v5230
  %v5565 = vpop.xlane.xlu0 %5564
  %5566 = vadd.xlane.f32.xlu0 %v5231
  %v5567 = vpop.xlane.xlu0 %5566
  %5568 = vadd.xlane.f32.xlu0 %v5232
  %v5569 = vpop.xlane.xlu0 %5568
  %5570 = vadd.xlane.f32.xlu0 %v5233
  %v5571 = vpop.xlane.xlu0 %5570
  %5572 = vadd.xlane.f32.xlu0 %v5234
  %v5573 = vpop.xlane.xlu0 %5572
  %5574 = vadd.xlane.f32.xlu0 %v5235
  %v5575 = vpop.xlane.xlu0 %5574
  %5576 = vadd.xlane.f32.xlu0 %v5236
  %v5577 = vpop.xlane.xlu0 %5576
  %5578 = vadd.xlane.f32.xlu0 %v5237
  %v5579 = vpop.xlane.xlu0 %5578
  %5580 = vadd.xlane.f32.xlu0 %v5238
  %v5581 = vpop.xlane.xlu0 %5580
  %5582 = vadd.xlane.f32.xlu0 %v5239
  %v5583 = vpop.xlane.xlu0 %5582
  %5584 = vadd.xlane.f32.xlu0 %v5240
  %v5585 = vpop.xlane.xlu0 %5584
  %5586 = vadd.xlane.f32.xlu0 %v5241
  %v5587 = vpop.xlane.xlu0 %5586
  %5588 = vadd.xlane.f32.xlu0 %v5242
  %v5589 = vpop.xlane.xlu0 %5588
  %5590 = vadd.xlane.f32.xlu0 %v5243
  %v5591 = vpop.xlane.xlu0 %5590
  %5592 = vadd.xlane.f32.xlu0 %v5244
  %v5593 = vpop.xlane.xlu0 %5592
  %5594 = vadd.xlane.f32.xlu0 %v5245
  %v5595 = vpop.xlane.xlu0 %5594
  %5596 = vadd.xlane.f32.xlu0 %v5246
  %v5597 = vpop.xlane.xlu0 %5596
  %5598 = vadd.xlane.f32.xlu0 %v5247
  %v5599 = vpop.xlane.xlu0 %5598
  %5600 = vadd.xlane.f32.xlu0 %v5248
  %v5601 = vpop.xlane.xlu0 %5600
  %5602 = vadd.xlane.f32.xlu0 %v5249
  %v5603 = vpop.xlane.xlu0 %5602
  %5604 = vadd.xlane.f32.xlu0 %v5250
  %v5605 = vpop.xlane.xlu0 %5604
  %5606 = vadd.xlane.f32.xlu0 %v5251
  %v5607 = vpop.xlane.xlu0 %5606
  %5608 = vadd.xlane.f32.xlu0 %v5252
  %v5609 = vpop.xlane.xlu0 %5608
  %5610 = vadd.xlane.f32.xlu0 %v5253
  %v5611 = vpop.xlane.xlu0 %5610
  %5612 = vadd.xlane.f32.xlu0 %v5254
  %v5613 = vpop.xlane.xlu0 %5612
  %5614 = vadd.xlane.f32.xlu0 %v5255
  %v5615 = vpop.xlane.xlu0 %5614
  %5616 = vadd.xlane.f32.xlu0 %v5256
  %v5617 = vpop.xlane.xlu0 %5616
  %5618 = vadd.xlane.f32.xlu0 %v5257
  %v5619 = vpop.xlane.xlu0 %5618
  %5620 = vadd.xlane.f32.xlu0 %v5258
  %v5621 = vpop.xlane.xlu0 %5620
  %5622 = vadd.xlane.f32.xlu0 %v5259
  %v5623 = vpop.xlane.xlu0 %5622
  %5624 = vadd.xlane.f32.xlu0 %v5260
  %v5625 = vpop.xlane.xlu0 %5624
  %5626 = vadd.xlane.f32.xlu0 %v5261
  %v5627 = vpop.xlane.xlu0 %5626
  %5628 = vadd.xlane.f32.xlu0 %v5262
  %v5629 = vpop.xlane.xlu0 %5628
  %5630 = vadd.xlane.f32.xlu0 %v5263
  %v5631 = vpop.xlane.xlu0 %5630
  %5632 = vadd.xlane.f32.xlu0 %v5264
  %v5633 = vpop.xlane.xlu0 %5632
  %5634 = vadd.xlane.f32.xlu0 %v5265
  %v5635 = vpop.xlane.xlu0 %5634
  %5636 = vadd.xlane.f32.xlu0 %v5266
  %v5637 = vpop.xlane.xlu0 %5636
  %5638 = vadd.xlane.f32.xlu0 %v5267
  %v5639 = vpop.xlane.xlu0 %5638
  %5640 = vadd.xlane.f32.xlu0 %v5268
  %v5641 = vpop.xlane.xlu0 %5640
  %5642 = vadd.xlane.f32.xlu0 %v5269
  %v5643 = vpop.xlane.xlu0 %5642
  %5644 = vadd.xlane.f32.xlu0 %v5270
  %v5645 = vpop.xlane.xlu0 %5644
  %5646 = vadd.xlane.f32.xlu0 %v5271
  %v5647 = vpop.xlane.xlu0 %5646
  %5648 = vadd.xlane.f32.xlu0 %v5272
  %v5649 = vpop.xlane.xlu0 %5648
  %5650 = vadd.xlane.f32.xlu0 %v5273
  %v5651 = vpop.xlane.xlu0 %5650
  %5652 = vadd.xlane.f32.xlu0 %v5274
  %v5653 = vpop.xlane.xlu0 %5652
  %5654 = vadd.xlane.f32.xlu0 %v5275
  %v5655 = vpop.xlane.xlu0 %5654
  %5656 = vadd.xlane.f32.xlu0 %v5276
  %v5657 = vpop.xlane.xlu0 %5656
  %5658 = vadd.xlane.f32.xlu0 %v5277
  %v5659 = vpop.xlane.xlu0 %5658
  %5660 = vadd.xlane.f32.xlu0 %v5278
  %v5661 = vpop.xlane.xlu0 %5660
  %5662 = vadd.xlane.f32.xlu0 %v5279
  %v5663 = vpop.xlane.xlu0 %5662
  %5664 = vadd.xlane.f32.xlu0 %v5280
  %v5665 = vpop.xlane.xlu0 %5664
  %5666 = vadd.xlane.f32.xlu0 %v5281
  %v5667 = vpop.xlane.xlu0 %5666
  %5668 = vadd.xlane.f32.xlu0 %v5282
  %v5669 = vpop.xlane.xlu0 %5668
  %5670 = vadd.xlane.f32.xlu0 %v5283
  %v5671 = vpop.xlane.xlu0 %5670
  %5672 = vadd.xlane.f32.xlu0 %v5284
  %v5673 = vpop.xlane.xlu0 %5672
  %5674 = vadd.xlane.f32.xlu0 %v5285
  %v5675 = vpop.xlane.xlu0 %5674
  %5676 = vadd.xlane.f32.xlu0 %v5286
  %v5677 = vpop.xlane.xlu0 %5676
  %5678 = vadd.xlane.f32.xlu0 %v5287
  %v5679 = vpop.xlane.xlu0 %5678
  %5680 = vadd.xlane.f32.xlu0 %v5288
  %v5681 = vpop.xlane.xlu0 %5680
  %5682 = vadd.xlane.f32.xlu0 %v5289
  %v5683 = vpop.xlane.xlu0 %5682
  %5684 = vadd.xlane.f32.xlu0 %v5290
  %v5685 = vpop.xlane.xlu0 %5684
  %5686 = vadd.xlane.f32.xlu0 %v5291
  %v5687 = vpop.xlane.xlu0 %5686
  %5688 = vadd.xlane.f32.xlu0 %v5292
  %v5689 = vpop.xlane.xlu0 %5688
  %5690 = vadd.xlane.f32.xlu0 %v5293
  %v5691 = vpop.xlane.xlu0 %5690
  %5692 = vadd.xlane.f32.xlu0 %v5294
  %v5693 = vpop.xlane.xlu0 %5692
  %5694 = vadd.xlane.f32.xlu0 %v5295
  %v5695 = vpop.xlane.xlu0 %5694
  %5696 = vadd.xlane.f32.xlu0 %v5296
  %v5697 = vpop.xlane.xlu0 %5696
  %5698 = vadd.xlane.f32.xlu0 %v5297
  %v5699 = vpop.xlane.xlu0 %5698
  %5700 = vadd.xlane.f32.xlu0 %v5298
  %v5701 = vpop.xlane.xlu0 %5700
  %5702 = vadd.xlane.f32.xlu0 %v5299
  %v5703 = vpop.xlane.xlu0 %5702
  %5704 = vadd.xlane.f32.xlu0 %v5300
  %v5705 = vpop.xlane.xlu0 %5704
  %5706 = vadd.xlane.f32.xlu0 %v5301
  %v5707 = vpop.xlane.xlu0 %5706
  %5708 = vadd.xlane.f32.xlu0 %v5302
  %v5709 = vpop.xlane.xlu0 %5708
  %5710 = vadd.xlane.f32.xlu0 %v5303
  %v5711 = vpop.xlane.xlu0 %5710
  %5712 = vadd.xlane.f32.xlu0 %v5304
  %v5713 = vpop.xlane.xlu0 %5712
  %5714 = vadd.xlane.f32.xlu0 %v5305
  %v5715 = vpop.xlane.xlu0 %5714
  %5716 = vadd.xlane.f32.xlu0 %v5306
  %v5717 = vpop.xlane.xlu0 %5716
  %5718 = vadd.xlane.f32.xlu0 %v5307
  %v5719 = vpop.xlane.xlu0 %5718
  %5720 = vadd.xlane.f32.xlu0 %v5308
  %v5721 = vpop.xlane.xlu0 %5720
  %5722 = vadd.xlane.f32.xlu0 %v5309
  %v5723 = vpop.xlane.xlu0 %5722
  %5724 = vadd.xlane.f32.xlu0 %v5310
  %v5725 = vpop.xlane.xlu0 %5724
  %5726 = vadd.xlane.f32.xlu0 %v5311
  %v5727 = vpop.xlane.xlu0 %5726
  %5728 = vadd.xlane.f32.xlu0 %v5312
  %v5729 = vpop.xlane.xlu0 %5728
  %5730 = vadd.xlane.f32.xlu0 %v5313
  %v5731 = vpop.xlane.xlu0 %5730
  %5732 = vadd.xlane.f32.xlu0 %v5314
  %v5733 = vpop.xlane.xlu0 %5732
  %5734 = vadd.xlane.f32.xlu0 %v5315
  %v5735 = vpop.xlane.xlu0 %5734
  %5736 = vadd.xlane.f32.xlu0 %v5316
  %v5737 = vpop.xlane.xlu0 %5736
  %5738 = vadd.xlane.f32.xlu0 %v5317
  %v5739 = vpop.xlane.xlu0 %5738
  %5740 = vadd.xlane.f32.xlu0 %v5318
  %v5741 = vpop.xlane.xlu0 %5740
  %5742 = vadd.xlane.f32.xlu0 %v5319
  %v5743 = vpop.xlane.xlu0 %5742
  %5744 = vadd.xlane.f32.xlu0 %v5320
  %v5745 = vpop.xlane.xlu0 %5744
  %5746 = vadd.xlane.f32.xlu0 %v5321
  %v5747 = vpop.xlane.xlu0 %5746
  %5748 = vadd.xlane.f32.xlu0 %v5322
  %v5749 = vpop.xlane.xlu0 %5748
  %5750 = vadd.xlane.f32.xlu0 %v5323
  %v5751 = vpop.xlane.xlu0 %5750
  %5752 = vadd.xlane.f32.xlu0 %v5324
  %v5753 = vpop.xlane.xlu0 %5752
  %5754 = vadd.xlane.f32.xlu0 %v5325
  %v5755 = vpop.xlane.xlu0 %5754
  %5756 = vadd.xlane.f32.xlu0 %v5326
  %v5757 = vpop.xlane.xlu0 %5756
  %5758 = vadd.xlane.f32.xlu0 %v5327
  %v5759 = vpop.xlane.xlu0 %5758
  %5760 = vadd.xlane.f32.xlu0 %v5328
  %v5761 = vpop.xlane.xlu0 %5760
  %5762 = vadd.xlane.f32.xlu0 %v5329
  %v5763 = vpop.xlane.xlu0 %5762
  %5764 = vadd.xlane.f32.xlu0 %v5330
  %v5765 = vpop.xlane.xlu0 %5764
  %5766 = vadd.xlane.f32.xlu0 %v5331
  %v5767 = vpop.xlane.xlu0 %5766
  %5768 = vadd.xlane.f32.xlu0 %v5332
  %v5769 = vpop.xlane.xlu0 %5768
  %5770 = vadd.xlane.f32.xlu0 %v5333
  %v5771 = vpop.xlane.xlu0 %5770
  %5772 = vadd.xlane.f32.xlu0 %v5334
  %v5773 = vpop.xlane.xlu0 %5772
  %5774 = vadd.xlane.f32.xlu0 %v5335
  %v5775 = vpop.xlane.xlu0 %5774
  %5776 = vadd.xlane.f32.xlu0 %v5336
  %v5777 = vpop.xlane.xlu0 %5776
  %5778 = vadd.xlane.f32.xlu0 %v5337
  %v5779 = vpop.xlane.xlu0 %5778
  %5780 = vadd.xlane.f32.xlu0 %v5338
  %v5781 = vpop.xlane.xlu0 %5780
  %5782 = vadd.xlane.f32.xlu0 %v5339
  %v5783 = vpop.xlane.xlu0 %5782
  %5784 = vadd.xlane.f32.xlu0 %v5340
  %v5785 = vpop.xlane.xlu0 %5784
  %5786 = vadd.xlane.f32.xlu0 %v5341
  %v5787 = vpop.xlane.xlu0 %5786
  %5788 = vadd.xlane.f32.xlu0 %v5342
  %v5789 = vpop.xlane.xlu0 %5788
  %5790 = vadd.xlane.f32.xlu0 %v5343
  %v5791 = vpop.xlane.xlu0 %5790
  %5792 = vadd.xlane.f32.xlu0 %v5344
  %v5793 = vpop.xlane.xlu0 %5792
  %5794 = vadd.xlane.f32.xlu0 %v5345
  %v5795 = vpop.xlane.xlu0 %5794
  %5796 = vadd.xlane.f32.xlu0 %v5346
  %v5797 = vpop.xlane.xlu0 %5796
  %5798 = vadd.xlane.f32.xlu0 %v5347
  %v5799 = vpop.xlane.xlu0 %5798
  %5800 = vadd.xlane.f32.xlu0 %v5348
  %v5801 = vpop.xlane.xlu0 %5800
  %5802 = vadd.xlane.f32.xlu0 %v5349
  %v5803 = vpop.xlane.xlu0 %5802
  %5804 = vadd.xlane.f32.xlu0 %v5350
  %v5805 = vpop.xlane.xlu0 %5804
  %5806 = vadd.xlane.f32.xlu0 %v5351
  %v5807 = vpop.xlane.xlu0 %5806
  %5808 = vadd.xlane.f32.xlu0 %v5352
  %v5809 = vpop.xlane.xlu0 %5808
  %5810 = vadd.xlane.f32.xlu0 %v5353
  %v5811 = vpop.xlane.xlu0 %5810
  %5812 = vadd.xlane.f32.xlu0 %v5354
  %v5813 = vpop.xlane.xlu0 %5812
  %5814 = vadd.xlane.f32.xlu0 %v5355
  %v5815 = vpop.xlane.xlu0 %5814
  %5816 = vadd.xlane.f32.xlu0 %v5356
  %v5817 = vpop.xlane.xlu0 %5816
  %5818 = vadd.xlane.f32.xlu0 %v5357
  %v5819 = vpop.xlane.xlu0 %5818
  %5820 = vadd.xlane.f32.xlu0 %v5358
  %v5821 = vpop.xlane.xlu0 %5820
  %5822 = vadd.xlane.f32.xlu0 %v5359
  %v5823 = vpop.xlane.xlu0 %5822
  %5824 = vadd.xlane.f32.xlu0 %v5360
  %v5825 = vpop.xlane.xlu0 %5824
  %5826 = vadd.xlane.f32.xlu0 %v5361
  %v5827 = vpop.xlane.xlu0 %5826
  %5828 = vadd.xlane.f32.xlu0 %v5362
  %v5829 = vpop.xlane.xlu0 %5828
  %5830 = vadd.xlane.f32.xlu0 %v5363
  %v5831 = vpop.xlane.xlu0 %5830
  %5832 = vadd.xlane.f32.xlu0 %v5364
  %v5833 = vpop.xlane.xlu0 %5832
  %5834 = vadd.xlane.f32.xlu0 %v5365
  %v5835 = vpop.xlane.xlu0 %5834
  %5836 = vadd.xlane.f32.xlu0 %v5366
  %v5837 = vpop.xlane.xlu0 %5836
  %5838 = vadd.xlane.f32.xlu0 %v5367
  %v5839 = vpop.xlane.xlu0 %5838
  %5840 = vadd.xlane.f32.xlu0 %v5368
  %v5841 = vpop.xlane.xlu0 %5840
  %5842 = vadd.xlane.f32.xlu0 %v5369
  %v5843 = vpop.xlane.xlu0 %5842
  %5844 = vadd.xlane.f32.xlu0 %v5370
  %v5845 = vpop.xlane.xlu0 %5844
  %5846 = vadd.xlane.f32.xlu0 %v5371
  %v5847 = vpop.xlane.xlu0 %5846
  %5848 = vadd.xlane.f32.xlu0 %v5372
  %v5849 = vpop.xlane.xlu0 %5848
  %5850 = vadd.xlane.f32.xlu0 %v5373
  %v5851 = vpop.xlane.xlu0 %5850
  %5852 = vadd.xlane.f32.xlu0 %v5374
  %v5853 = vpop.xlane.xlu0 %5852
  %5854 = vadd.xlane.f32.xlu0 %v5375
  %v5855 = vpop.xlane.xlu0 %5854
  %5856 = vadd.xlane.f32.xlu0 %v5376
  %v5857 = vpop.xlane.xlu0 %5856
  %5858 = vadd.xlane.f32.xlu0 %v5377
  %v5859 = vpop.xlane.xlu0 %5858
  %5860 = vadd.xlane.f32.xlu0 %v5378
  %v5861 = vpop.xlane.xlu0 %5860
  %5862 = vadd.xlane.f32.xlu0 %v5379
  %v5863 = vpop.xlane.xlu0 %5862
  %5864 = vadd.xlane.f32.xlu0 %v5380
  %v5865 = vpop.xlane.xlu0 %5864
  %5866 = vadd.xlane.f32.xlu0 %v5381
  %v5867 = vpop.xlane.xlu0 %5866
  %5868 = vadd.xlane.f32.xlu0 %v5382
  %v5869 = vpop.xlane.xlu0 %5868
  %5870 = vadd.xlane.f32.xlu0 %v5383
  %v5871 = vpop.xlane.xlu0 %5870
  %5872 = vadd.xlane.f32.xlu0 %v5384
  %v5873 = vpop.xlane.xlu0 %5872
  %5874 = vadd.xlane.f32.xlu0 %v5385
  %v5875 = vpop.xlane.xlu0 %5874
  %5876 = vadd.xlane.f32.xlu0 %v5386
  %v5877 = vpop.xlane.xlu0 %5876
  %5878 = vadd.xlane.f32.xlu0 %v5387
  %v5879 = vpop.xlane.xlu0 %5878
  %5880 = vadd.xlane.f32.xlu0 %v5388
  %v5881 = vpop.xlane.xlu0 %5880
  %5882 = vadd.xlane.f32.xlu0 %v5389
  %v5883 = vpop.xlane.xlu0 %5882
  %5884 = vadd.xlane.f32.xlu0 %v5390
  %v5885 = vpop.xlane.xlu0 %5884
  %5886 = vadd.xlane.f32.xlu0 %v5391
  %v5887 = vpop.xlane.xlu0 %5886
  %5888 = vadd.xlane.f32.xlu0 %v5392
  %v5889 = vpop.xlane.xlu0 %5888
  %5890 = vadd.xlane.f32.xlu0 %v5393
  %v5891 = vpop.xlane.xlu0 %5890
  %5892 = vadd.xlane.f32.xlu0 %v5394
  %v5893 = vpop.xlane.xlu0 %5892
  %5894 = vadd.xlane.f32.xlu0 %v5395
  %v5895 = vpop.xlane.xlu0 %5894
  %5896 = vadd.xlane.f32.xlu0 %v5396
  %v5897 = vpop.xlane.xlu0 %5896
  %5898 = vadd.xlane.f32.xlu0 %v5397
  %v5899 = vpop.xlane.xlu0 %5898
  %5900 = vadd.xlane.f32.xlu0 %v5398
  %v5901 = vpop.xlane.xlu0 %5900
  %5902 = vadd.xlane.f32.xlu0 %v5399
  %v5903 = vpop.xlane.xlu0 %5902
  %5904 = vadd.xlane.f32.xlu0 %v5400
  %v5905 = vpop.xlane.xlu0 %5904
  %5906 = vadd.xlane.f32.xlu0 %v5401
  %v5907 = vpop.xlane.xlu0 %5906
  %5908 = vadd.xlane.f32.xlu0 %v5402
  %v5909 = vpop.xlane.xlu0 %5908
  %5910 = vadd.xlane.f32.xlu0 %v5403
  %v5911 = vpop.xlane.xlu0 %5910
  %5912 = vadd.xlane.f32.xlu0 %v5404
  %v5913 = vpop.xlane.xlu0 %5912
  %5914 = vadd.xlane.f32.xlu0 %v5405
  %v5915 = vpop.xlane.xlu0 %5914
  %5916 = vadd.xlane.f32.xlu0 %v5406
  %v5917 = vpop.xlane.xlu0 %5916
  %5918 = vadd.xlane.f32.xlu0 %v5407
  %v5919 = vpop.xlane.xlu0 %5918
  %5920 = vmatprep.subr.bf16.mxu0 0
  %5921 = vmatpush1.bf16.msra.mxu0 %v1302
  %5922 = vmatprep.subr.bf16.mxu0 0
  %5923 = vmatpush1.bf16.msra.mxu0 %v1301
  %5924 = vmatprep.subr.bf16.mxu0 0
  %5925 = vmatpush1.bf16.msra.mxu0 %v1300
  %5926 = vmatprep.subr.bf16.mxu0 0
  %5927 = vmatpush1.bf16.msra.mxu0 %v1299
  %5928 = vmatprep.subr.bf16.mxu0 0
  %5929 = vmatpush1.bf16.msra.mxu0 %v1298
  %5930 = vmatprep.subr.bf16.mxu0 0
  %5931 = vmatpush1.bf16.msra.mxu0 %v1297
  %5932 = vmatprep.subr.bf16.mxu0 0
  %5933 = vmatpush1.bf16.msra.mxu0 %v1296
  %5934 = vmatprep.subr.bf16.mxu0 0
  %5935 = vmatpush1.bf16.msra.mxu0 %v1295
  %5936 = vmatprep.subr.bf16.mxu0 0
  %5937 = vmatpush2.bf16.msra.mxu0 0
  %5938 = vmatprep.subr.bf16.mxu0 0
  %5939 = vmatpush2.bf16.msra.mxu0 0
  %5940 = vmatprep.subr.bf16.mxu0 0
  %5941 = vmatpush2.bf16.msra.mxu0 0
  %5942 = vmatprep.subr.bf16.mxu0 0
  %5943 = vmatpush2.bf16.msra.mxu0 0
  %5944 = vmatprep.subr.bf16.mxu0 0
  %5945 = vmatpush2.bf16.msra.mxu0 0
  %5946 = vmatprep.subr.bf16.mxu0 0
  %5947 = vmatpush2.bf16.msra.mxu0 0
  %5948 = vmatprep.subr.bf16.mxu0 0
  %5949 = vmatpush2.bf16.msra.mxu0 0
  %5950 = vmatprep.subr.bf16.mxu0 0
  %5951 = vmatpush2.bf16.msra.mxu0 0
  %5952 = vmatprep.mubr.bf16.mxu0 0
  %5953 = vmatmul.mubr.bf16.gmra.mxu0 %v5024
  %v5954 = vpop.f32.mrf.mxu0
  %v5955 = vadd.f32 0.0, %v5954
  %v5956 = vpop.f32.mrf.mxu0
  %v5957 = vpop.f32.mrf.mxu0
  %v5958 = vadd.f32 0.0, %v5957
  %v5959 = vpop.f32.mrf.mxu0
  %5960 = vmatprep.mubr.bf16.mxu0 0
  %5961 = vmatmul.mubr.bf16.gmra.mxu0 %v5025
  %v5962 = vpop.f32.mrf.mxu0
  %v5963 = vadd.f32 0.0, %v5962
  %v5964 = vpop.f32.mrf.mxu0
  %v5965 = vpop.f32.mrf.mxu0
  %v5966 = vadd.f32 0.0, %v5965
  %v5967 = vpop.f32.mrf.mxu0
  %5968 = vmatprep.mubr.bf16.mxu0 0
  %5969 = vmatmul.mubr.bf16.gmra.mxu0 %v5026
  %v5970 = vpop.f32.mrf.mxu0
  %v5971 = vadd.f32 0.0, %v5970
  %v5972 = vpop.f32.mrf.mxu0
  %v5973 = vpop.f32.mrf.mxu0
  %v5974 = vadd.f32 0.0, %v5973
  %v5975 = vpop.f32.mrf.mxu0
  %5976 = vmatprep.mubr.bf16.mxu0 0
  %5977 = vmatmul.mubr.bf16.gmra.mxu0 %v5027
  %v5978 = vpop.f32.mrf.mxu0
  %v5979 = vadd.f32 0.0, %v5978
  %v5980 = vpop.f32.mrf.mxu0
  %v5981 = vpop.f32.mrf.mxu0
  %v5982 = vadd.f32 0.0, %v5981
  %v5983 = vpop.f32.mrf.mxu0
  %5984 = vmatprep.mubr.bf16.mxu0 0
  %5985 = vmatmul.mubr.bf16.gmra.mxu0 %v5028
  %v5986 = vpop.f32.mrf.mxu0
  %v5987 = vadd.f32 0.0, %v5986
  %v5988 = vpop.f32.mrf.mxu0
  %v5989 = vpop.f32.mrf.mxu0
  %v5990 = vadd.f32 0.0, %v5989
  %v5991 = vpop.f32.mrf.mxu0
  %5992 = vmatprep.mubr.bf16.mxu0 0
  %5993 = vmatmul.mubr.bf16.gmra.mxu0 %v5029
  %v5994 = vpop.f32.mrf.mxu0
  %v5995 = vadd.f32 0.0, %v5994
  %v5996 = vpop.f32.mrf.mxu0
  %v5997 = vpop.f32.mrf.mxu0
  %v5998 = vadd.f32 0.0, %v5997
  %v5999 = vpop.f32.mrf.mxu0
  %6000 = vmatprep.mubr.bf16.mxu0 0
  %6001 = vmatmul.mubr.bf16.gmra.mxu0 %v5030
  %v6002 = vpop.f32.mrf.mxu0
  %v6003 = vadd.f32 0.0, %v6002
  %v6004 = vpop.f32.mrf.mxu0
  %v6005 = vpop.f32.mrf.mxu0
  %v6006 = vadd.f32 0.0, %v6005
  %v6007 = vpop.f32.mrf.mxu0
  %6008 = vmatprep.mubr.bf16.mxu0 0
  %6009 = vmatmul.mubr.bf16.gmra.mxu0 %v5031
  %v6010 = vpop.f32.mrf.mxu0
  %v6011 = vadd.f32 0.0, %v6010
  %v6012 = vpop.f32.mrf.mxu0
  %v6013 = vpop.f32.mrf.mxu0
  %v6014 = vadd.f32 0.0, %v6013
  %v6015 = vpop.f32.mrf.mxu0
  %6016 = vdwg.mxu0
  %6017 = vmatprep.subr.bf16.mxu0 0
  %6018 = vmatpush1.bf16.msra.mxu0 %v1310
  %6019 = vmatprep.subr.bf16.mxu0 0
  %6020 = vmatpush1.bf16.msra.mxu0 %v1309
  %6021 = vmatprep.subr.bf16.mxu0 0
  %6022 = vmatpush1.bf16.msra.mxu0 %v1308
  %6023 = vmatprep.subr.bf16.mxu0 0
  %6024 = vmatpush1.bf16.msra.mxu0 %v1307
  %6025 = vmatprep.subr.bf16.mxu0 0
  %6026 = vmatpush1.bf16.msra.mxu0 %v1306
  %6027 = vmatprep.subr.bf16.mxu0 0
  %6028 = vmatpush1.bf16.msra.mxu0 %v1305
  %6029 = vmatprep.subr.bf16.mxu0 0
  %6030 = vmatpush1.bf16.msra.mxu0 %v1304
  %6031 = vmatprep.subr.bf16.mxu0 0
  %6032 = vmatpush1.bf16.msra.mxu0 %v1303
  %6033 = vmatprep.subr.bf16.mxu0 0
  %6034 = vmatpush2.bf16.msra.mxu0 0
  %6035 = vmatprep.subr.bf16.mxu0 0
  %6036 = vmatpush2.bf16.msra.mxu0 0
  %6037 = vmatprep.subr.bf16.mxu0 0
  %6038 = vmatpush2.bf16.msra.mxu0 0
  %6039 = vmatprep.subr.bf16.mxu0 0
  %6040 = vmatpush2.bf16.msra.mxu0 0
  %6041 = vmatprep.subr.bf16.mxu0 0
  %6042 = vmatpush2.bf16.msra.mxu0 0
  %6043 = vmatprep.subr.bf16.mxu0 0
  %6044 = vmatpush2.bf16.msra.mxu0 0
  %6045 = vmatprep.subr.bf16.mxu0 0
  %6046 = vmatpush2.bf16.msra.mxu0 0
  %6047 = vmatprep.subr.bf16.mxu0 0
  %6048 = vmatpush2.bf16.msra.mxu0 0
  %6049 = vmatprep.mubr.bf16.mxu0 0
  %6050 = vmatmul.mubr.bf16.gmra.mxu0 %v5032
  %v6051 = vpop.f32.mrf.mxu0
  %v6052 = vadd.f32 0.0, %v6051
  %v6053 = vpop.f32.mrf.mxu0
  %v6054 = vpop.f32.mrf.mxu0
  %v6055 = vadd.f32 0.0, %v6054
  %v6056 = vpop.f32.mrf.mxu0
  %6057 = vmatprep.mubr.bf16.mxu0 0
  %6058 = vmatmul.mubr.bf16.gmra.mxu0 %v5033
  %v6059 = vpop.f32.mrf.mxu0
  %v6060 = vadd.f32 0.0, %v6059
  %v6061 = vpop.f32.mrf.mxu0
  %v6062 = vpop.f32.mrf.mxu0
  %v6063 = vadd.f32 0.0, %v6062
  %v6064 = vpop.f32.mrf.mxu0
  %6065 = vmatprep.mubr.bf16.mxu0 0
  %6066 = vmatmul.mubr.bf16.gmra.mxu0 %v5034
  %v6067 = vpop.f32.mrf.mxu0
  %v6068 = vadd.f32 0.0, %v6067
  %v6069 = vpop.f32.mrf.mxu0
  %v6070 = vpop.f32.mrf.mxu0
  %v6071 = vadd.f32 0.0, %v6070
  %v6072 = vpop.f32.mrf.mxu0
  %6073 = vmatprep.mubr.bf16.mxu0 0
  %6074 = vmatmul.mubr.bf16.gmra.mxu0 %v5035
  %v6075 = vpop.f32.mrf.mxu0
  %v6076 = vadd.f32 0.0, %v6075
  %v6077 = vpop.f32.mrf.mxu0
  %v6078 = vpop.f32.mrf.mxu0
  %v6079 = vadd.f32 0.0, %v6078
  %v6080 = vpop.f32.mrf.mxu0
  %6081 = vmatprep.mubr.bf16.mxu0 0
  %6082 = vmatmul.mubr.bf16.gmra.mxu0 %v5036
  %v6083 = vpop.f32.mrf.mxu0
  %v6084 = vadd.f32 0.0, %v6083
  %v6085 = vpop.f32.mrf.mxu0
  %v6086 = vpop.f32.mrf.mxu0
  %v6087 = vadd.f32 0.0, %v6086
  %v6088 = vpop.f32.mrf.mxu0
  %6089 = vmatprep.mubr.bf16.mxu0 0
  %6090 = vmatmul.mubr.bf16.gmra.mxu0 %v5037
  %v6091 = vpop.f32.mrf.mxu0
  %v6092 = vadd.f32 0.0, %v6091
  %v6093 = vpop.f32.mrf.mxu0
  %v6094 = vpop.f32.mrf.mxu0
  %v6095 = vadd.f32 0.0, %v6094
  %v6096 = vpop.f32.mrf.mxu0
  %6097 = vmatprep.mubr.bf16.mxu0 0
  %6098 = vmatmul.mubr.bf16.gmra.mxu0 %v5038
  %v6099 = vpop.f32.mrf.mxu0
  %v6100 = vadd.f32 0.0, %v6099
  %v6101 = vpop.f32.mrf.mxu0
  %v6102 = vpop.f32.mrf.mxu0
  %v6103 = vadd.f32 0.0, %v6102
  %v6104 = vpop.f32.mrf.mxu0
  %6105 = vmatprep.mubr.bf16.mxu0 0
  %6106 = vmatmul.mubr.bf16.gmra.mxu0 %v5039
  %v6107 = vpop.f32.mrf.mxu0
  %v6108 = vadd.f32 0.0, %v6107
  %v6109 = vpop.f32.mrf.mxu0
  %v6110 = vpop.f32.mrf.mxu0
  %v6111 = vadd.f32 0.0, %v6110
  %v6112 = vpop.f32.mrf.mxu0
  %6113 = vdwg.mxu0
  %6114 = vmatprep.subr.bf16.mxu0 0
  %6115 = vmatpush1.bf16.msra.mxu0 %v1318
  %6116 = vmatprep.subr.bf16.mxu0 0
  %6117 = vmatpush1.bf16.msra.mxu0 %v1317
  %6118 = vmatprep.subr.bf16.mxu0 0
  %6119 = vmatpush1.bf16.msra.mxu0 %v1316
  %6120 = vmatprep.subr.bf16.mxu0 0
  %6121 = vmatpush1.bf16.msra.mxu0 %v1315
  %6122 = vmatprep.subr.bf16.mxu0 0
  %6123 = vmatpush1.bf16.msra.mxu0 %v1314
  %6124 = vmatprep.subr.bf16.mxu0 0
  %6125 = vmatpush1.bf16.msra.mxu0 %v1313
  %6126 = vmatprep.subr.bf16.mxu0 0
  %6127 = vmatpush1.bf16.msra.mxu0 %v1312
  %6128 = vmatprep.subr.bf16.mxu0 0
  %6129 = vmatpush1.bf16.msra.mxu0 %v1311
  %6130 = vmatprep.subr.bf16.mxu0 0
  %6131 = vmatpush2.bf16.msra.mxu0 0
  %6132 = vmatprep.subr.bf16.mxu0 0
  %6133 = vmatpush2.bf16.msra.mxu0 0
  %6134 = vmatprep.subr.bf16.mxu0 0
  %6135 = vmatpush2.bf16.msra.mxu0 0
  %6136 = vmatprep.subr.bf16.mxu0 0
  %6137 = vmatpush2.bf16.msra.mxu0 0
  %6138 = vmatprep.subr.bf16.mxu0 0
  %6139 = vmatpush2.bf16.msra.mxu0 0
  %6140 = vmatprep.subr.bf16.mxu0 0
  %6141 = vmatpush2.bf16.msra.mxu0 0
  %6142 = vmatprep.subr.bf16.mxu0 0
  %6143 = vmatpush2.bf16.msra.mxu0 0
  %6144 = vmatprep.subr.bf16.mxu0 0
  %6145 = vmatpush2.bf16.msra.mxu0 0
  %6146 = vmatprep.mubr.bf16.mxu0 0
  %6147 = vmatmul.mubr.bf16.gmra.mxu0 %v5040
  %v6148 = vpop.f32.mrf.mxu0
  %v6149 = vadd.f32 0.0, %v6148
  %v6150 = vpop.f32.mrf.mxu0
  %v6151 = vpop.f32.mrf.mxu0
  %v6152 = vadd.f32 0.0, %v6151
  %v6153 = vpop.f32.mrf.mxu0
  %6154 = vmatprep.mubr.bf16.mxu0 0
  %6155 = vmatmul.mubr.bf16.gmra.mxu0 %v5041
  %v6156 = vpop.f32.mrf.mxu0
  %v6157 = vadd.f32 0.0, %v6156
  %v6158 = vpop.f32.mrf.mxu0
  %v6159 = vpop.f32.mrf.mxu0
  %v6160 = vadd.f32 0.0, %v6159
  %v6161 = vpop.f32.mrf.mxu0
  %6162 = vmatprep.mubr.bf16.mxu0 0
  %6163 = vmatmul.mubr.bf16.gmra.mxu0 %v5042
  %v6164 = vpop.f32.mrf.mxu0
  %v6165 = vadd.f32 0.0, %v6164
  %v6166 = vpop.f32.mrf.mxu0
  %v6167 = vpop.f32.mrf.mxu0
  %v6168 = vadd.f32 0.0, %v6167
  %v6169 = vpop.f32.mrf.mxu0
  %6170 = vmatprep.mubr.bf16.mxu0 0
  %6171 = vmatmul.mubr.bf16.gmra.mxu0 %v5043
  %v6172 = vpop.f32.mrf.mxu0
  %v6173 = vadd.f32 0.0, %v6172
  %v6174 = vpop.f32.mrf.mxu0
  %v6175 = vpop.f32.mrf.mxu0
  %v6176 = vadd.f32 0.0, %v6175
  %v6177 = vpop.f32.mrf.mxu0
  %6178 = vmatprep.mubr.bf16.mxu0 0
  %6179 = vmatmul.mubr.bf16.gmra.mxu0 %v5044
  %v6180 = vpop.f32.mrf.mxu0
  %v6181 = vadd.f32 0.0, %v6180
  %v6182 = vpop.f32.mrf.mxu0
  %v6183 = vpop.f32.mrf.mxu0
  %v6184 = vadd.f32 0.0, %v6183
  %v6185 = vpop.f32.mrf.mxu0
  %6186 = vmatprep.mubr.bf16.mxu0 0
  %6187 = vmatmul.mubr.bf16.gmra.mxu0 %v5045
  %v6188 = vpop.f32.mrf.mxu0
  %v6189 = vadd.f32 0.0, %v6188
  %v6190 = vpop.f32.mrf.mxu0
  %v6191 = vpop.f32.mrf.mxu0
  %v6192 = vadd.f32 0.0, %v6191
  %v6193 = vpop.f32.mrf.mxu0
  %6194 = vmatprep.mubr.bf16.mxu0 0
  %6195 = vmatmul.mubr.bf16.gmra.mxu0 %v5046
  %v6196 = vpop.f32.mrf.mxu0
  %v6197 = vadd.f32 0.0, %v6196
  %v6198 = vpop.f32.mrf.mxu0
  %v6199 = vpop.f32.mrf.mxu0
  %v6200 = vadd.f32 0.0, %v6199
  %v6201 = vpop.f32.mrf.mxu0
  %6202 = vmatprep.mubr.bf16.mxu0 0
  %6203 = vmatmul.mubr.bf16.gmra.mxu0 %v5047
  %v6204 = vpop.f32.mrf.mxu0
  %v6205 = vadd.f32 0.0, %v6204
  %v6206 = vpop.f32.mrf.mxu0
  %v6207 = vpop.f32.mrf.mxu0
  %v6208 = vadd.f32 0.0, %v6207
  %v6209 = vpop.f32.mrf.mxu0
  %6210 = vdwg.mxu0
  %6211 = vmatprep.subr.bf16.mxu0 0
  %6212 = vmatpush1.bf16.msra.mxu0 %v1326
  %6213 = vmatprep.subr.bf16.mxu0 0
  %6214 = vmatpush1.bf16.msra.mxu0 %v1325
  %6215 = vmatprep.subr.bf16.mxu0 0
  %6216 = vmatpush1.bf16.msra.mxu0 %v1324
  %6217 = vmatprep.subr.bf16.mxu0 0
  %6218 = vmatpush1.bf16.msra.mxu0 %v1323
  %6219 = vmatprep.subr.bf16.mxu0 0
  %6220 = vmatpush1.bf16.msra.mxu0 %v1322
  %6221 = vmatprep.subr.bf16.mxu0 0
  %6222 = vmatpush1.bf16.msra.mxu0 %v1321
  %6223 = vmatprep.subr.bf16.mxu0 0
  %6224 = vmatpush1.bf16.msra.mxu0 %v1320
  %6225 = vmatprep.subr.bf16.mxu0 0
  %6226 = vmatpush1.bf16.msra.mxu0 %v1319
  %6227 = vmatprep.subr.bf16.mxu0 0
  %6228 = vmatpush2.bf16.msra.mxu0 0
  %6229 = vmatprep.subr.bf16.mxu0 0
  %6230 = vmatpush2.bf16.msra.mxu0 0
  %6231 = vmatprep.subr.bf16.mxu0 0
  %6232 = vmatpush2.bf16.msra.mxu0 0
  %6233 = vmatprep.subr.bf16.mxu0 0
  %6234 = vmatpush2.bf16.msra.mxu0 0
  %6235 = vmatprep.subr.bf16.mxu0 0
  %6236 = vmatpush2.bf16.msra.mxu0 0
  %6237 = vmatprep.subr.bf16.mxu0 0
  %6238 = vmatpush2.bf16.msra.mxu0 0
  %6239 = vmatprep.subr.bf16.mxu0 0
  %6240 = vmatpush2.bf16.msra.mxu0 0
  %6241 = vmatprep.subr.bf16.mxu0 0
  %6242 = vmatpush2.bf16.msra.mxu0 0
  %6243 = vmatprep.mubr.bf16.mxu0 0
  %6244 = vmatmul.mubr.bf16.gmra.mxu0 %v5048
  %v6245 = vpop.f32.mrf.mxu0
  %v6246 = vadd.f32 0.0, %v6245
  %v6247 = vpop.f32.mrf.mxu0
  %v6248 = vpop.f32.mrf.mxu0
  %v6249 = vadd.f32 0.0, %v6248
  %v6250 = vpop.f32.mrf.mxu0
  %6251 = vmatprep.mubr.bf16.mxu0 0
  %6252 = vmatmul.mubr.bf16.gmra.mxu0 %v5049
  %v6253 = vpop.f32.mrf.mxu0
  %v6254 = vadd.f32 0.0, %v6253
  %v6255 = vpop.f32.mrf.mxu0
  %v6256 = vpop.f32.mrf.mxu0
  %v6257 = vadd.f32 0.0, %v6256
  %v6258 = vpop.f32.mrf.mxu0
  %6259 = vmatprep.mubr.bf16.mxu0 0
  %6260 = vmatmul.mubr.bf16.gmra.mxu0 %v5050
  %v6261 = vpop.f32.mrf.mxu0
  %v6262 = vadd.f32 0.0, %v6261
  %v6263 = vpop.f32.mrf.mxu0
  %v6264 = vpop.f32.mrf.mxu0
  %v6265 = vadd.f32 0.0, %v6264
  %v6266 = vpop.f32.mrf.mxu0
  %6267 = vmatprep.mubr.bf16.mxu0 0
  %6268 = vmatmul.mubr.bf16.gmra.mxu0 %v5051
  %v6269 = vpop.f32.mrf.mxu0
  %v6270 = vadd.f32 0.0, %v6269
  %v6271 = vpop.f32.mrf.mxu0
  %v6272 = vpop.f32.mrf.mxu0
  %v6273 = vadd.f32 0.0, %v6272
  %v6274 = vpop.f32.mrf.mxu0
  %6275 = vmatprep.mubr.bf16.mxu0 0
  %6276 = vmatmul.mubr.bf16.gmra.mxu0 %v5052
  %v6277 = vpop.f32.mrf.mxu0
  %v6278 = vadd.f32 0.0, %v6277
  %v6279 = vpop.f32.mrf.mxu0
  %v6280 = vpop.f32.mrf.mxu0
  %v6281 = vadd.f32 0.0, %v6280
  %v6282 = vpop.f32.mrf.mxu0
  %6283 = vmatprep.mubr.bf16.mxu0 0
  %6284 = vmatmul.mubr.bf16.gmra.mxu0 %v5053
  %v6285 = vpop.f32.mrf.mxu0
  %v6286 = vadd.f32 0.0, %v6285
  %v6287 = vpop.f32.mrf.mxu0
  %v6288 = vpop.f32.mrf.mxu0
  %v6289 = vadd.f32 0.0, %v6288
  %v6290 = vpop.f32.mrf.mxu0
  %6291 = vmatprep.mubr.bf16.mxu0 0
  %6292 = vmatmul.mubr.bf16.gmra.mxu0 %v5054
  %v6293 = vpop.f32.mrf.mxu0
  %v6294 = vadd.f32 0.0, %v6293
  %v6295 = vpop.f32.mrf.mxu0
  %v6296 = vpop.f32.mrf.mxu0
  %v6297 = vadd.f32 0.0, %v6296
  %v6298 = vpop.f32.mrf.mxu0
  %6299 = vmatprep.mubr.bf16.mxu0 0
  %6300 = vmatmul.mubr.bf16.gmra.mxu0 %v5055
  %v6301 = vpop.f32.mrf.mxu0
  %v6302 = vadd.f32 0.0, %v6301
  %v6303 = vpop.f32.mrf.mxu0
  %v6304 = vpop.f32.mrf.mxu0
  %v6305 = vadd.f32 0.0, %v6304
  %v6306 = vpop.f32.mrf.mxu0
  %6307 = vdwg.mxu0
  %6308 = vmatprep.subr.bf16.mxu0 0
  %6309 = vmatpush1.bf16.msra.mxu0 %v1334
  %6310 = vmatprep.subr.bf16.mxu0 0
  %6311 = vmatpush1.bf16.msra.mxu0 %v1333
  %6312 = vmatprep.subr.bf16.mxu0 0
  %6313 = vmatpush1.bf16.msra.mxu0 %v1332
  %6314 = vmatprep.subr.bf16.mxu0 0
  %6315 = vmatpush1.bf16.msra.mxu0 %v1331
  %6316 = vmatprep.subr.bf16.mxu0 0
  %6317 = vmatpush1.bf16.msra.mxu0 %v1330
  %6318 = vmatprep.subr.bf16.mxu0 0
  %6319 = vmatpush1.bf16.msra.mxu0 %v1329
  %6320 = vmatprep.subr.bf16.mxu0 0
  %6321 = vmatpush1.bf16.msra.mxu0 %v1328
  %6322 = vmatprep.subr.bf16.mxu0 0
  %6323 = vmatpush1.bf16.msra.mxu0 %v1327
  %6324 = vmatprep.subr.bf16.mxu0 0
  %6325 = vmatpush2.bf16.msra.mxu0 0
  %6326 = vmatprep.subr.bf16.mxu0 0
  %6327 = vmatpush2.bf16.msra.mxu0 0
  %6328 = vmatprep.subr.bf16.mxu0 0
  %6329 = vmatpush2.bf16.msra.mxu0 0
  %6330 = vmatprep.subr.bf16.mxu0 0
  %6331 = vmatpush2.bf16.msra.mxu0 0
  %6332 = vmatprep.subr.bf16.mxu0 0
  %6333 = vmatpush2.bf16.msra.mxu0 0
  %6334 = vmatprep.subr.bf16.mxu0 0
  %6335 = vmatpush2.bf16.msra.mxu0 0
  %6336 = vmatprep.subr.bf16.mxu0 0
  %6337 = vmatpush2.bf16.msra.mxu0 0
  %6338 = vmatprep.subr.bf16.mxu0 0
  %6339 = vmatpush2.bf16.msra.mxu0 0
  %6340 = vmatprep.mubr.bf16.mxu0 0
  %6341 = vmatmul.mubr.bf16.gmra.mxu0 %v5056
  %v6342 = vpop.f32.mrf.mxu0
  %v6343 = vadd.f32 0.0, %v6342
  %v6344 = vpop.f32.mrf.mxu0
  %v6345 = vpop.f32.mrf.mxu0
  %v6346 = vadd.f32 0.0, %v6345
  %v6347 = vpop.f32.mrf.mxu0
  %6348 = vmatprep.mubr.bf16.mxu0 0
  %6349 = vmatmul.mubr.bf16.gmra.mxu0 %v5057
  %v6350 = vpop.f32.mrf.mxu0
  %v6351 = vadd.f32 0.0, %v6350
  %v6352 = vpop.f32.mrf.mxu0
  %v6353 = vpop.f32.mrf.mxu0
  %v6354 = vadd.f32 0.0, %v6353
  %v6355 = vpop.f32.mrf.mxu0
  %6356 = vmatprep.mubr.bf16.mxu0 0
  %6357 = vmatmul.mubr.bf16.gmra.mxu0 %v5058
  %v6358 = vpop.f32.mrf.mxu0
  %v6359 = vadd.f32 0.0, %v6358
  %v6360 = vpop.f32.mrf.mxu0
  %v6361 = vpop.f32.mrf.mxu0
  %v6362 = vadd.f32 0.0, %v6361
  %v6363 = vpop.f32.mrf.mxu0
  %6364 = vmatprep.mubr.bf16.mxu0 0
  %6365 = vmatmul.mubr.bf16.gmra.mxu0 %v5059
  %v6366 = vpop.f32.mrf.mxu0
  %v6367 = vadd.f32 0.0, %v6366
  %v6368 = vpop.f32.mrf.mxu0
  %v6369 = vpop.f32.mrf.mxu0
  %v6370 = vadd.f32 0.0, %v6369
  %v6371 = vpop.f32.mrf.mxu0
  %6372 = vmatprep.mubr.bf16.mxu0 0
  %6373 = vmatmul.mubr.bf16.gmra.mxu0 %v5060
  %v6374 = vpop.f32.mrf.mxu0
  %v6375 = vadd.f32 0.0, %v6374
  %v6376 = vpop.f32.mrf.mxu0
  %v6377 = vpop.f32.mrf.mxu0
  %v6378 = vadd.f32 0.0, %v6377
  %v6379 = vpop.f32.mrf.mxu0
  %6380 = vmatprep.mubr.bf16.mxu0 0
  %6381 = vmatmul.mubr.bf16.gmra.mxu0 %v5061
  %v6382 = vpop.f32.mrf.mxu0
  %v6383 = vadd.f32 0.0, %v6382
  %v6384 = vpop.f32.mrf.mxu0
  %v6385 = vpop.f32.mrf.mxu0
  %v6386 = vadd.f32 0.0, %v6385
  %v6387 = vpop.f32.mrf.mxu0
  %6388 = vmatprep.mubr.bf16.mxu0 0
  %6389 = vmatmul.mubr.bf16.gmra.mxu0 %v5062
  %v6390 = vpop.f32.mrf.mxu0
  %v6391 = vadd.f32 0.0, %v6390
  %v6392 = vpop.f32.mrf.mxu0
  %v6393 = vpop.f32.mrf.mxu0
  %v6394 = vadd.f32 0.0, %v6393
  %v6395 = vpop.f32.mrf.mxu0
  %6396 = vmatprep.mubr.bf16.mxu0 0
  %6397 = vmatmul.mubr.bf16.gmra.mxu0 %v5063
  %v6398 = vpop.f32.mrf.mxu0
  %v6399 = vadd.f32 0.0, %v6398
  %v6400 = vpop.f32.mrf.mxu0
  %v6401 = vpop.f32.mrf.mxu0
  %v6402 = vadd.f32 0.0, %v6401
  %v6403 = vpop.f32.mrf.mxu0
  %6404 = vdwg.mxu0
  %6405 = vmatprep.subr.bf16.mxu0 0
  %6406 = vmatpush1.bf16.msra.mxu0 %v1342
  %6407 = vmatprep.subr.bf16.mxu0 0
  %6408 = vmatpush1.bf16.msra.mxu0 %v1341
  %6409 = vmatprep.subr.bf16.mxu0 0
  %6410 = vmatpush1.bf16.msra.mxu0 %v1340
  %6411 = vmatprep.subr.bf16.mxu0 0
  %6412 = vmatpush1.bf16.msra.mxu0 %v1339
  %6413 = vmatprep.subr.bf16.mxu0 0
  %6414 = vmatpush1.bf16.msra.mxu0 %v1338
  %6415 = vmatprep.subr.bf16.mxu0 0
  %6416 = vmatpush1.bf16.msra.mxu0 %v1337
  %6417 = vmatprep.subr.bf16.mxu0 0
  %6418 = vmatpush1.bf16.msra.mxu0 %v1336
  %6419 = vmatprep.subr.bf16.mxu0 0
  %6420 = vmatpush1.bf16.msra.mxu0 %v1335
  %6421 = vmatprep.subr.bf16.mxu0 0
  %6422 = vmatpush2.bf16.msra.mxu0 0
  %6423 = vmatprep.subr.bf16.mxu0 0
  %6424 = vmatpush2.bf16.msra.mxu0 0
  %6425 = vmatprep.subr.bf16.mxu0 0
  %6426 = vmatpush2.bf16.msra.mxu0 0
  %6427 = vmatprep.subr.bf16.mxu0 0
  %6428 = vmatpush2.bf16.msra.mxu0 0
  %6429 = vmatprep.subr.bf16.mxu0 0
  %6430 = vmatpush2.bf16.msra.mxu0 0
  %6431 = vmatprep.subr.bf16.mxu0 0
  %6432 = vmatpush2.bf16.msra.mxu0 0
  %6433 = vmatprep.subr.bf16.mxu0 0
  %6434 = vmatpush2.bf16.msra.mxu0 0
  %6435 = vmatprep.subr.bf16.mxu0 0
  %6436 = vmatpush2.bf16.msra.mxu0 0
  %6437 = vmatprep.mubr.bf16.mxu0 0
  %6438 = vmatmul.mubr.bf16.gmra.mxu0 %v5064
  %v6439 = vpop.f32.mrf.mxu0
  %v6440 = vadd.f32 0.0, %v6439
  %v6441 = vpop.f32.mrf.mxu0
  %v6442 = vpop.f32.mrf.mxu0
  %v6443 = vadd.f32 0.0, %v6442
  %v6444 = vpop.f32.mrf.mxu0
  %6445 = vmatprep.mubr.bf16.mxu0 0
  %6446 = vmatmul.mubr.bf16.gmra.mxu0 %v5065
  %v6447 = vpop.f32.mrf.mxu0
  %v6448 = vadd.f32 0.0, %v6447
  %v6449 = vpop.f32.mrf.mxu0
  %v6450 = vpop.f32.mrf.mxu0
  %v6451 = vadd.f32 0.0, %v6450
  %v6452 = vpop.f32.mrf.mxu0
  %6453 = vmatprep.mubr.bf16.mxu0 0
  %6454 = vmatmul.mubr.bf16.gmra.mxu0 %v5066
  %v6455 = vpop.f32.mrf.mxu0
  %v6456 = vadd.f32 0.0, %v6455
  %v6457 = vpop.f32.mrf.mxu0
  %v6458 = vpop.f32.mrf.mxu0
  %v6459 = vadd.f32 0.0, %v6458
  %v6460 = vpop.f32.mrf.mxu0
  %6461 = vmatprep.mubr.bf16.mxu0 0
  %6462 = vmatmul.mubr.bf16.gmra.mxu0 %v5067
  %v6463 = vpop.f32.mrf.mxu0
  %v6464 = vadd.f32 0.0, %v6463
  %v6465 = vpop.f32.mrf.mxu0
  %v6466 = vpop.f32.mrf.mxu0
  %v6467 = vadd.f32 0.0, %v6466
  %v6468 = vpop.f32.mrf.mxu0
  %6469 = vmatprep.mubr.bf16.mxu0 0
  %6470 = vmatmul.mubr.bf16.gmra.mxu0 %v5068
  %v6471 = vpop.f32.mrf.mxu0
  %v6472 = vadd.f32 0.0, %v6471
  %v6473 = vpop.f32.mrf.mxu0
  %v6474 = vpop.f32.mrf.mxu0
  %v6475 = vadd.f32 0.0, %v6474
  %v6476 = vpop.f32.mrf.mxu0
  %6477 = vmatprep.mubr.bf16.mxu0 0
  %6478 = vmatmul.mubr.bf16.gmra.mxu0 %v5069
  %v6479 = vpop.f32.mrf.mxu0
  %v6480 = vadd.f32 0.0, %v6479
  %v6481 = vpop.f32.mrf.mxu0
  %v6482 = vpop.f32.mrf.mxu0
  %v6483 = vadd.f32 0.0, %v6482
  %v6484 = vpop.f32.mrf.mxu0
  %6485 = vmatprep.mubr.bf16.mxu0 0
  %6486 = vmatmul.mubr.bf16.gmra.mxu0 %v5070
  %v6487 = vpop.f32.mrf.mxu0
  %v6488 = vadd.f32 0.0, %v6487
  %v6489 = vpop.f32.mrf.mxu0
  %v6490 = vpop.f32.mrf.mxu0
  %v6491 = vadd.f32 0.0, %v6490
  %v6492 = vpop.f32.mrf.mxu0
  %6493 = vmatprep.mubr.bf16.mxu0 0
  %6494 = vmatmul.mubr.bf16.gmra.mxu0 %v5071
  %v6495 = vpop.f32.mrf.mxu0
  %v6496 = vadd.f32 0.0, %v6495
  %v6497 = vpop.f32.mrf.mxu0
  %v6498 = vpop.f32.mrf.mxu0
  %v6499 = vadd.f32 0.0, %v6498
  %v6500 = vpop.f32.mrf.mxu0
  %6501 = vdwg.mxu0
  %6502 = vmatprep.subr.bf16.mxu0 0
  %6503 = vmatpush1.bf16.msra.mxu0 %v1350
  %6504 = vmatprep.subr.bf16.mxu0 0
  %6505 = vmatpush1.bf16.msra.mxu0 %v1349
  %6506 = vmatprep.subr.bf16.mxu0 0
  %6507 = vmatpush1.bf16.msra.mxu0 %v1348
  %6508 = vmatprep.subr.bf16.mxu0 0
  %6509 = vmatpush1.bf16.msra.mxu0 %v1347
  %6510 = vmatprep.subr.bf16.mxu0 0
  %6511 = vmatpush1.bf16.msra.mxu0 %v1346
  %6512 = vmatprep.subr.bf16.mxu0 0
  %6513 = vmatpush1.bf16.msra.mxu0 %v1345
  %6514 = vmatprep.subr.bf16.mxu0 0
  %6515 = vmatpush1.bf16.msra.mxu0 %v1344
  %6516 = vmatprep.subr.bf16.mxu0 0
  %6517 = vmatpush1.bf16.msra.mxu0 %v1343
  %6518 = vmatprep.subr.bf16.mxu0 0
  %6519 = vmatpush2.bf16.msra.mxu0 0
  %6520 = vmatprep.subr.bf16.mxu0 0
  %6521 = vmatpush2.bf16.msra.mxu0 0
  %6522 = vmatprep.subr.bf16.mxu0 0
  %6523 = vmatpush2.bf16.msra.mxu0 0
  %6524 = vmatprep.subr.bf16.mxu0 0
  %6525 = vmatpush2.bf16.msra.mxu0 0
  %6526 = vmatprep.subr.bf16.mxu0 0
  %6527 = vmatpush2.bf16.msra.mxu0 0
  %6528 = vmatprep.subr.bf16.mxu0 0
  %6529 = vmatpush2.bf16.msra.mxu0 0
  %6530 = vmatprep.subr.bf16.mxu0 0
  %6531 = vmatpush2.bf16.msra.mxu0 0
  %6532 = vmatprep.subr.bf16.mxu0 0
  %6533 = vmatpush2.bf16.msra.mxu0 0
  %6534 = vmatprep.mubr.bf16.mxu0 0
  %6535 = vmatmul.mubr.bf16.gmra.mxu0 %v5072
  %v6536 = vpop.f32.mrf.mxu0
  %v6537 = vadd.f32 0.0, %v6536
  %v6538 = vpop.f32.mrf.mxu0
  %v6539 = vpop.f32.mrf.mxu0
  %v6540 = vadd.f32 0.0, %v6539
  %v6541 = vpop.f32.mrf.mxu0
  %6542 = vmatprep.mubr.bf16.mxu0 0
  %6543 = vmatmul.mubr.bf16.gmra.mxu0 %v5073
  %v6544 = vpop.f32.mrf.mxu0
  %v6545 = vadd.f32 0.0, %v6544
  %v6546 = vpop.f32.mrf.mxu0
  %v6547 = vpop.f32.mrf.mxu0
  %v6548 = vadd.f32 0.0, %v6547
  %v6549 = vpop.f32.mrf.mxu0
  %6550 = vmatprep.mubr.bf16.mxu0 0
  %6551 = vmatmul.mubr.bf16.gmra.mxu0 %v5074
  %v6552 = vpop.f32.mrf.mxu0
  %v6553 = vadd.f32 0.0, %v6552
  %v6554 = vpop.f32.mrf.mxu0
  %v6555 = vpop.f32.mrf.mxu0
  %v6556 = vadd.f32 0.0, %v6555
  %v6557 = vpop.f32.mrf.mxu0
  %6558 = vmatprep.mubr.bf16.mxu0 0
  %6559 = vmatmul.mubr.bf16.gmra.mxu0 %v5075
  %v6560 = vpop.f32.mrf.mxu0
  %v6561 = vadd.f32 0.0, %v6560
  %v6562 = vpop.f32.mrf.mxu0
  %v6563 = vpop.f32.mrf.mxu0
  %v6564 = vadd.f32 0.0, %v6563
  %v6565 = vpop.f32.mrf.mxu0
  %6566 = vmatprep.mubr.bf16.mxu0 0
  %6567 = vmatmul.mubr.bf16.gmra.mxu0 %v5076
  %v6568 = vpop.f32.mrf.mxu0
  %v6569 = vadd.f32 0.0, %v6568
  %v6570 = vpop.f32.mrf.mxu0
  %v6571 = vpop.f32.mrf.mxu0
  %v6572 = vadd.f32 0.0, %v6571
  %v6573 = vpop.f32.mrf.mxu0
  %6574 = vmatprep.mubr.bf16.mxu0 0
  %6575 = vmatmul.mubr.bf16.gmra.mxu0 %v5077
  %v6576 = vpop.f32.mrf.mxu0
  %v6577 = vadd.f32 0.0, %v6576
  %v6578 = vpop.f32.mrf.mxu0
  %v6579 = vpop.f32.mrf.mxu0
  %v6580 = vadd.f32 0.0, %v6579
  %v6581 = vpop.f32.mrf.mxu0
  %6582 = vmatprep.mubr.bf16.mxu0 0
  %6583 = vmatmul.mubr.bf16.gmra.mxu0 %v5078
  %v6584 = vpop.f32.mrf.mxu0
  %v6585 = vadd.f32 0.0, %v6584
  %v6586 = vpop.f32.mrf.mxu0
  %v6587 = vpop.f32.mrf.mxu0
  %v6588 = vadd.f32 0.0, %v6587
  %v6589 = vpop.f32.mrf.mxu0
  %6590 = vmatprep.mubr.bf16.mxu0 0
  %6591 = vmatmul.mubr.bf16.gmra.mxu0 %v5079
  %v6592 = vpop.f32.mrf.mxu0
  %v6593 = vadd.f32 0.0, %v6592
  %v6594 = vpop.f32.mrf.mxu0
  %v6595 = vpop.f32.mrf.mxu0
  %v6596 = vadd.f32 0.0, %v6595
  %v6597 = vpop.f32.mrf.mxu0
  %6598 = vdwg.mxu0
  %6599 = vmatprep.subr.bf16.mxu0 0
  %6600 = vmatpush1.bf16.msra.mxu0 %v1358
  %6601 = vmatprep.subr.bf16.mxu0 0
  %6602 = vmatpush1.bf16.msra.mxu0 %v1357
  %6603 = vmatprep.subr.bf16.mxu0 0
  %6604 = vmatpush1.bf16.msra.mxu0 %v1356
  %6605 = vmatprep.subr.bf16.mxu0 0
  %6606 = vmatpush1.bf16.msra.mxu0 %v1355
  %6607 = vmatprep.subr.bf16.mxu0 0
  %6608 = vmatpush1.bf16.msra.mxu0 %v1354
  %6609 = vmatprep.subr.bf16.mxu0 0
  %6610 = vmatpush1.bf16.msra.mxu0 %v1353
  %6611 = vmatprep.subr.bf16.mxu0 0
  %6612 = vmatpush1.bf16.msra.mxu0 %v1352
  %6613 = vmatprep.subr.bf16.mxu0 0
  %6614 = vmatpush1.bf16.msra.mxu0 %v1351
  %6615 = vmatprep.subr.bf16.mxu0 0
  %6616 = vmatpush2.bf16.msra.mxu0 0
  %6617 = vmatprep.subr.bf16.mxu0 0
  %6618 = vmatpush2.bf16.msra.mxu0 0
  %6619 = vmatprep.subr.bf16.mxu0 0
  %6620 = vmatpush2.bf16.msra.mxu0 0
  %6621 = vmatprep.subr.bf16.mxu0 0
  %6622 = vmatpush2.bf16.msra.mxu0 0
  %6623 = vmatprep.subr.bf16.mxu0 0
  %6624 = vmatpush2.bf16.msra.mxu0 0
  %6625 = vmatprep.subr.bf16.mxu0 0
  %6626 = vmatpush2.bf16.msra.mxu0 0
  %6627 = vmatprep.subr.bf16.mxu0 0
  %6628 = vmatpush2.bf16.msra.mxu0 0
  %6629 = vmatprep.subr.bf16.mxu0 0
  %6630 = vmatpush2.bf16.msra.mxu0 0
  %6631 = vmatprep.mubr.bf16.mxu0 0
  %6632 = vmatmul.mubr.bf16.gmra.mxu0 %v5080
  %v6633 = vpop.f32.mrf.mxu0
  %v6634 = vadd.f32 0.0, %v6633
  %v6635 = vpop.f32.mrf.mxu0
  %v6636 = vpop.f32.mrf.mxu0
  %v6637 = vadd.f32 0.0, %v6636
  %v6638 = vpop.f32.mrf.mxu0
  %6639 = vmatprep.mubr.bf16.mxu0 0
  %6640 = vmatmul.mubr.bf16.gmra.mxu0 %v5081
  %v6641 = vpop.f32.mrf.mxu0
  %v6642 = vadd.f32 0.0, %v6641
  %v6643 = vpop.f32.mrf.mxu0
  %v6644 = vpop.f32.mrf.mxu0
  %v6645 = vadd.f32 0.0, %v6644
  %v6646 = vpop.f32.mrf.mxu0
  %6647 = vmatprep.mubr.bf16.mxu0 0
  %6648 = vmatmul.mubr.bf16.gmra.mxu0 %v5082
  %v6649 = vpop.f32.mrf.mxu0
  %v6650 = vadd.f32 0.0, %v6649
  %v6651 = vpop.f32.mrf.mxu0
  %v6652 = vpop.f32.mrf.mxu0
  %v6653 = vadd.f32 0.0, %v6652
  %v6654 = vpop.f32.mrf.mxu0
  %6655 = vmatprep.mubr.bf16.mxu0 0
  %6656 = vmatmul.mubr.bf16.gmra.mxu0 %v5083
  %v6657 = vpop.f32.mrf.mxu0
  %v6658 = vadd.f32 0.0, %v6657
  %v6659 = vpop.f32.mrf.mxu0
  %v6660 = vpop.f32.mrf.mxu0
  %v6661 = vadd.f32 0.0, %v6660
  %v6662 = vpop.f32.mrf.mxu0
  %6663 = vmatprep.mubr.bf16.mxu0 0
  %6664 = vmatmul.mubr.bf16.gmra.mxu0 %v5084
  %v6665 = vpop.f32.mrf.mxu0
  %v6666 = vadd.f32 0.0, %v6665
  %v6667 = vpop.f32.mrf.mxu0
  %v6668 = vpop.f32.mrf.mxu0
  %v6669 = vadd.f32 0.0, %v6668
  %v6670 = vpop.f32.mrf.mxu0
  %6671 = vmatprep.mubr.bf16.mxu0 0
  %6672 = vmatmul.mubr.bf16.gmra.mxu0 %v5085
  %v6673 = vpop.f32.mrf.mxu0
  %v6674 = vadd.f32 0.0, %v6673
  %v6675 = vpop.f32.mrf.mxu0
  %v6676 = vpop.f32.mrf.mxu0
  %v6677 = vadd.f32 0.0, %v6676
  %v6678 = vpop.f32.mrf.mxu0
  %6679 = vmatprep.mubr.bf16.mxu0 0
  %6680 = vmatmul.mubr.bf16.gmra.mxu0 %v5086
  %v6681 = vpop.f32.mrf.mxu0
  %v6682 = vadd.f32 0.0, %v6681
  %v6683 = vpop.f32.mrf.mxu0
  %v6684 = vpop.f32.mrf.mxu0
  %v6685 = vadd.f32 0.0, %v6684
  %v6686 = vpop.f32.mrf.mxu0
  %6687 = vmatprep.mubr.bf16.mxu0 0
  %6688 = vmatmul.mubr.bf16.gmra.mxu0 %v5087
  %v6689 = vpop.f32.mrf.mxu0
  %v6690 = vadd.f32 0.0, %v6689
  %v6691 = vpop.f32.mrf.mxu0
  %v6692 = vpop.f32.mrf.mxu0
  %v6693 = vadd.f32 0.0, %v6692
  %v6694 = vpop.f32.mrf.mxu0
  %6695 = vdwg.mxu0
  %6696 = vmatprep.subr.bf16.mxu0 0
  %6697 = vmatpush1.bf16.msra.mxu0 %v1366
  %6698 = vmatprep.subr.bf16.mxu0 0
  %6699 = vmatpush1.bf16.msra.mxu0 %v1365
  %6700 = vmatprep.subr.bf16.mxu0 0
  %6701 = vmatpush1.bf16.msra.mxu0 %v1364
  %6702 = vmatprep.subr.bf16.mxu0 0
  %6703 = vmatpush1.bf16.msra.mxu0 %v1363
  %6704 = vmatprep.subr.bf16.mxu0 0
  %6705 = vmatpush1.bf16.msra.mxu0 %v1362
  %6706 = vmatprep.subr.bf16.mxu0 0
  %6707 = vmatpush1.bf16.msra.mxu0 %v1361
  %6708 = vmatprep.subr.bf16.mxu0 0
  %6709 = vmatpush1.bf16.msra.mxu0 %v1360
  %6710 = vmatprep.subr.bf16.mxu0 0
  %6711 = vmatpush1.bf16.msra.mxu0 %v1359
  %6712 = vmatprep.subr.bf16.mxu0 0
  %6713 = vmatpush2.bf16.msra.mxu0 0
  %6714 = vmatprep.subr.bf16.mxu0 0
  %6715 = vmatpush2.bf16.msra.mxu0 0
  %6716 = vmatprep.subr.bf16.mxu0 0
  %6717 = vmatpush2.bf16.msra.mxu0 0
  %6718 = vmatprep.subr.bf16.mxu0 0
  %6719 = vmatpush2.bf16.msra.mxu0 0
  %6720 = vmatprep.subr.bf16.mxu0 0
  %6721 = vmatpush2.bf16.msra.mxu0 0
  %6722 = vmatprep.subr.bf16.mxu0 0
  %6723 = vmatpush2.bf16.msra.mxu0 0
  %6724 = vmatprep.subr.bf16.mxu0 0
  %6725 = vmatpush2.bf16.msra.mxu0 0
  %6726 = vmatprep.subr.bf16.mxu0 0
  %6727 = vmatpush2.bf16.msra.mxu0 0
  %6728 = vmatprep.mubr.bf16.mxu0 0
  %6729 = vmatmul.mubr.bf16.gmra.mxu0 %v5088
  %v6730 = vpop.f32.mrf.mxu0
  %v6731 = vadd.f32 0.0, %v6730
  %v6732 = vpop.f32.mrf.mxu0
  %v6733 = vpop.f32.mrf.mxu0
  %v6734 = vadd.f32 0.0, %v6733
  %v6735 = vpop.f32.mrf.mxu0
  %6736 = vmatprep.mubr.bf16.mxu0 0
  %6737 = vmatmul.mubr.bf16.gmra.mxu0 %v5089
  %v6738 = vpop.f32.mrf.mxu0
  %v6739 = vadd.f32 0.0, %v6738
  %v6740 = vpop.f32.mrf.mxu0
  %v6741 = vpop.f32.mrf.mxu0
  %v6742 = vadd.f32 0.0, %v6741
  %v6743 = vpop.f32.mrf.mxu0
  %6744 = vmatprep.mubr.bf16.mxu0 0
  %6745 = vmatmul.mubr.bf16.gmra.mxu0 %v5090
  %v6746 = vpop.f32.mrf.mxu0
  %v6747 = vadd.f32 0.0, %v6746
  %v6748 = vpop.f32.mrf.mxu0
  %v6749 = vpop.f32.mrf.mxu0
  %v6750 = vadd.f32 0.0, %v6749
  %v6751 = vpop.f32.mrf.mxu0
  %6752 = vmatprep.mubr.bf16.mxu0 0
  %6753 = vmatmul.mubr.bf16.gmra.mxu0 %v5091
  %v6754 = vpop.f32.mrf.mxu0
  %v6755 = vadd.f32 0.0, %v6754
  %v6756 = vpop.f32.mrf.mxu0
  %v6757 = vpop.f32.mrf.mxu0
  %v6758 = vadd.f32 0.0, %v6757
  %v6759 = vpop.f32.mrf.mxu0
  %6760 = vmatprep.mubr.bf16.mxu0 0
  %6761 = vmatmul.mubr.bf16.gmra.mxu0 %v5092
  %v6762 = vpop.f32.mrf.mxu0
  %v6763 = vadd.f32 0.0, %v6762
  %v6764 = vpop.f32.mrf.mxu0
  %v6765 = vpop.f32.mrf.mxu0
  %v6766 = vadd.f32 0.0, %v6765
  %v6767 = vpop.f32.mrf.mxu0
  %6768 = vmatprep.mubr.bf16.mxu0 0
  %6769 = vmatmul.mubr.bf16.gmra.mxu0 %v5093
  %v6770 = vpop.f32.mrf.mxu0
  %v6771 = vadd.f32 0.0, %v6770
  %v6772 = vpop.f32.mrf.mxu0
  %v6773 = vpop.f32.mrf.mxu0
  %v6774 = vadd.f32 0.0, %v6773
  %v6775 = vpop.f32.mrf.mxu0
  %6776 = vmatprep.mubr.bf16.mxu0 0
  %6777 = vmatmul.mubr.bf16.gmra.mxu0 %v5094
  %v6778 = vpop.f32.mrf.mxu0
  %v6779 = vadd.f32 0.0, %v6778
  %v6780 = vpop.f32.mrf.mxu0
  %v6781 = vpop.f32.mrf.mxu0
  %v6782 = vadd.f32 0.0, %v6781
  %v6783 = vpop.f32.mrf.mxu0
  %6784 = vmatprep.mubr.bf16.mxu0 0
  %6785 = vmatmul.mubr.bf16.gmra.mxu0 %v5095
  %v6786 = vpop.f32.mrf.mxu0
  %v6787 = vadd.f32 0.0, %v6786
  %v6788 = vpop.f32.mrf.mxu0
  %v6789 = vpop.f32.mrf.mxu0
  %v6790 = vadd.f32 0.0, %v6789
  %v6791 = vpop.f32.mrf.mxu0
  %6792 = vdwg.mxu0
  %6793 = vmatprep.subr.bf16.mxu0 0
  %6794 = vmatpush1.bf16.msra.mxu0 %v1374
  %6795 = vmatprep.subr.bf16.mxu0 0
  %6796 = vmatpush1.bf16.msra.mxu0 %v1373
  %6797 = vmatprep.subr.bf16.mxu0 0
  %6798 = vmatpush1.bf16.msra.mxu0 %v1372
  %6799 = vmatprep.subr.bf16.mxu0 0
  %6800 = vmatpush1.bf16.msra.mxu0 %v1371
  %6801 = vmatprep.subr.bf16.mxu0 0
  %6802 = vmatpush1.bf16.msra.mxu0 %v1370
  %6803 = vmatprep.subr.bf16.mxu0 0
  %6804 = vmatpush1.bf16.msra.mxu0 %v1369
  %6805 = vmatprep.subr.bf16.mxu0 0
  %6806 = vmatpush1.bf16.msra.mxu0 %v1368
  %6807 = vmatprep.subr.bf16.mxu0 0
  %6808 = vmatpush1.bf16.msra.mxu0 %v1367
  %6809 = vmatprep.subr.bf16.mxu0 0
  %6810 = vmatpush2.bf16.msra.mxu0 0
  %6811 = vmatprep.subr.bf16.mxu0 0
  %6812 = vmatpush2.bf16.msra.mxu0 0
  %6813 = vmatprep.subr.bf16.mxu0 0
  %6814 = vmatpush2.bf16.msra.mxu0 0
  %6815 = vmatprep.subr.bf16.mxu0 0
  %6816 = vmatpush2.bf16.msra.mxu0 0
  %6817 = vmatprep.subr.bf16.mxu0 0
  %6818 = vmatpush2.bf16.msra.mxu0 0
  %6819 = vmatprep.subr.bf16.mxu0 0
  %6820 = vmatpush2.bf16.msra.mxu0 0
  %6821 = vmatprep.subr.bf16.mxu0 0
  %6822 = vmatpush2.bf16.msra.mxu0 0
  %6823 = vmatprep.subr.bf16.mxu0 0
  %6824 = vmatpush2.bf16.msra.mxu0 0
  %6825 = vmatprep.mubr.bf16.mxu0 0
  %6826 = vmatmul.mubr.bf16.gmra.mxu0 %v5096
  %v6827 = vpop.f32.mrf.mxu0
  %v6828 = vadd.f32 0.0, %v6827
  %v6829 = vpop.f32.mrf.mxu0
  %v6830 = vpop.f32.mrf.mxu0
  %v6831 = vadd.f32 0.0, %v6830
  %v6832 = vpop.f32.mrf.mxu0
  %6833 = vmatprep.mubr.bf16.mxu0 0
  %6834 = vmatmul.mubr.bf16.gmra.mxu0 %v5097
  %v6835 = vpop.f32.mrf.mxu0
  %v6836 = vadd.f32 0.0, %v6835
  %v6837 = vpop.f32.mrf.mxu0
  %v6838 = vpop.f32.mrf.mxu0
  %v6839 = vadd.f32 0.0, %v6838
  %v6840 = vpop.f32.mrf.mxu0
  %6841 = vmatprep.mubr.bf16.mxu0 0
  %6842 = vmatmul.mubr.bf16.gmra.mxu0 %v5098
  %v6843 = vpop.f32.mrf.mxu0
  %v6844 = vadd.f32 0.0, %v6843
  %v6845 = vpop.f32.mrf.mxu0
  %v6846 = vpop.f32.mrf.mxu0
  %v6847 = vadd.f32 0.0, %v6846
  %v6848 = vpop.f32.mrf.mxu0
  %6849 = vmatprep.mubr.bf16.mxu0 0
  %6850 = vmatmul.mubr.bf16.gmra.mxu0 %v5099
  %v6851 = vpop.f32.mrf.mxu0
  %v6852 = vadd.f32 0.0, %v6851
  %v6853 = vpop.f32.mrf.mxu0
  %v6854 = vpop.f32.mrf.mxu0
  %v6855 = vadd.f32 0.0, %v6854
  %v6856 = vpop.f32.mrf.mxu0
  %6857 = vmatprep.mubr.bf16.mxu0 0
  %6858 = vmatmul.mubr.bf16.gmra.mxu0 %v5100
  %v6859 = vpop.f32.mrf.mxu0
  %v6860 = vadd.f32 0.0, %v6859
  %v6861 = vpop.f32.mrf.mxu0
  %v6862 = vpop.f32.mrf.mxu0
  %v6863 = vadd.f32 0.0, %v6862
  %v6864 = vpop.f32.mrf.mxu0
  %6865 = vmatprep.mubr.bf16.mxu0 0
  %6866 = vmatmul.mubr.bf16.gmra.mxu0 %v5101
  %v6867 = vpop.f32.mrf.mxu0
  %v6868 = vadd.f32 0.0, %v6867
  %v6869 = vpop.f32.mrf.mxu0
  %v6870 = vpop.f32.mrf.mxu0
  %v6871 = vadd.f32 0.0, %v6870
  %v6872 = vpop.f32.mrf.mxu0
  %6873 = vmatprep.mubr.bf16.mxu0 0
  %6874 = vmatmul.mubr.bf16.gmra.mxu0 %v5102
  %v6875 = vpop.f32.mrf.mxu0
  %v6876 = vadd.f32 0.0, %v6875
  %v6877 = vpop.f32.mrf.mxu0
  %v6878 = vpop.f32.mrf.mxu0
  %v6879 = vadd.f32 0.0, %v6878
  %v6880 = vpop.f32.mrf.mxu0
  %6881 = vmatprep.mubr.bf16.mxu0 0
  %6882 = vmatmul.mubr.bf16.gmra.mxu0 %v5103
  %v6883 = vpop.f32.mrf.mxu0
  %v6884 = vadd.f32 0.0, %v6883
  %v6885 = vpop.f32.mrf.mxu0
  %v6886 = vpop.f32.mrf.mxu0
  %v6887 = vadd.f32 0.0, %v6886
  %v6888 = vpop.f32.mrf.mxu0
  %6889 = vdwg.mxu0
  %6890 = vmatprep.subr.bf16.mxu0 0
  %6891 = vmatpush1.bf16.msra.mxu0 %v1382
  %6892 = vmatprep.subr.bf16.mxu0 0
  %6893 = vmatpush1.bf16.msra.mxu0 %v1381
  %6894 = vmatprep.subr.bf16.mxu0 0
  %6895 = vmatpush1.bf16.msra.mxu0 %v1380
  %6896 = vmatprep.subr.bf16.mxu0 0
  %6897 = vmatpush1.bf16.msra.mxu0 %v1379
  %6898 = vmatprep.subr.bf16.mxu0 0
  %6899 = vmatpush1.bf16.msra.mxu0 %v1378
  %6900 = vmatprep.subr.bf16.mxu0 0
  %6901 = vmatpush1.bf16.msra.mxu0 %v1377
  %6902 = vmatprep.subr.bf16.mxu0 0
  %6903 = vmatpush1.bf16.msra.mxu0 %v1376
  %6904 = vmatprep.subr.bf16.mxu0 0
  %6905 = vmatpush1.bf16.msra.mxu0 %v1375
  %6906 = vmatprep.subr.bf16.mxu0 0
  %6907 = vmatpush2.bf16.msra.mxu0 0
  %6908 = vmatprep.subr.bf16.mxu0 0
  %6909 = vmatpush2.bf16.msra.mxu0 0
  %6910 = vmatprep.subr.bf16.mxu0 0
  %6911 = vmatpush2.bf16.msra.mxu0 0
  %6912 = vmatprep.subr.bf16.mxu0 0
  %6913 = vmatpush2.bf16.msra.mxu0 0
  %6914 = vmatprep.subr.bf16.mxu0 0
  %6915 = vmatpush2.bf16.msra.mxu0 0
  %6916 = vmatprep.subr.bf16.mxu0 0
  %6917 = vmatpush2.bf16.msra.mxu0 0
  %6918 = vmatprep.subr.bf16.mxu0 0
  %6919 = vmatpush2.bf16.msra.mxu0 0
  %6920 = vmatprep.subr.bf16.mxu0 0
  %6921 = vmatpush2.bf16.msra.mxu0 0
  %6922 = vmatprep.mubr.bf16.mxu0 0
  %6923 = vmatmul.mubr.bf16.gmra.mxu0 %v5104
  %v6924 = vpop.f32.mrf.mxu0
  %v6925 = vadd.f32 0.0, %v6924
  %v6926 = vpop.f32.mrf.mxu0
  %v6927 = vpop.f32.mrf.mxu0
  %v6928 = vadd.f32 0.0, %v6927
  %v6929 = vpop.f32.mrf.mxu0
  %6930 = vmatprep.mubr.bf16.mxu0 0
  %6931 = vmatmul.mubr.bf16.gmra.mxu0 %v5105
  %v6932 = vpop.f32.mrf.mxu0
  %v6933 = vadd.f32 0.0, %v6932
  %v6934 = vpop.f32.mrf.mxu0
  %v6935 = vpop.f32.mrf.mxu0
  %v6936 = vadd.f32 0.0, %v6935
  %v6937 = vpop.f32.mrf.mxu0
  %6938 = vmatprep.mubr.bf16.mxu0 0
  %6939 = vmatmul.mubr.bf16.gmra.mxu0 %v5106
  %v6940 = vpop.f32.mrf.mxu0
  %v6941 = vadd.f32 0.0, %v6940
  %v6942 = vpop.f32.mrf.mxu0
  %v6943 = vpop.f32.mrf.mxu0
  %v6944 = vadd.f32 0.0, %v6943
  %v6945 = vpop.f32.mrf.mxu0
  %6946 = vmatprep.mubr.bf16.mxu0 0
  %6947 = vmatmul.mubr.bf16.gmra.mxu0 %v5107
  %v6948 = vpop.f32.mrf.mxu0
  %v6949 = vadd.f32 0.0, %v6948
  %v6950 = vpop.f32.mrf.mxu0
  %v6951 = vpop.f32.mrf.mxu0
  %v6952 = vadd.f32 0.0, %v6951
  %v6953 = vpop.f32.mrf.mxu0
  %6954 = vmatprep.mubr.bf16.mxu0 0
  %6955 = vmatmul.mubr.bf16.gmra.mxu0 %v5108
  %v6956 = vpop.f32.mrf.mxu0
  %v6957 = vadd.f32 0.0, %v6956
  %v6958 = vpop.f32.mrf.mxu0
  %v6959 = vpop.f32.mrf.mxu0
  %v6960 = vadd.f32 0.0, %v6959
  %v6961 = vpop.f32.mrf.mxu0
  %6962 = vmatprep.mubr.bf16.mxu0 0
  %6963 = vmatmul.mubr.bf16.gmra.mxu0 %v5109
  %v6964 = vpop.f32.mrf.mxu0
  %v6965 = vadd.f32 0.0, %v6964
  %v6966 = vpop.f32.mrf.mxu0
  %v6967 = vpop.f32.mrf.mxu0
  %v6968 = vadd.f32 0.0, %v6967
  %v6969 = vpop.f32.mrf.mxu0
  %6970 = vmatprep.mubr.bf16.mxu0 0
  %6971 = vmatmul.mubr.bf16.gmra.mxu0 %v5110
  %v6972 = vpop.f32.mrf.mxu0
  %v6973 = vadd.f32 0.0, %v6972
  %v6974 = vpop.f32.mrf.mxu0
  %v6975 = vpop.f32.mrf.mxu0
  %v6976 = vadd.f32 0.0, %v6975
  %v6977 = vpop.f32.mrf.mxu0
  %6978 = vmatprep.mubr.bf16.mxu0 0
  %6979 = vmatmul.mubr.bf16.gmra.mxu0 %v5111
  %v6980 = vpop.f32.mrf.mxu0
  %v6981 = vadd.f32 0.0, %v6980
  %v6982 = vpop.f32.mrf.mxu0
  %v6983 = vpop.f32.mrf.mxu0
  %v6984 = vadd.f32 0.0, %v6983
  %v6985 = vpop.f32.mrf.mxu0
  %6986 = vdwg.mxu0
  %6987 = vmatprep.subr.bf16.mxu0 0
  %6988 = vmatpush1.bf16.msra.mxu0 %v1390
  %6989 = vmatprep.subr.bf16.mxu0 0
  %6990 = vmatpush1.bf16.msra.mxu0 %v1389
  %6991 = vmatprep.subr.bf16.mxu0 0
  %6992 = vmatpush1.bf16.msra.mxu0 %v1388
  %6993 = vmatprep.subr.bf16.mxu0 0
  %6994 = vmatpush1.bf16.msra.mxu0 %v1387
  %6995 = vmatprep.subr.bf16.mxu0 0
  %6996 = vmatpush1.bf16.msra.mxu0 %v1386
  %6997 = vmatprep.subr.bf16.mxu0 0
  %6998 = vmatpush1.bf16.msra.mxu0 %v1385
  %6999 = vmatprep.subr.bf16.mxu0 0
  %7000 = vmatpush1.bf16.msra.mxu0 %v1384
  %7001 = vmatprep.subr.bf16.mxu0 0
  %7002 = vmatpush1.bf16.msra.mxu0 %v1383
  %7003 = vmatprep.subr.bf16.mxu0 0
  %7004 = vmatpush2.bf16.msra.mxu0 0
  %7005 = vmatprep.subr.bf16.mxu0 0
  %7006 = vmatpush2.bf16.msra.mxu0 0
  %7007 = vmatprep.subr.bf16.mxu0 0
  %7008 = vmatpush2.bf16.msra.mxu0 0
  %7009 = vmatprep.subr.bf16.mxu0 0
  %7010 = vmatpush2.bf16.msra.mxu0 0
  %7011 = vmatprep.subr.bf16.mxu0 0
  %7012 = vmatpush2.bf16.msra.mxu0 0
  %7013 = vmatprep.subr.bf16.mxu0 0
  %7014 = vmatpush2.bf16.msra.mxu0 0
  %7015 = vmatprep.subr.bf16.mxu0 0
  %7016 = vmatpush2.bf16.msra.mxu0 0
  %7017 = vmatprep.subr.bf16.mxu0 0
  %7018 = vmatpush2.bf16.msra.mxu0 0
  %7019 = vmatprep.mubr.bf16.mxu0 0
  %7020 = vmatmul.mubr.bf16.gmra.mxu0 %v5112
  %v7021 = vpop.f32.mrf.mxu0
  %v7022 = vadd.f32 0.0, %v7021
  %v7023 = vpop.f32.mrf.mxu0
  %v7024 = vpop.f32.mrf.mxu0
  %v7025 = vadd.f32 0.0, %v7024
  %v7026 = vpop.f32.mrf.mxu0
  %7027 = vmatprep.mubr.bf16.mxu0 0
  %7028 = vmatmul.mubr.bf16.gmra.mxu0 %v5113
  %v7029 = vpop.f32.mrf.mxu0
  %v7030 = vadd.f32 0.0, %v7029
  %v7031 = vpop.f32.mrf.mxu0
  %v7032 = vpop.f32.mrf.mxu0
  %v7033 = vadd.f32 0.0, %v7032
  %v7034 = vpop.f32.mrf.mxu0
  %7035 = vmatprep.mubr.bf16.mxu0 0
  %7036 = vmatmul.mubr.bf16.gmra.mxu0 %v5114
  %v7037 = vpop.f32.mrf.mxu0
  %v7038 = vadd.f32 0.0, %v7037
  %v7039 = vpop.f32.mrf.mxu0
  %v7040 = vpop.f32.mrf.mxu0
  %v7041 = vadd.f32 0.0, %v7040
  %v7042 = vpop.f32.mrf.mxu0
  %7043 = vmatprep.mubr.bf16.mxu0 0
  %7044 = vmatmul.mubr.bf16.gmra.mxu0 %v5115
  %v7045 = vpop.f32.mrf.mxu0
  %v7046 = vadd.f32 0.0, %v7045
  %v7047 = vpop.f32.mrf.mxu0
  %v7048 = vpop.f32.mrf.mxu0
  %v7049 = vadd.f32 0.0, %v7048
  %v7050 = vpop.f32.mrf.mxu0
  %7051 = vmatprep.mubr.bf16.mxu0 0
  %7052 = vmatmul.mubr.bf16.gmra.mxu0 %v5116
  %v7053 = vpop.f32.mrf.mxu0
  %v7054 = vadd.f32 0.0, %v7053
  %v7055 = vpop.f32.mrf.mxu0
  %v7056 = vpop.f32.mrf.mxu0
  %v7057 = vadd.f32 0.0, %v7056
  %v7058 = vpop.f32.mrf.mxu0
  %7059 = vmatprep.mubr.bf16.mxu0 0
  %7060 = vmatmul.mubr.bf16.gmra.mxu0 %v5117
  %v7061 = vpop.f32.mrf.mxu0
  %v7062 = vadd.f32 0.0, %v7061
  %v7063 = vpop.f32.mrf.mxu0
  %v7064 = vpop.f32.mrf.mxu0
  %v7065 = vadd.f32 0.0, %v7064
  %v7066 = vpop.f32.mrf.mxu0
  %7067 = vmatprep.mubr.bf16.mxu0 0
  %7068 = vmatmul.mubr.bf16.gmra.mxu0 %v5118
  %v7069 = vpop.f32.mrf.mxu0
  %v7070 = vadd.f32 0.0, %v7069
  %v7071 = vpop.f32.mrf.mxu0
  %v7072 = vpop.f32.mrf.mxu0
  %v7073 = vadd.f32 0.0, %v7072
  %v7074 = vpop.f32.mrf.mxu0
  %7075 = vmatprep.mubr.bf16.mxu0 0
  %7076 = vmatmul.mubr.bf16.gmra.mxu0 %v5119
  %v7077 = vpop.f32.mrf.mxu0
  %v7078 = vadd.f32 0.0, %v7077
  %v7079 = vpop.f32.mrf.mxu0
  %v7080 = vpop.f32.mrf.mxu0
  %v7081 = vadd.f32 0.0, %v7080
  %v7082 = vpop.f32.mrf.mxu0
  %7083 = vdwg.mxu0
  %7084 = vmatprep.subr.bf16.mxu0 0
  %7085 = vmatpush1.bf16.msra.mxu0 %v1398
  %7086 = vmatprep.subr.bf16.mxu0 0
  %7087 = vmatpush1.bf16.msra.mxu0 %v1397
  %7088 = vmatprep.subr.bf16.mxu0 0
  %7089 = vmatpush1.bf16.msra.mxu0 %v1396
  %7090 = vmatprep.subr.bf16.mxu0 0
  %7091 = vmatpush1.bf16.msra.mxu0 %v1395
  %7092 = vmatprep.subr.bf16.mxu0 0
  %7093 = vmatpush1.bf16.msra.mxu0 %v1394
  %7094 = vmatprep.subr.bf16.mxu0 0
  %7095 = vmatpush1.bf16.msra.mxu0 %v1393
  %7096 = vmatprep.subr.bf16.mxu0 0
  %7097 = vmatpush1.bf16.msra.mxu0 %v1392
  %7098 = vmatprep.subr.bf16.mxu0 0
  %7099 = vmatpush1.bf16.msra.mxu0 %v1391
  %7100 = vmatprep.subr.bf16.mxu0 0
  %7101 = vmatpush2.bf16.msra.mxu0 0
  %7102 = vmatprep.subr.bf16.mxu0 0
  %7103 = vmatpush2.bf16.msra.mxu0 0
  %7104 = vmatprep.subr.bf16.mxu0 0
  %7105 = vmatpush2.bf16.msra.mxu0 0
  %7106 = vmatprep.subr.bf16.mxu0 0
  %7107 = vmatpush2.bf16.msra.mxu0 0
  %7108 = vmatprep.subr.bf16.mxu0 0
  %7109 = vmatpush2.bf16.msra.mxu0 0
  %7110 = vmatprep.subr.bf16.mxu0 0
  %7111 = vmatpush2.bf16.msra.mxu0 0
  %7112 = vmatprep.subr.bf16.mxu0 0
  %7113 = vmatpush2.bf16.msra.mxu0 0
  %7114 = vmatprep.subr.bf16.mxu0 0
  %7115 = vmatpush2.bf16.msra.mxu0 0
  %7116 = vmatprep.mubr.bf16.mxu0 0
  %7117 = vmatmul.mubr.bf16.gmra.mxu0 %v5120
  %v7118 = vpop.f32.mrf.mxu0
  %v7119 = vadd.f32 0.0, %v7118
  %v7120 = vpop.f32.mrf.mxu0
  %v7121 = vpop.f32.mrf.mxu0
  %v7122 = vadd.f32 0.0, %v7121
  %v7123 = vpop.f32.mrf.mxu0
  %7124 = vmatprep.mubr.bf16.mxu0 0
  %7125 = vmatmul.mubr.bf16.gmra.mxu0 %v5121
  %v7126 = vpop.f32.mrf.mxu0
  %v7127 = vadd.f32 0.0, %v7126
  %v7128 = vpop.f32.mrf.mxu0
  %v7129 = vpop.f32.mrf.mxu0
  %v7130 = vadd.f32 0.0, %v7129
  %v7131 = vpop.f32.mrf.mxu0
  %7132 = vmatprep.mubr.bf16.mxu0 0
  %7133 = vmatmul.mubr.bf16.gmra.mxu0 %v5122
  %v7134 = vpop.f32.mrf.mxu0
  %v7135 = vadd.f32 0.0, %v7134
  %v7136 = vpop.f32.mrf.mxu0
  %v7137 = vpop.f32.mrf.mxu0
  %v7138 = vadd.f32 0.0, %v7137
  %v7139 = vpop.f32.mrf.mxu0
  %7140 = vmatprep.mubr.bf16.mxu0 0
  %7141 = vmatmul.mubr.bf16.gmra.mxu0 %v5123
  %v7142 = vpop.f32.mrf.mxu0
  %v7143 = vadd.f32 0.0, %v7142
  %v7144 = vpop.f32.mrf.mxu0
  %v7145 = vpop.f32.mrf.mxu0
  %v7146 = vadd.f32 0.0, %v7145
  %v7147 = vpop.f32.mrf.mxu0
  %7148 = vmatprep.mubr.bf16.mxu0 0
  %7149 = vmatmul.mubr.bf16.gmra.mxu0 %v5124
  %v7150 = vpop.f32.mrf.mxu0
  %v7151 = vadd.f32 0.0, %v7150
  %v7152 = vpop.f32.mrf.mxu0
  %v7153 = vpop.f32.mrf.mxu0
  %v7154 = vadd.f32 0.0, %v7153
  %v7155 = vpop.f32.mrf.mxu0
  %7156 = vmatprep.mubr.bf16.mxu0 0
  %7157 = vmatmul.mubr.bf16.gmra.mxu0 %v5125
  %v7158 = vpop.f32.mrf.mxu0
  %v7159 = vadd.f32 0.0, %v7158
  %v7160 = vpop.f32.mrf.mxu0
  %v7161 = vpop.f32.mrf.mxu0
  %v7162 = vadd.f32 0.0, %v7161
  %v7163 = vpop.f32.mrf.mxu0
  %7164 = vmatprep.mubr.bf16.mxu0 0
  %7165 = vmatmul.mubr.bf16.gmra.mxu0 %v5126
  %v7166 = vpop.f32.mrf.mxu0
  %v7167 = vadd.f32 0.0, %v7166
  %v7168 = vpop.f32.mrf.mxu0
  %v7169 = vpop.f32.mrf.mxu0
  %v7170 = vadd.f32 0.0, %v7169
  %v7171 = vpop.f32.mrf.mxu0
  %7172 = vmatprep.mubr.bf16.mxu0 0
  %7173 = vmatmul.mubr.bf16.gmra.mxu0 %v5127
  %v7174 = vpop.f32.mrf.mxu0
  %v7175 = vadd.f32 0.0, %v7174
  %v7176 = vpop.f32.mrf.mxu0
  %v7177 = vpop.f32.mrf.mxu0
  %v7178 = vadd.f32 0.0, %v7177
  %v7179 = vpop.f32.mrf.mxu0
  %7180 = vdwg.mxu0
  %7181 = vmatprep.subr.bf16.mxu0 0
  %7182 = vmatpush1.bf16.msra.mxu0 %v1406
  %7183 = vmatprep.subr.bf16.mxu0 0
  %7184 = vmatpush1.bf16.msra.mxu0 %v1405
  %7185 = vmatprep.subr.bf16.mxu0 0
  %7186 = vmatpush1.bf16.msra.mxu0 %v1404
  %7187 = vmatprep.subr.bf16.mxu0 0
  %7188 = vmatpush1.bf16.msra.mxu0 %v1403
  %7189 = vmatprep.subr.bf16.mxu0 0
  %7190 = vmatpush1.bf16.msra.mxu0 %v1402
  %7191 = vmatprep.subr.bf16.mxu0 0
  %7192 = vmatpush1.bf16.msra.mxu0 %v1401
  %7193 = vmatprep.subr.bf16.mxu0 0
  %7194 = vmatpush1.bf16.msra.mxu0 %v1400
  %7195 = vmatprep.subr.bf16.mxu0 0
  %7196 = vmatpush1.bf16.msra.mxu0 %v1399
  %7197 = vmatprep.subr.bf16.mxu0 0
  %7198 = vmatpush2.bf16.msra.mxu0 0
  %7199 = vmatprep.subr.bf16.mxu0 0
  %7200 = vmatpush2.bf16.msra.mxu0 0
  %7201 = vmatprep.subr.bf16.mxu0 0
  %7202 = vmatpush2.bf16.msra.mxu0 0
  %7203 = vmatprep.subr.bf16.mxu0 0
  %7204 = vmatpush2.bf16.msra.mxu0 0
  %7205 = vmatprep.subr.bf16.mxu0 0
  %7206 = vmatpush2.bf16.msra.mxu0 0
  %7207 = vmatprep.subr.bf16.mxu0 0
  %7208 = vmatpush2.bf16.msra.mxu0 0
  %7209 = vmatprep.subr.bf16.mxu0 0
  %7210 = vmatpush2.bf16.msra.mxu0 0
  %7211 = vmatprep.subr.bf16.mxu0 0
  %7212 = vmatpush2.bf16.msra.mxu0 0
  %7213 = vmatprep.mubr.bf16.mxu0 0
  %7214 = vmatmul.mubr.bf16.gmra.mxu0 %v5128
  %v7215 = vpop.f32.mrf.mxu0
  %v7216 = vadd.f32 0.0, %v7215
  %v7217 = vpop.f32.mrf.mxu0
  %v7218 = vpop.f32.mrf.mxu0
  %v7219 = vadd.f32 0.0, %v7218
  %v7220 = vpop.f32.mrf.mxu0
  %7221 = vmatprep.mubr.bf16.mxu0 0
  %7222 = vmatmul.mubr.bf16.gmra.mxu0 %v5129
  %v7223 = vpop.f32.mrf.mxu0
  %v7224 = vadd.f32 0.0, %v7223
  %v7225 = vpop.f32.mrf.mxu0
  %v7226 = vpop.f32.mrf.mxu0
  %v7227 = vadd.f32 0.0, %v7226
  %v7228 = vpop.f32.mrf.mxu0
  %7229 = vmatprep.mubr.bf16.mxu0 0
  %7230 = vmatmul.mubr.bf16.gmra.mxu0 %v5130
  %v7231 = vpop.f32.mrf.mxu0
  %v7232 = vadd.f32 0.0, %v7231
  %v7233 = vpop.f32.mrf.mxu0
  %v7234 = vpop.f32.mrf.mxu0
  %v7235 = vadd.f32 0.0, %v7234
  %v7236 = vpop.f32.mrf.mxu0
  %7237 = vmatprep.mubr.bf16.mxu0 0
  %7238 = vmatmul.mubr.bf16.gmra.mxu0 %v5131
  %v7239 = vpop.f32.mrf.mxu0
  %v7240 = vadd.f32 0.0, %v7239
  %v7241 = vpop.f32.mrf.mxu0
  %v7242 = vpop.f32.mrf.mxu0
  %v7243 = vadd.f32 0.0, %v7242
  %v7244 = vpop.f32.mrf.mxu0
  %7245 = vmatprep.mubr.bf16.mxu0 0
  %7246 = vmatmul.mubr.bf16.gmra.mxu0 %v5132
  %v7247 = vpop.f32.mrf.mxu0
  %v7248 = vadd.f32 0.0, %v7247
  %v7249 = vpop.f32.mrf.mxu0
  %v7250 = vpop.f32.mrf.mxu0
  %v7251 = vadd.f32 0.0, %v7250
  %v7252 = vpop.f32.mrf.mxu0
  %7253 = vmatprep.mubr.bf16.mxu0 0
  %7254 = vmatmul.mubr.bf16.gmra.mxu0 %v5133
  %v7255 = vpop.f32.mrf.mxu0
  %v7256 = vadd.f32 0.0, %v7255
  %v7257 = vpop.f32.mrf.mxu0
  %v7258 = vpop.f32.mrf.mxu0
  %v7259 = vadd.f32 0.0, %v7258
  %v7260 = vpop.f32.mrf.mxu0
  %7261 = vmatprep.mubr.bf16.mxu0 0
  %7262 = vmatmul.mubr.bf16.gmra.mxu0 %v5134
  %v7263 = vpop.f32.mrf.mxu0
  %v7264 = vadd.f32 0.0, %v7263
  %v7265 = vpop.f32.mrf.mxu0
  %v7266 = vpop.f32.mrf.mxu0
  %v7267 = vadd.f32 0.0, %v7266
  %v7268 = vpop.f32.mrf.mxu0
  %7269 = vmatprep.mubr.bf16.mxu0 0
  %7270 = vmatmul.mubr.bf16.gmra.mxu0 %v5135
  %v7271 = vpop.f32.mrf.mxu0
  %v7272 = vadd.f32 0.0, %v7271
  %v7273 = vpop.f32.mrf.mxu0
  %v7274 = vpop.f32.mrf.mxu0
  %v7275 = vadd.f32 0.0, %v7274
  %v7276 = vpop.f32.mrf.mxu0
  %7277 = vdwg.mxu0
  %7278 = vmatprep.subr.bf16.mxu0 0
  %7279 = vmatpush1.bf16.msra.mxu0 %v1414
  %7280 = vmatprep.subr.bf16.mxu0 0
  %7281 = vmatpush1.bf16.msra.mxu0 %v1413
  %7282 = vmatprep.subr.bf16.mxu0 0
  %7283 = vmatpush1.bf16.msra.mxu0 %v1412
  %7284 = vmatprep.subr.bf16.mxu0 0
  %7285 = vmatpush1.bf16.msra.mxu0 %v1411
  %7286 = vmatprep.subr.bf16.mxu0 0
  %7287 = vmatpush1.bf16.msra.mxu0 %v1410
  %7288 = vmatprep.subr.bf16.mxu0 0
  %7289 = vmatpush1.bf16.msra.mxu0 %v1409
  %7290 = vmatprep.subr.bf16.mxu0 0
  %7291 = vmatpush1.bf16.msra.mxu0 %v1408
  %7292 = vmatprep.subr.bf16.mxu0 0
  %7293 = vmatpush1.bf16.msra.mxu0 %v1407
  %7294 = vmatprep.subr.bf16.mxu0 0
  %7295 = vmatpush2.bf16.msra.mxu0 0
  %7296 = vmatprep.subr.bf16.mxu0 0
  %7297 = vmatpush2.bf16.msra.mxu0 0
  %7298 = vmatprep.subr.bf16.mxu0 0
  %7299 = vmatpush2.bf16.msra.mxu0 0
  %7300 = vmatprep.subr.bf16.mxu0 0
  %7301 = vmatpush2.bf16.msra.mxu0 0
  %7302 = vmatprep.subr.bf16.mxu0 0
  %7303 = vmatpush2.bf16.msra.mxu0 0
  %7304 = vmatprep.subr.bf16.mxu0 0
  %7305 = vmatpush2.bf16.msra.mxu0 0
  %7306 = vmatprep.subr.bf16.mxu0 0
  %7307 = vmatpush2.bf16.msra.mxu0 0
  %7308 = vmatprep.subr.bf16.mxu0 0
  %7309 = vmatpush2.bf16.msra.mxu0 0
  %7310 = vmatprep.mubr.bf16.mxu0 0
  %7311 = vmatmul.mubr.bf16.gmra.mxu0 %v5136
  %v7312 = vpop.f32.mrf.mxu0
  %v7313 = vadd.f32 0.0, %v7312
  %v7314 = vpop.f32.mrf.mxu0
  %v7315 = vpop.f32.mrf.mxu0
  %v7316 = vadd.f32 0.0, %v7315
  %v7317 = vpop.f32.mrf.mxu0
  %7318 = vmatprep.mubr.bf16.mxu0 0
  %7319 = vmatmul.mubr.bf16.gmra.mxu0 %v5137
  %v7320 = vpop.f32.mrf.mxu0
  %v7321 = vadd.f32 0.0, %v7320
  %v7322 = vpop.f32.mrf.mxu0
  %v7323 = vpop.f32.mrf.mxu0
  %v7324 = vadd.f32 0.0, %v7323
  %v7325 = vpop.f32.mrf.mxu0
  %7326 = vmatprep.mubr.bf16.mxu0 0
  %7327 = vmatmul.mubr.bf16.gmra.mxu0 %v5138
  %v7328 = vpop.f32.mrf.mxu0
  %v7329 = vadd.f32 0.0, %v7328
  %v7330 = vpop.f32.mrf.mxu0
  %v7331 = vpop.f32.mrf.mxu0
  %v7332 = vadd.f32 0.0, %v7331
  %v7333 = vpop.f32.mrf.mxu0
  %7334 = vmatprep.mubr.bf16.mxu0 0
  %7335 = vmatmul.mubr.bf16.gmra.mxu0 %v5139
  %v7336 = vpop.f32.mrf.mxu0
  %v7337 = vadd.f32 0.0, %v7336
  %v7338 = vpop.f32.mrf.mxu0
  %v7339 = vpop.f32.mrf.mxu0
  %v7340 = vadd.f32 0.0, %v7339
  %v7341 = vpop.f32.mrf.mxu0
  %7342 = vmatprep.mubr.bf16.mxu0 0
  %7343 = vmatmul.mubr.bf16.gmra.mxu0 %v5140
  %v7344 = vpop.f32.mrf.mxu0
  %v7345 = vadd.f32 0.0, %v7344
  %v7346 = vpop.f32.mrf.mxu0
  %v7347 = vpop.f32.mrf.mxu0
  %v7348 = vadd.f32 0.0, %v7347
  %v7349 = vpop.f32.mrf.mxu0
  %7350 = vmatprep.mubr.bf16.mxu0 0
  %7351 = vmatmul.mubr.bf16.gmra.mxu0 %v5141
  %v7352 = vpop.f32.mrf.mxu0
  %v7353 = vadd.f32 0.0, %v7352
  %v7354 = vpop.f32.mrf.mxu0
  %v7355 = vpop.f32.mrf.mxu0
  %v7356 = vadd.f32 0.0, %v7355
  %v7357 = vpop.f32.mrf.mxu0
  %7358 = vmatprep.mubr.bf16.mxu0 0
  %7359 = vmatmul.mubr.bf16.gmra.mxu0 %v5142
  %v7360 = vpop.f32.mrf.mxu0
  %v7361 = vadd.f32 0.0, %v7360
  %v7362 = vpop.f32.mrf.mxu0
  %v7363 = vpop.f32.mrf.mxu0
  %v7364 = vadd.f32 0.0, %v7363
  %v7365 = vpop.f32.mrf.mxu0
  %7366 = vmatprep.mubr.bf16.mxu0 0
  %7367 = vmatmul.mubr.bf16.gmra.mxu0 %v5143
  %v7368 = vpop.f32.mrf.mxu0
  %v7369 = vadd.f32 0.0, %v7368
  %v7370 = vpop.f32.mrf.mxu0
  %v7371 = vpop.f32.mrf.mxu0
  %v7372 = vadd.f32 0.0, %v7371
  %v7373 = vpop.f32.mrf.mxu0
  %7374 = vdwg.mxu0
  %7375 = vmatprep.subr.bf16.mxu0 0
  %7376 = vmatpush1.bf16.msra.mxu0 %v1422
  %7377 = vmatprep.subr.bf16.mxu0 0
  %7378 = vmatpush1.bf16.msra.mxu0 %v1421
  %7379 = vmatprep.subr.bf16.mxu0 0
  %7380 = vmatpush1.bf16.msra.mxu0 %v1420
  %7381 = vmatprep.subr.bf16.mxu0 0
  %7382 = vmatpush1.bf16.msra.mxu0 %v1419
  %7383 = vmatprep.subr.bf16.mxu0 0
  %7384 = vmatpush1.bf16.msra.mxu0 %v1418
  %7385 = vmatprep.subr.bf16.mxu0 0
  %7386 = vmatpush1.bf16.msra.mxu0 %v1417
  %7387 = vmatprep.subr.bf16.mxu0 0
  %7388 = vmatpush1.bf16.msra.mxu0 %v1416
  %7389 = vmatprep.subr.bf16.mxu0 0
  %7390 = vmatpush1.bf16.msra.mxu0 %v1415
  %7391 = vmatprep.subr.bf16.mxu0 0
  %7392 = vmatpush2.bf16.msra.mxu0 0
  %7393 = vmatprep.subr.bf16.mxu0 0
  %7394 = vmatpush2.bf16.msra.mxu0 0
  %7395 = vmatprep.subr.bf16.mxu0 0
  %7396 = vmatpush2.bf16.msra.mxu0 0
  %7397 = vmatprep.subr.bf16.mxu0 0
  %7398 = vmatpush2.bf16.msra.mxu0 0
  %7399 = vmatprep.subr.bf16.mxu0 0
  %7400 = vmatpush2.bf16.msra.mxu0 0
  %7401 = vmatprep.subr.bf16.mxu0 0
  %7402 = vmatpush2.bf16.msra.mxu0 0
  %7403 = vmatprep.subr.bf16.mxu0 0
  %7404 = vmatpush2.bf16.msra.mxu0 0
  %7405 = vmatprep.subr.bf16.mxu0 0
  %7406 = vmatpush2.bf16.msra.mxu0 0
  %7407 = vmatprep.mubr.bf16.mxu0 0
  %7408 = vmatmul.mubr.bf16.gmra.mxu0 %v5144
  %v7409 = vpop.f32.mrf.mxu0
  %v7410 = vadd.f32 0.0, %v7409
  %v7411 = vpop.f32.mrf.mxu0
  %v7412 = vpop.f32.mrf.mxu0
  %v7413 = vadd.f32 0.0, %v7412
  %v7414 = vpop.f32.mrf.mxu0
  %7415 = vmatprep.mubr.bf16.mxu0 0
  %7416 = vmatmul.mubr.bf16.gmra.mxu0 %v5145
  %v7417 = vpop.f32.mrf.mxu0
  %v7418 = vadd.f32 0.0, %v7417
  %v7419 = vpop.f32.mrf.mxu0
  %v7420 = vpop.f32.mrf.mxu0
  %v7421 = vadd.f32 0.0, %v7420
  %v7422 = vpop.f32.mrf.mxu0
  %7423 = vmatprep.mubr.bf16.mxu0 0
  %7424 = vmatmul.mubr.bf16.gmra.mxu0 %v5146
  %v7425 = vpop.f32.mrf.mxu0
  %v7426 = vadd.f32 0.0, %v7425
  %v7427 = vpop.f32.mrf.mxu0
  %v7428 = vpop.f32.mrf.mxu0
  %v7429 = vadd.f32 0.0, %v7428
  %v7430 = vpop.f32.mrf.mxu0
  %7431 = vmatprep.mubr.bf16.mxu0 0
  %7432 = vmatmul.mubr.bf16.gmra.mxu0 %v5147
  %v7433 = vpop.f32.mrf.mxu0
  %v7434 = vadd.f32 0.0, %v7433
  %v7435 = vpop.f32.mrf.mxu0
  %v7436 = vpop.f32.mrf.mxu0
  %v7437 = vadd.f32 0.0, %v7436
  %v7438 = vpop.f32.mrf.mxu0
  %7439 = vmatprep.mubr.bf16.mxu0 0
  %7440 = vmatmul.mubr.bf16.gmra.mxu0 %v5148
  %v7441 = vpop.f32.mrf.mxu0
  %v7442 = vadd.f32 0.0, %v7441
  %v7443 = vpop.f32.mrf.mxu0
  %v7444 = vpop.f32.mrf.mxu0
  %v7445 = vadd.f32 0.0, %v7444
  %v7446 = vpop.f32.mrf.mxu0
  %7447 = vmatprep.mubr.bf16.mxu0 0
  %7448 = vmatmul.mubr.bf16.gmra.mxu0 %v5149
  %v7449 = vpop.f32.mrf.mxu0
  %v7450 = vadd.f32 0.0, %v7449
  %v7451 = vpop.f32.mrf.mxu0
  %v7452 = vpop.f32.mrf.mxu0
  %v7453 = vadd.f32 0.0, %v7452
  %v7454 = vpop.f32.mrf.mxu0
  %7455 = vmatprep.mubr.bf16.mxu0 0
  %7456 = vmatmul.mubr.bf16.gmra.mxu0 %v5150
  %v7457 = vpop.f32.mrf.mxu0
  %v7458 = vadd.f32 0.0, %v7457
  %v7459 = vpop.f32.mrf.mxu0
  %v7460 = vpop.f32.mrf.mxu0
  %v7461 = vadd.f32 0.0, %v7460
  %v7462 = vpop.f32.mrf.mxu0
  %7463 = vmatprep.mubr.bf16.mxu0 0
  %7464 = vmatmul.mubr.bf16.gmra.mxu0 %v5151
  %v7465 = vpop.f32.mrf.mxu0
  %v7466 = vadd.f32 0.0, %v7465
  %v7467 = vpop.f32.mrf.mxu0
  %v7468 = vpop.f32.mrf.mxu0
  %v7469 = vadd.f32 0.0, %v7468
  %v7470 = vpop.f32.mrf.mxu0
  %7471 = vdwg.mxu0
  %v7472 = vrcp.pop %v5409
  %v7473 = vrcp.pop %v5411
  %v7474 = vrcp.pop %v5413
  %v7475 = vrcp.pop %v5415
  %v7476 = vrcp.pop %v5417
  %v7477 = vrcp.pop %v5419
  %v7478 = vrcp.pop %v5421
  %v7479 = vrcp.pop %v5423
  %v7480 = vrcp.pop %v5425
  %v7481 = vrcp.pop %v5427
  %v7482 = vrcp.pop %v5429
  %v7483 = vrcp.pop %v5431
  %v7484 = vrcp.pop %v5433
  %v7485 = vrcp.pop %v5435
  %v7486 = vrcp.pop %v5437
  %v7487 = vrcp.pop %v5439
  %v7488 = vrcp.pop %v5441
  %v7489 = vrcp.pop %v5443
  %v7490 = vrcp.pop %v5445
  %v7491 = vrcp.pop %v5447
  %v7492 = vrcp.pop %v5449
  %v7493 = vrcp.pop %v5451
  %v7494 = vrcp.pop %v5453
  %v7495 = vrcp.pop %v5455
  %v7496 = vrcp.pop %v5457
  %v7497 = vrcp.pop %v5459
  %v7498 = vrcp.pop %v5461
  %v7499 = vrcp.pop %v5463
  %v7500 = vrcp.pop %v5465
  %v7501 = vrcp.pop %v5467
  %v7502 = vrcp.pop %v5469
  %v7503 = vrcp.pop %v5471
  %v7504 = vrcp.pop %v5473
  %v7505 = vrcp.pop %v5475
  %v7506 = vrcp.pop %v5477
  %v7507 = vrcp.pop %v5479
  %v7508 = vrcp.pop %v5481
  %v7509 = vrcp.pop %v5483
  %v7510 = vrcp.pop %v5485
  %v7511 = vrcp.pop %v5487
  %v7512 = vrcp.pop %v5489
  %v7513 = vrcp.pop %v5491
  %v7514 = vrcp.pop %v5493
  %v7515 = vrcp.pop %v5495
  %v7516 = vrcp.pop %v5497
  %v7517 = vrcp.pop %v5499
  %v7518 = vrcp.pop %v5501
  %v7519 = vrcp.pop %v5503
  %v7520 = vrcp.pop %v5505
  %v7521 = vrcp.pop %v5507
  %v7522 = vrcp.pop %v5509
  %v7523 = vrcp.pop %v5511
  %v7524 = vrcp.pop %v5513
  %v7525 = vrcp.pop %v5515
  %v7526 = vrcp.pop %v5517
  %v7527 = vrcp.pop %v5519
  %v7528 = vrcp.pop %v5521
  %v7529 = vrcp.pop %v5523
  %v7530 = vrcp.pop %v5525
  %v7531 = vrcp.pop %v5527
  %v7532 = vrcp.pop %v5529
  %v7533 = vrcp.pop %v5531
  %v7534 = vrcp.pop %v5533
  %v7535 = vrcp.pop %v5535
  %v7536 = vrcp.pop %v5537
  %v7537 = vrcp.pop %v5539
  %v7538 = vrcp.pop %v5541
  %v7539 = vrcp.pop %v5543
  %v7540 = vrcp.pop %v5545
  %v7541 = vrcp.pop %v5547
  %v7542 = vrcp.pop %v5549
  %v7543 = vrcp.pop %v5551
  %v7544 = vrcp.pop %v5553
  %v7545 = vrcp.pop %v5555
  %v7546 = vrcp.pop %v5557
  %v7547 = vrcp.pop %v5559
  %v7548 = vrcp.pop %v5561
  %v7549 = vrcp.pop %v5563
  %v7550 = vrcp.pop %v5565
  %v7551 = vrcp.pop %v5567
  %v7552 = vrcp.pop %v5569
  %v7553 = vrcp.pop %v5571
  %v7554 = vrcp.pop %v5573
  %v7555 = vrcp.pop %v5575
  %v7556 = vrcp.pop %v5577
  %v7557 = vrcp.pop %v5579
  %v7558 = vrcp.pop %v5581
  %v7559 = vrcp.pop %v5583
  %v7560 = vrcp.pop %v5585
  %v7561 = vrcp.pop %v5587
  %v7562 = vrcp.pop %v5589
  %v7563 = vrcp.pop %v5591
  %v7564 = vrcp.pop %v5593
  %v7565 = vrcp.pop %v5595
  %v7566 = vrcp.pop %v5597
  %v7567 = vrcp.pop %v5599
  %v7568 = vrcp.pop %v5601
  %v7569 = vrcp.pop %v5603
  %v7570 = vrcp.pop %v5605
  %v7571 = vrcp.pop %v5607
  %v7572 = vrcp.pop %v5609
  %v7573 = vrcp.pop %v5611
  %v7574 = vrcp.pop %v5613
  %v7575 = vrcp.pop %v5615
  %v7576 = vrcp.pop %v5617
  %v7577 = vrcp.pop %v5619
  %v7578 = vrcp.pop %v5621
  %v7579 = vrcp.pop %v5623
  %v7580 = vrcp.pop %v5625
  %v7581 = vrcp.pop %v5627
  %v7582 = vrcp.pop %v5629
  %v7583 = vrcp.pop %v5631
  %v7584 = vrcp.pop %v5633
  %v7585 = vrcp.pop %v5635
  %v7586 = vrcp.pop %v5637
  %v7587 = vrcp.pop %v5639
  %v7588 = vrcp.pop %v5641
  %v7589 = vrcp.pop %v5643
  %v7590 = vrcp.pop %v5645
  %v7591 = vrcp.pop %v5647
  %v7592 = vrcp.pop %v5649
  %v7593 = vrcp.pop %v5651
  %v7594 = vrcp.pop %v5653
  %v7595 = vrcp.pop %v5655
  %v7596 = vrcp.pop %v5657
  %v7597 = vrcp.pop %v5659
  %v7598 = vrcp.pop %v5661
  %v7599 = vrcp.pop %v5663
  %v7600 = vrcp.pop %v5665
  %v7601 = vrcp.pop %v5667
  %v7602 = vrcp.pop %v5669
  %v7603 = vrcp.pop %v5671
  %v7604 = vrcp.pop %v5673
  %v7605 = vrcp.pop %v5675
  %v7606 = vrcp.pop %v5677
  %v7607 = vrcp.pop %v5679
  %v7608 = vrcp.pop %v5681
  %v7609 = vrcp.pop %v5683
  %v7610 = vrcp.pop %v5685
  %v7611 = vrcp.pop %v5687
  %v7612 = vrcp.pop %v5689
  %v7613 = vrcp.pop %v5691
  %v7614 = vrcp.pop %v5693
  %v7615 = vrcp.pop %v5695
  %v7616 = vrcp.pop %v5697
  %v7617 = vrcp.pop %v5699
  %v7618 = vrcp.pop %v5701
  %v7619 = vrcp.pop %v5703
  %v7620 = vrcp.pop %v5705
  %v7621 = vrcp.pop %v5707
  %v7622 = vrcp.pop %v5709
  %v7623 = vrcp.pop %v5711
  %v7624 = vrcp.pop %v5713
  %v7625 = vrcp.pop %v5715
  %v7626 = vrcp.pop %v5717
  %v7627 = vrcp.pop %v5719
  %v7628 = vrcp.pop %v5721
  %v7629 = vrcp.pop %v5723
  %v7630 = vrcp.pop %v5725
  %v7631 = vrcp.pop %v5727
  %v7632 = vrcp.pop %v5729
  %v7633 = vrcp.pop %v5731
  %v7634 = vrcp.pop %v5733
  %v7635 = vrcp.pop %v5735
  %v7636 = vrcp.pop %v5737
  %v7637 = vrcp.pop %v5739
  %v7638 = vrcp.pop %v5741
  %v7639 = vrcp.pop %v5743
  %v7640 = vrcp.pop %v5745
  %v7641 = vrcp.pop %v5747
  %v7642 = vrcp.pop %v5749
  %v7643 = vrcp.pop %v5751
  %v7644 = vrcp.pop %v5753
  %v7645 = vrcp.pop %v5755
  %v7646 = vrcp.pop %v5757
  %v7647 = vrcp.pop %v5759
  %v7648 = vrcp.pop %v5761
  %v7649 = vrcp.pop %v5763
  %v7650 = vrcp.pop %v5765
  %v7651 = vrcp.pop %v5767
  %v7652 = vrcp.pop %v5769
  %v7653 = vrcp.pop %v5771
  %v7654 = vrcp.pop %v5773
  %v7655 = vrcp.pop %v5775
  %v7656 = vrcp.pop %v5777
  %v7657 = vrcp.pop %v5779
  %v7658 = vrcp.pop %v5781
  %v7659 = vrcp.pop %v5783
  %v7660 = vrcp.pop %v5785
  %v7661 = vrcp.pop %v5787
  %v7662 = vrcp.pop %v5789
  %v7663 = vrcp.pop %v5791
  %v7664 = vrcp.pop %v5793
  %v7665 = vrcp.pop %v5795
  %v7666 = vrcp.pop %v5797
  %v7667 = vrcp.pop %v5799
  %v7668 = vrcp.pop %v5801
  %v7669 = vrcp.pop %v5803
  %v7670 = vrcp.pop %v5805
  %v7671 = vrcp.pop %v5807
  %v7672 = vrcp.pop %v5809
  %v7673 = vrcp.pop %v5811
  %v7674 = vrcp.pop %v5813
  %v7675 = vrcp.pop %v5815
  %v7676 = vrcp.pop %v5817
  %v7677 = vrcp.pop %v5819
  %v7678 = vrcp.pop %v5821
  %v7679 = vrcp.pop %v5823
  %v7680 = vrcp.pop %v5825
  %v7681 = vrcp.pop %v5827
  %v7682 = vrcp.pop %v5829
  %v7683 = vrcp.pop %v5831
  %v7684 = vrcp.pop %v5833
  %v7685 = vrcp.pop %v5835
  %v7686 = vrcp.pop %v5837
  %v7687 = vrcp.pop %v5839
  %v7688 = vrcp.pop %v5841
  %v7689 = vrcp.pop %v5843
  %v7690 = vrcp.pop %v5845
  %v7691 = vrcp.pop %v5847
  %v7692 = vrcp.pop %v5849
  %v7693 = vrcp.pop %v5851
  %v7694 = vrcp.pop %v5853
  %v7695 = vrcp.pop %v5855
  %v7696 = vrcp.pop %v5857
  %v7697 = vrcp.pop %v5859
  %v7698 = vrcp.pop %v5861
  %v7699 = vrcp.pop %v5863
  %v7700 = vrcp.pop %v5865
  %v7701 = vrcp.pop %v5867
  %v7702 = vrcp.pop %v5869
  %v7703 = vrcp.pop %v5871
  %v7704 = vrcp.pop %v5873
  %v7705 = vrcp.pop %v5875
  %v7706 = vrcp.pop %v5877
  %v7707 = vrcp.pop %v5879
  %v7708 = vrcp.pop %v5881
  %v7709 = vrcp.pop %v5883
  %v7710 = vrcp.pop %v5885
  %v7711 = vrcp.pop %v5887
  %v7712 = vrcp.pop %v5889
  %v7713 = vrcp.pop %v5891
  %v7714 = vrcp.pop %v5893
  %v7715 = vrcp.pop %v5895
  %v7716 = vrcp.pop %v5897
  %v7717 = vrcp.pop %v5899
  %v7718 = vrcp.pop %v5901
  %v7719 = vrcp.pop %v5903
  %v7720 = vrcp.pop %v5905
  %v7721 = vrcp.pop %v5907
  %v7722 = vrcp.pop %v5909
  %v7723 = vrcp.pop %v5911
  %v7724 = vrcp.pop %v5913
  %v7725 = vrcp.pop %v5915
  %v7726 = vrcp.pop %v5917
  %v7727 = vrcp.pop %v5919
  %v7728 = vmul.f32 %v5955, %v7472
  %v7729 = vmul.f32 %v5958, %v7473
  %v7730 = vmul.f32 %v5963, %v7474
  %v7731 = vmul.f32 %v5966, %v7475
  %v7732 = vmul.f32 %v5971, %v7476
  %v7733 = vmul.f32 %v5974, %v7477
  %v7734 = vmul.f32 %v5979, %v7478
  %v7735 = vmul.f32 %v5982, %v7479
  %v7736 = vmul.f32 %v5987, %v7480
  %v7737 = vmul.f32 %v5990, %v7481
  %v7738 = vmul.f32 %v5995, %v7482
  %v7739 = vmul.f32 %v5998, %v7483
  %v7740 = vmul.f32 %v6003, %v7484
  %v7741 = vmul.f32 %v6006, %v7485
  %v7742 = vmul.f32 %v6011, %v7486
  %v7743 = vmul.f32 %v6014, %v7487
  %v7744 = vmul.f32 %v6052, %v7488
  %v7745 = vmul.f32 %v6055, %v7489
  %v7746 = vmul.f32 %v6060, %v7490
  %v7747 = vmul.f32 %v6063, %v7491
  %v7748 = vmul.f32 %v6068, %v7492
  %v7749 = vmul.f32 %v6071, %v7493
  %v7750 = vmul.f32 %v6076, %v7494
  %v7751 = vmul.f32 %v6079, %v7495
  %v7752 = vmul.f32 %v6084, %v7496
  %v7753 = vmul.f32 %v6087, %v7497
  %v7754 = vmul.f32 %v6092, %v7498
  %v7755 = vmul.f32 %v6095, %v7499
  %v7756 = vmul.f32 %v6100, %v7500
  %v7757 = vmul.f32 %v6103, %v7501
  %v7758 = vmul.f32 %v6108, %v7502
  %v7759 = vmul.f32 %v6111, %v7503
  %v7760 = vmul.f32 %v6149, %v7504
  %v7761 = vmul.f32 %v6152, %v7505
  %v7762 = vmul.f32 %v6157, %v7506
  %v7763 = vmul.f32 %v6160, %v7507
  %v7764 = vmul.f32 %v6165, %v7508
  %v7765 = vmul.f32 %v6168, %v7509
  %v7766 = vmul.f32 %v6173, %v7510
  %v7767 = vmul.f32 %v6176, %v7511
  %v7768 = vmul.f32 %v6181, %v7512
  %v7769 = vmul.f32 %v6184, %v7513
  %v7770 = vmul.f32 %v6189, %v7514
  %v7771 = vmul.f32 %v6192, %v7515
  %v7772 = vmul.f32 %v6197, %v7516
  %v7773 = vmul.f32 %v6200, %v7517
  %v7774 = vmul.f32 %v6205, %v7518
  %v7775 = vmul.f32 %v6208, %v7519
  %v7776 = vmul.f32 %v6246, %v7520
  %v7777 = vmul.f32 %v6249, %v7521
  %v7778 = vmul.f32 %v6254, %v7522
  %v7779 = vmul.f32 %v6257, %v7523
  %v7780 = vmul.f32 %v6262, %v7524
  %v7781 = vmul.f32 %v6265, %v7525
  %v7782 = vmul.f32 %v6270, %v7526
  %v7783 = vmul.f32 %v6273, %v7527
  %v7784 = vmul.f32 %v6278, %v7528
  %v7785 = vmul.f32 %v6281, %v7529
  %v7786 = vmul.f32 %v6286, %v7530
  %v7787 = vmul.f32 %v6289, %v7531
  %v7788 = vmul.f32 %v6294, %v7532
  %v7789 = vmul.f32 %v6297, %v7533
  %v7790 = vmul.f32 %v6302, %v7534
  %v7791 = vmul.f32 %v6305, %v7535
  %v7792 = vmul.f32 %v6343, %v7536
  %v7793 = vmul.f32 %v6346, %v7537
  %v7794 = vmul.f32 %v6351, %v7538
  %v7795 = vmul.f32 %v6354, %v7539
  %v7796 = vmul.f32 %v6359, %v7540
  %v7797 = vmul.f32 %v6362, %v7541
  %v7798 = vmul.f32 %v6367, %v7542
  %v7799 = vmul.f32 %v6370, %v7543
  %v7800 = vmul.f32 %v6375, %v7544
  %v7801 = vmul.f32 %v6378, %v7545
  %v7802 = vmul.f32 %v6383, %v7546
  %v7803 = vmul.f32 %v6386, %v7547
  %v7804 = vmul.f32 %v6391, %v7548
  %v7805 = vmul.f32 %v6394, %v7549
  %v7806 = vmul.f32 %v6399, %v7550
  %v7807 = vmul.f32 %v6402, %v7551
  %v7808 = vmul.f32 %v6440, %v7552
  %v7809 = vmul.f32 %v6443, %v7553
  %v7810 = vmul.f32 %v6448, %v7554
  %v7811 = vmul.f32 %v6451, %v7555
  %v7812 = vmul.f32 %v6456, %v7556
  %v7813 = vmul.f32 %v6459, %v7557
  %v7814 = vmul.f32 %v6464, %v7558
  %v7815 = vmul.f32 %v6467, %v7559
  %v7816 = vmul.f32 %v6472, %v7560
  %v7817 = vmul.f32 %v6475, %v7561
  %v7818 = vmul.f32 %v6480, %v7562
  %v7819 = vmul.f32 %v6483, %v7563
  %v7820 = vmul.f32 %v6488, %v7564
  %v7821 = vmul.f32 %v6491, %v7565
  %v7822 = vmul.f32 %v6496, %v7566
  %v7823 = vmul.f32 %v6499, %v7567
  %v7824 = vmul.f32 %v6537, %v7568
  %v7825 = vmul.f32 %v6540, %v7569
  %v7826 = vmul.f32 %v6545, %v7570
  %v7827 = vmul.f32 %v6548, %v7571
  %v7828 = vmul.f32 %v6553, %v7572
  %v7829 = vmul.f32 %v6556, %v7573
  %v7830 = vmul.f32 %v6561, %v7574
  %v7831 = vmul.f32 %v6564, %v7575
  %v7832 = vmul.f32 %v6569, %v7576
  %v7833 = vmul.f32 %v6572, %v7577
  %v7834 = vmul.f32 %v6577, %v7578
  %v7835 = vmul.f32 %v6580, %v7579
  %v7836 = vmul.f32 %v6585, %v7580
  %v7837 = vmul.f32 %v6588, %v7581
  %v7838 = vmul.f32 %v6593, %v7582
  %v7839 = vmul.f32 %v6596, %v7583
  %v7840 = vmul.f32 %v6634, %v7584
  %v7841 = vmul.f32 %v6637, %v7585
  %v7842 = vmul.f32 %v6642, %v7586
  %v7843 = vmul.f32 %v6645, %v7587
  %v7844 = vmul.f32 %v6650, %v7588
  %v7845 = vmul.f32 %v6653, %v7589
  %v7846 = vmul.f32 %v6658, %v7590
  %v7847 = vmul.f32 %v6661, %v7591
  %v7848 = vmul.f32 %v6666, %v7592
  %v7849 = vmul.f32 %v6669, %v7593
  %v7850 = vmul.f32 %v6674, %v7594
  %v7851 = vmul.f32 %v6677, %v7595
  %v7852 = vmul.f32 %v6682, %v7596
  %v7853 = vmul.f32 %v6685, %v7597
  %v7854 = vmul.f32 %v6690, %v7598
  %v7855 = vmul.f32 %v6693, %v7599
  %v7856 = vmul.f32 %v6731, %v7600
  %v7857 = vmul.f32 %v6734, %v7601
  %v7858 = vmul.f32 %v6739, %v7602
  %v7859 = vmul.f32 %v6742, %v7603
  %v7860 = vmul.f32 %v6747, %v7604
  %v7861 = vmul.f32 %v6750, %v7605
  %v7862 = vmul.f32 %v6755, %v7606
  %v7863 = vmul.f32 %v6758, %v7607
  %v7864 = vmul.f32 %v6763, %v7608
  %v7865 = vmul.f32 %v6766, %v7609
  %v7866 = vmul.f32 %v6771, %v7610
  %v7867 = vmul.f32 %v6774, %v7611
  %v7868 = vmul.f32 %v6779, %v7612
  %v7869 = vmul.f32 %v6782, %v7613
  %v7870 = vmul.f32 %v6787, %v7614
  %v7871 = vmul.f32 %v6790, %v7615
  %v7872 = vmul.f32 %v6828, %v7616
  %v7873 = vmul.f32 %v6831, %v7617
  %v7874 = vmul.f32 %v6836, %v7618
  %v7875 = vmul.f32 %v6839, %v7619
  %v7876 = vmul.f32 %v6844, %v7620
  %v7877 = vmul.f32 %v6847, %v7621
  %v7878 = vmul.f32 %v6852, %v7622
  %v7879 = vmul.f32 %v6855, %v7623
  %v7880 = vmul.f32 %v6860, %v7624
  %v7881 = vmul.f32 %v6863, %v7625
  %v7882 = vmul.f32 %v6868, %v7626
  %v7883 = vmul.f32 %v6871, %v7627
  %v7884 = vmul.f32 %v6876, %v7628
  %v7885 = vmul.f32 %v6879, %v7629
  %v7886 = vmul.f32 %v6884, %v7630
  %v7887 = vmul.f32 %v6887, %v7631
  %v7888 = vmul.f32 %v6925, %v7632
  %v7889 = vmul.f32 %v6928, %v7633
  %v7890 = vmul.f32 %v6933, %v7634
  %v7891 = vmul.f32 %v6936, %v7635
  %v7892 = vmul.f32 %v6941, %v7636
  %v7893 = vmul.f32 %v6944, %v7637
  %v7894 = vmul.f32 %v6949, %v7638
  %v7895 = vmul.f32 %v6952, %v7639
  %v7896 = vmul.f32 %v6957, %v7640
  %v7897 = vmul.f32 %v6960, %v7641
  %v7898 = vmul.f32 %v6965, %v7642
  %v7899 = vmul.f32 %v6968, %v7643
  %v7900 = vmul.f32 %v6973, %v7644
  %v7901 = vmul.f32 %v6976, %v7645
  %v7902 = vmul.f32 %v6981, %v7646
  %v7903 = vmul.f32 %v6984, %v7647
  %v7904 = vmul.f32 %v7022, %v7648
  %v7905 = vmul.f32 %v7025, %v7649
  %v7906 = vmul.f32 %v7030, %v7650
  %v7907 = vmul.f32 %v7033, %v7651
  %v7908 = vmul.f32 %v7038, %v7652
  %v7909 = vmul.f32 %v7041, %v7653
  %v7910 = vmul.f32 %v7046, %v7654
  %v7911 = vmul.f32 %v7049, %v7655
  %v7912 = vmul.f32 %v7054, %v7656
  %v7913 = vmul.f32 %v7057, %v7657
  %v7914 = vmul.f32 %v7062, %v7658
  %v7915 = vmul.f32 %v7065, %v7659
  %v7916 = vmul.f32 %v7070, %v7660
  %v7917 = vmul.f32 %v7073, %v7661
  %v7918 = vmul.f32 %v7078, %v7662
  %v7919 = vmul.f32 %v7081, %v7663
  %v7920 = vmul.f32 %v7119, %v7664
  %v7921 = vmul.f32 %v7122, %v7665
  %v7922 = vmul.f32 %v7127, %v7666
  %v7923 = vmul.f32 %v7130, %v7667
  %v7924 = vmul.f32 %v7135, %v7668
  %v7925 = vmul.f32 %v7138, %v7669
  %v7926 = vmul.f32 %v7143, %v7670
  %v7927 = vmul.f32 %v7146, %v7671
  %v7928 = vmul.f32 %v7151, %v7672
  %v7929 = vmul.f32 %v7154, %v7673
  %v7930 = vmul.f32 %v7159, %v7674
  %v7931 = vmul.f32 %v7162, %v7675
  %v7932 = vmul.f32 %v7167, %v7676
  %v7933 = vmul.f32 %v7170, %v7677
  %v7934 = vmul.f32 %v7175, %v7678
  %v7935 = vmul.f32 %v7178, %v7679
  %v7936 = vmul.f32 %v7216, %v7680
  %v7937 = vmul.f32 %v7219, %v7681
  %v7938 = vmul.f32 %v7224, %v7682
  %v7939 = vmul.f32 %v7227, %v7683
  %v7940 = vmul.f32 %v7232, %v7684
  %v7941 = vmul.f32 %v7235, %v7685
  %v7942 = vmul.f32 %v7240, %v7686
  %v7943 = vmul.f32 %v7243, %v7687
  %v7944 = vmul.f32 %v7248, %v7688
  %v7945 = vmul.f32 %v7251, %v7689
  %v7946 = vmul.f32 %v7256, %v7690
  %v7947 = vmul.f32 %v7259, %v7691
  %v7948 = vmul.f32 %v7264, %v7692
  %v7949 = vmul.f32 %v7267, %v7693
  %v7950 = vmul.f32 %v7272, %v7694
  %v7951 = vmul.f32 %v7275, %v7695
  %v7952 = vmul.f32 %v7313, %v7696
  %v7953 = vmul.f32 %v7316, %v7697
  %v7954 = vmul.f32 %v7321, %v7698
  %v7955 = vmul.f32 %v7324, %v7699
  %v7956 = vmul.f32 %v7329, %v7700
  %v7957 = vmul.f32 %v7332, %v7701
  %v7958 = vmul.f32 %v7337, %v7702
  %v7959 = vmul.f32 %v7340, %v7703
  %v7960 = vmul.f32 %v7345, %v7704
  %v7961 = vmul.f32 %v7348, %v7705
  %v7962 = vmul.f32 %v7353, %v7706
  %v7963 = vmul.f32 %v7356, %v7707
  %v7964 = vmul.f32 %v7361, %v7708
  %v7965 = vmul.f32 %v7364, %v7709
  %v7966 = vmul.f32 %v7369, %v7710
  %v7967 = vmul.f32 %v7372, %v7711
  %v7968 = vmul.f32 %v7410, %v7712
  %v7969 = vmul.f32 %v7413, %v7713
  %v7970 = vmul.f32 %v7418, %v7714
  %v7971 = vmul.f32 %v7421, %v7715
  %v7972 = vmul.f32 %v7426, %v7716
  %v7973 = vmul.f32 %v7429, %v7717
  %v7974 = vmul.f32 %v7434, %v7718
  %v7975 = vmul.f32 %v7437, %v7719
  %v7976 = vmul.f32 %v7442, %v7720
  %v7977 = vmul.f32 %v7445, %v7721
  %v7978 = vmul.f32 %v7450, %v7722
  %v7979 = vmul.f32 %v7453, %v7723
  %v7980 = vmul.f32 %v7458, %v7724
  %v7981 = vmul.f32 %v7461, %v7725
  %v7982 = vmul.f32 %v7466, %v7726
  %v7983 = vmul.f32 %v7469, %v7727
  %7984 = vst.msk [vmem:[%s3] sm:$0xff] %vm1423, %v7728
  %7985 = vst.msk [vmem:[%s3 + $0x8] sm:$0xff] %vm1423, %v7729
  %7986 = vst.msk [vmem:[%s3 + $0x10] sm:$0xff] %vm1423, %v7730
  %7987 = vst.msk [vmem:[%s3 + $0x18] sm:$0xff] %vm1423, %v7731
  %7988 = vst.msk [vmem:[%s3 + $0x20] sm:$0xff] %vm1423, %v7732
  %7989 = vst.msk [vmem:[%s3 + $0x28] sm:$0xff] %vm1423, %v7733
  %7990 = vst.msk [vmem:[%s3 + $0x30] sm:$0xff] %vm1423, %v7734
  %7991 = vst.msk [vmem:[%s3 + $0x38] sm:$0xff] %vm1423, %v7735
  %7992 = vst.msk [vmem:[%s3 + $0x40] sm:$0xff] %vm1423, %v7736
  %7993 = vst.msk [vmem:[%s3 + $0x48] sm:$0xff] %vm1423, %v7737
  %7994 = vst.msk [vmem:[%s3 + $0x50] sm:$0xff] %vm1423, %v7738
  %7995 = vst.msk [vmem:[%s3 + $0x58] sm:$0xff] %vm1423, %v7739
  %7996 = vst.msk [vmem:[%s3 + $0x60] sm:$0xff] %vm1423, %v7740
  %7997 = vst.msk [vmem:[%s3 + $0x68] sm:$0xff] %vm1423, %v7741
  %7998 = vst.msk [vmem:[%s3 + $0x70] sm:$0xff] %vm1423, %v7742
  %7999 = vst.msk [vmem:[%s3 + $0x78] sm:$0xff] %vm1423, %v7743
  %8000 = vst.msk [vmem:[%s3 + $0x80] sm:$0xff] %vm1423, %v7744
  %8001 = vst.msk [vmem:[%s3 + $0x88] sm:$0xff] %vm1423, %v7745
  %8002 = vst.msk [vmem:[%s3 + $0x90] sm:$0xff] %vm1423, %v7746
  %8003 = vst.msk [vmem:[%s3 + $0x98] sm:$0xff] %vm1423, %v7747
  %8004 = vst.msk [vmem:[%s3 + $0xa0] sm:$0xff] %vm1423, %v7748
  %8005 = vst.msk [vmem:[%s3 + $0xa8] sm:$0xff] %vm1423, %v7749
  %8006 = vst.msk [vmem:[%s3 + $0xb0] sm:$0xff] %vm1423, %v7750
  %8007 = vst.msk [vmem:[%s3 + $0xb8] sm:$0xff] %vm1423, %v7751
  %8008 = vst.msk [vmem:[%s3 + $0xc0] sm:$0xff] %vm1423, %v7752
  %8009 = vst.msk [vmem:[%s3 + $0xc8] sm:$0xff] %vm1423, %v7753
  %8010 = vst.msk [vmem:[%s3 + $0xd0] sm:$0xff] %vm1423, %v7754
  %8011 = vst.msk [vmem:[%s3 + $0xd8] sm:$0xff] %vm1423, %v7755
  %8012 = vst.msk [vmem:[%s3 + $0xe0] sm:$0xff] %vm1423, %v7756
  %8013 = vst.msk [vmem:[%s3 + $0xe8] sm:$0xff] %vm1423, %v7757
  %8014 = vst.msk [vmem:[%s3 + $0xf0] sm:$0xff] %vm1423, %v7758
  %8015 = vst.msk [vmem:[%s3 + $0xf8] sm:$0xff] %vm1423, %v7759
  %8016 = vst.msk [vmem:[%s3 + $0x100] sm:$0xff] %vm1423, %v7760
  %8017 = vst.msk [vmem:[%s3 + $0x108] sm:$0xff] %vm1423, %v7761
  %8018 = vst.msk [vmem:[%s3 + $0x110] sm:$0xff] %vm1423, %v7762
  %8019 = vst.msk [vmem:[%s3 + $0x118] sm:$0xff] %vm1423, %v7763
  %8020 = vst.msk [vmem:[%s3 + $0x120] sm:$0xff] %vm1423, %v7764
  %8021 = vst.msk [vmem:[%s3 + $0x128] sm:$0xff] %vm1423, %v7765
  %8022 = vst.msk [vmem:[%s3 + $0x130] sm:$0xff] %vm1423, %v7766
  %8023 = vst.msk [vmem:[%s3 + $0x138] sm:$0xff] %vm1423, %v7767
  %8024 = vst.msk [vmem:[%s3 + $0x140] sm:$0xff] %vm1423, %v7768
  %8025 = vst.msk [vmem:[%s3 + $0x148] sm:$0xff] %vm1423, %v7769
  %8026 = vst.msk [vmem:[%s3 + $0x150] sm:$0xff] %vm1423, %v7770
  %8027 = vst.msk [vmem:[%s3 + $0x158] sm:$0xff] %vm1423, %v7771
  %8028 = vst.msk [vmem:[%s3 + $0x160] sm:$0xff] %vm1423, %v7772
  %8029 = vst.msk [vmem:[%s3 + $0x168] sm:$0xff] %vm1423, %v7773
  %8030 = vst.msk [vmem:[%s3 + $0x170] sm:$0xff] %vm1423, %v7774
  %8031 = vst.msk [vmem:[%s3 + $0x178] sm:$0xff] %vm1423, %v7775
  %8032 = vst.msk [vmem:[%s3 + $0x180] sm:$0xff] %vm1423, %v7776
  %8033 = vst.msk [vmem:[%s3 + $0x188] sm:$0xff] %vm1423, %v7777
  %8034 = vst.msk [vmem:[%s3 + $0x190] sm:$0xff] %vm1423, %v7778
  %8035 = vst.msk [vmem:[%s3 + $0x198] sm:$0xff] %vm1423, %v7779
  %8036 = vst.msk [vmem:[%s3 + $0x1a0] sm:$0xff] %vm1423, %v7780
  %8037 = vst.msk [vmem:[%s3 + $0x1a8] sm:$0xff] %vm1423, %v7781
  %8038 = vst.msk [vmem:[%s3 + $0x1b0] sm:$0xff] %vm1423, %v7782
  %8039 = vst.msk [vmem:[%s3 + $0x1b8] sm:$0xff] %vm1423, %v7783
  %8040 = vst.msk [vmem:[%s3 + $0x1c0] sm:$0xff] %vm1423, %v7784
  %8041 = vst.msk [vmem:[%s3 + $0x1c8] sm:$0xff] %vm1423, %v7785
  %8042 = vst.msk [vmem:[%s3 + $0x1d0] sm:$0xff] %vm1423, %v7786
  %8043 = vst.msk [vmem:[%s3 + $0x1d8] sm:$0xff] %vm1423, %v7787
  %8044 = vst.msk [vmem:[%s3 + $0x1e0] sm:$0xff] %vm1423, %v7788
  %8045 = vst.msk [vmem:[%s3 + $0x1e8] sm:$0xff] %vm1423, %v7789
  %8046 = vst.msk [vmem:[%s3 + $0x1f0] sm:$0xff] %vm1423, %v7790
  %8047 = vst.msk [vmem:[%s3 + $0x1f8] sm:$0xff] %vm1423, %v7791
  %8048 = vst.msk [vmem:[%s3 + $0x200] sm:$0xff] %vm1423, %v7792
  %8049 = vst.msk [vmem:[%s3 + $0x208] sm:$0xff] %vm1423, %v7793
  %8050 = vst.msk [vmem:[%s3 + $0x210] sm:$0xff] %vm1423, %v7794
  %8051 = vst.msk [vmem:[%s3 + $0x218] sm:$0xff] %vm1423, %v7795
  %8052 = vst.msk [vmem:[%s3 + $0x220] sm:$0xff] %vm1423, %v7796
  %8053 = vst.msk [vmem:[%s3 + $0x228] sm:$0xff] %vm1423, %v7797
  %8054 = vst.msk [vmem:[%s3 + $0x230] sm:$0xff] %vm1423, %v7798
  %8055 = vst.msk [vmem:[%s3 + $0x238] sm:$0xff] %vm1423, %v7799
  %8056 = vst.msk [vmem:[%s3 + $0x240] sm:$0xff] %vm1423, %v7800
  %8057 = vst.msk [vmem:[%s3 + $0x248] sm:$0xff] %vm1423, %v7801
  %8058 = vst.msk [vmem:[%s3 + $0x250] sm:$0xff] %vm1423, %v7802
  %8059 = vst.msk [vmem:[%s3 + $0x258] sm:$0xff] %vm1423, %v7803
  %8060 = vst.msk [vmem:[%s3 + $0x260] sm:$0xff] %vm1423, %v7804
  %8061 = vst.msk [vmem:[%s3 + $0x268] sm:$0xff] %vm1423, %v7805
  %8062 = vst.msk [vmem:[%s3 + $0x270] sm:$0xff] %vm1423, %v7806
  %8063 = vst.msk [vmem:[%s3 + $0x278] sm:$0xff] %vm1423, %v7807
  %8064 = vst.msk [vmem:[%s3 + $0x280] sm:$0xff] %vm1423, %v7808
  %8065 = vst.msk [vmem:[%s3 + $0x288] sm:$0xff] %vm1423, %v7809
  %8066 = vst.msk [vmem:[%s3 + $0x290] sm:$0xff] %vm1423, %v7810
  %8067 = vst.msk [vmem:[%s3 + $0x298] sm:$0xff] %vm1423, %v7811
  %8068 = vst.msk [vmem:[%s3 + $0x2a0] sm:$0xff] %vm1423, %v7812
  %8069 = vst.msk [vmem:[%s3 + $0x2a8] sm:$0xff] %vm1423, %v7813
  %8070 = vst.msk [vmem:[%s3 + $0x2b0] sm:$0xff] %vm1423, %v7814
  %8071 = vst.msk [vmem:[%s3 + $0x2b8] sm:$0xff] %vm1423, %v7815
  %8072 = vst.msk [vmem:[%s3 + $0x2c0] sm:$0xff] %vm1423, %v7816
  %8073 = vst.msk [vmem:[%s3 + $0x2c8] sm:$0xff] %vm1423, %v7817
  %8074 = vst.msk [vmem:[%s3 + $0x2d0] sm:$0xff] %vm1423, %v7818
  %8075 = vst.msk [vmem:[%s3 + $0x2d8] sm:$0xff] %vm1423, %v7819
  %8076 = vst.msk [vmem:[%s3 + $0x2e0] sm:$0xff] %vm1423, %v7820
  %8077 = vst.msk [vmem:[%s3 + $0x2e8] sm:$0xff] %vm1423, %v7821
  %8078 = vst.msk [vmem:[%s3 + $0x2f0] sm:$0xff] %vm1423, %v7822
  %8079 = vst.msk [vmem:[%s3 + $0x2f8] sm:$0xff] %vm1423, %v7823
  %8080 = vst.msk [vmem:[%s3 + $0x300] sm:$0xff] %vm1423, %v7824
  %8081 = vst.msk [vmem:[%s3 + $0x308] sm:$0xff] %vm1423, %v7825
  %8082 = vst.msk [vmem:[%s3 + $0x310] sm:$0xff] %vm1423, %v7826
  %8083 = vst.msk [vmem:[%s3 + $0x318] sm:$0xff] %vm1423, %v7827
  %8084 = vst.msk [vmem:[%s3 + $0x320] sm:$0xff] %vm1423, %v7828
  %8085 = vst.msk [vmem:[%s3 + $0x328] sm:$0xff] %vm1423, %v7829
  %8086 = vst.msk [vmem:[%s3 + $0x330] sm:$0xff] %vm1423, %v7830
  %8087 = vst.msk [vmem:[%s3 + $0x338] sm:$0xff] %vm1423, %v7831
  %8088 = vst.msk [vmem:[%s3 + $0x340] sm:$0xff] %vm1423, %v7832
  %8089 = vst.msk [vmem:[%s3 + $0x348] sm:$0xff] %vm1423, %v7833
  %8090 = vst.msk [vmem:[%s3 + $0x350] sm:$0xff] %vm1423, %v7834
  %8091 = vst.msk [vmem:[%s3 + $0x358] sm:$0xff] %vm1423, %v7835
  %8092 = vst.msk [vmem:[%s3 + $0x360] sm:$0xff] %vm1423, %v7836
  %8093 = vst.msk [vmem:[%s3 + $0x368] sm:$0xff] %vm1423, %v7837
  %8094 = vst.msk [vmem:[%s3 + $0x370] sm:$0xff] %vm1423, %v7838
  %8095 = vst.msk [vmem:[%s3 + $0x378] sm:$0xff] %vm1423, %v7839
  %8096 = vst.msk [vmem:[%s3 + $0x380] sm:$0xff] %vm1423, %v7840
  %8097 = vst.msk [vmem:[%s3 + $0x388] sm:$0xff] %vm1423, %v7841
  %8098 = vst.msk [vmem:[%s3 + $0x390] sm:$0xff] %vm1423, %v7842
  %8099 = vst.msk [vmem:[%s3 + $0x398] sm:$0xff] %vm1423, %v7843
  %8100 = vst.msk [vmem:[%s3 + $0x3a0] sm:$0xff] %vm1423, %v7844
  %8101 = vst.msk [vmem:[%s3 + $0x3a8] sm:$0xff] %vm1423, %v7845
  %8102 = vst.msk [vmem:[%s3 + $0x3b0] sm:$0xff] %vm1423, %v7846
  %8103 = vst.msk [vmem:[%s3 + $0x3b8] sm:$0xff] %vm1423, %v7847
  %8104 = vst.msk [vmem:[%s3 + $0x3c0] sm:$0xff] %vm1423, %v7848
  %8105 = vst.msk [vmem:[%s3 + $0x3c8] sm:$0xff] %vm1423, %v7849
  %8106 = vst.msk [vmem:[%s3 + $0x3d0] sm:$0xff] %vm1423, %v7850
  %8107 = vst.msk [vmem:[%s3 + $0x3d8] sm:$0xff] %vm1423, %v7851
  %8108 = vst.msk [vmem:[%s3 + $0x3e0] sm:$0xff] %vm1423, %v7852
  %8109 = vst.msk [vmem:[%s3 + $0x3e8] sm:$0xff] %vm1423, %v7853
  %8110 = vst.msk [vmem:[%s3 + $0x3f0] sm:$0xff] %vm1423, %v7854
  %8111 = vst.msk [vmem:[%s3 + $0x3f8] sm:$0xff] %vm1423, %v7855
  %8112 = vst.msk [vmem:[%s3 + $0x400] sm:$0xff] %vm1423, %v7856
  %8113 = vst.msk [vmem:[%s3 + $0x408] sm:$0xff] %vm1423, %v7857
  %8114 = vst.msk [vmem:[%s3 + $0x410] sm:$0xff] %vm1423, %v7858
  %8115 = vst.msk [vmem:[%s3 + $0x418] sm:$0xff] %vm1423, %v7859
  %8116 = vst.msk [vmem:[%s3 + $0x420] sm:$0xff] %vm1423, %v7860
  %8117 = vst.msk [vmem:[%s3 + $0x428] sm:$0xff] %vm1423, %v7861
  %8118 = vst.msk [vmem:[%s3 + $0x430] sm:$0xff] %vm1423, %v7862
  %8119 = vst.msk [vmem:[%s3 + $0x438] sm:$0xff] %vm1423, %v7863
  %8120 = vst.msk [vmem:[%s3 + $0x440] sm:$0xff] %vm1423, %v7864
  %8121 = vst.msk [vmem:[%s3 + $0x448] sm:$0xff] %vm1423, %v7865
  %8122 = vst.msk [vmem:[%s3 + $0x450] sm:$0xff] %vm1423, %v7866
  %8123 = vst.msk [vmem:[%s3 + $0x458] sm:$0xff] %vm1423, %v7867
  %8124 = vst.msk [vmem:[%s3 + $0x460] sm:$0xff] %vm1423, %v7868
  %8125 = vst.msk [vmem:[%s3 + $0x468] sm:$0xff] %vm1423, %v7869
  %8126 = vst.msk [vmem:[%s3 + $0x470] sm:$0xff] %vm1423, %v7870
  %8127 = vst.msk [vmem:[%s3 + $0x478] sm:$0xff] %vm1423, %v7871
  %8128 = vst.msk [vmem:[%s3 + $0x480] sm:$0xff] %vm1423, %v7872
  %8129 = vst.msk [vmem:[%s3 + $0x488] sm:$0xff] %vm1423, %v7873
  %8130 = vst.msk [vmem:[%s3 + $0x490] sm:$0xff] %vm1423, %v7874
  %8131 = vst.msk [vmem:[%s3 + $0x498] sm:$0xff] %vm1423, %v7875
  %8132 = vst.msk [vmem:[%s3 + $0x4a0] sm:$0xff] %vm1423, %v7876
  %8133 = vst.msk [vmem:[%s3 + $0x4a8] sm:$0xff] %vm1423, %v7877
  %8134 = vst.msk [vmem:[%s3 + $0x4b0] sm:$0xff] %vm1423, %v7878
  %8135 = vst.msk [vmem:[%s3 + $0x4b8] sm:$0xff] %vm1423, %v7879
  %8136 = vst.msk [vmem:[%s3 + $0x4c0] sm:$0xff] %vm1423, %v7880
  %8137 = vst.msk [vmem:[%s3 + $0x4c8] sm:$0xff] %vm1423, %v7881
  %8138 = vst.msk [vmem:[%s3 + $0x4d0] sm:$0xff] %vm1423, %v7882
  %8139 = vst.msk [vmem:[%s3 + $0x4d8] sm:$0xff] %vm1423, %v7883
  %8140 = vst.msk [vmem:[%s3 + $0x4e0] sm:$0xff] %vm1423, %v7884
  %8141 = vst.msk [vmem:[%s3 + $0x4e8] sm:$0xff] %vm1423, %v7885
  %8142 = vst.msk [vmem:[%s3 + $0x4f0] sm:$0xff] %vm1423, %v7886
  %8143 = vst.msk [vmem:[%s3 + $0x4f8] sm:$0xff] %vm1423, %v7887
  %8144 = vst.msk [vmem:[%s3 + $0x500] sm:$0xff] %vm1423, %v7888
  %8145 = vst.msk [vmem:[%s3 + $0x508] sm:$0xff] %vm1423, %v7889
  %8146 = vst.msk [vmem:[%s3 + $0x510] sm:$0xff] %vm1423, %v7890
  %8147 = vst.msk [vmem:[%s3 + $0x518] sm:$0xff] %vm1423, %v7891
  %8148 = vst.msk [vmem:[%s3 + $0x520] sm:$0xff] %vm1423, %v7892
  %8149 = vst.msk [vmem:[%s3 + $0x528] sm:$0xff] %vm1423, %v7893
  %8150 = vst.msk [vmem:[%s3 + $0x530] sm:$0xff] %vm1423, %v7894
  %8151 = vst.msk [vmem:[%s3 + $0x538] sm:$0xff] %vm1423, %v7895
  %8152 = vst.msk [vmem:[%s3 + $0x540] sm:$0xff] %vm1423, %v7896
  %8153 = vst.msk [vmem:[%s3 + $0x548] sm:$0xff] %vm1423, %v7897
  %8154 = vst.msk [vmem:[%s3 + $0x550] sm:$0xff] %vm1423, %v7898
  %8155 = vst.msk [vmem:[%s3 + $0x558] sm:$0xff] %vm1423, %v7899
  %8156 = vst.msk [vmem:[%s3 + $0x560] sm:$0xff] %vm1423, %v7900
  %8157 = vst.msk [vmem:[%s3 + $0x568] sm:$0xff] %vm1423, %v7901
  %8158 = vst.msk [vmem:[%s3 + $0x570] sm:$0xff] %vm1423, %v7902
  %8159 = vst.msk [vmem:[%s3 + $0x578] sm:$0xff] %vm1423, %v7903
  %8160 = vst.msk [vmem:[%s3 + $0x580] sm:$0xff] %vm1423, %v7904
  %8161 = vst.msk [vmem:[%s3 + $0x588] sm:$0xff] %vm1423, %v7905
  %8162 = vst.msk [vmem:[%s3 + $0x590] sm:$0xff] %vm1423, %v7906
  %8163 = vst.msk [vmem:[%s3 + $0x598] sm:$0xff] %vm1423, %v7907
  %8164 = vst.msk [vmem:[%s3 + $0x5a0] sm:$0xff] %vm1423, %v7908
  %8165 = vst.msk [vmem:[%s3 + $0x5a8] sm:$0xff] %vm1423, %v7909
  %8166 = vst.msk [vmem:[%s3 + $0x5b0] sm:$0xff] %vm1423, %v7910
  %8167 = vst.msk [vmem:[%s3 + $0x5b8] sm:$0xff] %vm1423, %v7911
  %8168 = vst.msk [vmem:[%s3 + $0x5c0] sm:$0xff] %vm1423, %v7912
  %8169 = vst.msk [vmem:[%s3 + $0x5c8] sm:$0xff] %vm1423, %v7913
  %8170 = vst.msk [vmem:[%s3 + $0x5d0] sm:$0xff] %vm1423, %v7914
  %8171 = vst.msk [vmem:[%s3 + $0x5d8] sm:$0xff] %vm1423, %v7915
  %8172 = vst.msk [vmem:[%s3 + $0x5e0] sm:$0xff] %vm1423, %v7916
  %8173 = vst.msk [vmem:[%s3 + $0x5e8] sm:$0xff] %vm1423, %v7917
  %8174 = vst.msk [vmem:[%s3 + $0x5f0] sm:$0xff] %vm1423, %v7918
  %8175 = vst.msk [vmem:[%s3 + $0x5f8] sm:$0xff] %vm1423, %v7919
  %8176 = vst.msk [vmem:[%s3 + $0x600] sm:$0xff] %vm1423, %v7920
  %8177 = vst.msk [vmem:[%s3 + $0x608] sm:$0xff] %vm1423, %v7921
  %8178 = vst.msk [vmem:[%s3 + $0x610] sm:$0xff] %vm1423, %v7922
  %8179 = vst.msk [vmem:[%s3 + $0x618] sm:$0xff] %vm1423, %v7923
  %8180 = vst.msk [vmem:[%s3 + $0x620] sm:$0xff] %vm1423, %v7924
  %8181 = vst.msk [vmem:[%s3 + $0x628] sm:$0xff] %vm1423, %v7925
  %8182 = vst.msk [vmem:[%s3 + $0x630] sm:$0xff] %vm1423, %v7926
  %8183 = vst.msk [vmem:[%s3 + $0x638] sm:$0xff] %vm1423, %v7927
  %8184 = vst.msk [vmem:[%s3 + $0x640] sm:$0xff] %vm1423, %v7928
  %8185 = vst.msk [vmem:[%s3 + $0x648] sm:$0xff] %vm1423, %v7929
  %8186 = vst.msk [vmem:[%s3 + $0x650] sm:$0xff] %vm1423, %v7930
  %8187 = vst.msk [vmem:[%s3 + $0x658] sm:$0xff] %vm1423, %v7931
  %8188 = vst.msk [vmem:[%s3 + $0x660] sm:$0xff] %vm1423, %v7932
  %8189 = vst.msk [vmem:[%s3 + $0x668] sm:$0xff] %vm1423, %v7933
  %8190 = vst.msk [vmem:[%s3 + $0x670] sm:$0xff] %vm1423, %v7934
  %8191 = vst.msk [vmem:[%s3 + $0x678] sm:$0xff] %vm1423, %v7935
  %8192 = vst.msk [vmem:[%s3 + $0x680] sm:$0xff] %vm1423, %v7936
  %8193 = vst.msk [vmem:[%s3 + $0x688] sm:$0xff] %vm1423, %v7937
  %8194 = vst.msk [vmem:[%s3 + $0x690] sm:$0xff] %vm1423, %v7938
  %8195 = vst.msk [vmem:[%s3 + $0x698] sm:$0xff] %vm1423, %v7939
  %8196 = vst.msk [vmem:[%s3 + $0x6a0] sm:$0xff] %vm1423, %v7940
  %8197 = vst.msk [vmem:[%s3 + $0x6a8] sm:$0xff] %vm1423, %v7941
  %8198 = vst.msk [vmem:[%s3 + $0x6b0] sm:$0xff] %vm1423, %v7942
  %8199 = vst.msk [vmem:[%s3 + $0x6b8] sm:$0xff] %vm1423, %v7943
  %8200 = vst.msk [vmem:[%s3 + $0x6c0] sm:$0xff] %vm1423, %v7944
  %8201 = vst.msk [vmem:[%s3 + $0x6c8] sm:$0xff] %vm1423, %v7945
  %8202 = vst.msk [vmem:[%s3 + $0x6d0] sm:$0xff] %vm1423, %v7946
  %8203 = vst.msk [vmem:[%s3 + $0x6d8] sm:$0xff] %vm1423, %v7947
  %8204 = vst.msk [vmem:[%s3 + $0x6e0] sm:$0xff] %vm1423, %v7948
  %8205 = vst.msk [vmem:[%s3 + $0x6e8] sm:$0xff] %vm1423, %v7949
  %8206 = vst.msk [vmem:[%s3 + $0x6f0] sm:$0xff] %vm1423, %v7950
  %8207 = vst.msk [vmem:[%s3 + $0x6f8] sm:$0xff] %vm1423, %v7951
  %8208 = vst.msk [vmem:[%s3 + $0x700] sm:$0xff] %vm1423, %v7952
  %8209 = vst.msk [vmem:[%s3 + $0x708] sm:$0xff] %vm1423, %v7953
  %8210 = vst.msk [vmem:[%s3 + $0x710] sm:$0xff] %vm1423, %v7954
  %8211 = vst.msk [vmem:[%s3 + $0x718] sm:$0xff] %vm1423, %v7955
  %8212 = vst.msk [vmem:[%s3 + $0x720] sm:$0xff] %vm1423, %v7956
  %8213 = vst.msk [vmem:[%s3 + $0x728] sm:$0xff] %vm1423, %v7957
  %8214 = vst.msk [vmem:[%s3 + $0x730] sm:$0xff] %vm1423, %v7958
  %8215 = vst.msk [vmem:[%s3 + $0x738] sm:$0xff] %vm1423, %v7959
  %8216 = vst.msk [vmem:[%s3 + $0x740] sm:$0xff] %vm1423, %v7960
  %8217 = vst.msk [vmem:[%s3 + $0x748] sm:$0xff] %vm1423, %v7961
  %8218 = vst.msk [vmem:[%s3 + $0x750] sm:$0xff] %vm1423, %v7962
  %8219 = vst.msk [vmem:[%s3 + $0x758] sm:$0xff] %vm1423, %v7963
  %8220 = vst.msk [vmem:[%s3 + $0x760] sm:$0xff] %vm1423, %v7964
  %8221 = vst.msk [vmem:[%s3 + $0x768] sm:$0xff] %vm1423, %v7965
  %8222 = vst.msk [vmem:[%s3 + $0x770] sm:$0xff] %vm1423, %v7966
  %8223 = vst.msk [vmem:[%s3 + $0x778] sm:$0xff] %vm1423, %v7967
  %8224 = vst.msk [vmem:[%s3 + $0x780] sm:$0xff] %vm1423, %v7968
  %8225 = vst.msk [vmem:[%s3 + $0x788] sm:$0xff] %vm1423, %v7969
  %8226 = vst.msk [vmem:[%s3 + $0x790] sm:$0xff] %vm1423, %v7970
  %8227 = vst.msk [vmem:[%s3 + $0x798] sm:$0xff] %vm1423, %v7971
  %8228 = vst.msk [vmem:[%s3 + $0x7a0] sm:$0xff] %vm1423, %v7972
  %8229 = vst.msk [vmem:[%s3 + $0x7a8] sm:$0xff] %vm1423, %v7973
  %8230 = vst.msk [vmem:[%s3 + $0x7b0] sm:$0xff] %vm1423, %v7974
  %8231 = vst.msk [vmem:[%s3 + $0x7b8] sm:$0xff] %vm1423, %v7975
  %8232 = vst.msk [vmem:[%s3 + $0x7c0] sm:$0xff] %vm1423, %v7976
  %8233 = vst.msk [vmem:[%s3 + $0x7c8] sm:$0xff] %vm1423, %v7977
  %8234 = vst.msk [vmem:[%s3 + $0x7d0] sm:$0xff] %vm1423, %v7978
  %8235 = vst.msk [vmem:[%s3 + $0x7d8] sm:$0xff] %vm1423, %v7979
  %8236 = vst.msk [vmem:[%s3 + $0x7e0] sm:$0xff] %vm1423, %v7980
  %8237 = vst.msk [vmem:[%s3 + $0x7e8] sm:$0xff] %vm1423, %v7981
  %8238 = vst.msk [vmem:[%s3 + $0x7f0] sm:$0xff] %vm1423, %v7982
  %8239 = vst.msk [vmem:[%s3 + $0x7f8] sm:$0xff] %vm1423, %v7983
  // Predicated region
  $region14: #{tpu_custom_call.1} parent=0 // pred_check
    _
  $region15: #{tpu_custom_call.1} parent=0 // pred_check_branch
    %8241 = sbr.rel (0) target = $region17
  $region16: #{tpu_custom_call.1} parent=0 // pred_region
    _
  $region17: #{tpu_custom_call.1} parent=0 // pred_fallthru
    _
  // Predicated region
  $region18: #{tpu_custom_call.1} parent=0 // pred_check
    _
  $region19: #{tpu_custom_call.1} parent=0 // pred_check_branch
    %8243 = sbr.rel (0) target = $region21
  $region20: #{tpu_custom_call.1} parent=0 // pred_region
    _
  $region21: #{tpu_custom_call.1} parent=0 // pred_fallthru
    _

</llo_original>
